<compile_context>
chip_gen: v7x
topology: tpu7x:2x2x1
jax: 0.10.0
libtpu: 0.0.40
codegen_flags: <defaults>
</compile_context>

<pallas_src>
import math
import jax
import jax.numpy as jnp
import numpy as np
from jax.experimental import pallas as pl
from jax.experimental.pallas import tpu as pltpu

MIN_STD = 0.01
NEG_INF = -1e30
LN_EPS = 1e-5  # PyTorch nn.LayerNorm default eps


def _layernorm(x, g, b):
    mu = jnp.mean(x, axis=-1, keepdims=True)
    var = jnp.mean((x - mu) ** 2, axis=-1, keepdims=True)
    return (x - mu) * jax.lax.rsqrt(var + LN_EPS) * g + b


def make_kernel(nhead, nlayers, Bc, T):
    def kernel(x_ref, emb_w_ref, emb_b_ref,
               qkv_w_ref, qkv_b_ref, ow_ref, ob_ref,
               ln1_g_ref, ln1_b_ref, w1_ref, b1_ref, w2_ref, b2_ref,
               ln2_g_ref, ln2_b_ref, fn_g_ref, fn_b_ref,
               head_w_ref, head_b_ref, out_ref):
        M = x_ref.shape[0]              # Bc * T (flattened on host)
        H = emb_w_ref.shape[1]
        dh = H // nhead
        bf16 = jnp.bfloat16
        f32 = jnp.float32

        # (T, T) causal mask, built once and hoisted out of the layer loop.
        row = jax.lax.broadcasted_iota(jnp.int32, (T, T), 0)
        col = jax.lax.broadcasted_iota(jnp.int32, (T, T), 1)
        mask = jnp.where(col <= row, 0.0, NEG_INF).astype(f32)

        # ---- enc_emb (bf16 MXU feed, f32 accumulate) ----
        h = jnp.dot(x_ref[...].astype(bf16), emb_w_ref[...],
                    preferred_element_type=f32) + emb_b_ref[...]        # (M, H) f32

        # ---- nlayers post-norm TransformerEncoderLayers (dropout=0, relu) ----
        for l in range(nlayers):
            # qkv projection; 1/sqrt(dh) is pre-folded into the Q columns on host.
            qkv = jnp.dot(h.astype(bf16), qkv_w_ref[l],
                          preferred_element_type=f32) + qkv_b_ref[l]    # (M, 3H) f32
            qkv3 = qkv.astype(bf16).reshape(Bc, T, 3 * H)

            # Head-batched attention: stack heads along a leading batch axis
            # (G = nhead * Bc) and run ONE batched dot_general per matmul.
            qb = jnp.concatenate(
                [qkv3[:, :, hd * dh:(hd + 1) * dh] for hd in range(nhead)], axis=0)
            kb = jnp.concatenate(
                [qkv3[:, :, H + hd * dh:H + (hd + 1) * dh] for hd in range(nhead)], axis=0)
            vb = jnp.concatenate(
                [qkv3[:, :, 2 * H + hd * dh:2 * H + (hd + 1) * dh] for hd in range(nhead)], axis=0)

            s = jnp.einsum('gqd,gkd->gqk', qb, kb,
                           preferred_element_type=f32) + mask           # (G, T, T) f32
            m = jnp.max(s, axis=-1, keepdims=True)
            p = jnp.exp(s - m)
            p = p * pl.reciprocal(jnp.sum(p, axis=-1, keepdims=True), approx=True)
            ov = jnp.einsum('gqk,gkd->gqd', p.astype(bf16), vb,
                            preferred_element_type=f32)                 # (G, T, dh) f32

            # back to (M, H) and fused out-projection (single GEMM)
            o = jnp.concatenate(
                [ov[hd * Bc:(hd + 1) * Bc] for hd in range(nhead)],
                axis=-1).reshape(M, H)
            attn = jnp.dot(o.astype(bf16), ow_ref[l],
                           preferred_element_type=f32) + ob_ref[l]
            h = _layernorm(h + attn, ln1_g_ref[l], ln1_b_ref[l])

            ff = jnp.dot(h.astype(bf16), w1_ref[l],
                         preferred_element_type=f32) + b1_ref[l]
            ff = jnp.maximum(ff, 0.0)
            ff = jnp.dot(ff.astype(bf16), w2_ref[l],
                         preferred_element_type=f32) + b2_ref[l]
            h = _layernorm(h + ff, ln2_g_ref[l], ln2_b_ref[l])

        # ---- final encoder norm + fused lane-padded (mean | log_sigma) head ----
        h = _layernorm(h, fn_g_ref[...], fn_b_ref[...])
        out_ref[...] = jnp.dot(h.astype(bf16), head_w_ref[...],
                               preferred_element_type=f32) + head_b_ref[...]

    return kernel


def _num_tensorcores():
    try:
        return int(getattr(jax.devices()[0], "num_cores", 1) or 1)
    except Exception:
        return 1


def transformer_forward(params, past_x, past_y, future_x, *, nhead):
    B, S_past, y_dim = past_y.shape
    S_fut = future_x.shape[1]

    # glue (matches the torch forward exactly)
    future_y_fake = jnp.broadcast_to(past_y[:, -1:, :], (B, S_fut, y_dim))
    context = jnp.concatenate([past_x, past_y], axis=-1)
    target = jnp.concatenate([future_x, future_y_fake], axis=-1)
    x = jnp.concatenate([context, target], axis=1)          # (B, T, x_dim + y_dim)
    T, Din = x.shape[1], x.shape[2]
    x_flat = x.reshape(B * T, Din)                          # flatten on host (free)

    H = params['emb_w'].shape[1]
    dh = H // nhead
    L = params['qkv_w'].shape[0]
    Y2 = 2 * y_dim
    PADN = 128                                              # lane-dense output width
    f32 = jnp.float32
    bf16 = jnp.bfloat16

    # Adaptive batch split: only when 2 TensorCores AND each chunk keeps >= 256 rows.
    NB = 2 if (B % 2 == 0 and (B // 2) * T >= 256 and _num_tensorcores() >= 2) else 1
    Bc = B // NB

    # Fold the softmax scale 1/sqrt(dh) into the Q columns of the qkv projection.
    col_scale = jnp.concatenate(
        [jnp.full((H,), 1.0 / math.sqrt(dh), f32), jnp.ones((2 * H,), f32)])
    qkv_w = (params['qkv_w'] * col_scale).astype(bf16)
    qkv_b = params['qkv_b'] * col_scale

    # Fused mean|std head, zero-padded to 128 lanes for unmasked full-lane stores.
    head_w = (jnp.zeros((H, PADN), f32)
              .at[:, :y_dim].set(params['mw'])
              .at[:, y_dim:Y2].set(params['sw'])).astype(bf16)
    head_b = (jnp.zeros((1, PADN), f32)
              .at[:, :y_dim].set(params['mb'])
              .at[:, y_dim:Y2].set(params['sb']))

    args = (x_flat,
            params['emb_w'].astype(bf16), params['emb_b'],
            qkv_w, qkv_b,
            params['ow'].astype(bf16), params['ob'],
            params['ln1_g'], params['ln1_b'],
            params['w1'].astype(bf16), params['b1'],
            params['w2'].astype(bf16), params['b2'],
            params['ln2_g'], params['ln2_b'],
            params['fn_g'], params['fn_b'],
            head_w, head_b)

    def const_spec(a):
        nd = a.ndim
        if NB > 1:
            # grid-invariant weights: single-buffer them to halve VMEM footprint
            return pl.BlockSpec(a.shape, lambda b, _nd=nd: (0,) * _nd,
                                pipeline_mode=pl.Buffered(1))
        return pl.BlockSpec(a.shape, lambda b, _nd=nd: (0,) * _nd)

    in_specs = [pl.BlockSpec((Bc * T, Din), lambda b: (b, 0))]
    in_specs += [const_spec(a) for a in args[1:]]

    # On a 2-TC part (v7x) guarantee each batch chunk lands on its own TensorCore.
    dim_sem = (pltpu.CORE_PARALLEL,) if NB == 2 else ("arbitrary",)

    out = pl.pallas_call(
        make_kernel(nhead, L, Bc, T),
        out_shape=jax.ShapeDtypeStruct((B * T, PADN), jnp.float32),
        grid_spec=pltpu.PrefetchScalarGridSpec(
            num_scalar_prefetch=0,
            grid=(NB,),
            in_specs=in_specs,
            out_specs=pl.BlockSpec((Bc * T, PADN), lambda b: (b, 0))),
        compiler_params=pltpu.CompilerParams(dimension_semantics=dim_sem),
    )(*args)

    out = out.reshape(B, T, PADN)
    mean = out[:, S_past:, :y_dim]
    log_sigma = out[:, S_past:, y_dim:Y2]
    sigma = MIN_STD + (1.0 - MIN_STD) * jax.nn.softplus(log_sigma)
    return mean, sigma


def reference_forward(params, past_x, past_y, future_x, *, nhead):
    """Pure-JAX f32 reference for correctness check."""
    B, S_past, y_dim = past_y.shape
    S_fut = future_x.shape[1]
    future_y_fake = jnp.broadcast_to(past_y[:, -1:, :], (B, S_fut, y_dim))
    context = jnp.concatenate([past_x, past_y], axis=-1)
    target = jnp.concatenate([future_x, future_y_fake], axis=-1)
    x = jnp.concatenate([context, target], axis=1)
    T = x.shape[1]
    H = params['emb_w'].shape[1]
    dh = H // nhead
    L = params['qkv_w'].shape[0]

    h = x @ params['emb_w'] + params['emb_b']
    row = jnp.arange(T)[:, None]
    col = jnp.arange(T)[None, :]
    causal = jnp.where(col <= row, 0.0, NEG_INF)
    for l in range(L):
        qkv = h @ params['qkv_w'][l] + params['qkv_b'][l]
        q = qkv[..., :H].reshape(B, T, nhead, dh)
        k = qkv[..., H:2 * H].reshape(B, T, nhead, dh)
        v = qkv[..., 2 * H:].reshape(B, T, nhead, dh)
        s = jnp.einsum('bqhd,bkhd->bhqk', q, k) / math.sqrt(dh) + causal
        p = jax.nn.softmax(s, axis=-1)
        o = jnp.einsum('bhqk,bkhd->bqhd', p, v).reshape(B, T, H)
        attn = o @ params['ow'][l] + params['ob'][l]
        h = _layernorm(h + attn, params['ln1_g'][l], params['ln1_b'][l])
        ff = jnp.maximum(h @ params['w1'][l] + params['b1'][l], 0.0) @ params['w2'][l] + params['b2'][l]
        h = _layernorm(h + ff, params['ln2_g'][l], params['ln2_b'][l])
    h = _layernorm(h, params['fn_g'], params['fn_b'])
    mean = (h @ params['mw'] + params['mb'])[:, S_past:, :]
    log_sigma = (h @ params['sw'] + params['sb'])[:, S_past:, :]
    sigma = MIN_STD + (1 - MIN_STD) * jax.nn.softplus(log_sigma)
    return mean, sigma


def init_params(key, x_dim, y_dim, hidden, nlayers, ff):
    """Deterministic synthetic parameters (same shapes as the torch module, with
    Linear weights pre-transposed to the x @ W convention)."""
    Din = x_dim + y_dim
    keys = iter(jax.random.split(key, 16))

    def w(shape, scale=0.1):
        return jax.random.normal(next(keys), shape, jnp.float32) * scale

    p = {}
    p['emb_w'] = w((Din, hidden))
    p['emb_b'] = w((1, hidden))
    p['qkv_w'] = w((nlayers, hidden, 3 * hidden))   # self_attn.in_proj (transposed)
    p['qkv_b'] = w((nlayers, 3 * hidden))
    p['ow'] = w((nlayers, hidden, hidden))          # self_attn.out_proj (transposed)
    p['ob'] = w((nlayers, hidden))
    p['ln1_g'] = jnp.ones((nlayers, hidden), jnp.float32)
    p['ln1_b'] = jnp.zeros((nlayers, hidden), jnp.float32)
    p['w1'] = w((nlayers, hidden, ff))
    p['b1'] = w((nlayers, ff))
    p['w2'] = w((nlayers, ff, hidden))
    p['b2'] = w((nlayers, hidden))
    p['ln2_g'] = jnp.ones((nlayers, hidden), jnp.float32)
    p['ln2_b'] = jnp.zeros((nlayers, hidden), jnp.float32)
    p['fn_g'] = jnp.ones((1, hidden), jnp.float32)
    p['fn_b'] = jnp.zeros((1, hidden), jnp.float32)
    p['mw'] = w((hidden, y_dim))
    p['mb'] = w((1, y_dim))
    p['sw'] = w((hidden, y_dim))
    p['sb'] = w((1, y_dim))
    return p


if __name__ == "__main__":
    # small config (module defaults are nhead=8, nlayers=8, hidden_size=32; we keep
    # nhead/hidden defaults and use a small nlayers=2 for a fast demo)
    x_dim, y_dim = 3, 2
    hidden, nhead, nlayers = 32, 8, 2
    ff = hidden * 8
    B, S_past, S_fut = 2, 8, 8

    key = jax.random.PRNGKey(0)
    kp, kx1, kx2, ky = jax.random.split(key, 4)
    params = init_params(kp, x_dim, y_dim, hidden, nlayers, ff)
    past_x = jax.random.normal(kx1, (B, S_past, x_dim), jnp.float32)
    past_y = jax.random.normal(ky, (B, S_past, y_dim), jnp.float32)
    future_x = jax.random.normal(kx2, (B, S_fut, x_dim), jnp.float32)

    mean, sigma = transformer_forward(params, past_x, past_y, future_x, nhead=nhead)
    jax.block_until_ready((mean, sigma))

    ref_mean, ref_sigma = reference_forward(params, past_x, past_y, future_x, nhead=nhead)

    assert mean.shape == (B, S_fut, y_dim) and sigma.shape == (B, S_fut, y_dim)
    assert np.all(np.isfinite(np.asarray(mean))) and np.all(np.asarray(sigma) > 0)
    assert np.allclose(np.asarray(mean), np.asarray(ref_mean), rtol=2e-2, atol=2e-2)
    assert np.allclose(np.asarray(sigma), np.asarray(ref_sigma), rtol=2e-2, atol=2e-2)
    print("KERNEL_OK")
</pallas_src>

<mosaic_0001>
module attributes {stable_mosaic.version = 11 : i64} {
  func.func @kernel(%arg0: i32, %arg1: memref<32x5xf32, #tpu.memory_space<vmem>>, %arg2: memref<5x32xbf16, #tpu.memory_space<vmem>>, %arg3: memref<1x32xf32, #tpu.memory_space<vmem>>, %arg4: memref<2x32x96xbf16, #tpu.memory_space<vmem>>, %arg5: memref<2x96xf32, #tpu.memory_space<vmem>>, %arg6: memref<2x32x32xbf16, #tpu.memory_space<vmem>>, %arg7: memref<2x32xf32, #tpu.memory_space<vmem>>, %arg8: memref<2x32xf32, #tpu.memory_space<vmem>>, %arg9: memref<2x32xf32, #tpu.memory_space<vmem>>, %arg10: memref<2x32x256xbf16, #tpu.memory_space<vmem>>, %arg11: memref<2x256xf32, #tpu.memory_space<vmem>>, %arg12: memref<2x256x32xbf16, #tpu.memory_space<vmem>>, %arg13: memref<2x32xf32, #tpu.memory_space<vmem>>, %arg14: memref<2x32xf32, #tpu.memory_space<vmem>>, %arg15: memref<2x32xf32, #tpu.memory_space<vmem>>, %arg16: memref<1x32xf32, #tpu.memory_space<vmem>>, %arg17: memref<1x32xf32, #tpu.memory_space<vmem>>, %arg18: memref<32x128xbf16, #tpu.memory_space<vmem>>, %arg19: memref<1x128xf32, #tpu.memory_space<vmem>>, %arg20: memref<32x128xf32, #tpu.memory_space<vmem>>) attributes {dimension_semantics = [#tpu.dimension_semantics<arbitrary>], iteration_bounds = array<i64: 1>, scalar_prefetch = 0 : i64, scratch_operands = 0 : i64, tpu.core_type = #tpu.core_type<tc>, window_params = [{transform_indices = @transform_0, window_bounds = array<i64: 32, 5>}, {pipeline_mode = #tpu.pipeline_mode<synchronous>, transform_indices = @transform_1, window_bounds = array<i64: 5, 32>}, {pipeline_mode = #tpu.pipeline_mode<synchronous>, transform_indices = @transform_2, window_bounds = array<i64: 1, 32>}, {pipeline_mode = #tpu.pipeline_mode<synchronous>, transform_indices = @transform_3, window_bounds = array<i64: 2, 32, 96>}, {pipeline_mode = #tpu.pipeline_mode<synchronous>, transform_indices = @transform_4, window_bounds = array<i64: 2, 96>}, {pipeline_mode = #tpu.pipeline_mode<synchronous>, transform_indices = @transform_5, window_bounds = array<i64: 2, 32, 32>}, {pipeline_mode = #tpu.pipeline_mode<synchronous>, transform_indices = @transform_6, window_bounds = array<i64: 2, 32>}, {pipeline_mode = #tpu.pipeline_mode<synchronous>, transform_indices = @transform_7, window_bounds = array<i64: 2, 32>}, {pipeline_mode = #tpu.pipeline_mode<synchronous>, transform_indices = @transform_8, window_bounds = array<i64: 2, 32>}, {pipeline_mode = #tpu.pipeline_mode<synchronous>, transform_indices = @transform_9, window_bounds = array<i64: 2, 32, 256>}, {pipeline_mode = #tpu.pipeline_mode<synchronous>, transform_indices = @transform_10, window_bounds = array<i64: 2, 256>}, {pipeline_mode = #tpu.pipeline_mode<synchronous>, transform_indices = @transform_11, window_bounds = array<i64: 2, 256, 32>}, {pipeline_mode = #tpu.pipeline_mode<synchronous>, transform_indices = @transform_12, window_bounds = array<i64: 2, 32>}, {pipeline_mode = #tpu.pipeline_mode<synchronous>, transform_indices = @transform_13, window_bounds = array<i64: 2, 32>}, {pipeline_mode = #tpu.pipeline_mode<synchronous>, transform_indices = @transform_14, window_bounds = array<i64: 2, 32>}, {pipeline_mode = #tpu.pipeline_mode<synchronous>, transform_indices = @transform_15, window_bounds = array<i64: 1, 32>}, {pipeline_mode = #tpu.pipeline_mode<synchronous>, transform_indices = @transform_16, window_bounds = array<i64: 1, 32>}, {pipeline_mode = #tpu.pipeline_mode<synchronous>, transform_indices = @transform_17, window_bounds = array<i64: 32, 128>}, {pipeline_mode = #tpu.pipeline_mode<synchronous>, transform_indices = @transform_18, window_bounds = array<i64: 1, 128>}, {transform_indices = @transform_19, window_bounds = array<i64: 32, 128>}]} {
    %0 = tpu.iota {dimensions = array<i32: 0>} : vector<16x16xi32>
    %1 = tpu.iota {dimensions = array<i32: 1>} : vector<16x16xi32>
    %2 = arith.cmpi sle, %1, %0 : vector<16x16xi32>
    %cst = arith.constant 0.000000e+00 : f32
    %cst_0 = arith.constant -1.000000e+30 : f32
    %3 = vector.broadcast %cst : f32 to vector<16x16xf32>
    %4 = vector.broadcast %cst_0 : f32 to vector<16x16xf32>
    %5 = arith.select %2, %3, %4 : vector<16x16xi1>, vector<16x16xf32>
    %c0 = arith.constant 0 : index
    %c0_1 = arith.constant 0 : index
    %6 = vector.load %arg1[%c0, %c0_1] : memref<32x5xf32, #tpu.memory_space<vmem>>, vector<32x5xf32>
    %7 = arith.truncf %6 : vector<32x5xf32> to vector<32x5xbf16>
    %c0_2 = arith.constant 0 : index
    %c0_3 = arith.constant 0 : index
    %8 = vector.load %arg2[%c0_2, %c0_3] : memref<5x32xbf16, #tpu.memory_space<vmem>>, vector<5x32xbf16>
    %cst_4 = arith.constant dense<0.000000e+00> : vector<32x32xf32>
    %9 = tpu.matmul %7, %8, %cst_4 {dimension_numbers = #tpu.dot_dimension_numbers<[1], [0], [0], [1], [0, 0, 1, 1], [], []>} : vector<32x5xbf16>, vector<5x32xbf16>, vector<32x32xf32> -> vector<32x32xf32>
    %c0_5 = arith.constant 0 : index
    %c0_6 = arith.constant 0 : index
    %10 = vector.load %arg3[%c0_5, %c0_6] : memref<1x32xf32, #tpu.memory_space<vmem>>, vector<1x32xf32>
    %11 = vector.broadcast %10 : vector<1x32xf32> to vector<32x32xf32>
    %12 = arith.addf %9, %11 : vector<32x32xf32>
    %13 = arith.truncf %12 : vector<32x32xf32> to vector<32x32xbf16>
    %c0_7 = arith.constant 0 : index
    %c0_8 = arith.constant 0 : index
    %c0_9 = arith.constant 0 : index
    %14 = vector.load %arg4[%c0_7, %c0_8, %c0_9] : memref<2x32x96xbf16, #tpu.memory_space<vmem>>, vector<1x32x96xbf16>
    %15 = vector.shape_cast %14 : vector<1x32x96xbf16> to vector<32x96xbf16>
    %cst_10 = arith.constant dense<0.000000e+00> : vector<32x96xf32>
    %16 = tpu.matmul %13, %15, %cst_10 {dimension_numbers = #tpu.dot_dimension_numbers<[1], [0], [0], [1], [0, 0, 1, 1], [], []>} : vector<32x32xbf16>, vector<32x96xbf16>, vector<32x96xf32> -> vector<32x96xf32>
    %c0_11 = arith.constant 0 : index
    %c0_12 = arith.constant 0 : index
    %17 = vector.load %arg5[%c0_11, %c0_12] : memref<2x96xf32, #tpu.memory_space<vmem>>, vector<1x96xf32>
    %18 = vector.shape_cast %17 : vector<1x96xf32> to vector<96xf32>
    %19 = vector.shape_cast %18 : vector<96xf32> to vector<1x96xf32>
    %20 = vector.broadcast %19 : vector<1x96xf32> to vector<32x96xf32>
    %21 = arith.addf %16, %20 : vector<32x96xf32>
    %22 = arith.truncf %21 : vector<32x96xf32> to vector<32x96xbf16>
    %23 = vector.shape_cast %22 : vector<32x96xbf16> to vector<2x16x96xbf16>
    %24 = vector.extract_strided_slice %23 {offsets = [0, 0, 0], sizes = [2, 16, 4], strides = [1, 1, 1]} : vector<2x16x96xbf16> to vector<2x16x4xbf16>
    %25 = vector.extract_strided_slice %23 {offsets = [0, 0, 4], sizes = [2, 16, 4], strides = [1, 1, 1]} : vector<2x16x96xbf16> to vector<2x16x4xbf16>
    %26 = vector.extract_strided_slice %23 {offsets = [0, 0, 8], sizes = [2, 16, 4], strides = [1, 1, 1]} : vector<2x16x96xbf16> to vector<2x16x4xbf16>
    %27 = vector.extract_strided_slice %23 {offsets = [0, 0, 12], sizes = [2, 16, 4], strides = [1, 1, 1]} : vector<2x16x96xbf16> to vector<2x16x4xbf16>
    %28 = vector.extract_strided_slice %23 {offsets = [0, 0, 16], sizes = [2, 16, 4], strides = [1, 1, 1]} : vector<2x16x96xbf16> to vector<2x16x4xbf16>
    %29 = vector.extract_strided_slice %23 {offsets = [0, 0, 20], sizes = [2, 16, 4], strides = [1, 1, 1]} : vector<2x16x96xbf16> to vector<2x16x4xbf16>
    %30 = vector.extract_strided_slice %23 {offsets = [0, 0, 24], sizes = [2, 16, 4], strides = [1, 1, 1]} : vector<2x16x96xbf16> to vector<2x16x4xbf16>
    %31 = vector.extract_strided_slice %23 {offsets = [0, 0, 28], sizes = [2, 16, 4], strides = [1, 1, 1]} : vector<2x16x96xbf16> to vector<2x16x4xbf16>
    %32 = tpu.concatenate %24, %25, %26, %27, %28, %29, %30, %31 in 0 : vector<2x16x4xbf16>, vector<2x16x4xbf16>, vector<2x16x4xbf16>, vector<2x16x4xbf16>, vector<2x16x4xbf16>, vector<2x16x4xbf16>, vector<2x16x4xbf16>, vector<2x16x4xbf16> -> vector<16x16x4xbf16>
    %33 = vector.extract_strided_slice %23 {offsets = [0, 0, 32], sizes = [2, 16, 4], strides = [1, 1, 1]} : vector<2x16x96xbf16> to vector<2x16x4xbf16>
    %34 = vector.extract_strided_slice %23 {offsets = [0, 0, 36], sizes = [2, 16, 4], strides = [1, 1, 1]} : vector<2x16x96xbf16> to vector<2x16x4xbf16>
    %35 = vector.extract_strided_slice %23 {offsets = [0, 0, 40], sizes = [2, 16, 4], strides = [1, 1, 1]} : vector<2x16x96xbf16> to vector<2x16x4xbf16>
    %36 = vector.extract_strided_slice %23 {offsets = [0, 0, 44], sizes = [2, 16, 4], strides = [1, 1, 1]} : vector<2x16x96xbf16> to vector<2x16x4xbf16>
    %37 = vector.extract_strided_slice %23 {offsets = [0, 0, 48], sizes = [2, 16, 4], strides = [1, 1, 1]} : vector<2x16x96xbf16> to vector<2x16x4xbf16>
    %38 = vector.extract_strided_slice %23 {offsets = [0, 0, 52], sizes = [2, 16, 4], strides = [1, 1, 1]} : vector<2x16x96xbf16> to vector<2x16x4xbf16>
    %39 = vector.extract_strided_slice %23 {offsets = [0, 0, 56], sizes = [2, 16, 4], strides = [1, 1, 1]} : vector<2x16x96xbf16> to vector<2x16x4xbf16>
    %40 = vector.extract_strided_slice %23 {offsets = [0, 0, 60], sizes = [2, 16, 4], strides = [1, 1, 1]} : vector<2x16x96xbf16> to vector<2x16x4xbf16>
    %41 = tpu.concatenate %33, %34, %35, %36, %37, %38, %39, %40 in 0 : vector<2x16x4xbf16>, vector<2x16x4xbf16>, vector<2x16x4xbf16>, vector<2x16x4xbf16>, vector<2x16x4xbf16>, vector<2x16x4xbf16>, vector<2x16x4xbf16>, vector<2x16x4xbf16> -> vector<16x16x4xbf16>
    %42 = vector.extract_strided_slice %23 {offsets = [0, 0, 64], sizes = [2, 16, 4], strides = [1, 1, 1]} : vector<2x16x96xbf16> to vector<2x16x4xbf16>
    %43 = vector.extract_strided_slice %23 {offsets = [0, 0, 68], sizes = [2, 16, 4], strides = [1, 1, 1]} : vector<2x16x96xbf16> to vector<2x16x4xbf16>
    %44 = vector.extract_strided_slice %23 {offsets = [0, 0, 72], sizes = [2, 16, 4], strides = [1, 1, 1]} : vector<2x16x96xbf16> to vector<2x16x4xbf16>
    %45 = vector.extract_strided_slice %23 {offsets = [0, 0, 76], sizes = [2, 16, 4], strides = [1, 1, 1]} : vector<2x16x96xbf16> to vector<2x16x4xbf16>
    %46 = vector.extract_strided_slice %23 {offsets = [0, 0, 80], sizes = [2, 16, 4], strides = [1, 1, 1]} : vector<2x16x96xbf16> to vector<2x16x4xbf16>
    %47 = vector.extract_strided_slice %23 {offsets = [0, 0, 84], sizes = [2, 16, 4], strides = [1, 1, 1]} : vector<2x16x96xbf16> to vector<2x16x4xbf16>
    %48 = vector.extract_strided_slice %23 {offsets = [0, 0, 88], sizes = [2, 16, 4], strides = [1, 1, 1]} : vector<2x16x96xbf16> to vector<2x16x4xbf16>
    %49 = vector.extract_strided_slice %23 {offsets = [0, 0, 92], sizes = [2, 16, 4], strides = [1, 1, 1]} : vector<2x16x96xbf16> to vector<2x16x4xbf16>
    %50 = tpu.concatenate %42, %43, %44, %45, %46, %47, %48, %49 in 0 : vector<2x16x4xbf16>, vector<2x16x4xbf16>, vector<2x16x4xbf16>, vector<2x16x4xbf16>, vector<2x16x4xbf16>, vector<2x16x4xbf16>, vector<2x16x4xbf16>, vector<2x16x4xbf16> -> vector<16x16x4xbf16>
    "tpu.trace_start"() <{level = 10 : i32, message = "gqd,gkd->gqk"}> : () -> ()
    %cst_13 = arith.constant dense<0.000000e+00> : vector<16x16x16xf32>
    %51 = tpu.matmul %32, %41, %cst_13 {dimension_numbers = #tpu.dot_dimension_numbers<[2], [2], [1], [1], [0, 0, 0, 1, 1, 1], [0], [0]>} : vector<16x16x4xbf16>, vector<16x16x4xbf16>, vector<16x16x16xf32> -> vector<16x16x16xf32>
    "tpu.trace_stop"() : () -> ()
    %52 = vector.shape_cast %5 : vector<16x16xf32> to vector<1x16x16xf32>
    %53 = vector.broadcast %52 : vector<1x16x16xf32> to vector<16x16x16xf32>
    %54 = arith.addf %51, %53 : vector<16x16x16xf32>
    %cst_14 = arith.constant dense<0xFF800000> : vector<16x16xf32>
    %55 = vector.multi_reduction <maximumf>, %54, %cst_14 [2] : vector<16x16x16xf32> to vector<16x16xf32>
    %56 = vector.shape_cast %55 : vector<16x16xf32> to vector<16x16x1xf32>
    %57 = vector.broadcast %56 : vector<16x16x1xf32> to vector<16x16x16xf32>
    %58 = arith.subf %54, %57 : vector<16x16x16xf32>
    %59 = math.exp %58 : vector<16x16x16xf32>
    %cst_15 = arith.constant dense<0.000000e+00> : vector<16x16xf32>
    %60 = vector.multi_reduction <add>, %59, %cst_15 [2] : vector<16x16x16xf32> to vector<16x16xf32>
    %61 = vector.shape_cast %60 : vector<16x16xf32> to vector<16x16x1xf32>
    %62 = tpu.reciprocal %61 {approx = true} : vector<16x16x1xf32> -> vector<16x16x1xf32>
    %63 = vector.broadcast %62 : vector<16x16x1xf32> to vector<16x16x16xf32>
    %64 = arith.mulf %59, %63 : vector<16x16x16xf32>
    %65 = arith.truncf %64 : vector<16x16x16xf32> to vector<16x16x16xbf16>
    "tpu.trace_start"() <{level = 10 : i32, message = "gqk,gkd->gqd"}> : () -> ()
    %cst_16 = arith.constant dense<0.000000e+00> : vector<16x16x4xf32>
    %66 = tpu.matmul %65, %50, %cst_16 {dimension_numbers = #tpu.dot_dimension_numbers<[2], [1], [1], [2], [0, 0, 0, 1, 1, 2], [0], [0]>} : vector<16x16x16xbf16>, vector<16x16x4xbf16>, vector<16x16x4xf32> -> vector<16x16x4xf32>
    "tpu.trace_stop"() : () -> ()
    %67 = vector.extract_strided_slice %66 {offsets = [0, 0, 0], sizes = [2, 16, 4], strides = [1, 1, 1]} : vector<16x16x4xf32> to vector<2x16x4xf32>
    %68 = vector.extract_strided_slice %66 {offsets = [2, 0, 0], sizes = [2, 16, 4], strides = [1, 1, 1]} : vector<16x16x4xf32> to vector<2x16x4xf32>
    %69 = vector.extract_strided_slice %66 {offsets = [4, 0, 0], sizes = [2, 16, 4], strides = [1, 1, 1]} : vector<16x16x4xf32> to vector<2x16x4xf32>
    %70 = vector.extract_strided_slice %66 {offsets = [6, 0, 0], sizes = [2, 16, 4], strides = [1, 1, 1]} : vector<16x16x4xf32> to vector<2x16x4xf32>
    %71 = vector.extract_strided_slice %66 {offsets = [8, 0, 0], sizes = [2, 16, 4], strides = [1, 1, 1]} : vector<16x16x4xf32> to vector<2x16x4xf32>
    %72 = vector.extract_strided_slice %66 {offsets = [10, 0, 0], sizes = [2, 16, 4], strides = [1, 1, 1]} : vector<16x16x4xf32> to vector<2x16x4xf32>
    %73 = vector.extract_strided_slice %66 {offsets = [12, 0, 0], sizes = [2, 16, 4], strides = [1, 1, 1]} : vector<16x16x4xf32> to vector<2x16x4xf32>
    %74 = vector.extract_strided_slice %66 {offsets = [14, 0, 0], sizes = [2, 16, 4], strides = [1, 1, 1]} : vector<16x16x4xf32> to vector<2x16x4xf32>
    %75 = tpu.concatenate %67, %68, %69, %70, %71, %72, %73, %74 in 2 : vector<2x16x4xf32>, vector<2x16x4xf32>, vector<2x16x4xf32>, vector<2x16x4xf32>, vector<2x16x4xf32>, vector<2x16x4xf32>, vector<2x16x4xf32>, vector<2x16x4xf32> -> vector<2x16x32xf32>
    %76 = vector.shape_cast %75 : vector<2x16x32xf32> to vector<32x32xf32>
    %77 = arith.truncf %76 : vector<32x32xf32> to vector<32x32xbf16>
    %c0_17 = arith.constant 0 : index
    %c0_18 = arith.constant 0 : index
    %c0_19 = arith.constant 0 : index
    %78 = vector.load %arg6[%c0_17, %c0_18, %c0_19] : memref<2x32x32xbf16, #tpu.memory_space<vmem>>, vector<1x32x32xbf16>
    %79 = vector.shape_cast %78 : vector<1x32x32xbf16> to vector<32x32xbf16>
    %cst_20 = arith.constant dense<0.000000e+00> : vector<32x32xf32>
    %80 = tpu.matmul %77, %79, %cst_20 {dimension_numbers = #tpu.dot_dimension_numbers<[1], [0], [0], [1], [0, 0, 1, 1], [], []>} : vector<32x32xbf16>, vector<32x32xbf16>, vector<32x32xf32> -> vector<32x32xf32>
    %c0_21 = arith.constant 0 : index
    %c0_22 = arith.constant 0 : index
    %81 = vector.load %arg7[%c0_21, %c0_22] : memref<2x32xf32, #tpu.memory_space<vmem>>, vector<1x32xf32>
    %82 = vector.shape_cast %81 : vector<1x32xf32> to vector<32xf32>
    %83 = vector.shape_cast %82 : vector<32xf32> to vector<1x32xf32>
    %84 = vector.broadcast %83 : vector<1x32xf32> to vector<32x32xf32>
    %85 = arith.addf %80, %84 : vector<32x32xf32>
    %86 = arith.addf %12, %85 : vector<32x32xf32>
    %c0_23 = arith.constant 0 : index
    %c0_24 = arith.constant 0 : index
    %87 = vector.load %arg8[%c0_23, %c0_24] : memref<2x32xf32, #tpu.memory_space<vmem>>, vector<1x32xf32>
    %88 = vector.shape_cast %87 : vector<1x32xf32> to vector<32xf32>
    %c0_25 = arith.constant 0 : index
    %c0_26 = arith.constant 0 : index
    %89 = vector.load %arg9[%c0_25, %c0_26] : memref<2x32xf32, #tpu.memory_space<vmem>>, vector<1x32xf32>
    %90 = vector.shape_cast %89 : vector<1x32xf32> to vector<32xf32>
    %cst_27 = arith.constant dense<0.000000e+00> : vector<32xf32>
    %91 = vector.multi_reduction <add>, %86, %cst_27 [1] : vector<32x32xf32> to vector<32xf32>
    %92 = vector.shape_cast %91 : vector<32xf32> to vector<32x1xf32>
    %cst_28 = arith.constant 3.200000e+01 : f32
    %93 = vector.broadcast %cst_28 : f32 to vector<32x1xf32>
    %94 = arith.divf %92, %93 : vector<32x1xf32>
    %95 = vector.broadcast %94 : vector<32x1xf32> to vector<32x32xf32>
    %96 = arith.subf %86, %95 : vector<32x32xf32>
    %97 = arith.mulf %96, %96 : vector<32x32xf32>
    %cst_29 = arith.constant dense<0.000000e+00> : vector<32xf32>
    %98 = vector.multi_reduction <add>, %97, %cst_29 [1] : vector<32x32xf32> to vector<32xf32>
    %99 = vector.shape_cast %98 : vector<32xf32> to vector<32x1xf32>
    %cst_30 = arith.constant 3.200000e+01 : f32
    %100 = vector.broadcast %cst_30 : f32 to vector<32x1xf32>
    %101 = arith.divf %99, %100 : vector<32x1xf32>
    %102 = vector.broadcast %94 : vector<32x1xf32> to vector<32x32xf32>
    %103 = arith.subf %86, %102 : vector<32x32xf32>
    %cst_31 = arith.constant 9.99999974E-6 : f32
    %104 = vector.broadcast %cst_31 : f32 to vector<32x1xf32>
    %105 = arith.addf %101, %104 : vector<32x1xf32>
    %106 = math.rsqrt %105 : vector<32x1xf32>
    %107 = vector.broadcast %106 : vector<32x1xf32> to vector<32x32xf32>
    %108 = arith.mulf %103, %107 : vector<32x32xf32>
    %109 = vector.shape_cast %88 : vector<32xf32> to vector<1x32xf32>
    %110 = vector.broadcast %109 : vector<1x32xf32> to vector<32x32xf32>
    %111 = arith.mulf %108, %110 : vector<32x32xf32>
    %112 = vector.shape_cast %90 : vector<32xf32> to vector<1x32xf32>
    %113 = vector.broadcast %112 : vector<1x32xf32> to vector<32x32xf32>
    %114 = arith.addf %111, %113 : vector<32x32xf32>
    %115 = arith.truncf %114 : vector<32x32xf32> to vector<32x32xbf16>
    %c0_32 = arith.constant 0 : index
    %c0_33 = arith.constant 0 : index
    %c0_34 = arith.constant 0 : index
    %116 = vector.load %arg10[%c0_32, %c0_33, %c0_34] : memref<2x32x256xbf16, #tpu.memory_space<vmem>>, vector<1x32x256xbf16>
    %117 = vector.shape_cast %116 : vector<1x32x256xbf16> to vector<32x256xbf16>
    %cst_35 = arith.constant dense<0.000000e+00> : vector<32x256xf32>
    %118 = tpu.matmul %115, %117, %cst_35 {dimension_numbers = #tpu.dot_dimension_numbers<[1], [0], [0], [1], [0, 0, 1, 1], [], []>} : vector<32x32xbf16>, vector<32x256xbf16>, vector<32x256xf32> -> vector<32x256xf32>
    %c0_36 = arith.constant 0 : index
    %c0_37 = arith.constant 0 : index
    %119 = vector.load %arg11[%c0_36, %c0_37] : memref<2x256xf32, #tpu.memory_space<vmem>>, vector<1x256xf32>
    %120 = vector.shape_cast %119 : vector<1x256xf32> to vector<256xf32>
    %121 = vector.shape_cast %120 : vector<256xf32> to vector<1x256xf32>
    %122 = vector.broadcast %121 : vector<1x256xf32> to vector<32x256xf32>
    %123 = arith.addf %118, %122 : vector<32x256xf32>
    %cst_38 = arith.constant 0.000000e+00 : f32
    %124 = vector.broadcast %cst_38 : f32 to vector<32x256xf32>
    %125 = arith.maximumf %123, %124 : vector<32x256xf32>
    %126 = arith.truncf %125 : vector<32x256xf32> to vector<32x256xbf16>
    %c0_39 = arith.constant 0 : index
    %c0_40 = arith.constant 0 : index
    %c0_41 = arith.constant 0 : index
    %127 = vector.load %arg12[%c0_39, %c0_40, %c0_41] : memref<2x256x32xbf16, #tpu.memory_space<vmem>>, vector<1x256x32xbf16>
    %128 = vector.shape_cast %127 : vector<1x256x32xbf16> to vector<256x32xbf16>
    %cst_42 = arith.constant dense<0.000000e+00> : vector<32x32xf32>
    %129 = tpu.matmul %126, %128, %cst_42 {dimension_numbers = #tpu.dot_dimension_numbers<[1], [0], [0], [1], [0, 0, 1, 1], [], []>} : vector<32x256xbf16>, vector<256x32xbf16>, vector<32x32xf32> -> vector<32x32xf32>
    %c0_43 = arith.constant 0 : index
    %c0_44 = arith.constant 0 : index
    %130 = vector.load %arg13[%c0_43, %c0_44] : memref<2x32xf32, #tpu.memory_space<vmem>>, vector<1x32xf32>
    %131 = vector.shape_cast %130 : vector<1x32xf32> to vector<32xf32>
    %132 = vector.shape_cast %131 : vector<32xf32> to vector<1x32xf32>
    %133 = vector.broadcast %132 : vector<1x32xf32> to vector<32x32xf32>
    %134 = arith.addf %129, %133 : vector<32x32xf32>
    %135 = arith.addf %114, %134 : vector<32x32xf32>
    %c0_45 = arith.constant 0 : index
    %c0_46 = arith.constant 0 : index
    %136 = vector.load %arg14[%c0_45, %c0_46] : memref<2x32xf32, #tpu.memory_space<vmem>>, vector<1x32xf32>
    %137 = vector.shape_cast %136 : vector<1x32xf32> to vector<32xf32>
    %c0_47 = arith.constant 0 : index
    %c0_48 = arith.constant 0 : index
    %138 = vector.load %arg15[%c0_47, %c0_48] : memref<2x32xf32, #tpu.memory_space<vmem>>, vector<1x32xf32>
    %139 = vector.shape_cast %138 : vector<1x32xf32> to vector<32xf32>
    %cst_49 = arith.constant dense<0.000000e+00> : vector<32xf32>
    %140 = vector.multi_reduction <add>, %135, %cst_49 [1] : vector<32x32xf32> to vector<32xf32>
    %141 = vector.shape_cast %140 : vector<32xf32> to vector<32x1xf32>
    %cst_50 = arith.constant 3.200000e+01 : f32
    %142 = vector.broadcast %cst_50 : f32 to vector<32x1xf32>
    %143 = arith.divf %141, %142 : vector<32x1xf32>
    %144 = vector.broadcast %143 : vector<32x1xf32> to vector<32x32xf32>
    %145 = arith.subf %135, %144 : vector<32x32xf32>
    %146 = arith.mulf %145, %145 : vector<32x32xf32>
    %cst_51 = arith.constant dense<0.000000e+00> : vector<32xf32>
    %147 = vector.multi_reduction <add>, %146, %cst_51 [1] : vector<32x32xf32> to vector<32xf32>
    %148 = vector.shape_cast %147 : vector<32xf32> to vector<32x1xf32>
    %cst_52 = arith.constant 3.200000e+01 : f32
    %149 = vector.broadcast %cst_52 : f32 to vector<32x1xf32>
    %150 = arith.divf %148, %149 : vector<32x1xf32>
    %151 = vector.broadcast %143 : vector<32x1xf32> to vector<32x32xf32>
    %152 = arith.subf %135, %151 : vector<32x32xf32>
    %cst_53 = arith.constant 9.99999974E-6 : f32
    %153 = vector.broadcast %cst_53 : f32 to vector<32x1xf32>
    %154 = arith.addf %150, %153 : vector<32x1xf32>
    %155 = math.rsqrt %154 : vector<32x1xf32>
    %156 = vector.broadcast %155 : vector<32x1xf32> to vector<32x32xf32>
    %157 = arith.mulf %152, %156 : vector<32x32xf32>
    %158 = vector.shape_cast %137 : vector<32xf32> to vector<1x32xf32>
    %159 = vector.broadcast %158 : vector<1x32xf32> to vector<32x32xf32>
    %160 = arith.mulf %157, %159 : vector<32x32xf32>
    %161 = vector.shape_cast %139 : vector<32xf32> to vector<1x32xf32>
    %162 = vector.broadcast %161 : vector<1x32xf32> to vector<32x32xf32>
    %163 = arith.addf %160, %162 : vector<32x32xf32>
    %164 = arith.truncf %163 : vector<32x32xf32> to vector<32x32xbf16>
    %c1 = arith.constant 1 : index
    %c0_54 = arith.constant 0 : index
    %c0_55 = arith.constant 0 : index
    %165 = vector.load %arg4[%c1, %c0_54, %c0_55] : memref<2x32x96xbf16, #tpu.memory_space<vmem>>, vector<1x32x96xbf16>
    %166 = vector.shape_cast %165 : vector<1x32x96xbf16> to vector<32x96xbf16>
    %cst_56 = arith.constant dense<0.000000e+00> : vector<32x96xf32>
    %167 = tpu.matmul %164, %166, %cst_56 {dimension_numbers = #tpu.dot_dimension_numbers<[1], [0], [0], [1], [0, 0, 1, 1], [], []>} : vector<32x32xbf16>, vector<32x96xbf16>, vector<32x96xf32> -> vector<32x96xf32>
    %c1_57 = arith.constant 1 : index
    %c0_58 = arith.constant 0 : index
    %168 = vector.load %arg5[%c1_57, %c0_58] : memref<2x96xf32, #tpu.memory_space<vmem>>, vector<1x96xf32>
    %169 = vector.shape_cast %168 : vector<1x96xf32> to vector<96xf32>
    %170 = vector.shape_cast %169 : vector<96xf32> to vector<1x96xf32>
    %171 = vector.broadcast %170 : vector<1x96xf32> to vector<32x96xf32>
    %172 = arith.addf %167, %171 : vector<32x96xf32>
    %173 = arith.truncf %172 : vector<32x96xf32> to vector<32x96xbf16>
    %174 = vector.shape_cast %173 : vector<32x96xbf16> to vector<2x16x96xbf16>
    %175 = vector.extract_strided_slice %174 {offsets = [0, 0, 0], sizes = [2, 16, 4], strides = [1, 1, 1]} : vector<2x16x96xbf16> to vector<2x16x4xbf16>
    %176 = vector.extract_strided_slice %174 {offsets = [0, 0, 4], sizes = [2, 16, 4], strides = [1, 1, 1]} : vector<2x16x96xbf16> to vector<2x16x4xbf16>
    %177 = vector.extract_strided_slice %174 {offsets = [0, 0, 8], sizes = [2, 16, 4], strides = [1, 1, 1]} : vector<2x16x96xbf16> to vector<2x16x4xbf16>
    %178 = vector.extract_strided_slice %174 {offsets = [0, 0, 12], sizes = [2, 16, 4], strides = [1, 1, 1]} : vector<2x16x96xbf16> to vector<2x16x4xbf16>
    %179 = vector.extract_strided_slice %174 {offsets = [0, 0, 16], sizes = [2, 16, 4], strides = [1, 1, 1]} : vector<2x16x96xbf16> to vector<2x16x4xbf16>
    %180 = vector.extract_strided_slice %174 {offsets = [0, 0, 20], sizes = [2, 16, 4], strides = [1, 1, 1]} : vector<2x16x96xbf16> to vector<2x16x4xbf16>
    %181 = vector.extract_strided_slice %174 {offsets = [0, 0, 24], sizes = [2, 16, 4], strides = [1, 1, 1]} : vector<2x16x96xbf16> to vector<2x16x4xbf16>
    %182 = vector.extract_strided_slice %174 {offsets = [0, 0, 28], sizes = [2, 16, 4], strides = [1, 1, 1]} : vector<2x16x96xbf16> to vector<2x16x4xbf16>
    %183 = tpu.concatenate %175, %176, %177, %178, %179, %180, %181, %182 in 0 : vector<2x16x4xbf16>, vector<2x16x4xbf16>, vector<2x16x4xbf16>, vector<2x16x4xbf16>, vector<2x16x4xbf16>, vector<2x16x4xbf16>, vector<2x16x4xbf16>, vector<2x16x4xbf16> -> vector<16x16x4xbf16>
    %184 = vector.extract_strided_slice %174 {offsets = [0, 0, 32], sizes = [2, 16, 4], strides = [1, 1, 1]} : vector<2x16x96xbf16> to vector<2x16x4xbf16>
    %185 = vector.extract_strided_slice %174 {offsets = [0, 0, 36], sizes = [2, 16, 4], strides = [1, 1, 1]} : vector<2x16x96xbf16> to vector<2x16x4xbf16>
    %186 = vector.extract_strided_slice %174 {offsets = [0, 0, 40], sizes = [2, 16, 4], strides = [1, 1, 1]} : vector<2x16x96xbf16> to vector<2x16x4xbf16>
    %187 = vector.extract_strided_slice %174 {offsets = [0, 0, 44], sizes = [2, 16, 4], strides = [1, 1, 1]} : vector<2x16x96xbf16> to vector<2x16x4xbf16>
    %188 = vector.extract_strided_slice %174 {offsets = [0, 0, 48], sizes = [2, 16, 4], strides = [1, 1, 1]} : vector<2x16x96xbf16> to vector<2x16x4xbf16>
    %189 = vector.extract_strided_slice %174 {offsets = [0, 0, 52], sizes = [2, 16, 4], strides = [1, 1, 1]} : vector<2x16x96xbf16> to vector<2x16x4xbf16>
    %190 = vector.extract_strided_slice %174 {offsets = [0, 0, 56], sizes = [2, 16, 4], strides = [1, 1, 1]} : vector<2x16x96xbf16> to vector<2x16x4xbf16>
    %191 = vector.extract_strided_slice %174 {offsets = [0, 0, 60], sizes = [2, 16, 4], strides = [1, 1, 1]} : vector<2x16x96xbf16> to vector<2x16x4xbf16>
    %192 = tpu.concatenate %184, %185, %186, %187, %188, %189, %190, %191 in 0 : vector<2x16x4xbf16>, vector<2x16x4xbf16>, vector<2x16x4xbf16>, vector<2x16x4xbf16>, vector<2x16x4xbf16>, vector<2x16x4xbf16>, vector<2x16x4xbf16>, vector<2x16x4xbf16> -> vector<16x16x4xbf16>
    %193 = vector.extract_strided_slice %174 {offsets = [0, 0, 64], sizes = [2, 16, 4], strides = [1, 1, 1]} : vector<2x16x96xbf16> to vector<2x16x4xbf16>
    %194 = vector.extract_strided_slice %174 {offsets = [0, 0, 68], sizes = [2, 16, 4], strides = [1, 1, 1]} : vector<2x16x96xbf16> to vector<2x16x4xbf16>
    %195 = vector.extract_strided_slice %174 {offsets = [0, 0, 72], sizes = [2, 16, 4], strides = [1, 1, 1]} : vector<2x16x96xbf16> to vector<2x16x4xbf16>
    %196 = vector.extract_strided_slice %174 {offsets = [0, 0, 76], sizes = [2, 16, 4], strides = [1, 1, 1]} : vector<2x16x96xbf16> to vector<2x16x4xbf16>
    %197 = vector.extract_strided_slice %174 {offsets = [0, 0, 80], sizes = [2, 16, 4], strides = [1, 1, 1]} : vector<2x16x96xbf16> to vector<2x16x4xbf16>
    %198 = vector.extract_strided_slice %174 {offsets = [0, 0, 84], sizes = [2, 16, 4], strides = [1, 1, 1]} : vector<2x16x96xbf16> to vector<2x16x4xbf16>
    %199 = vector.extract_strided_slice %174 {offsets = [0, 0, 88], sizes = [2, 16, 4], strides = [1, 1, 1]} : vector<2x16x96xbf16> to vector<2x16x4xbf16>
    %200 = vector.extract_strided_slice %174 {offsets = [0, 0, 92], sizes = [2, 16, 4], strides = [1, 1, 1]} : vector<2x16x96xbf16> to vector<2x16x4xbf16>
    %201 = tpu.concatenate %193, %194, %195, %196, %197, %198, %199, %200 in 0 : vector<2x16x4xbf16>, vector<2x16x4xbf16>, vector<2x16x4xbf16>, vector<2x16x4xbf16>, vector<2x16x4xbf16>, vector<2x16x4xbf16>, vector<2x16x4xbf16>, vector<2x16x4xbf16> -> vector<16x16x4xbf16>
    "tpu.trace_start"() <{level = 10 : i32, message = "gqd,gkd->gqk"}> : () -> ()
    %cst_59 = arith.constant dense<0.000000e+00> : vector<16x16x16xf32>
    %202 = tpu.matmul %183, %192, %cst_59 {dimension_numbers = #tpu.dot_dimension_numbers<[2], [2], [1], [1], [0, 0, 0, 1, 1, 1], [0], [0]>} : vector<16x16x4xbf16>, vector<16x16x4xbf16>, vector<16x16x16xf32> -> vector<16x16x16xf32>
    "tpu.trace_stop"() : () -> ()
    %203 = vector.shape_cast %5 : vector<16x16xf32> to vector<1x16x16xf32>
    %204 = vector.broadcast %203 : vector<1x16x16xf32> to vector<16x16x16xf32>
    %205 = arith.addf %202, %204 : vector<16x16x16xf32>
    %cst_60 = arith.constant dense<0xFF800000> : vector<16x16xf32>
    %206 = vector.multi_reduction <maximumf>, %205, %cst_60 [2] : vector<16x16x16xf32> to vector<16x16xf32>
    %207 = vector.shape_cast %206 : vector<16x16xf32> to vector<16x16x1xf32>
    %208 = vector.broadcast %207 : vector<16x16x1xf32> to vector<16x16x16xf32>
    %209 = arith.subf %205, %208 : vector<16x16x16xf32>
    %210 = math.exp %209 : vector<16x16x16xf32>
    %cst_61 = arith.constant dense<0.000000e+00> : vector<16x16xf32>
    %211 = vector.multi_reduction <add>, %210, %cst_61 [2] : vector<16x16x16xf32> to vector<16x16xf32>
    %212 = vector.shape_cast %211 : vector<16x16xf32> to vector<16x16x1xf32>
    %213 = tpu.reciprocal %212 {approx = true} : vector<16x16x1xf32> -> vector<16x16x1xf32>
    %214 = vector.broadcast %213 : vector<16x16x1xf32> to vector<16x16x16xf32>
    %215 = arith.mulf %210, %214 : vector<16x16x16xf32>
    %216 = arith.truncf %215 : vector<16x16x16xf32> to vector<16x16x16xbf16>
    "tpu.trace_start"() <{level = 10 : i32, message = "gqk,gkd->gqd"}> : () -> ()
    %cst_62 = arith.constant dense<0.000000e+00> : vector<16x16x4xf32>
    %217 = tpu.matmul %216, %201, %cst_62 {dimension_numbers = #tpu.dot_dimension_numbers<[2], [1], [1], [2], [0, 0, 0, 1, 1, 2], [0], [0]>} : vector<16x16x16xbf16>, vector<16x16x4xbf16>, vector<16x16x4xf32> -> vector<16x16x4xf32>
    "tpu.trace_stop"() : () -> ()
    %218 = vector.extract_strided_slice %217 {offsets = [0, 0, 0], sizes = [2, 16, 4], strides = [1, 1, 1]} : vector<16x16x4xf32> to vector<2x16x4xf32>
    %219 = vector.extract_strided_slice %217 {offsets = [2, 0, 0], sizes = [2, 16, 4], strides = [1, 1, 1]} : vector<16x16x4xf32> to vector<2x16x4xf32>
    %220 = vector.extract_strided_slice %217 {offsets = [4, 0, 0], sizes = [2, 16, 4], strides = [1, 1, 1]} : vector<16x16x4xf32> to vector<2x16x4xf32>
    %221 = vector.extract_strided_slice %217 {offsets = [6, 0, 0], sizes = [2, 16, 4], strides = [1, 1, 1]} : vector<16x16x4xf32> to vector<2x16x4xf32>
    %222 = vector.extract_strided_slice %217 {offsets = [8, 0, 0], sizes = [2, 16, 4], strides = [1, 1, 1]} : vector<16x16x4xf32> to vector<2x16x4xf32>
    %223 = vector.extract_strided_slice %217 {offsets = [10, 0, 0], sizes = [2, 16, 4], strides = [1, 1, 1]} : vector<16x16x4xf32> to vector<2x16x4xf32>
    %224 = vector.extract_strided_slice %217 {offsets = [12, 0, 0], sizes = [2, 16, 4], strides = [1, 1, 1]} : vector<16x16x4xf32> to vector<2x16x4xf32>
    %225 = vector.extract_strided_slice %217 {offsets = [14, 0, 0], sizes = [2, 16, 4], strides = [1, 1, 1]} : vector<16x16x4xf32> to vector<2x16x4xf32>
    %226 = tpu.concatenate %218, %219, %220, %221, %222, %223, %224, %225 in 2 : vector<2x16x4xf32>, vector<2x16x4xf32>, vector<2x16x4xf32>, vector<2x16x4xf32>, vector<2x16x4xf32>, vector<2x16x4xf32>, vector<2x16x4xf32>, vector<2x16x4xf32> -> vector<2x16x32xf32>
    %227 = vector.shape_cast %226 : vector<2x16x32xf32> to vector<32x32xf32>
    %228 = arith.truncf %227 : vector<32x32xf32> to vector<32x32xbf16>
    %c1_63 = arith.constant 1 : index
    %c0_64 = arith.constant 0 : index
    %c0_65 = arith.constant 0 : index
    %229 = vector.load %arg6[%c1_63, %c0_64, %c0_65] : memref<2x32x32xbf16, #tpu.memory_space<vmem>>, vector<1x32x32xbf16>
    %230 = vector.shape_cast %229 : vector<1x32x32xbf16> to vector<32x32xbf16>
    %cst_66 = arith.constant dense<0.000000e+00> : vector<32x32xf32>
    %231 = tpu.matmul %228, %230, %cst_66 {dimension_numbers = #tpu.dot_dimension_numbers<[1], [0], [0], [1], [0, 0, 1, 1], [], []>} : vector<32x32xbf16>, vector<32x32xbf16>, vector<32x32xf32> -> vector<32x32xf32>
    %c1_67 = arith.constant 1 : index
    %c0_68 = arith.constant 0 : index
    %232 = vector.load %arg7[%c1_67, %c0_68] : memref<2x32xf32, #tpu.memory_space<vmem>>, vector<1x32xf32>
    %233 = vector.shape_cast %232 : vector<1x32xf32> to vector<32xf32>
    %234 = vector.shape_cast %233 : vector<32xf32> to vector<1x32xf32>
    %235 = vector.broadcast %234 : vector<1x32xf32> to vector<32x32xf32>
    %236 = arith.addf %231, %235 : vector<32x32xf32>
    %237 = arith.addf %163, %236 : vector<32x32xf32>
    %c1_69 = arith.constant 1 : index
    %c0_70 = arith.constant 0 : index
    %238 = vector.load %arg8[%c1_69, %c0_70] : memref<2x32xf32, #tpu.memory_space<vmem>>, vector<1x32xf32>
    %239 = vector.shape_cast %238 : vector<1x32xf32> to vector<32xf32>
    %c1_71 = arith.constant 1 : index
    %c0_72 = arith.constant 0 : index
    %240 = vector.load %arg9[%c1_71, %c0_72] : memref<2x32xf32, #tpu.memory_space<vmem>>, vector<1x32xf32>
    %241 = vector.shape_cast %240 : vector<1x32xf32> to vector<32xf32>
    %cst_73 = arith.constant dense<0.000000e+00> : vector<32xf32>
    %242 = vector.multi_reduction <add>, %237, %cst_73 [1] : vector<32x32xf32> to vector<32xf32>
    %243 = vector.shape_cast %242 : vector<32xf32> to vector<32x1xf32>
    %cst_74 = arith.constant 3.200000e+01 : f32
    %244 = vector.broadcast %cst_74 : f32 to vector<32x1xf32>
    %245 = arith.divf %243, %244 : vector<32x1xf32>
    %246 = vector.broadcast %245 : vector<32x1xf32> to vector<32x32xf32>
    %247 = arith.subf %237, %246 : vector<32x32xf32>
    %248 = arith.mulf %247, %247 : vector<32x32xf32>
    %cst_75 = arith.constant dense<0.000000e+00> : vector<32xf32>
    %249 = vector.multi_reduction <add>, %248, %cst_75 [1] : vector<32x32xf32> to vector<32xf32>
    %250 = vector.shape_cast %249 : vector<32xf32> to vector<32x1xf32>
    %cst_76 = arith.constant 3.200000e+01 : f32
    %251 = vector.broadcast %cst_76 : f32 to vector<32x1xf32>
    %252 = arith.divf %250, %251 : vector<32x1xf32>
    %253 = vector.broadcast %245 : vector<32x1xf32> to vector<32x32xf32>
    %254 = arith.subf %237, %253 : vector<32x32xf32>
    %cst_77 = arith.constant 9.99999974E-6 : f32
    %255 = vector.broadcast %cst_77 : f32 to vector<32x1xf32>
    %256 = arith.addf %252, %255 : vector<32x1xf32>
    %257 = math.rsqrt %256 : vector<32x1xf32>
    %258 = vector.broadcast %257 : vector<32x1xf32> to vector<32x32xf32>
    %259 = arith.mulf %254, %258 : vector<32x32xf32>
    %260 = vector.shape_cast %239 : vector<32xf32> to vector<1x32xf32>
    %261 = vector.broadcast %260 : vector<1x32xf32> to vector<32x32xf32>
    %262 = arith.mulf %259, %261 : vector<32x32xf32>
    %263 = vector.shape_cast %241 : vector<32xf32> to vector<1x32xf32>
    %264 = vector.broadcast %263 : vector<1x32xf32> to vector<32x32xf32>
    %265 = arith.addf %262, %264 : vector<32x32xf32>
    %266 = arith.truncf %265 : vector<32x32xf32> to vector<32x32xbf16>
    %c1_78 = arith.constant 1 : index
    %c0_79 = arith.constant 0 : index
    %c0_80 = arith.constant 0 : index
    %267 = vector.load %arg10[%c1_78, %c0_79, %c0_80] : memref<2x32x256xbf16, #tpu.memory_space<vmem>>, vector<1x32x256xbf16>
    %268 = vector.shape_cast %267 : vector<1x32x256xbf16> to vector<32x256xbf16>
    %cst_81 = arith.constant dense<0.000000e+00> : vector<32x256xf32>
    %269 = tpu.matmul %266, %268, %cst_81 {dimension_numbers = #tpu.dot_dimension_numbers<[1], [0], [0], [1], [0, 0, 1, 1], [], []>} : vector<32x32xbf16>, vector<32x256xbf16>, vector<32x256xf32> -> vector<32x256xf32>
    %c1_82 = arith.constant 1 : index
    %c0_83 = arith.constant 0 : index
    %270 = vector.load %arg11[%c1_82, %c0_83] : memref<2x256xf32, #tpu.memory_space<vmem>>, vector<1x256xf32>
    %271 = vector.shape_cast %270 : vector<1x256xf32> to vector<256xf32>
    %272 = vector.shape_cast %271 : vector<256xf32> to vector<1x256xf32>
    %273 = vector.broadcast %272 : vector<1x256xf32> to vector<32x256xf32>
    %274 = arith.addf %269, %273 : vector<32x256xf32>
    %cst_84 = arith.constant 0.000000e+00 : f32
    %275 = vector.broadcast %cst_84 : f32 to vector<32x256xf32>
    %276 = arith.maximumf %274, %275 : vector<32x256xf32>
    %277 = arith.truncf %276 : vector<32x256xf32> to vector<32x256xbf16>
    %c1_85 = arith.constant 1 : index
    %c0_86 = arith.constant 0 : index
    %c0_87 = arith.constant 0 : index
    %278 = vector.load %arg12[%c1_85, %c0_86, %c0_87] : memref<2x256x32xbf16, #tpu.memory_space<vmem>>, vector<1x256x32xbf16>
    %279 = vector.shape_cast %278 : vector<1x256x32xbf16> to vector<256x32xbf16>
    %cst_88 = arith.constant dense<0.000000e+00> : vector<32x32xf32>
    %280 = tpu.matmul %277, %279, %cst_88 {dimension_numbers = #tpu.dot_dimension_numbers<[1], [0], [0], [1], [0, 0, 1, 1], [], []>} : vector<32x256xbf16>, vector<256x32xbf16>, vector<32x32xf32> -> vector<32x32xf32>
    %c1_89 = arith.constant 1 : index
    %c0_90 = arith.constant 0 : index
    %281 = vector.load %arg13[%c1_89, %c0_90] : memref<2x32xf32, #tpu.memory_space<vmem>>, vector<1x32xf32>
    %282 = vector.shape_cast %281 : vector<1x32xf32> to vector<32xf32>
    %283 = vector.shape_cast %282 : vector<32xf32> to vector<1x32xf32>
    %284 = vector.broadcast %283 : vector<1x32xf32> to vector<32x32xf32>
    %285 = arith.addf %280, %284 : vector<32x32xf32>
    %286 = arith.addf %265, %285 : vector<32x32xf32>
    %c1_91 = arith.constant 1 : index
    %c0_92 = arith.constant 0 : index
    %287 = vector.load %arg14[%c1_91, %c0_92] : memref<2x32xf32, #tpu.memory_space<vmem>>, vector<1x32xf32>
    %288 = vector.shape_cast %287 : vector<1x32xf32> to vector<32xf32>
    %c1_93 = arith.constant 1 : index
    %c0_94 = arith.constant 0 : index
    %289 = vector.load %arg15[%c1_93, %c0_94] : memref<2x32xf32, #tpu.memory_space<vmem>>, vector<1x32xf32>
    %290 = vector.shape_cast %289 : vector<1x32xf32> to vector<32xf32>
    %cst_95 = arith.constant dense<0.000000e+00> : vector<32xf32>
    %291 = vector.multi_reduction <add>, %286, %cst_95 [1] : vector<32x32xf32> to vector<32xf32>
    %292 = vector.shape_cast %291 : vector<32xf32> to vector<32x1xf32>
    %cst_96 = arith.constant 3.200000e+01 : f32
    %293 = vector.broadcast %cst_96 : f32 to vector<32x1xf32>
    %294 = arith.divf %292, %293 : vector<32x1xf32>
    %295 = vector.broadcast %294 : vector<32x1xf32> to vector<32x32xf32>
    %296 = arith.subf %286, %295 : vector<32x32xf32>
    %297 = arith.mulf %296, %296 : vector<32x32xf32>
    %cst_97 = arith.constant dense<0.000000e+00> : vector<32xf32>
    %298 = vector.multi_reduction <add>, %297, %cst_97 [1] : vector<32x32xf32> to vector<32xf32>
    %299 = vector.shape_cast %298 : vector<32xf32> to vector<32x1xf32>
    %cst_98 = arith.constant 3.200000e+01 : f32
    %300 = vector.broadcast %cst_98 : f32 to vector<32x1xf32>
    %301 = arith.divf %299, %300 : vector<32x1xf32>
    %302 = vector.broadcast %294 : vector<32x1xf32> to vector<32x32xf32>
    %303 = arith.subf %286, %302 : vector<32x32xf32>
    %cst_99 = arith.constant 9.99999974E-6 : f32
    %304 = vector.broadcast %cst_99 : f32 to vector<32x1xf32>
    %305 = arith.addf %301, %304 : vector<32x1xf32>
    %306 = math.rsqrt %305 : vector<32x1xf32>
    %307 = vector.broadcast %306 : vector<32x1xf32> to vector<32x32xf32>
    %308 = arith.mulf %303, %307 : vector<32x32xf32>
    %309 = vector.shape_cast %288 : vector<32xf32> to vector<1x32xf32>
    %310 = vector.broadcast %309 : vector<1x32xf32> to vector<32x32xf32>
    %311 = arith.mulf %308, %310 : vector<32x32xf32>
    %312 = vector.shape_cast %290 : vector<32xf32> to vector<1x32xf32>
    %313 = vector.broadcast %312 : vector<1x32xf32> to vector<32x32xf32>
    %314 = arith.addf %311, %313 : vector<32x32xf32>
    %c0_100 = arith.constant 0 : index
    %c0_101 = arith.constant 0 : index
    %315 = vector.load %arg16[%c0_100, %c0_101] : memref<1x32xf32, #tpu.memory_space<vmem>>, vector<1x32xf32>
    %c0_102 = arith.constant 0 : index
    %c0_103 = arith.constant 0 : index
    %316 = vector.load %arg17[%c0_102, %c0_103] : memref<1x32xf32, #tpu.memory_space<vmem>>, vector<1x32xf32>
    %cst_104 = arith.constant dense<0.000000e+00> : vector<32xf32>
    %317 = vector.multi_reduction <add>, %314, %cst_104 [1] : vector<32x32xf32> to vector<32xf32>
    %318 = vector.shape_cast %317 : vector<32xf32> to vector<32x1xf32>
    %cst_105 = arith.constant 3.200000e+01 : f32
    %319 = vector.broadcast %cst_105 : f32 to vector<32x1xf32>
    %320 = arith.divf %318, %319 : vector<32x1xf32>
    %321 = vector.broadcast %320 : vector<32x1xf32> to vector<32x32xf32>
    %322 = arith.subf %314, %321 : vector<32x32xf32>
    %323 = arith.mulf %322, %322 : vector<32x32xf32>
    %cst_106 = arith.constant dense<0.000000e+00> : vector<32xf32>
    %324 = vector.multi_reduction <add>, %323, %cst_106 [1] : vector<32x32xf32> to vector<32xf32>
    %325 = vector.shape_cast %324 : vector<32xf32> to vector<32x1xf32>
    %cst_107 = arith.constant 3.200000e+01 : f32
    %326 = vector.broadcast %cst_107 : f32 to vector<32x1xf32>
    %327 = arith.divf %325, %326 : vector<32x1xf32>
    %328 = vector.broadcast %320 : vector<32x1xf32> to vector<32x32xf32>
    %329 = arith.subf %314, %328 : vector<32x32xf32>
    %cst_108 = arith.constant 9.99999974E-6 : f32
    %330 = vector.broadcast %cst_108 : f32 to vector<32x1xf32>
    %331 = arith.addf %327, %330 : vector<32x1xf32>
    %332 = math.rsqrt %331 : vector<32x1xf32>
    %333 = vector.broadcast %332 : vector<32x1xf32> to vector<32x32xf32>
    %334 = arith.mulf %329, %333 : vector<32x32xf32>
    %335 = vector.broadcast %315 : vector<1x32xf32> to vector<32x32xf32>
    %336 = arith.mulf %334, %335 : vector<32x32xf32>
    %337 = vector.broadcast %316 : vector<1x32xf32> to vector<32x32xf32>
    %338 = arith.addf %336, %337 : vector<32x32xf32>
    %339 = arith.truncf %338 : vector<32x32xf32> to vector<32x32xbf16>
    %c0_109 = arith.constant 0 : index
    %c0_110 = arith.constant 0 : index
    %340 = vector.load %arg18[%c0_109, %c0_110] : memref<32x128xbf16, #tpu.memory_space<vmem>>, vector<32x128xbf16>
    %cst_111 = arith.constant dense<0.000000e+00> : vector<32x128xf32>
    %341 = tpu.matmul %339, %340, %cst_111 {dimension_numbers = #tpu.dot_dimension_numbers<[1], [0], [0], [1], [0, 0, 1, 1], [], []>} : vector<32x32xbf16>, vector<32x128xbf16>, vector<32x128xf32> -> vector<32x128xf32>
    %c0_112 = arith.constant 0 : index
    %c0_113 = arith.constant 0 : index
    %342 = vector.load %arg19[%c0_112, %c0_113] : memref<1x128xf32, #tpu.memory_space<vmem>>, vector<1x128xf32>
    %343 = vector.broadcast %342 : vector<1x128xf32> to vector<32x128xf32>
    %344 = arith.addf %341, %343 : vector<32x128xf32>
    %c0_114 = arith.constant 0 : index
    %c0_115 = arith.constant 0 : index
    %345 = vector.load %arg20[%c0_114, %c0_115] : memref<32x128xf32, #tpu.memory_space<vmem>>, vector<32x128xf32>
    tpu.vector_store %arg20[%c0_114, %c0_115], %344 {strides = array<i32>} : memref<32x128xf32, #tpu.memory_space<vmem>>, vector<32x128xf32>,
    return
  }
  func.func @transform_0(%arg0: i32) -> (i32, i32) {
    %c0_i32 = arith.constant 0 : i32
    %c0_i32_0 = arith.constant 0 : i32
    return %arg0, %c0_i32 : i32, i32
  }
  func.func @transform_1(%arg0: i32) -> (i32, i32) {
    %c0_i32 = arith.constant 0 : i32
    %c0_i32_0 = arith.constant 0 : i32
    %c0_i32_1 = arith.constant 0 : i32
    return %c0_i32, %c0_i32_0 : i32, i32
  }
  func.func @transform_2(%arg0: i32) -> (i32, i32) {
    %c0_i32 = arith.constant 0 : i32
    %c0_i32_0 = arith.constant 0 : i32
    %c0_i32_1 = arith.constant 0 : i32
    return %c0_i32, %c0_i32_0 : i32, i32
  }
  func.func @transform_3(%arg0: i32) -> (i32, i32, i32) {
    %c0_i32 = arith.constant 0 : i32
    %c0_i32_0 = arith.constant 0 : i32
    %c0_i32_1 = arith.constant 0 : i32
    %c0_i32_2 = arith.constant 0 : i32
    return %c0_i32, %c0_i32_0, %c0_i32_1 : i32, i32, i32
  }
  func.func @transform_4(%arg0: i32) -> (i32, i32) {
    %c0_i32 = arith.constant 0 : i32
    %c0_i32_0 = arith.constant 0 : i32
    %c0_i32_1 = arith.constant 0 : i32
    return %c0_i32, %c0_i32_0 : i32, i32
  }
  func.func @transform_5(%arg0: i32) -> (i32, i32, i32) {
    %c0_i32 = arith.constant 0 : i32
    %c0_i32_0 = arith.constant 0 : i32
    %c0_i32_1 = arith.constant 0 : i32
    %c0_i32_2 = arith.constant 0 : i32
    return %c0_i32, %c0_i32_0, %c0_i32_1 : i32, i32, i32
  }
  func.func @transform_6(%arg0: i32) -> (i32, i32) {
    %c0_i32 = arith.constant 0 : i32
    %c0_i32_0 = arith.constant 0 : i32
    %c0_i32_1 = arith.constant 0 : i32
    return %c0_i32, %c0_i32_0 : i32, i32
  }
  func.func @transform_7(%arg0: i32) -> (i32, i32) {
    %c0_i32 = arith.constant 0 : i32
    %c0_i32_0 = arith.constant 0 : i32
    %c0_i32_1 = arith.constant 0 : i32
    return %c0_i32, %c0_i32_0 : i32, i32
  }
  func.func @transform_8(%arg0: i32) -> (i32, i32) {
    %c0_i32 = arith.constant 0 : i32
    %c0_i32_0 = arith.constant 0 : i32
    %c0_i32_1 = arith.constant 0 : i32
    return %c0_i32, %c0_i32_0 : i32, i32
  }
  func.func @transform_9(%arg0: i32) -> (i32, i32, i32) {
    %c0_i32 = arith.constant 0 : i32
    %c0_i32_0 = arith.constant 0 : i32
    %c0_i32_1 = arith.constant 0 : i32
    %c0_i32_2 = arith.constant 0 : i32
    return %c0_i32, %c0_i32_0, %c0_i32_1 : i32, i32, i32
  }
  func.func @transform_10(%arg0: i32) -> (i32, i32) {
    %c0_i32 = arith.constant 0 : i32
    %c0_i32_0 = arith.constant 0 : i32
    %c0_i32_1 = arith.constant 0 : i32
    return %c0_i32, %c0_i32_0 : i32, i32
  }
  func.func @transform_11(%arg0: i32) -> (i32, i32, i32) {
    %c0_i32 = arith.constant 0 : i32
    %c0_i32_0 = arith.constant 0 : i32
    %c0_i32_1 = arith.constant 0 : i32
    %c0_i32_2 = arith.constant 0 : i32
    return %c0_i32, %c0_i32_0, %c0_i32_1 : i32, i32, i32
  }
  func.func @transform_12(%arg0: i32) -> (i32, i32) {
    %c0_i32 = arith.constant 0 : i32
    %c0_i32_0 = arith.constant 0 : i32
    %c0_i32_1 = arith.constant 0 : i32
    return %c0_i32, %c0_i32_0 : i32, i32
  }
  func.func @transform_13(%arg0: i32) -> (i32, i32) {
    %c0_i32 = arith.constant 0 : i32
    %c0_i32_0 = arith.constant 0 : i32
    %c0_i32_1 = arith.constant 0 : i32
    return %c0_i32, %c0_i32_0 : i32, i32
  }
  func.func @transform_14(%arg0: i32) -> (i32, i32) {
    %c0_i32 = arith.constant 0 : i32
    %c0_i32_0 = arith.constant 0 : i32
    %c0_i32_1 = arith.constant 0 : i32
    return %c0_i32, %c0_i32_0 : i32, i32
  }
  func.func @transform_15(%arg0: i32) -> (i32, i32) {
    %c0_i32 = arith.constant 0 : i32
    %c0_i32_0 = arith.constant 0 : i32
    %c0_i32_1 = arith.constant 0 : i32
    return %c0_i32, %c0_i32_0 : i32, i32
  }
  func.func @transform_16(%arg0: i32) -> (i32, i32) {
    %c0_i32 = arith.constant 0 : i32
    %c0_i32_0 = arith.constant 0 : i32
    %c0_i32_1 = arith.constant 0 : i32
    return %c0_i32, %c0_i32_0 : i32, i32
  }
  func.func @transform_17(%arg0: i32) -> (i32, i32) {
    %c0_i32 = arith.constant 0 : i32
    %c0_i32_0 = arith.constant 0 : i32
    %c0_i32_1 = arith.constant 0 : i32
    return %c0_i32, %c0_i32_0 : i32, i32
  }
  func.func @transform_18(%arg0: i32) -> (i32, i32) {
    %c0_i32 = arith.constant 0 : i32
    %c0_i32_0 = arith.constant 0 : i32
    %c0_i32_1 = arith.constant 0 : i32
    return %c0_i32, %c0_i32_0 : i32, i32
  }
  func.func @transform_19(%arg0: i32) -> (i32, i32) {
    %c0_i32 = arith.constant 0 : i32
    %c0_i32_0 = arith.constant 0 : i32
    return %arg0, %c0_i32 : i32, i32
  }
}

</mosaic_0001>

<llo_original>
// kernel: tpu_custom_call.1
$region0: #{tpu_custom_call.1}
  #allocation0 [shape = 'u32[]', space=smem, size = 0x4, offset = 0x4, fixed_abs, tag = 'smem constant byte address 0x4 - core index']
  #allocation1 [shape = 'u32[144,128]{1,0:T(1,128)}', space=vmem, size = 0x12000, scoped, tag = 'internal scratch']
  %s0 = inlined_call_operand.vmem [shape: f32[32,5], index: 0, kind: input, shape index: {}]
  %s1 = inlined_call_operand.vmem [shape: bf16[5,32], index: 1, kind: input, shape index: {}]
  %s2 = inlined_call_operand.vmem [shape: f32[1,32], index: 2, kind: input, shape index: {}]
  %s3 = inlined_call_operand.vmem [shape: bf16[2,32,96], index: 3, kind: input, shape index: {}]
  %s4 = inlined_call_operand.vmem [shape: f32[2,96], index: 4, kind: input, shape index: {}]
  %s5 = inlined_call_operand.vmem [shape: bf16[2,32,32], index: 5, kind: input, shape index: {}]
  %s6 = inlined_call_operand.vmem [shape: f32[2,32], index: 6, kind: input, shape index: {}]
  %s7 = inlined_call_operand.vmem [shape: f32[2,32], index: 7, kind: input, shape index: {}]
  %s8 = inlined_call_operand.vmem [shape: f32[2,32], index: 8, kind: input, shape index: {}]
  %s9 = inlined_call_operand.vmem [shape: bf16[2,32,256], index: 9, kind: input, shape index: {}]
  %s10 = inlined_call_operand.vmem [shape: f32[2,256], index: 10, kind: input, shape index: {}]
  %s11 = inlined_call_operand.vmem [shape: bf16[2,256,32], index: 11, kind: input, shape index: {}]
  %s12 = inlined_call_operand.vmem [shape: f32[2,32], index: 12, kind: input, shape index: {}]
  %s13 = inlined_call_operand.vmem [shape: f32[2,32], index: 13, kind: input, shape index: {}]
  %s14 = inlined_call_operand.vmem [shape: f32[2,32], index: 14, kind: input, shape index: {}]
  %s15 = inlined_call_operand.vmem [shape: f32[1,32], index: 15, kind: input, shape index: {}]
  %s16 = inlined_call_operand.vmem [shape: f32[1,32], index: 16, kind: input, shape index: {}]
  %s17 = inlined_call_operand.vmem [shape: bf16[32,128], index: 17, kind: input, shape index: {}]
  %s18 = inlined_call_operand.vmem [shape: f32[1,128], index: 18, kind: input, shape index: {}]
  %s19 = inlined_call_operand.hbm [shape: f32[32,128], index: 19, kind: output, shape index: {}]
  %s20 = sld [smem:[#allocation0]]
  $region86: #{tpu_custom_call.1} parent=0
    _
  %s22 = ssub.s32 1, %s20
  %s23 = scalar_select 0, %s22, %s20
  $region1: #{tpu_custom_call.1} parent=0
    #allocation2 [shape = 'u8[16384]{0}', space=vmem, size = 0x4000, scoped, tag = 'output window, operand 0, single buffered']
    #allocation3 [shape = 's32[1]{0}', space=sflag, size = 0x4, scoped, tag = 'scoped memory for tpu_custom_call.1']
    %24 = vsyncpa [#allocation3], 0
    // Predicated region
    $region2: #{tpu_custom_call.1} parent=1 // pred_check
      _
    $region3: #{tpu_custom_call.1} parent=1 // pred_check_branch
      %26 = sbr.rel (0) target = $region5
    $region4: #{tpu_custom_call.1} parent=1 // pred_region
      _
    $region5: #{tpu_custom_call.1} parent=1 // pred_fallthru
      _
    // Predicated region
    $region6: #{tpu_custom_call.1} parent=1 // pred_check
      _
    $region7: #{tpu_custom_call.1} parent=1 // pred_check_branch
      %28 = sbr.rel (0) target = $region9
    $region8: #{tpu_custom_call.1} parent=1 // pred_region
      _
    $region9: #{tpu_custom_call.1} parent=1 // pred_fallthru
      _
    // Predicated region
    $region10: #{tpu_custom_call.1} parent=1 // pred_check
      _
    $region11: #{tpu_custom_call.1} parent=1 // pred_check_branch
      %30 = sbr.rel (0) target = $region13
    $region12: #{tpu_custom_call.1} parent=1 // pred_region
      _
    $region13: #{tpu_custom_call.1} parent=1 // pred_fallthru
      _
    // Predicated region
    $region14: #{tpu_custom_call.1} parent=1 // pred_check
      _
    $region15: #{tpu_custom_call.1} parent=1 // pred_check_branch
      %32 = sbr.rel (0) target = $region17
    $region16: #{tpu_custom_call.1} parent=1 // pred_region
      _
    $region17: #{tpu_custom_call.1} parent=1 // pred_fallthru
      _
    // Predicated region
    $region18: #{tpu_custom_call.1} parent=1 // pred_check
      _
    $region19: #{tpu_custom_call.1} parent=1 // pred_check_branch
      %34 = sbr.rel (0) target = $region21
    $region20: #{tpu_custom_call.1} parent=1 // pred_region
      _
    $region21: #{tpu_custom_call.1} parent=1 // pred_fallthru
      _
    // Predicated region
    $region22: #{tpu_custom_call.1} parent=1 // pred_check
      _
    $region23: #{tpu_custom_call.1} parent=1 // pred_check_branch
      %36 = sbr.rel (0) target = $region25
    $region24: #{tpu_custom_call.1} parent=1 // pred_region
      _
    $region25: #{tpu_custom_call.1} parent=1 // pred_fallthru
      _
    // Predicated region
    $region26: #{tpu_custom_call.1} parent=1 // pred_check
      _
    $region27: #{tpu_custom_call.1} parent=1 // pred_check_branch
      %38 = sbr.rel (0) target = $region29
    $region28: #{tpu_custom_call.1} parent=1 // pred_region
      _
    $region29: #{tpu_custom_call.1} parent=1 // pred_fallthru
      _
    // Predicated region
    $region30: #{tpu_custom_call.1} parent=1 // pred_check
      _
    $region31: #{tpu_custom_call.1} parent=1 // pred_check_branch
      %40 = sbr.rel (0) target = $region33
    $region32: #{tpu_custom_call.1} parent=1 // pred_region
      _
    $region33: #{tpu_custom_call.1} parent=1 // pred_fallthru
      _
    // Predicated region
    $region34: #{tpu_custom_call.1} parent=1 // pred_check
      _
    $region35: #{tpu_custom_call.1} parent=1 // pred_check_branch
      %42 = sbr.rel (0) target = $region37
    $region36: #{tpu_custom_call.1} parent=1 // pred_region
      _
    $region37: #{tpu_custom_call.1} parent=1 // pred_fallthru
      _
    // Predicated region
    $region38: #{tpu_custom_call.1} parent=1 // pred_check
      _
    $region39: #{tpu_custom_call.1} parent=1 // pred_check_branch
      %44 = sbr.rel (0) target = $region41
    $region40: #{tpu_custom_call.1} parent=1 // pred_region
      _
    $region41: #{tpu_custom_call.1} parent=1 // pred_fallthru
      _
    // Predicated region
    $region42: #{tpu_custom_call.1} parent=1 // pred_check
      _
    $region43: #{tpu_custom_call.1} parent=1 // pred_check_branch
      %46 = sbr.rel (0) target = $region45
    $region44: #{tpu_custom_call.1} parent=1 // pred_region
      _
    $region45: #{tpu_custom_call.1} parent=1 // pred_fallthru
      _
    // Predicated region
    $region46: #{tpu_custom_call.1} parent=1 // pred_check
      _
    $region47: #{tpu_custom_call.1} parent=1 // pred_check_branch
      %48 = sbr.rel (0) target = $region49
    $region48: #{tpu_custom_call.1} parent=1 // pred_region
      _
    $region49: #{tpu_custom_call.1} parent=1 // pred_fallthru
      _
    // Predicated region
    $region50: #{tpu_custom_call.1} parent=1 // pred_check
      _
    $region51: #{tpu_custom_call.1} parent=1 // pred_check_branch
      %50 = sbr.rel (0) target = $region53
    $region52: #{tpu_custom_call.1} parent=1 // pred_region
      _
    $region53: #{tpu_custom_call.1} parent=1 // pred_fallthru
      _
    // Predicated region
    $region54: #{tpu_custom_call.1} parent=1 // pred_check
      _
    $region55: #{tpu_custom_call.1} parent=1 // pred_check_branch
      %52 = sbr.rel (0) target = $region57
    $region56: #{tpu_custom_call.1} parent=1 // pred_region
      _
    $region57: #{tpu_custom_call.1} parent=1 // pred_fallthru
      _
    // Predicated region
    $region58: #{tpu_custom_call.1} parent=1 // pred_check
      _
    $region59: #{tpu_custom_call.1} parent=1 // pred_check_branch
      %54 = sbr.rel (0) target = $region61
    $region60: #{tpu_custom_call.1} parent=1 // pred_region
      _
    $region61: #{tpu_custom_call.1} parent=1 // pred_fallthru
      _
    // Predicated region
    $region62: #{tpu_custom_call.1} parent=1 // pred_check
      _
    $region63: #{tpu_custom_call.1} parent=1 // pred_check_branch
      %56 = sbr.rel (0) target = $region65
    $region64: #{tpu_custom_call.1} parent=1 // pred_region
      _
    $region65: #{tpu_custom_call.1} parent=1 // pred_fallthru
      _
    // Predicated region
    $region66: #{tpu_custom_call.1} parent=1 // pred_check
      _
    $region67: #{tpu_custom_call.1} parent=1 // pred_check_branch
      %58 = sbr.rel (0) target = $region69
    $region68: #{tpu_custom_call.1} parent=1 // pred_region
      _
    $region69: #{tpu_custom_call.1} parent=1 // pred_fallthru
      _
    // Predicated region
    $region70: #{tpu_custom_call.1} parent=1 // pred_check
      _
    $region71: #{tpu_custom_call.1} parent=1 // pred_check_branch
      %60 = sbr.rel (0) target = $region73
    $region72: #{tpu_custom_call.1} parent=1 // pred_region
      _
    $region73: #{tpu_custom_call.1} parent=1 // pred_fallthru
      _
    // Predicated region
    $region74: #{tpu_custom_call.1} parent=1 // pred_check
      _
    $region75: #{tpu_custom_call.1} parent=1 // pred_check_branch
      %62 = sbr.rel (0) target = $region77
    $region76: #{tpu_custom_call.1} parent=1 // pred_region
      _
    $region77: #{tpu_custom_call.1} parent=1 // pred_fallthru
      _
    %v64 = vlaneseq
    %v65 = vshrl.u32 %v64, 7
    %v66 = vadd.s32 %v65, 8
    %v67 = vlaneseq
    %v68 = vand.u32 %v67, 127
    %vm69 = vcmp.le.s32.totalorder %v68, %v65
    %vm70 = vcmp.le.s32.totalorder %v68, %v66
    %v71 = vsel %vm69, 0.0, -1e+30
    %v72 = vsel %vm70, 0.0, -1e+30
    %v73 = vld [vmem:[%s0] sm:$0xff]
    %v74 = vld [vmem:[%s0 + $0x8] sm:$0xff]
    %v75 = vld [vmem:[%s0 + $0x10] sm:$0xff]
    %v76 = vld [vmem:[%s0 + $0x18] sm:$0xff]
    %v77 = vpack.c.bf16 %v74, %v73
    %v78 = vpack.c.bf16 %v76, %v75
    %v79 = vld [vmem:[%s1] sm:$0x7]
    %v80 = vld [vmem:[%s2] sm:$0x1]
    %v82 = vlaneseq
    %v83 = vshrl.u32 %v82, 7
    %v84 = vsub.s32 0, %v83
    %v85 = vrot.slane %v80, %v84
    %vm87 = vcmask 39936
    %v89 = vsel %vm87, %v77, 0
    %v92 = vsel %vm87, %v78, 0
    %vm94 = vcmask 1041408
    %vm95 = vcmask 1042432
    %v96 = vsel %vm94, 4294967295, 65535
    %v97 = vsel %vm95, %v96, 0
    %v99 = vand.u32 %v79, %v97
    %101 = vmatprep.subr.bf16.mxu0 0
    %102 = vmatpush1.bf16.msra.mxu0 %v99
    %103 = vmatprep.subr.bf16.mxu0 0
    %104 = vmatpush1.bf16.msra.mxu0 0
    %105 = vmatprep.subr.bf16.mxu0 0
    %106 = vmatpush1.bf16.msra.mxu0 0
    %107 = vmatprep.subr.bf16.mxu0 0
    %108 = vmatpush1.bf16.msra.mxu0 0
    %109 = vmatprep.subr.bf16.mxu0 0
    %110 = vmatpush1.bf16.msra.mxu0 0
    %111 = vmatprep.subr.bf16.mxu0 0
    %112 = vmatpush1.bf16.msra.mxu0 0
    %113 = vmatprep.subr.bf16.mxu0 0
    %114 = vmatpush1.bf16.msra.mxu0 0
    %115 = vmatprep.subr.bf16.mxu0 0
    %116 = vmatpush1.bf16.msra.mxu0 0
    %117 = vmatprep.subr.bf16.mxu0 0
    %118 = vmatpush1.bf16.msra.mxu0 0
    %119 = vmatprep.subr.bf16.mxu0 0
    %120 = vmatpush1.bf16.msra.mxu0 0
    %121 = vmatprep.subr.bf16.mxu0 0
    %122 = vmatpush1.bf16.msra.mxu0 0
    %123 = vmatprep.subr.bf16.mxu0 0
    %124 = vmatpush1.bf16.msra.mxu0 0
    %125 = vmatprep.subr.bf16.mxu0 0
    %126 = vmatpush1.bf16.msra.mxu0 0
    %127 = vmatprep.subr.bf16.mxu0 0
    %128 = vmatpush1.bf16.msra.mxu0 0
    %129 = vmatprep.subr.bf16.mxu0 0
    %130 = vmatpush1.bf16.msra.mxu0 0
    %131 = vmatprep.subr.bf16.mxu0 0
    %132 = vmatpush1.bf16.msra.mxu0 0
    %133 = vmatprep.mubr.bf16.mxu0 0
    %134 = vmatmul.mubr.bf16.gmra.mrb[0].mxu0 %v89
    %v135 = vpop.f32.mrb[0].mxu0
    %v136 = vadd.f32 %v85, %v135
    %v137 = vpop.f32.mrb[0].mxu0
    %v138 = vpop.f32.mrb[0].mxu0
    %v139 = vadd.f32 %v85, %v138
    %v140 = vpop.f32.mrb[0].mxu0
    %141 = vmatprep.mubr.bf16.mxu0 0
    %142 = vmatmul.mubr.bf16.gmra.mrb[0].mxu0 %v92
    %v143 = vpop.f32.mrb[0].mxu0
    %v144 = vadd.f32 %v85, %v143
    %v145 = vpop.f32.mrb[0].mxu0
    %v146 = vpop.f32.mrb[0].mxu0
    %v147 = vadd.f32 %v85, %v146
    %v148 = vpop.f32.mrb[0].mxu0
    %149 = vdwg.mxu0
    %v150 = vpack.c.bf16 %v139, %v136
    %v151 = vpack.c.bf16 %v147, %v144
    %v152 = vld [vmem:[%s3] sm:$0xf]
    %v153 = vld [vmem:[%s3 + $0x4] sm:$0xf]
    %v154 = vld [vmem:[%s3 + $0x8] sm:$0xf]
    %v155 = vld [vmem:[%s3 + $0xc] sm:$0xf]
    %v156 = vld [vmem:[%s4] sm:$0x1]
    %v157 = vlaneseq
    %v158 = vshrl.u32 %v157, 7
    %v159 = vsub.s32 0, %v158
    %v160 = vrot.slane %v156, %v159
    %v165 = vunpack.c.l.b16 %v152
    %v166 = vunpack.c.l.b16 %v153
    %v167 = vunpack.c.l.b16 %v154
    %v168 = vunpack.c.l.b16 %v155
    %v169 = vpack.c.b16 %v166, %v165
    %v170 = vpack.c.b16 %v168, %v167
    %vm173 = vcmask 261120
    %v175 = vsel %vm173, %v150, 0
    %v178 = vsel %vm173, %v151, 0
    %180 = vmatprep.subr.bf16.mxu0 0
    %181 = vmatpush1.bf16.msra.mxu0 %v169
    %182 = vmatprep.subr.bf16.mxu0 0
    %183 = vmatpush1.bf16.msra.mxu0 %v170
    %184 = vmatprep.subr.bf16.mxu0 0
    %185 = vmatpush1.bf16.msra.mxu0 0
    %186 = vmatprep.subr.bf16.mxu0 0
    %187 = vmatpush1.bf16.msra.mxu0 0
    %188 = vmatprep.subr.bf16.mxu0 0
    %189 = vmatpush1.bf16.msra.mxu0 0
    %190 = vmatprep.subr.bf16.mxu0 0
    %191 = vmatpush1.bf16.msra.mxu0 0
    %192 = vmatprep.subr.bf16.mxu0 0
    %193 = vmatpush1.bf16.msra.mxu0 0
    %194 = vmatprep.subr.bf16.mxu0 0
    %195 = vmatpush1.bf16.msra.mxu0 0
    %196 = vmatprep.subr.bf16.mxu0 0
    %197 = vmatpush1.bf16.msra.mxu0 0
    %198 = vmatprep.subr.bf16.mxu0 0
    %199 = vmatpush1.bf16.msra.mxu0 0
    %200 = vmatprep.subr.bf16.mxu0 0
    %201 = vmatpush1.bf16.msra.mxu0 0
    %202 = vmatprep.subr.bf16.mxu0 0
    %203 = vmatpush1.bf16.msra.mxu0 0
    %204 = vmatprep.subr.bf16.mxu0 0
    %205 = vmatpush1.bf16.msra.mxu0 0
    %206 = vmatprep.subr.bf16.mxu0 0
    %207 = vmatpush1.bf16.msra.mxu0 0
    %208 = vmatprep.subr.bf16.mxu0 0
    %209 = vmatpush1.bf16.msra.mxu0 0
    %210 = vmatprep.subr.bf16.mxu0 0
    %211 = vmatpush1.bf16.msra.mxu0 0
    %212 = vmatprep.mubr.bf16.mxu0 0
    %213 = vmatmul.mubr.bf16.gmra.mrb[0].mxu0 %v175
    %v214 = vpop.f32.mrb[0].mxu0
    %v215 = vadd.f32 %v160, %v214
    %v216 = vpop.f32.mrb[0].mxu0
    %v217 = vpop.f32.mrb[0].mxu0
    %v218 = vadd.f32 %v160, %v217
    %v219 = vpop.f32.mrb[0].mxu0
    %220 = vmatprep.mubr.bf16.mxu0 0
    %221 = vmatmul.mubr.bf16.gmra.mrb[0].mxu0 %v178
    %v222 = vpop.f32.mrb[0].mxu0
    %v223 = vadd.f32 %v160, %v222
    %v224 = vpop.f32.mrb[0].mxu0
    %v225 = vpop.f32.mrb[0].mxu0
    %v226 = vadd.f32 %v160, %v225
    %v227 = vpop.f32.mrb[0].mxu0
    %228 = vdwg.mxu0
    %v229 = vpack.c.bf16 %v218, %v215
    %v230 = vpack.c.bf16 %v226, %v223
    %233 = vrot.lane.b32.xlu0 %v229, 124
    %v234 = vpop.permute.xlu0 %233
    %235 = vrot.lane.b32.xlu0 %v230, 124
    %v236 = vpop.permute.xlu0 %235
    %237 = vrot.lane.b32.xlu0 %v229, 120
    %v238 = vpop.permute.xlu0 %237
    %239 = vrot.lane.b32.xlu0 %v230, 120
    %v240 = vpop.permute.xlu0 %239
    %241 = vrot.lane.b32.xlu0 %v229, 116
    %v242 = vpop.permute.xlu0 %241
    %243 = vrot.lane.b32.xlu0 %v230, 116
    %v244 = vpop.permute.xlu0 %243
    %245 = vrot.lane.b32.xlu0 %v229, 112
    %v246 = vpop.permute.xlu0 %245
    %247 = vrot.lane.b32.xlu0 %v230, 112
    %v248 = vpop.permute.xlu0 %247
    %249 = vrot.lane.b32.xlu0 %v229, 108
    %v250 = vpop.permute.xlu0 %249
    %251 = vrot.lane.b32.xlu0 %v230, 108
    %v252 = vpop.permute.xlu0 %251
    %253 = vrot.lane.b32.xlu0 %v229, 104
    %v254 = vpop.permute.xlu0 %253
    %255 = vrot.lane.b32.xlu0 %v230, 104
    %v256 = vpop.permute.xlu0 %255
    %257 = vrot.lane.b32.xlu0 %v229, 100
    %v258 = vpop.permute.xlu0 %257
    %259 = vrot.lane.b32.xlu0 %v230, 100
    %v260 = vpop.permute.xlu0 %259
    %261 = vrot.lane.b32.xlu0 %v229, 96
    %v262 = vpop.permute.xlu0 %261
    %vm263 = vcmask 31744
    %v265 = vsel %vm263, %v229, 0
    %v268 = vsel %vm263, %v262, 0
    %270 = vmatprep.subr.bf16.mxu0 0
    %271 = vmatpush1.bf16.xpose.msra.mxu0 %v268
    %272 = vmatprep.subr.bf16.mxu0 0
    %273 = vmatpush1.bf16.xpose.msra.mxu0 0
    %274 = vmatprep.subr.bf16.mxu0 0
    %275 = vmatpush1.bf16.xpose.msra.mxu0 0
    %276 = vmatprep.subr.bf16.mxu0 0
    %277 = vmatpush1.bf16.xpose.msra.mxu0 0
    %278 = vmatprep.subr.bf16.mxu0 0
    %279 = vmatpush1.bf16.xpose.msra.mxu0 0
    %280 = vmatprep.subr.bf16.mxu0 0
    %281 = vmatpush1.bf16.xpose.msra.mxu0 0
    %282 = vmatprep.subr.bf16.mxu0 0
    %283 = vmatpush1.bf16.xpose.msra.mxu0 0
    %284 = vmatprep.subr.bf16.mxu0 0
    %285 = vmatpush1.bf16.xpose.msra.mxu0 0
    %286 = vmatprep.subr.bf16.mxu0 0
    %287 = vmatpush1.bf16.xpose.msra.mxu0 0
    %288 = vmatprep.subr.bf16.mxu0 0
    %289 = vmatpush1.bf16.xpose.msra.mxu0 0
    %290 = vmatprep.subr.bf16.mxu0 0
    %291 = vmatpush1.bf16.xpose.msra.mxu0 0
    %292 = vmatprep.subr.bf16.mxu0 0
    %293 = vmatpush1.bf16.xpose.msra.mxu0 0
    %294 = vmatprep.subr.bf16.mxu0 0
    %295 = vmatpush1.bf16.xpose.msra.mxu0 0
    %296 = vmatprep.subr.bf16.mxu0 0
    %297 = vmatpush1.bf16.xpose.msra.mxu0 0
    %298 = vmatprep.subr.bf16.mxu0 0
    %299 = vmatpush1.bf16.xpose.msra.mxu0 0
    %300 = vmatprep.subr.bf16.mxu0 0
    %301 = vmatpush1.bf16.xpose.msra.mxu0 0
    %302 = vmatprep.mubr.bf16.mxu0 0
    %303 = vmatmul.mubr.bf16.gmra.mrb[0].mxu0 %v265
    %v304 = vpop.f32.mrb[0].mxu0
    %v305 = vadd.f32 %v71, %v304
    %v306 = vpop.f32.mrb[0].mxu0
    %v307 = vpop.f32.mrb[0].mxu0
    %v308 = vadd.f32 %v72, %v307
    %v309 = vpop.f32.mrb[0].mxu0
    %310 = vdwg.mxu0
    %311 = vrot.lane.b32.xlu0 %v230, 96
    %v312 = vpop.permute.xlu0 %311
    %v314 = vsel %vm263, %v230, 0
    %v317 = vsel %vm263, %v312, 0
    %319 = vmatprep.subr.bf16.mxu0 0
    %320 = vmatpush1.bf16.xpose.msra.mxu0 %v317
    %321 = vmatprep.subr.bf16.mxu0 0
    %322 = vmatpush1.bf16.xpose.msra.mxu0 0
    %323 = vmatprep.subr.bf16.mxu0 0
    %324 = vmatpush1.bf16.xpose.msra.mxu0 0
    %325 = vmatprep.subr.bf16.mxu0 0
    %326 = vmatpush1.bf16.xpose.msra.mxu0 0
    %327 = vmatprep.subr.bf16.mxu0 0
    %328 = vmatpush1.bf16.xpose.msra.mxu0 0
    %329 = vmatprep.subr.bf16.mxu0 0
    %330 = vmatpush1.bf16.xpose.msra.mxu0 0
    %331 = vmatprep.subr.bf16.mxu0 0
    %332 = vmatpush1.bf16.xpose.msra.mxu0 0
    %333 = vmatprep.subr.bf16.mxu0 0
    %334 = vmatpush1.bf16.xpose.msra.mxu0 0
    %335 = vmatprep.subr.bf16.mxu0 0
    %336 = vmatpush1.bf16.xpose.msra.mxu0 0
    %337 = vmatprep.subr.bf16.mxu0 0
    %338 = vmatpush1.bf16.xpose.msra.mxu0 0
    %339 = vmatprep.subr.bf16.mxu0 0
    %340 = vmatpush1.bf16.xpose.msra.mxu0 0
    %341 = vmatprep.subr.bf16.mxu0 0
    %342 = vmatpush1.bf16.xpose.msra.mxu0 0
    %343 = vmatprep.subr.bf16.mxu0 0
    %344 = vmatpush1.bf16.xpose.msra.mxu0 0
    %345 = vmatprep.subr.bf16.mxu0 0
    %346 = vmatpush1.bf16.xpose.msra.mxu0 0
    %347 = vmatprep.subr.bf16.mxu0 0
    %348 = vmatpush1.bf16.xpose.msra.mxu0 0
    %349 = vmatprep.subr.bf16.mxu0 0
    %350 = vmatpush1.bf16.xpose.msra.mxu0 0
    %351 = vmatprep.mubr.bf16.mxu0 0
    %352 = vmatmul.mubr.bf16.gmra.mrb[0].mxu0 %v314
    %v353 = vpop.f32.mrb[0].mxu0
    %v354 = vadd.f32 %v71, %v353
    %v355 = vpop.f32.mrb[0].mxu0
    %v356 = vpop.f32.mrb[0].mxu0
    %v357 = vadd.f32 %v72, %v356
    %v358 = vpop.f32.mrb[0].mxu0
    %359 = vdwg.mxu0
    %360 = vrot.lane.b32.xlu0 %v234, 96
    %v361 = vpop.permute.xlu0 %360
    %v363 = vsel %vm263, %v234, 0
    %v366 = vsel %vm263, %v361, 0
    %368 = vmatprep.subr.bf16.mxu0 0
    %369 = vmatpush1.bf16.xpose.msra.mxu0 %v366
    %370 = vmatprep.subr.bf16.mxu0 0
    %371 = vmatpush1.bf16.xpose.msra.mxu0 0
    %372 = vmatprep.subr.bf16.mxu0 0
    %373 = vmatpush1.bf16.xpose.msra.mxu0 0
    %374 = vmatprep.subr.bf16.mxu0 0
    %375 = vmatpush1.bf16.xpose.msra.mxu0 0
    %376 = vmatprep.subr.bf16.mxu0 0
    %377 = vmatpush1.bf16.xpose.msra.mxu0 0
    %378 = vmatprep.subr.bf16.mxu0 0
    %379 = vmatpush1.bf16.xpose.msra.mxu0 0
    %380 = vmatprep.subr.bf16.mxu0 0
    %381 = vmatpush1.bf16.xpose.msra.mxu0 0
    %382 = vmatprep.subr.bf16.mxu0 0
    %383 = vmatpush1.bf16.xpose.msra.mxu0 0
    %384 = vmatprep.subr.bf16.mxu0 0
    %385 = vmatpush1.bf16.xpose.msra.mxu0 0
    %386 = vmatprep.subr.bf16.mxu0 0
    %387 = vmatpush1.bf16.xpose.msra.mxu0 0
    %388 = vmatprep.subr.bf16.mxu0 0
    %389 = vmatpush1.bf16.xpose.msra.mxu0 0
    %390 = vmatprep.subr.bf16.mxu0 0
    %391 = vmatpush1.bf16.xpose.msra.mxu0 0
    %392 = vmatprep.subr.bf16.mxu0 0
    %393 = vmatpush1.bf16.xpose.msra.mxu0 0
    %394 = vmatprep.subr.bf16.mxu0 0
    %395 = vmatpush1.bf16.xpose.msra.mxu0 0
    %396 = vmatprep.subr.bf16.mxu0 0
    %397 = vmatpush1.bf16.xpose.msra.mxu0 0
    %398 = vmatprep.subr.bf16.mxu0 0
    %399 = vmatpush1.bf16.xpose.msra.mxu0 0
    %400 = vmatprep.mubr.bf16.mxu0 0
    %401 = vmatmul.mubr.bf16.gmra.mrb[0].mxu0 %v363
    %v402 = vpop.f32.mrb[0].mxu0
    %v403 = vadd.f32 %v71, %v402
    %v404 = vpop.f32.mrb[0].mxu0
    %v405 = vpop.f32.mrb[0].mxu0
    %v406 = vadd.f32 %v72, %v405
    %v407 = vpop.f32.mrb[0].mxu0
    %408 = vdwg.mxu0
    %409 = vrot.lane.b32.xlu0 %v236, 96
    %v410 = vpop.permute.xlu0 %409
    %v412 = vsel %vm263, %v236, 0
    %v415 = vsel %vm263, %v410, 0
    %417 = vmatprep.subr.bf16.mxu0 0
    %418 = vmatpush1.bf16.xpose.msra.mxu0 %v415
    %419 = vmatprep.subr.bf16.mxu0 0
    %420 = vmatpush1.bf16.xpose.msra.mxu0 0
    %421 = vmatprep.subr.bf16.mxu0 0
    %422 = vmatpush1.bf16.xpose.msra.mxu0 0
    %423 = vmatprep.subr.bf16.mxu0 0
    %424 = vmatpush1.bf16.xpose.msra.mxu0 0
    %425 = vmatprep.subr.bf16.mxu0 0
    %426 = vmatpush1.bf16.xpose.msra.mxu0 0
    %427 = vmatprep.subr.bf16.mxu0 0
    %428 = vmatpush1.bf16.xpose.msra.mxu0 0
    %429 = vmatprep.subr.bf16.mxu0 0
    %430 = vmatpush1.bf16.xpose.msra.mxu0 0
    %431 = vmatprep.subr.bf16.mxu0 0
    %432 = vmatpush1.bf16.xpose.msra.mxu0 0
    %433 = vmatprep.subr.bf16.mxu0 0
    %434 = vmatpush1.bf16.xpose.msra.mxu0 0
    %435 = vmatprep.subr.bf16.mxu0 0
    %436 = vmatpush1.bf16.xpose.msra.mxu0 0
    %437 = vmatprep.subr.bf16.mxu0 0
    %438 = vmatpush1.bf16.xpose.msra.mxu0 0
    %439 = vmatprep.subr.bf16.mxu0 0
    %440 = vmatpush1.bf16.xpose.msra.mxu0 0
    %441 = vmatprep.subr.bf16.mxu0 0
    %442 = vmatpush1.bf16.xpose.msra.mxu0 0
    %443 = vmatprep.subr.bf16.mxu0 0
    %444 = vmatpush1.bf16.xpose.msra.mxu0 0
    %445 = vmatprep.subr.bf16.mxu0 0
    %446 = vmatpush1.bf16.xpose.msra.mxu0 0
    %447 = vmatprep.subr.bf16.mxu0 0
    %448 = vmatpush1.bf16.xpose.msra.mxu0 0
    %449 = vmatprep.mubr.bf16.mxu0 0
    %450 = vmatmul.mubr.bf16.gmra.mrb[0].mxu0 %v412
    %v451 = vpop.f32.mrb[0].mxu0
    %v452 = vadd.f32 %v71, %v451
    %v453 = vpop.f32.mrb[0].mxu0
    %v454 = vpop.f32.mrb[0].mxu0
    %v455 = vadd.f32 %v72, %v454
    %v456 = vpop.f32.mrb[0].mxu0
    %457 = vdwg.mxu0
    %458 = vrot.lane.b32.xlu0 %v238, 96
    %v459 = vpop.permute.xlu0 %458
    %v461 = vsel %vm263, %v238, 0
    %v464 = vsel %vm263, %v459, 0
    %466 = vmatprep.subr.bf16.mxu0 0
    %467 = vmatpush1.bf16.xpose.msra.mxu0 %v464
    %468 = vmatprep.subr.bf16.mxu0 0
    %469 = vmatpush1.bf16.xpose.msra.mxu0 0
    %470 = vmatprep.subr.bf16.mxu0 0
    %471 = vmatpush1.bf16.xpose.msra.mxu0 0
    %472 = vmatprep.subr.bf16.mxu0 0
    %473 = vmatpush1.bf16.xpose.msra.mxu0 0
    %474 = vmatprep.subr.bf16.mxu0 0
    %475 = vmatpush1.bf16.xpose.msra.mxu0 0
    %476 = vmatprep.subr.bf16.mxu0 0
    %477 = vmatpush1.bf16.xpose.msra.mxu0 0
    %478 = vmatprep.subr.bf16.mxu0 0
    %479 = vmatpush1.bf16.xpose.msra.mxu0 0
    %480 = vmatprep.subr.bf16.mxu0 0
    %481 = vmatpush1.bf16.xpose.msra.mxu0 0
    %482 = vmatprep.subr.bf16.mxu0 0
    %483 = vmatpush1.bf16.xpose.msra.mxu0 0
    %484 = vmatprep.subr.bf16.mxu0 0
    %485 = vmatpush1.bf16.xpose.msra.mxu0 0
    %486 = vmatprep.subr.bf16.mxu0 0
    %487 = vmatpush1.bf16.xpose.msra.mxu0 0
    %488 = vmatprep.subr.bf16.mxu0 0
    %489 = vmatpush1.bf16.xpose.msra.mxu0 0
    %490 = vmatprep.subr.bf16.mxu0 0
    %491 = vmatpush1.bf16.xpose.msra.mxu0 0
    %492 = vmatprep.subr.bf16.mxu0 0
    %493 = vmatpush1.bf16.xpose.msra.mxu0 0
    %494 = vmatprep.subr.bf16.mxu0 0
    %495 = vmatpush1.bf16.xpose.msra.mxu0 0
    %496 = vmatprep.subr.bf16.mxu0 0
    %497 = vmatpush1.bf16.xpose.msra.mxu0 0
    %498 = vmatprep.mubr.bf16.mxu0 0
    %499 = vmatmul.mubr.bf16.gmra.mrb[0].mxu0 %v461
    %v500 = vpop.f32.mrb[0].mxu0
    %v501 = vadd.f32 %v71, %v500
    %v502 = vpop.f32.mrb[0].mxu0
    %v503 = vpop.f32.mrb[0].mxu0
    %v504 = vadd.f32 %v72, %v503
    %v505 = vpop.f32.mrb[0].mxu0
    %506 = vdwg.mxu0
    %507 = vrot.lane.b32.xlu0 %v240, 96
    %v508 = vpop.permute.xlu0 %507
    %v510 = vsel %vm263, %v240, 0
    %v513 = vsel %vm263, %v508, 0
    %515 = vmatprep.subr.bf16.mxu0 0
    %516 = vmatpush1.bf16.xpose.msra.mxu0 %v513
    %517 = vmatprep.subr.bf16.mxu0 0
    %518 = vmatpush1.bf16.xpose.msra.mxu0 0
    %519 = vmatprep.subr.bf16.mxu0 0
    %520 = vmatpush1.bf16.xpose.msra.mxu0 0
    %521 = vmatprep.subr.bf16.mxu0 0
    %522 = vmatpush1.bf16.xpose.msra.mxu0 0
    %523 = vmatprep.subr.bf16.mxu0 0
    %524 = vmatpush1.bf16.xpose.msra.mxu0 0
    %525 = vmatprep.subr.bf16.mxu0 0
    %526 = vmatpush1.bf16.xpose.msra.mxu0 0
    %527 = vmatprep.subr.bf16.mxu0 0
    %528 = vmatpush1.bf16.xpose.msra.mxu0 0
    %529 = vmatprep.subr.bf16.mxu0 0
    %530 = vmatpush1.bf16.xpose.msra.mxu0 0
    %531 = vmatprep.subr.bf16.mxu0 0
    %532 = vmatpush1.bf16.xpose.msra.mxu0 0
    %533 = vmatprep.subr.bf16.mxu0 0
    %534 = vmatpush1.bf16.xpose.msra.mxu0 0
    %535 = vmatprep.subr.bf16.mxu0 0
    %536 = vmatpush1.bf16.xpose.msra.mxu0 0
    %537 = vmatprep.subr.bf16.mxu0 0
    %538 = vmatpush1.bf16.xpose.msra.mxu0 0
    %539 = vmatprep.subr.bf16.mxu0 0
    %540 = vmatpush1.bf16.xpose.msra.mxu0 0
    %541 = vmatprep.subr.bf16.mxu0 0
    %542 = vmatpush1.bf16.xpose.msra.mxu0 0
    %543 = vmatprep.subr.bf16.mxu0 0
    %544 = vmatpush1.bf16.xpose.msra.mxu0 0
    %545 = vmatprep.subr.bf16.mxu0 0
    %546 = vmatpush1.bf16.xpose.msra.mxu0 0
    %547 = vmatprep.mubr.bf16.mxu0 0
    %548 = vmatmul.mubr.bf16.gmra.mrb[0].mxu0 %v510
    %v549 = vpop.f32.mrb[0].mxu0
    %v550 = vadd.f32 %v71, %v549
    %v551 = vpop.f32.mrb[0].mxu0
    %v552 = vpop.f32.mrb[0].mxu0
    %v553 = vadd.f32 %v72, %v552
    %v554 = vpop.f32.mrb[0].mxu0
    %555 = vdwg.mxu0
    %556 = vrot.lane.b32.xlu0 %v242, 96
    %v557 = vpop.permute.xlu0 %556
    %v559 = vsel %vm263, %v242, 0
    %v562 = vsel %vm263, %v557, 0
    %564 = vmatprep.subr.bf16.mxu0 0
    %565 = vmatpush1.bf16.xpose.msra.mxu0 %v562
    %566 = vmatprep.subr.bf16.mxu0 0
    %567 = vmatpush1.bf16.xpose.msra.mxu0 0
    %568 = vmatprep.subr.bf16.mxu0 0
    %569 = vmatpush1.bf16.xpose.msra.mxu0 0
    %570 = vmatprep.subr.bf16.mxu0 0
    %571 = vmatpush1.bf16.xpose.msra.mxu0 0
    %572 = vmatprep.subr.bf16.mxu0 0
    %573 = vmatpush1.bf16.xpose.msra.mxu0 0
    %574 = vmatprep.subr.bf16.mxu0 0
    %575 = vmatpush1.bf16.xpose.msra.mxu0 0
    %576 = vmatprep.subr.bf16.mxu0 0
    %577 = vmatpush1.bf16.xpose.msra.mxu0 0
    %578 = vmatprep.subr.bf16.mxu0 0
    %579 = vmatpush1.bf16.xpose.msra.mxu0 0
    %580 = vmatprep.subr.bf16.mxu0 0
    %581 = vmatpush1.bf16.xpose.msra.mxu0 0
    %582 = vmatprep.subr.bf16.mxu0 0
    %583 = vmatpush1.bf16.xpose.msra.mxu0 0
    %584 = vmatprep.subr.bf16.mxu0 0
    %585 = vmatpush1.bf16.xpose.msra.mxu0 0
    %586 = vmatprep.subr.bf16.mxu0 0
    %587 = vmatpush1.bf16.xpose.msra.mxu0 0
    %588 = vmatprep.subr.bf16.mxu0 0
    %589 = vmatpush1.bf16.xpose.msra.mxu0 0
    %590 = vmatprep.subr.bf16.mxu0 0
    %591 = vmatpush1.bf16.xpose.msra.mxu0 0
    %592 = vmatprep.subr.bf16.mxu0 0
    %593 = vmatpush1.bf16.xpose.msra.mxu0 0
    %594 = vmatprep.subr.bf16.mxu0 0
    %595 = vmatpush1.bf16.xpose.msra.mxu0 0
    %596 = vmatprep.mubr.bf16.mxu0 0
    %597 = vmatmul.mubr.bf16.gmra.mrb[0].mxu0 %v559
    %v598 = vpop.f32.mrb[0].mxu0
    %v599 = vadd.f32 %v71, %v598
    %v600 = vpop.f32.mrb[0].mxu0
    %v601 = vpop.f32.mrb[0].mxu0
    %v602 = vadd.f32 %v72, %v601
    %v603 = vpop.f32.mrb[0].mxu0
    %604 = vdwg.mxu0
    %605 = vrot.lane.b32.xlu0 %v244, 96
    %v606 = vpop.permute.xlu0 %605
    %v608 = vsel %vm263, %v244, 0
    %v611 = vsel %vm263, %v606, 0
    %613 = vmatprep.subr.bf16.mxu0 0
    %614 = vmatpush1.bf16.xpose.msra.mxu0 %v611
    %615 = vmatprep.subr.bf16.mxu0 0
    %616 = vmatpush1.bf16.xpose.msra.mxu0 0
    %617 = vmatprep.subr.bf16.mxu0 0
    %618 = vmatpush1.bf16.xpose.msra.mxu0 0
    %619 = vmatprep.subr.bf16.mxu0 0
    %620 = vmatpush1.bf16.xpose.msra.mxu0 0
    %621 = vmatprep.subr.bf16.mxu0 0
    %622 = vmatpush1.bf16.xpose.msra.mxu0 0
    %623 = vmatprep.subr.bf16.mxu0 0
    %624 = vmatpush1.bf16.xpose.msra.mxu0 0
    %625 = vmatprep.subr.bf16.mxu0 0
    %626 = vmatpush1.bf16.xpose.msra.mxu0 0
    %627 = vmatprep.subr.bf16.mxu0 0
    %628 = vmatpush1.bf16.xpose.msra.mxu0 0
    %629 = vmatprep.subr.bf16.mxu0 0
    %630 = vmatpush1.bf16.xpose.msra.mxu0 0
    %631 = vmatprep.subr.bf16.mxu0 0
    %632 = vmatpush1.bf16.xpose.msra.mxu0 0
    %633 = vmatprep.subr.bf16.mxu0 0
    %634 = vmatpush1.bf16.xpose.msra.mxu0 0
    %635 = vmatprep.subr.bf16.mxu0 0
    %636 = vmatpush1.bf16.xpose.msra.mxu0 0
    %637 = vmatprep.subr.bf16.mxu0 0
    %638 = vmatpush1.bf16.xpose.msra.mxu0 0
    %639 = vmatprep.subr.bf16.mxu0 0
    %640 = vmatpush1.bf16.xpose.msra.mxu0 0
    %641 = vmatprep.subr.bf16.mxu0 0
    %642 = vmatpush1.bf16.xpose.msra.mxu0 0
    %643 = vmatprep.subr.bf16.mxu0 0
    %644 = vmatpush1.bf16.xpose.msra.mxu0 0
    %645 = vmatprep.mubr.bf16.mxu0 0
    %646 = vmatmul.mubr.bf16.gmra.mrb[0].mxu0 %v608
    %v647 = vpop.f32.mrb[0].mxu0
    %v648 = vadd.f32 %v71, %v647
    %v649 = vpop.f32.mrb[0].mxu0
    %v650 = vpop.f32.mrb[0].mxu0
    %v651 = vadd.f32 %v72, %v650
    %v652 = vpop.f32.mrb[0].mxu0
    %653 = vdwg.mxu0
    %654 = vrot.lane.b32.xlu0 %v246, 96
    %v655 = vpop.permute.xlu0 %654
    %v657 = vsel %vm263, %v246, 0
    %v660 = vsel %vm263, %v655, 0
    %662 = vmatprep.subr.bf16.mxu0 0
    %663 = vmatpush1.bf16.xpose.msra.mxu0 %v660
    %664 = vmatprep.subr.bf16.mxu0 0
    %665 = vmatpush1.bf16.xpose.msra.mxu0 0
    %666 = vmatprep.subr.bf16.mxu0 0
    %667 = vmatpush1.bf16.xpose.msra.mxu0 0
    %668 = vmatprep.subr.bf16.mxu0 0
    %669 = vmatpush1.bf16.xpose.msra.mxu0 0
    %670 = vmatprep.subr.bf16.mxu0 0
    %671 = vmatpush1.bf16.xpose.msra.mxu0 0
    %672 = vmatprep.subr.bf16.mxu0 0
    %673 = vmatpush1.bf16.xpose.msra.mxu0 0
    %674 = vmatprep.subr.bf16.mxu0 0
    %675 = vmatpush1.bf16.xpose.msra.mxu0 0
    %676 = vmatprep.subr.bf16.mxu0 0
    %677 = vmatpush1.bf16.xpose.msra.mxu0 0
    %678 = vmatprep.subr.bf16.mxu0 0
    %679 = vmatpush1.bf16.xpose.msra.mxu0 0
    %680 = vmatprep.subr.bf16.mxu0 0
    %681 = vmatpush1.bf16.xpose.msra.mxu0 0
    %682 = vmatprep.subr.bf16.mxu0 0
    %683 = vmatpush1.bf16.xpose.msra.mxu0 0
    %684 = vmatprep.subr.bf16.mxu0 0
    %685 = vmatpush1.bf16.xpose.msra.mxu0 0
    %686 = vmatprep.subr.bf16.mxu0 0
    %687 = vmatpush1.bf16.xpose.msra.mxu0 0
    %688 = vmatprep.subr.bf16.mxu0 0
    %689 = vmatpush1.bf16.xpose.msra.mxu0 0
    %690 = vmatprep.subr.bf16.mxu0 0
    %691 = vmatpush1.bf16.xpose.msra.mxu0 0
    %692 = vmatprep.subr.bf16.mxu0 0
    %693 = vmatpush1.bf16.xpose.msra.mxu0 0
    %694 = vmatprep.mubr.bf16.mxu0 0
    %695 = vmatmul.mubr.bf16.gmra.mrb[0].mxu0 %v657
    %v696 = vpop.f32.mrb[0].mxu0
    %v697 = vadd.f32 %v71, %v696
    %v698 = vpop.f32.mrb[0].mxu0
    %v699 = vpop.f32.mrb[0].mxu0
    %v700 = vadd.f32 %v72, %v699
    %v701 = vpop.f32.mrb[0].mxu0
    %702 = vdwg.mxu0
    %703 = vrot.lane.b32.xlu0 %v248, 96
    %v704 = vpop.permute.xlu0 %703
    %v706 = vsel %vm263, %v248, 0
    %v709 = vsel %vm263, %v704, 0
    %711 = vmatprep.subr.bf16.mxu0 0
    %712 = vmatpush1.bf16.xpose.msra.mxu0 %v709
    %713 = vmatprep.subr.bf16.mxu0 0
    %714 = vmatpush1.bf16.xpose.msra.mxu0 0
    %715 = vmatprep.subr.bf16.mxu0 0
    %716 = vmatpush1.bf16.xpose.msra.mxu0 0
    %717 = vmatprep.subr.bf16.mxu0 0
    %718 = vmatpush1.bf16.xpose.msra.mxu0 0
    %719 = vmatprep.subr.bf16.mxu0 0
    %720 = vmatpush1.bf16.xpose.msra.mxu0 0
    %721 = vmatprep.subr.bf16.mxu0 0
    %722 = vmatpush1.bf16.xpose.msra.mxu0 0
    %723 = vmatprep.subr.bf16.mxu0 0
    %724 = vmatpush1.bf16.xpose.msra.mxu0 0
    %725 = vmatprep.subr.bf16.mxu0 0
    %726 = vmatpush1.bf16.xpose.msra.mxu0 0
    %727 = vmatprep.subr.bf16.mxu0 0
    %728 = vmatpush1.bf16.xpose.msra.mxu0 0
    %729 = vmatprep.subr.bf16.mxu0 0
    %730 = vmatpush1.bf16.xpose.msra.mxu0 0
    %731 = vmatprep.subr.bf16.mxu0 0
    %732 = vmatpush1.bf16.xpose.msra.mxu0 0
    %733 = vmatprep.subr.bf16.mxu0 0
    %734 = vmatpush1.bf16.xpose.msra.mxu0 0
    %735 = vmatprep.subr.bf16.mxu0 0
    %736 = vmatpush1.bf16.xpose.msra.mxu0 0
    %737 = vmatprep.subr.bf16.mxu0 0
    %738 = vmatpush1.bf16.xpose.msra.mxu0 0
    %739 = vmatprep.subr.bf16.mxu0 0
    %740 = vmatpush1.bf16.xpose.msra.mxu0 0
    %741 = vmatprep.subr.bf16.mxu0 0
    %742 = vmatpush1.bf16.xpose.msra.mxu0 0
    %743 = vmatprep.mubr.bf16.mxu0 0
    %744 = vmatmul.mubr.bf16.gmra.mrb[0].mxu0 %v706
    %v745 = vpop.f32.mrb[0].mxu0
    %v746 = vadd.f32 %v71, %v745
    %v747 = vpop.f32.mrb[0].mxu0
    %v748 = vpop.f32.mrb[0].mxu0
    %v749 = vadd.f32 %v72, %v748
    %v750 = vpop.f32.mrb[0].mxu0
    %751 = vdwg.mxu0
    %752 = vrot.lane.b32.xlu0 %v250, 96
    %v753 = vpop.permute.xlu0 %752
    %v755 = vsel %vm263, %v250, 0
    %v758 = vsel %vm263, %v753, 0
    %760 = vmatprep.subr.bf16.mxu0 0
    %761 = vmatpush1.bf16.xpose.msra.mxu0 %v758
    %762 = vmatprep.subr.bf16.mxu0 0
    %763 = vmatpush1.bf16.xpose.msra.mxu0 0
    %764 = vmatprep.subr.bf16.mxu0 0
    %765 = vmatpush1.bf16.xpose.msra.mxu0 0
    %766 = vmatprep.subr.bf16.mxu0 0
    %767 = vmatpush1.bf16.xpose.msra.mxu0 0
    %768 = vmatprep.subr.bf16.mxu0 0
    %769 = vmatpush1.bf16.xpose.msra.mxu0 0
    %770 = vmatprep.subr.bf16.mxu0 0
    %771 = vmatpush1.bf16.xpose.msra.mxu0 0
    %772 = vmatprep.subr.bf16.mxu0 0
    %773 = vmatpush1.bf16.xpose.msra.mxu0 0
    %774 = vmatprep.subr.bf16.mxu0 0
    %775 = vmatpush1.bf16.xpose.msra.mxu0 0
    %776 = vmatprep.subr.bf16.mxu0 0
    %777 = vmatpush1.bf16.xpose.msra.mxu0 0
    %778 = vmatprep.subr.bf16.mxu0 0
    %779 = vmatpush1.bf16.xpose.msra.mxu0 0
    %780 = vmatprep.subr.bf16.mxu0 0
    %781 = vmatpush1.bf16.xpose.msra.mxu0 0
    %782 = vmatprep.subr.bf16.mxu0 0
    %783 = vmatpush1.bf16.xpose.msra.mxu0 0
    %784 = vmatprep.subr.bf16.mxu0 0
    %785 = vmatpush1.bf16.xpose.msra.mxu0 0
    %786 = vmatprep.subr.bf16.mxu0 0
    %787 = vmatpush1.bf16.xpose.msra.mxu0 0
    %788 = vmatprep.subr.bf16.mxu0 0
    %789 = vmatpush1.bf16.xpose.msra.mxu0 0
    %790 = vmatprep.subr.bf16.mxu0 0
    %791 = vmatpush1.bf16.xpose.msra.mxu0 0
    %792 = vmatprep.mubr.bf16.mxu0 0
    %793 = vmatmul.mubr.bf16.gmra.mrb[0].mxu0 %v755
    %v794 = vpop.f32.mrb[0].mxu0
    %v795 = vadd.f32 %v71, %v794
    %v796 = vpop.f32.mrb[0].mxu0
    %v797 = vpop.f32.mrb[0].mxu0
    %v798 = vadd.f32 %v72, %v797
    %v799 = vpop.f32.mrb[0].mxu0
    %800 = vdwg.mxu0
    %801 = vrot.lane.b32.xlu0 %v252, 96
    %v802 = vpop.permute.xlu0 %801
    %v804 = vsel %vm263, %v252, 0
    %v807 = vsel %vm263, %v802, 0
    %809 = vmatprep.subr.bf16.mxu0 0
    %810 = vmatpush1.bf16.xpose.msra.mxu0 %v807
    %811 = vmatprep.subr.bf16.mxu0 0
    %812 = vmatpush1.bf16.xpose.msra.mxu0 0
    %813 = vmatprep.subr.bf16.mxu0 0
    %814 = vmatpush1.bf16.xpose.msra.mxu0 0
    %815 = vmatprep.subr.bf16.mxu0 0
    %816 = vmatpush1.bf16.xpose.msra.mxu0 0
    %817 = vmatprep.subr.bf16.mxu0 0
    %818 = vmatpush1.bf16.xpose.msra.mxu0 0
    %819 = vmatprep.subr.bf16.mxu0 0
    %820 = vmatpush1.bf16.xpose.msra.mxu0 0
    %821 = vmatprep.subr.bf16.mxu0 0
    %822 = vmatpush1.bf16.xpose.msra.mxu0 0
    %823 = vmatprep.subr.bf16.mxu0 0
    %824 = vmatpush1.bf16.xpose.msra.mxu0 0
    %825 = vmatprep.subr.bf16.mxu0 0
    %826 = vmatpush1.bf16.xpose.msra.mxu0 0
    %827 = vmatprep.subr.bf16.mxu0 0
    %828 = vmatpush1.bf16.xpose.msra.mxu0 0
    %829 = vmatprep.subr.bf16.mxu0 0
    %830 = vmatpush1.bf16.xpose.msra.mxu0 0
    %831 = vmatprep.subr.bf16.mxu0 0
    %832 = vmatpush1.bf16.xpose.msra.mxu0 0
    %833 = vmatprep.subr.bf16.mxu0 0
    %834 = vmatpush1.bf16.xpose.msra.mxu0 0
    %835 = vmatprep.subr.bf16.mxu0 0
    %836 = vmatpush1.bf16.xpose.msra.mxu0 0
    %837 = vmatprep.subr.bf16.mxu0 0
    %838 = vmatpush1.bf16.xpose.msra.mxu0 0
    %839 = vmatprep.subr.bf16.mxu0 0
    %840 = vmatpush1.bf16.xpose.msra.mxu0 0
    %841 = vmatprep.mubr.bf16.mxu0 0
    %842 = vmatmul.mubr.bf16.gmra.mrb[0].mxu0 %v804
    %v843 = vpop.f32.mrb[0].mxu0
    %v844 = vadd.f32 %v71, %v843
    %v845 = vpop.f32.mrb[0].mxu0
    %v846 = vpop.f32.mrb[0].mxu0
    %v847 = vadd.f32 %v72, %v846
    %v848 = vpop.f32.mrb[0].mxu0
    %849 = vdwg.mxu0
    %850 = vrot.lane.b32.xlu0 %v254, 96
    %v851 = vpop.permute.xlu0 %850
    %v853 = vsel %vm263, %v254, 0
    %v856 = vsel %vm263, %v851, 0
    %858 = vmatprep.subr.bf16.mxu0 0
    %859 = vmatpush1.bf16.xpose.msra.mxu0 %v856
    %860 = vmatprep.subr.bf16.mxu0 0
    %861 = vmatpush1.bf16.xpose.msra.mxu0 0
    %862 = vmatprep.subr.bf16.mxu0 0
    %863 = vmatpush1.bf16.xpose.msra.mxu0 0
    %864 = vmatprep.subr.bf16.mxu0 0
    %865 = vmatpush1.bf16.xpose.msra.mxu0 0
    %866 = vmatprep.subr.bf16.mxu0 0
    %867 = vmatpush1.bf16.xpose.msra.mxu0 0
    %868 = vmatprep.subr.bf16.mxu0 0
    %869 = vmatpush1.bf16.xpose.msra.mxu0 0
    %870 = vmatprep.subr.bf16.mxu0 0
    %871 = vmatpush1.bf16.xpose.msra.mxu0 0
    %872 = vmatprep.subr.bf16.mxu0 0
    %873 = vmatpush1.bf16.xpose.msra.mxu0 0
    %874 = vmatprep.subr.bf16.mxu0 0
    %875 = vmatpush1.bf16.xpose.msra.mxu0 0
    %876 = vmatprep.subr.bf16.mxu0 0
    %877 = vmatpush1.bf16.xpose.msra.mxu0 0
    %878 = vmatprep.subr.bf16.mxu0 0
    %879 = vmatpush1.bf16.xpose.msra.mxu0 0
    %880 = vmatprep.subr.bf16.mxu0 0
    %881 = vmatpush1.bf16.xpose.msra.mxu0 0
    %882 = vmatprep.subr.bf16.mxu0 0
    %883 = vmatpush1.bf16.xpose.msra.mxu0 0
    %884 = vmatprep.subr.bf16.mxu0 0
    %885 = vmatpush1.bf16.xpose.msra.mxu0 0
    %886 = vmatprep.subr.bf16.mxu0 0
    %887 = vmatpush1.bf16.xpose.msra.mxu0 0
    %888 = vmatprep.subr.bf16.mxu0 0
    %889 = vmatpush1.bf16.xpose.msra.mxu0 0
    %890 = vmatprep.mubr.bf16.mxu0 0
    %891 = vmatmul.mubr.bf16.gmra.mrb[0].mxu0 %v853
    %v892 = vpop.f32.mrb[0].mxu0
    %v893 = vadd.f32 %v71, %v892
    %v894 = vpop.f32.mrb[0].mxu0
    %v895 = vpop.f32.mrb[0].mxu0
    %v896 = vadd.f32 %v72, %v895
    %v897 = vpop.f32.mrb[0].mxu0
    %898 = vdwg.mxu0
    %899 = vrot.lane.b32.xlu0 %v256, 96
    %v900 = vpop.permute.xlu0 %899
    %v902 = vsel %vm263, %v256, 0
    %v905 = vsel %vm263, %v900, 0
    %907 = vmatprep.subr.bf16.mxu0 0
    %908 = vmatpush1.bf16.xpose.msra.mxu0 %v905
    %909 = vmatprep.subr.bf16.mxu0 0
    %910 = vmatpush1.bf16.xpose.msra.mxu0 0
    %911 = vmatprep.subr.bf16.mxu0 0
    %912 = vmatpush1.bf16.xpose.msra.mxu0 0
    %913 = vmatprep.subr.bf16.mxu0 0
    %914 = vmatpush1.bf16.xpose.msra.mxu0 0
    %915 = vmatprep.subr.bf16.mxu0 0
    %916 = vmatpush1.bf16.xpose.msra.mxu0 0
    %917 = vmatprep.subr.bf16.mxu0 0
    %918 = vmatpush1.bf16.xpose.msra.mxu0 0
    %919 = vmatprep.subr.bf16.mxu0 0
    %920 = vmatpush1.bf16.xpose.msra.mxu0 0
    %921 = vmatprep.subr.bf16.mxu0 0
    %922 = vmatpush1.bf16.xpose.msra.mxu0 0
    %923 = vmatprep.subr.bf16.mxu0 0
    %924 = vmatpush1.bf16.xpose.msra.mxu0 0
    %925 = vmatprep.subr.bf16.mxu0 0
    %926 = vmatpush1.bf16.xpose.msra.mxu0 0
    %927 = vmatprep.subr.bf16.mxu0 0
    %928 = vmatpush1.bf16.xpose.msra.mxu0 0
    %929 = vmatprep.subr.bf16.mxu0 0
    %930 = vmatpush1.bf16.xpose.msra.mxu0 0
    %931 = vmatprep.subr.bf16.mxu0 0
    %932 = vmatpush1.bf16.xpose.msra.mxu0 0
    %933 = vmatprep.subr.bf16.mxu0 0
    %934 = vmatpush1.bf16.xpose.msra.mxu0 0
    %935 = vmatprep.subr.bf16.mxu0 0
    %936 = vmatpush1.bf16.xpose.msra.mxu0 0
    %937 = vmatprep.subr.bf16.mxu0 0
    %938 = vmatpush1.bf16.xpose.msra.mxu0 0
    %939 = vmatprep.mubr.bf16.mxu0 0
    %940 = vmatmul.mubr.bf16.gmra.mrb[0].mxu0 %v902
    %v941 = vpop.f32.mrb[0].mxu0
    %v942 = vadd.f32 %v71, %v941
    %v943 = vpop.f32.mrb[0].mxu0
    %v944 = vpop.f32.mrb[0].mxu0
    %v945 = vadd.f32 %v72, %v944
    %v946 = vpop.f32.mrb[0].mxu0
    %947 = vdwg.mxu0
    %948 = vrot.lane.b32.xlu0 %v258, 96
    %v949 = vpop.permute.xlu0 %948
    %v951 = vsel %vm263, %v258, 0
    %v954 = vsel %vm263, %v949, 0
    %956 = vmatprep.subr.bf16.mxu0 0
    %957 = vmatpush1.bf16.xpose.msra.mxu0 %v954
    %958 = vmatprep.subr.bf16.mxu0 0
    %959 = vmatpush1.bf16.xpose.msra.mxu0 0
    %960 = vmatprep.subr.bf16.mxu0 0
    %961 = vmatpush1.bf16.xpose.msra.mxu0 0
    %962 = vmatprep.subr.bf16.mxu0 0
    %963 = vmatpush1.bf16.xpose.msra.mxu0 0
    %964 = vmatprep.subr.bf16.mxu0 0
    %965 = vmatpush1.bf16.xpose.msra.mxu0 0
    %966 = vmatprep.subr.bf16.mxu0 0
    %967 = vmatpush1.bf16.xpose.msra.mxu0 0
    %968 = vmatprep.subr.bf16.mxu0 0
    %969 = vmatpush1.bf16.xpose.msra.mxu0 0
    %970 = vmatprep.subr.bf16.mxu0 0
    %971 = vmatpush1.bf16.xpose.msra.mxu0 0
    %972 = vmatprep.subr.bf16.mxu0 0
    %973 = vmatpush1.bf16.xpose.msra.mxu0 0
    %974 = vmatprep.subr.bf16.mxu0 0
    %975 = vmatpush1.bf16.xpose.msra.mxu0 0
    %976 = vmatprep.subr.bf16.mxu0 0
    %977 = vmatpush1.bf16.xpose.msra.mxu0 0
    %978 = vmatprep.subr.bf16.mxu0 0
    %979 = vmatpush1.bf16.xpose.msra.mxu0 0
    %980 = vmatprep.subr.bf16.mxu0 0
    %981 = vmatpush1.bf16.xpose.msra.mxu0 0
    %982 = vmatprep.subr.bf16.mxu0 0
    %983 = vmatpush1.bf16.xpose.msra.mxu0 0
    %984 = vmatprep.subr.bf16.mxu0 0
    %985 = vmatpush1.bf16.xpose.msra.mxu0 0
    %986 = vmatprep.subr.bf16.mxu0 0
    %987 = vmatpush1.bf16.xpose.msra.mxu0 0
    %988 = vmatprep.mubr.bf16.mxu0 0
    %989 = vmatmul.mubr.bf16.gmra.mrb[0].mxu0 %v951
    %v990 = vpop.f32.mrb[0].mxu0
    %v991 = vadd.f32 %v71, %v990
    %v992 = vpop.f32.mrb[0].mxu0
    %v993 = vpop.f32.mrb[0].mxu0
    %v994 = vadd.f32 %v72, %v993
    %v995 = vpop.f32.mrb[0].mxu0
    %996 = vdwg.mxu0
    %997 = vrot.lane.b32.xlu0 %v260, 96
    %v998 = vpop.permute.xlu0 %997
    %v1000 = vsel %vm263, %v260, 0
    %v1003 = vsel %vm263, %v998, 0
    %1005 = vmatprep.subr.bf16.mxu0 0
    %1006 = vmatpush1.bf16.xpose.msra.mxu0 %v1003
    %1007 = vmatprep.subr.bf16.mxu0 0
    %1008 = vmatpush1.bf16.xpose.msra.mxu0 0
    %1009 = vmatprep.subr.bf16.mxu0 0
    %1010 = vmatpush1.bf16.xpose.msra.mxu0 0
    %1011 = vmatprep.subr.bf16.mxu0 0
    %1012 = vmatpush1.bf16.xpose.msra.mxu0 0
    %1013 = vmatprep.subr.bf16.mxu0 0
    %1014 = vmatpush1.bf16.xpose.msra.mxu0 0
    %1015 = vmatprep.subr.bf16.mxu0 0
    %1016 = vmatpush1.bf16.xpose.msra.mxu0 0
    %1017 = vmatprep.subr.bf16.mxu0 0
    %1018 = vmatpush1.bf16.xpose.msra.mxu0 0
    %1019 = vmatprep.subr.bf16.mxu0 0
    %1020 = vmatpush1.bf16.xpose.msra.mxu0 0
    %1021 = vmatprep.subr.bf16.mxu0 0
    %1022 = vmatpush1.bf16.xpose.msra.mxu0 0
    %1023 = vmatprep.subr.bf16.mxu0 0
    %1024 = vmatpush1.bf16.xpose.msra.mxu0 0
    %1025 = vmatprep.subr.bf16.mxu0 0
    %1026 = vmatpush1.bf16.xpose.msra.mxu0 0
    %1027 = vmatprep.subr.bf16.mxu0 0
    %1028 = vmatpush1.bf16.xpose.msra.mxu0 0
    %1029 = vmatprep.subr.bf16.mxu0 0
    %1030 = vmatpush1.bf16.xpose.msra.mxu0 0
    %1031 = vmatprep.subr.bf16.mxu0 0
    %1032 = vmatpush1.bf16.xpose.msra.mxu0 0
    %1033 = vmatprep.subr.bf16.mxu0 0
    %1034 = vmatpush1.bf16.xpose.msra.mxu0 0
    %1035 = vmatprep.subr.bf16.mxu0 0
    %1036 = vmatpush1.bf16.xpose.msra.mxu0 0
    %1037 = vmatprep.mubr.bf16.mxu0 0
    %1038 = vmatmul.mubr.bf16.gmra.mrb[0].mxu0 %v1000
    %v1039 = vpop.f32.mrb[0].mxu0
    %v1040 = vadd.f32 %v71, %v1039
    %v1041 = vpop.f32.mrb[0].mxu0
    %v1042 = vpop.f32.mrb[0].mxu0
    %v1043 = vadd.f32 %v72, %v1042
    %v1044 = vpop.f32.mrb[0].mxu0
    %1045 = vdwg.mxu0
    %vm1046 = vcmask 130048
    %v1047 = vsel %vm1046, %v305, -inf
    %1048 = vmax.xlane.f32.xlu0 %v1047
    %v1049 = vpop.xlane.xlu0 %1048
    %v1050 = vsel %vm1046, %v308, -inf
    %1051 = vmax.xlane.f32.xlu0 %v1050
    %v1052 = vpop.xlane.xlu0 %1051
    %v1053 = vsel %vm1046, %v354, -inf
    %1054 = vmax.xlane.f32.xlu0 %v1053
    %v1055 = vpop.xlane.xlu0 %1054
    %v1056 = vsel %vm1046, %v357, -inf
    %1057 = vmax.xlane.f32.xlu0 %v1056
    %v1058 = vpop.xlane.xlu0 %1057
    %v1059 = vsel %vm1046, %v403, -inf
    %1060 = vmax.xlane.f32.xlu0 %v1059
    %v1061 = vpop.xlane.xlu0 %1060
    %v1062 = vsel %vm1046, %v406, -inf
    %1063 = vmax.xlane.f32.xlu0 %v1062
    %v1064 = vpop.xlane.xlu0 %1063
    %v1065 = vsel %vm1046, %v452, -inf
    %1066 = vmax.xlane.f32.xlu0 %v1065
    %v1067 = vpop.xlane.xlu0 %1066
    %v1068 = vsel %vm1046, %v455, -inf
    %1069 = vmax.xlane.f32.xlu0 %v1068
    %v1070 = vpop.xlane.xlu0 %1069
    %v1071 = vsel %vm1046, %v501, -inf
    %1072 = vmax.xlane.f32.xlu0 %v1071
    %v1073 = vpop.xlane.xlu0 %1072
    %v1074 = vsel %vm1046, %v504, -inf
    %1075 = vmax.xlane.f32.xlu0 %v1074
    %v1076 = vpop.xlane.xlu0 %1075
    %v1077 = vsel %vm1046, %v550, -inf
    %1078 = vmax.xlane.f32.xlu0 %v1077
    %v1079 = vpop.xlane.xlu0 %1078
    %v1080 = vsel %vm1046, %v553, -inf
    %1081 = vmax.xlane.f32.xlu0 %v1080
    %v1082 = vpop.xlane.xlu0 %1081
    %v1083 = vsel %vm1046, %v599, -inf
    %1084 = vmax.xlane.f32.xlu0 %v1083
    %v1085 = vpop.xlane.xlu0 %1084
    %v1086 = vsel %vm1046, %v602, -inf
    %1087 = vmax.xlane.f32.xlu0 %v1086
    %v1088 = vpop.xlane.xlu0 %1087
    %v1089 = vsel %vm1046, %v648, -inf
    %1090 = vmax.xlane.f32.xlu0 %v1089
    %v1091 = vpop.xlane.xlu0 %1090
    %v1092 = vsel %vm1046, %v651, -inf
    %1093 = vmax.xlane.f32.xlu0 %v1092
    %v1094 = vpop.xlane.xlu0 %1093
    %v1095 = vsel %vm1046, %v697, -inf
    %1096 = vmax.xlane.f32.xlu0 %v1095
    %v1097 = vpop.xlane.xlu0 %1096
    %v1098 = vsel %vm1046, %v700, -inf
    %1099 = vmax.xlane.f32.xlu0 %v1098
    %v1100 = vpop.xlane.xlu0 %1099
    %v1101 = vsel %vm1046, %v746, -inf
    %1102 = vmax.xlane.f32.xlu0 %v1101
    %v1103 = vpop.xlane.xlu0 %1102
    %v1104 = vsel %vm1046, %v749, -inf
    %1105 = vmax.xlane.f32.xlu0 %v1104
    %v1106 = vpop.xlane.xlu0 %1105
    %v1107 = vsel %vm1046, %v795, -inf
    %1108 = vmax.xlane.f32.xlu0 %v1107
    %v1109 = vpop.xlane.xlu0 %1108
    %v1110 = vsel %vm1046, %v798, -inf
    %1111 = vmax.xlane.f32.xlu0 %v1110
    %v1112 = vpop.xlane.xlu0 %1111
    %v1113 = vsel %vm1046, %v844, -inf
    %1114 = vmax.xlane.f32.xlu0 %v1113
    %v1115 = vpop.xlane.xlu0 %1114
    %v1116 = vsel %vm1046, %v847, -inf
    %1117 = vmax.xlane.f32.xlu0 %v1116
    %v1118 = vpop.xlane.xlu0 %1117
    %v1119 = vsel %vm1046, %v893, -inf
    %1120 = vmax.xlane.f32.xlu0 %v1119
    %v1121 = vpop.xlane.xlu0 %1120
    %v1122 = vsel %vm1046, %v896, -inf
    %1123 = vmax.xlane.f32.xlu0 %v1122
    %v1124 = vpop.xlane.xlu0 %1123
    %v1125 = vsel %vm1046, %v942, -inf
    %1126 = vmax.xlane.f32.xlu0 %v1125
    %v1127 = vpop.xlane.xlu0 %1126
    %v1128 = vsel %vm1046, %v945, -inf
    %1129 = vmax.xlane.f32.xlu0 %v1128
    %v1130 = vpop.xlane.xlu0 %1129
    %v1131 = vsel %vm1046, %v991, -inf
    %1132 = vmax.xlane.f32.xlu0 %v1131
    %v1133 = vpop.xlane.xlu0 %1132
    %v1134 = vsel %vm1046, %v994, -inf
    %1135 = vmax.xlane.f32.xlu0 %v1134
    %v1136 = vpop.xlane.xlu0 %1135
    %v1137 = vsel %vm1046, %v1040, -inf
    %1138 = vmax.xlane.f32.xlu0 %v1137
    %v1139 = vpop.xlane.xlu0 %1138
    %v1140 = vsel %vm1046, %v1043, -inf
    %1141 = vmax.xlane.f32.xlu0 %v1140
    %v1142 = vpop.xlane.xlu0 %1141
    %v1143 = vsub.f32 %v305, %v1049
    %v1144 = vsub.f32 %v308, %v1052
    %v1145 = vsub.f32 %v354, %v1055
    %v1146 = vsub.f32 %v357, %v1058
    %v1147 = vsub.f32 %v403, %v1061
    %v1148 = vsub.f32 %v406, %v1064
    %v1149 = vsub.f32 %v452, %v1067
    %v1150 = vsub.f32 %v455, %v1070
    %v1151 = vsub.f32 %v501, %v1073
    %v1152 = vsub.f32 %v504, %v1076
    %v1153 = vsub.f32 %v550, %v1079
    %v1154 = vsub.f32 %v553, %v1082
    %v1155 = vsub.f32 %v599, %v1085
    %v1156 = vsub.f32 %v602, %v1088
    %v1157 = vsub.f32 %v648, %v1091
    %v1158 = vsub.f32 %v651, %v1094
    %v1159 = vsub.f32 %v697, %v1097
    %v1160 = vsub.f32 %v700, %v1100
    %v1161 = vsub.f32 %v746, %v1103
    %v1162 = vsub.f32 %v749, %v1106
    %v1163 = vsub.f32 %v795, %v1109
    %v1164 = vsub.f32 %v798, %v1112
    %v1165 = vsub.f32 %v844, %v1115
    %v1166 = vsub.f32 %v847, %v1118
    %v1167 = vsub.f32 %v893, %v1121
    %v1168 = vsub.f32 %v896, %v1124
    %v1169 = vsub.f32 %v942, %v1127
    %v1170 = vsub.f32 %v945, %v1130
    %v1171 = vsub.f32 %v991, %v1133
    %v1172 = vsub.f32 %v994, %v1136
    %v1173 = vsub.f32 %v1040, %v1139
    %v1174 = vsub.f32 %v1043, %v1142
    %v1175 = vmul.f32 %v1143, 1.442695
    %v1176 = vpow.pop %v1175
    %v1177 = vmul.f32 %v1144, 1.442695
    %v1178 = vpow.pop %v1177
    %v1179 = vmul.f32 %v1145, 1.442695
    %v1180 = vpow.pop %v1179
    %v1181 = vmul.f32 %v1146, 1.442695
    %v1182 = vpow.pop %v1181
    %v1183 = vmul.f32 %v1147, 1.442695
    %v1184 = vpow.pop %v1183
    %v1185 = vmul.f32 %v1148, 1.442695
    %v1186 = vpow.pop %v1185
    %v1187 = vmul.f32 %v1149, 1.442695
    %v1188 = vpow.pop %v1187
    %v1189 = vmul.f32 %v1150, 1.442695
    %v1190 = vpow.pop %v1189
    %v1191 = vmul.f32 %v1151, 1.442695
    %v1192 = vpow.pop %v1191
    %v1193 = vmul.f32 %v1152, 1.442695
    %v1194 = vpow.pop %v1193
    %v1195 = vmul.f32 %v1153, 1.442695
    %v1196 = vpow.pop %v1195
    %v1197 = vmul.f32 %v1154, 1.442695
    %v1198 = vpow.pop %v1197
    %v1199 = vmul.f32 %v1155, 1.442695
    %v1200 = vpow.pop %v1199
    %v1201 = vmul.f32 %v1156, 1.442695
    %v1202 = vpow.pop %v1201
    %v1203 = vmul.f32 %v1157, 1.442695
    %v1204 = vpow.pop %v1203
    %v1205 = vmul.f32 %v1158, 1.442695
    %v1206 = vpow.pop %v1205
    %v1207 = vmul.f32 %v1159, 1.442695
    %v1208 = vpow.pop %v1207
    %v1209 = vmul.f32 %v1160, 1.442695
    %v1210 = vpow.pop %v1209
    %v1211 = vmul.f32 %v1161, 1.442695
    %v1212 = vpow.pop %v1211
    %v1213 = vmul.f32 %v1162, 1.442695
    %v1214 = vpow.pop %v1213
    %v1215 = vmul.f32 %v1163, 1.442695
    %v1216 = vpow.pop %v1215
    %v1217 = vmul.f32 %v1164, 1.442695
    %v1218 = vpow.pop %v1217
    %v1219 = vmul.f32 %v1165, 1.442695
    %v1220 = vpow.pop %v1219
    %v1221 = vmul.f32 %v1166, 1.442695
    %v1222 = vpow.pop %v1221
    %v1223 = vmul.f32 %v1167, 1.442695
    %v1224 = vpow.pop %v1223
    %v1225 = vmul.f32 %v1168, 1.442695
    %v1226 = vpow.pop %v1225
    %v1227 = vmul.f32 %v1169, 1.442695
    %v1228 = vpow.pop %v1227
    %v1229 = vmul.f32 %v1170, 1.442695
    %v1230 = vpow.pop %v1229
    %v1231 = vmul.f32 %v1171, 1.442695
    %v1232 = vpow.pop %v1231
    %v1233 = vmul.f32 %v1172, 1.442695
    %v1234 = vpow.pop %v1233
    %v1235 = vmul.f32 %v1173, 1.442695
    %v1236 = vpow.pop %v1235
    %v1237 = vmul.f32 %v1174, 1.442695
    %v1238 = vpow.pop %v1237
    %v1239 = vsel %vm1046, %v1176, 0.0
    %1240 = vadd.xlane.f32.xlu0 %v1239
    %v1241 = vpop.xlane.xlu0 %1240
    %v1242 = vsel %vm1046, %v1178, 0.0
    %1243 = vadd.xlane.f32.xlu0 %v1242
    %v1244 = vpop.xlane.xlu0 %1243
    %v1245 = vsel %vm1046, %v1180, 0.0
    %1246 = vadd.xlane.f32.xlu0 %v1245
    %v1247 = vpop.xlane.xlu0 %1246
    %v1248 = vsel %vm1046, %v1182, 0.0
    %1249 = vadd.xlane.f32.xlu0 %v1248
    %v1250 = vpop.xlane.xlu0 %1249
    %v1251 = vsel %vm1046, %v1184, 0.0
    %1252 = vadd.xlane.f32.xlu0 %v1251
    %v1253 = vpop.xlane.xlu0 %1252
    %v1254 = vsel %vm1046, %v1186, 0.0
    %1255 = vadd.xlane.f32.xlu0 %v1254
    %v1256 = vpop.xlane.xlu0 %1255
    %v1257 = vsel %vm1046, %v1188, 0.0
    %1258 = vadd.xlane.f32.xlu0 %v1257
    %v1259 = vpop.xlane.xlu0 %1258
    %v1260 = vsel %vm1046, %v1190, 0.0
    %1261 = vadd.xlane.f32.xlu0 %v1260
    %v1262 = vpop.xlane.xlu0 %1261
    %v1263 = vsel %vm1046, %v1192, 0.0
    %1264 = vadd.xlane.f32.xlu0 %v1263
    %v1265 = vpop.xlane.xlu0 %1264
    %v1266 = vsel %vm1046, %v1194, 0.0
    %1267 = vadd.xlane.f32.xlu0 %v1266
    %v1268 = vpop.xlane.xlu0 %1267
    %v1269 = vsel %vm1046, %v1196, 0.0
    %1270 = vadd.xlane.f32.xlu0 %v1269
    %v1271 = vpop.xlane.xlu0 %1270
    %v1272 = vsel %vm1046, %v1198, 0.0
    %1273 = vadd.xlane.f32.xlu0 %v1272
    %v1274 = vpop.xlane.xlu0 %1273
    %v1275 = vsel %vm1046, %v1200, 0.0
    %1276 = vadd.xlane.f32.xlu0 %v1275
    %v1277 = vpop.xlane.xlu0 %1276
    %v1278 = vsel %vm1046, %v1202, 0.0
    %1279 = vadd.xlane.f32.xlu0 %v1278
    %v1280 = vpop.xlane.xlu0 %1279
    %v1281 = vsel %vm1046, %v1204, 0.0
    %1282 = vadd.xlane.f32.xlu0 %v1281
    %v1283 = vpop.xlane.xlu0 %1282
    %v1284 = vsel %vm1046, %v1206, 0.0
    %1285 = vadd.xlane.f32.xlu0 %v1284
    %v1286 = vpop.xlane.xlu0 %1285
    %v1287 = vsel %vm1046, %v1208, 0.0
    %1288 = vadd.xlane.f32.xlu0 %v1287
    %v1289 = vpop.xlane.xlu0 %1288
    %v1290 = vsel %vm1046, %v1210, 0.0
    %1291 = vadd.xlane.f32.xlu0 %v1290
    %v1292 = vpop.xlane.xlu0 %1291
    %v1293 = vsel %vm1046, %v1212, 0.0
    %1294 = vadd.xlane.f32.xlu0 %v1293
    %v1295 = vpop.xlane.xlu0 %1294
    %v1296 = vsel %vm1046, %v1214, 0.0
    %1297 = vadd.xlane.f32.xlu0 %v1296
    %v1298 = vpop.xlane.xlu0 %1297
    %v1299 = vsel %vm1046, %v1216, 0.0
    %1300 = vadd.xlane.f32.xlu0 %v1299
    %v1301 = vpop.xlane.xlu0 %1300
    %v1302 = vsel %vm1046, %v1218, 0.0
    %1303 = vadd.xlane.f32.xlu0 %v1302
    %v1304 = vpop.xlane.xlu0 %1303
    %v1305 = vsel %vm1046, %v1220, 0.0
    %1306 = vadd.xlane.f32.xlu0 %v1305
    %v1307 = vpop.xlane.xlu0 %1306
    %v1308 = vsel %vm1046, %v1222, 0.0
    %1309 = vadd.xlane.f32.xlu0 %v1308
    %v1310 = vpop.xlane.xlu0 %1309
    %v1311 = vsel %vm1046, %v1224, 0.0
    %1312 = vadd.xlane.f32.xlu0 %v1311
    %v1313 = vpop.xlane.xlu0 %1312
    %v1314 = vsel %vm1046, %v1226, 0.0
    %1315 = vadd.xlane.f32.xlu0 %v1314
    %v1316 = vpop.xlane.xlu0 %1315
    %v1317 = vsel %vm1046, %v1228, 0.0
    %1318 = vadd.xlane.f32.xlu0 %v1317
    %v1319 = vpop.xlane.xlu0 %1318
    %v1320 = vsel %vm1046, %v1230, 0.0
    %1321 = vadd.xlane.f32.xlu0 %v1320
    %v1322 = vpop.xlane.xlu0 %1321
    %v1323 = vsel %vm1046, %v1232, 0.0
    %1324 = vadd.xlane.f32.xlu0 %v1323
    %v1325 = vpop.xlane.xlu0 %1324
    %v1326 = vsel %vm1046, %v1234, 0.0
    %1327 = vadd.xlane.f32.xlu0 %v1326
    %v1328 = vpop.xlane.xlu0 %1327
    %v1329 = vsel %vm1046, %v1236, 0.0
    %1330 = vadd.xlane.f32.xlu0 %v1329
    %v1331 = vpop.xlane.xlu0 %1330
    %v1332 = vsel %vm1046, %v1238, 0.0
    %1333 = vadd.xlane.f32.xlu0 %v1332
    %v1334 = vpop.xlane.xlu0 %1333
    %v1335 = vrcp.pop %v1241
    %v1336 = vrcp.pop %v1244
    %v1337 = vrcp.pop %v1247
    %v1338 = vrcp.pop %v1250
    %v1339 = vrcp.pop %v1253
    %v1340 = vrcp.pop %v1256
    %v1341 = vrcp.pop %v1259
    %v1342 = vrcp.pop %v1262
    %v1343 = vrcp.pop %v1265
    %v1344 = vrcp.pop %v1268
    %v1345 = vrcp.pop %v1271
    %v1346 = vrcp.pop %v1274
    %v1347 = vrcp.pop %v1277
    %v1348 = vrcp.pop %v1280
    %v1349 = vrcp.pop %v1283
    %v1350 = vrcp.pop %v1286
    %v1351 = vrcp.pop %v1289
    %v1352 = vrcp.pop %v1292
    %v1353 = vrcp.pop %v1295
    %v1354 = vrcp.pop %v1298
    %v1355 = vrcp.pop %v1301
    %v1356 = vrcp.pop %v1304
    %v1357 = vrcp.pop %v1307
    %v1358 = vrcp.pop %v1310
    %v1359 = vrcp.pop %v1313
    %v1360 = vrcp.pop %v1316
    %v1361 = vrcp.pop %v1319
    %v1362 = vrcp.pop %v1322
    %v1363 = vrcp.pop %v1325
    %v1364 = vrcp.pop %v1328
    %v1365 = vrcp.pop %v1331
    %v1366 = vrcp.pop %v1334
    %v1367 = vmul.f32 %v1176, %v1335
    %v1368 = vmul.f32 %v1178, %v1336
    %v1369 = vmul.f32 %v1180, %v1337
    %v1370 = vmul.f32 %v1182, %v1338
    %v1371 = vmul.f32 %v1184, %v1339
    %v1372 = vmul.f32 %v1186, %v1340
    %v1373 = vmul.f32 %v1188, %v1341
    %v1374 = vmul.f32 %v1190, %v1342
    %v1375 = vmul.f32 %v1192, %v1343
    %v1376 = vmul.f32 %v1194, %v1344
    %v1377 = vmul.f32 %v1196, %v1345
    %v1378 = vmul.f32 %v1198, %v1346
    %v1379 = vmul.f32 %v1200, %v1347
    %v1380 = vmul.f32 %v1202, %v1348
    %v1381 = vmul.f32 %v1204, %v1349
    %v1382 = vmul.f32 %v1206, %v1350
    %v1383 = vmul.f32 %v1208, %v1351
    %v1384 = vmul.f32 %v1210, %v1352
    %v1385 = vmul.f32 %v1212, %v1353
    %v1386 = vmul.f32 %v1214, %v1354
    %v1387 = vmul.f32 %v1216, %v1355
    %v1388 = vmul.f32 %v1218, %v1356
    %v1389 = vmul.f32 %v1220, %v1357
    %v1390 = vmul.f32 %v1222, %v1358
    %v1391 = vmul.f32 %v1224, %v1359
    %v1392 = vmul.f32 %v1226, %v1360
    %v1393 = vmul.f32 %v1228, %v1361
    %v1394 = vmul.f32 %v1230, %v1362
    %v1395 = vmul.f32 %v1232, %v1363
    %v1396 = vmul.f32 %v1234, %v1364
    %v1397 = vmul.f32 %v1236, %v1365
    %v1398 = vmul.f32 %v1238, %v1366
    %v1399 = vpack.c.bf16 %v1368, %v1367
    %v1400 = vpack.c.bf16 %v1370, %v1369
    %v1401 = vpack.c.bf16 %v1372, %v1371
    %v1402 = vpack.c.bf16 %v1374, %v1373
    %v1403 = vpack.c.bf16 %v1376, %v1375
    %v1404 = vpack.c.bf16 %v1378, %v1377
    %v1405 = vpack.c.bf16 %v1380, %v1379
    %v1406 = vpack.c.bf16 %v1382, %v1381
    %v1407 = vpack.c.bf16 %v1384, %v1383
    %v1408 = vpack.c.bf16 %v1386, %v1385
    %v1409 = vpack.c.bf16 %v1388, %v1387
    %v1410 = vpack.c.bf16 %v1390, %v1389
    %v1411 = vpack.c.bf16 %v1392, %v1391
    %v1412 = vpack.c.bf16 %v1394, %v1393
    %v1413 = vpack.c.bf16 %v1396, %v1395
    %v1414 = vpack.c.bf16 %v1398, %v1397
    %1415 = vrot.lane.b32.xlu0 %v229, 64
    %v1416 = vpop.permute.xlu0 %1415
    %v1419 = vsel %vm1046, %v1399, 0
    %1421 = vmatprep.subr.bf16.mxu0 0
    %1422 = vmatpush1.bf16.msra.mxu0 %v1416
    %1423 = vmatprep.subr.bf16.mxu0 0
    %1424 = vmatpush1.bf16.msra.mxu0 0
    %1425 = vmatprep.subr.bf16.mxu0 0
    %1426 = vmatpush1.bf16.msra.mxu0 0
    %1427 = vmatprep.subr.bf16.mxu0 0
    %1428 = vmatpush1.bf16.msra.mxu0 0
    %1429 = vmatprep.subr.bf16.mxu0 0
    %1430 = vmatpush1.bf16.msra.mxu0 0
    %1431 = vmatprep.subr.bf16.mxu0 0
    %1432 = vmatpush1.bf16.msra.mxu0 0
    %1433 = vmatprep.subr.bf16.mxu0 0
    %1434 = vmatpush1.bf16.msra.mxu0 0
    %1435 = vmatprep.subr.bf16.mxu0 0
    %1436 = vmatpush1.bf16.msra.mxu0 0
    %1437 = vmatprep.subr.bf16.mxu0 0
    %1438 = vmatpush1.bf16.msra.mxu0 0
    %1439 = vmatprep.subr.bf16.mxu0 0
    %1440 = vmatpush1.bf16.msra.mxu0 0
    %1441 = vmatprep.subr.bf16.mxu0 0
    %1442 = vmatpush1.bf16.msra.mxu0 0
    %1443 = vmatprep.subr.bf16.mxu0 0
    %1444 = vmatpush1.bf16.msra.mxu0 0
    %1445 = vmatprep.subr.bf16.mxu0 0
    %1446 = vmatpush1.bf16.msra.mxu0 0
    %1447 = vmatprep.subr.bf16.mxu0 0
    %1448 = vmatpush1.bf16.msra.mxu0 0
    %1449 = vmatprep.subr.bf16.mxu0 0
    %1450 = vmatpush1.bf16.msra.mxu0 0
    %1451 = vmatprep.subr.bf16.mxu0 0
    %1452 = vmatpush1.bf16.msra.mxu0 0
    %1453 = vmatprep.mubr.bf16.mxu0 0
    %1454 = vmatmul.mubr.bf16.gmra.mrb[0].mxu0 %v1419
    %v1455 = vpop.f32.mrb[0].mxu0
    %v1456 = vadd.f32 0.0, %v1455
    %v1457 = vpop.f32.mrb[0].mxu0
    %v1458 = vpop.f32.mrb[0].mxu0
    %v1459 = vadd.f32 0.0, %v1458
    %v1460 = vpop.f32.mrb[0].mxu0
    %1461 = vdwg.mxu0
    %1462 = vrot.lane.b32.xlu0 %v230, 64
    %v1463 = vpop.permute.xlu0 %1462
    %v1466 = vsel %vm1046, %v1400, 0
    %1468 = vmatprep.subr.bf16.mxu0 0
    %1469 = vmatpush1.bf16.msra.mxu0 %v1463
    %1470 = vmatprep.subr.bf16.mxu0 0
    %1471 = vmatpush1.bf16.msra.mxu0 0
    %1472 = vmatprep.subr.bf16.mxu0 0
    %1473 = vmatpush1.bf16.msra.mxu0 0
    %1474 = vmatprep.subr.bf16.mxu0 0
    %1475 = vmatpush1.bf16.msra.mxu0 0
    %1476 = vmatprep.subr.bf16.mxu0 0
    %1477 = vmatpush1.bf16.msra.mxu0 0
    %1478 = vmatprep.subr.bf16.mxu0 0
    %1479 = vmatpush1.bf16.msra.mxu0 0
    %1480 = vmatprep.subr.bf16.mxu0 0
    %1481 = vmatpush1.bf16.msra.mxu0 0
    %1482 = vmatprep.subr.bf16.mxu0 0
    %1483 = vmatpush1.bf16.msra.mxu0 0
    %1484 = vmatprep.subr.bf16.mxu0 0
    %1485 = vmatpush1.bf16.msra.mxu0 0
    %1486 = vmatprep.subr.bf16.mxu0 0
    %1487 = vmatpush1.bf16.msra.mxu0 0
    %1488 = vmatprep.subr.bf16.mxu0 0
    %1489 = vmatpush1.bf16.msra.mxu0 0
    %1490 = vmatprep.subr.bf16.mxu0 0
    %1491 = vmatpush1.bf16.msra.mxu0 0
    %1492 = vmatprep.subr.bf16.mxu0 0
    %1493 = vmatpush1.bf16.msra.mxu0 0
    %1494 = vmatprep.subr.bf16.mxu0 0
    %1495 = vmatpush1.bf16.msra.mxu0 0
    %1496 = vmatprep.subr.bf16.mxu0 0
    %1497 = vmatpush1.bf16.msra.mxu0 0
    %1498 = vmatprep.subr.bf16.mxu0 0
    %1499 = vmatpush1.bf16.msra.mxu0 0
    %1500 = vmatprep.mubr.bf16.mxu0 0
    %1501 = vmatmul.mubr.bf16.gmra.mrb[0].mxu0 %v1466
    %v1502 = vpop.f32.mrb[0].mxu0
    %v1503 = vadd.f32 0.0, %v1502
    %v1504 = vpop.f32.mrb[0].mxu0
    %v1505 = vpop.f32.mrb[0].mxu0
    %v1506 = vadd.f32 0.0, %v1505
    %v1507 = vpop.f32.mrb[0].mxu0
    %1508 = vdwg.mxu0
    %1509 = vrot.lane.b32.xlu0 %v234, 64
    %v1510 = vpop.permute.xlu0 %1509
    %v1513 = vsel %vm1046, %v1401, 0
    %1515 = vmatprep.subr.bf16.mxu0 0
    %1516 = vmatpush1.bf16.msra.mxu0 %v1510
    %1517 = vmatprep.subr.bf16.mxu0 0
    %1518 = vmatpush1.bf16.msra.mxu0 0
    %1519 = vmatprep.subr.bf16.mxu0 0
    %1520 = vmatpush1.bf16.msra.mxu0 0
    %1521 = vmatprep.subr.bf16.mxu0 0
    %1522 = vmatpush1.bf16.msra.mxu0 0
    %1523 = vmatprep.subr.bf16.mxu0 0
    %1524 = vmatpush1.bf16.msra.mxu0 0
    %1525 = vmatprep.subr.bf16.mxu0 0
    %1526 = vmatpush1.bf16.msra.mxu0 0
    %1527 = vmatprep.subr.bf16.mxu0 0
    %1528 = vmatpush1.bf16.msra.mxu0 0
    %1529 = vmatprep.subr.bf16.mxu0 0
    %1530 = vmatpush1.bf16.msra.mxu0 0
    %1531 = vmatprep.subr.bf16.mxu0 0
    %1532 = vmatpush1.bf16.msra.mxu0 0
    %1533 = vmatprep.subr.bf16.mxu0 0
    %1534 = vmatpush1.bf16.msra.mxu0 0
    %1535 = vmatprep.subr.bf16.mxu0 0
    %1536 = vmatpush1.bf16.msra.mxu0 0
    %1537 = vmatprep.subr.bf16.mxu0 0
    %1538 = vmatpush1.bf16.msra.mxu0 0
    %1539 = vmatprep.subr.bf16.mxu0 0
    %1540 = vmatpush1.bf16.msra.mxu0 0
    %1541 = vmatprep.subr.bf16.mxu0 0
    %1542 = vmatpush1.bf16.msra.mxu0 0
    %1543 = vmatprep.subr.bf16.mxu0 0
    %1544 = vmatpush1.bf16.msra.mxu0 0
    %1545 = vmatprep.subr.bf16.mxu0 0
    %1546 = vmatpush1.bf16.msra.mxu0 0
    %1547 = vmatprep.mubr.bf16.mxu0 0
    %1548 = vmatmul.mubr.bf16.gmra.mrb[0].mxu0 %v1513
    %v1549 = vpop.f32.mrb[0].mxu0
    %v1550 = vadd.f32 0.0, %v1549
    %v1551 = vpop.f32.mrb[0].mxu0
    %v1552 = vpop.f32.mrb[0].mxu0
    %v1553 = vadd.f32 0.0, %v1552
    %v1554 = vpop.f32.mrb[0].mxu0
    %1555 = vdwg.mxu0
    %1556 = vrot.lane.b32.xlu0 %v236, 64
    %v1557 = vpop.permute.xlu0 %1556
    %v1560 = vsel %vm1046, %v1402, 0
    %1562 = vmatprep.subr.bf16.mxu0 0
    %1563 = vmatpush1.bf16.msra.mxu0 %v1557
    %1564 = vmatprep.subr.bf16.mxu0 0
    %1565 = vmatpush1.bf16.msra.mxu0 0
    %1566 = vmatprep.subr.bf16.mxu0 0
    %1567 = vmatpush1.bf16.msra.mxu0 0
    %1568 = vmatprep.subr.bf16.mxu0 0
    %1569 = vmatpush1.bf16.msra.mxu0 0
    %1570 = vmatprep.subr.bf16.mxu0 0
    %1571 = vmatpush1.bf16.msra.mxu0 0
    %1572 = vmatprep.subr.bf16.mxu0 0
    %1573 = vmatpush1.bf16.msra.mxu0 0
    %1574 = vmatprep.subr.bf16.mxu0 0
    %1575 = vmatpush1.bf16.msra.mxu0 0
    %1576 = vmatprep.subr.bf16.mxu0 0
    %1577 = vmatpush1.bf16.msra.mxu0 0
    %1578 = vmatprep.subr.bf16.mxu0 0
    %1579 = vmatpush1.bf16.msra.mxu0 0
    %1580 = vmatprep.subr.bf16.mxu0 0
    %1581 = vmatpush1.bf16.msra.mxu0 0
    %1582 = vmatprep.subr.bf16.mxu0 0
    %1583 = vmatpush1.bf16.msra.mxu0 0
    %1584 = vmatprep.subr.bf16.mxu0 0
    %1585 = vmatpush1.bf16.msra.mxu0 0
    %1586 = vmatprep.subr.bf16.mxu0 0
    %1587 = vmatpush1.bf16.msra.mxu0 0
    %1588 = vmatprep.subr.bf16.mxu0 0
    %1589 = vmatpush1.bf16.msra.mxu0 0
    %1590 = vmatprep.subr.bf16.mxu0 0
    %1591 = vmatpush1.bf16.msra.mxu0 0
    %1592 = vmatprep.subr.bf16.mxu0 0
    %1593 = vmatpush1.bf16.msra.mxu0 0
    %1594 = vmatprep.mubr.bf16.mxu0 0
    %1595 = vmatmul.mubr.bf16.gmra.mrb[0].mxu0 %v1560
    %v1596 = vpop.f32.mrb[0].mxu0
    %v1597 = vadd.f32 0.0, %v1596
    %v1598 = vpop.f32.mrb[0].mxu0
    %v1599 = vpop.f32.mrb[0].mxu0
    %v1600 = vadd.f32 0.0, %v1599
    %v1601 = vpop.f32.mrb[0].mxu0
    %1602 = vdwg.mxu0
    %1603 = vrot.lane.b32.xlu0 %v238, 64
    %v1604 = vpop.permute.xlu0 %1603
    %v1607 = vsel %vm1046, %v1403, 0
    %1609 = vmatprep.subr.bf16.mxu0 0
    %1610 = vmatpush1.bf16.msra.mxu0 %v1604
    %1611 = vmatprep.subr.bf16.mxu0 0
    %1612 = vmatpush1.bf16.msra.mxu0 0
    %1613 = vmatprep.subr.bf16.mxu0 0
    %1614 = vmatpush1.bf16.msra.mxu0 0
    %1615 = vmatprep.subr.bf16.mxu0 0
    %1616 = vmatpush1.bf16.msra.mxu0 0
    %1617 = vmatprep.subr.bf16.mxu0 0
    %1618 = vmatpush1.bf16.msra.mxu0 0
    %1619 = vmatprep.subr.bf16.mxu0 0
    %1620 = vmatpush1.bf16.msra.mxu0 0
    %1621 = vmatprep.subr.bf16.mxu0 0
    %1622 = vmatpush1.bf16.msra.mxu0 0
    %1623 = vmatprep.subr.bf16.mxu0 0
    %1624 = vmatpush1.bf16.msra.mxu0 0
    %1625 = vmatprep.subr.bf16.mxu0 0
    %1626 = vmatpush1.bf16.msra.mxu0 0
    %1627 = vmatprep.subr.bf16.mxu0 0
    %1628 = vmatpush1.bf16.msra.mxu0 0
    %1629 = vmatprep.subr.bf16.mxu0 0
    %1630 = vmatpush1.bf16.msra.mxu0 0
    %1631 = vmatprep.subr.bf16.mxu0 0
    %1632 = vmatpush1.bf16.msra.mxu0 0
    %1633 = vmatprep.subr.bf16.mxu0 0
    %1634 = vmatpush1.bf16.msra.mxu0 0
    %1635 = vmatprep.subr.bf16.mxu0 0
    %1636 = vmatpush1.bf16.msra.mxu0 0
    %1637 = vmatprep.subr.bf16.mxu0 0
    %1638 = vmatpush1.bf16.msra.mxu0 0
    %1639 = vmatprep.subr.bf16.mxu0 0
    %1640 = vmatpush1.bf16.msra.mxu0 0
    %1641 = vmatprep.mubr.bf16.mxu0 0
    %1642 = vmatmul.mubr.bf16.gmra.mrb[0].mxu0 %v1607
    %v1643 = vpop.f32.mrb[0].mxu0
    %v1644 = vadd.f32 0.0, %v1643
    %v1645 = vpop.f32.mrb[0].mxu0
    %v1646 = vpop.f32.mrb[0].mxu0
    %v1647 = vadd.f32 0.0, %v1646
    %v1648 = vpop.f32.mrb[0].mxu0
    %1649 = vdwg.mxu0
    %1650 = vrot.lane.b32.xlu0 %v240, 64
    %v1651 = vpop.permute.xlu0 %1650
    %v1654 = vsel %vm1046, %v1404, 0
    %1656 = vmatprep.subr.bf16.mxu0 0
    %1657 = vmatpush1.bf16.msra.mxu0 %v1651
    %1658 = vmatprep.subr.bf16.mxu0 0
    %1659 = vmatpush1.bf16.msra.mxu0 0
    %1660 = vmatprep.subr.bf16.mxu0 0
    %1661 = vmatpush1.bf16.msra.mxu0 0
    %1662 = vmatprep.subr.bf16.mxu0 0
    %1663 = vmatpush1.bf16.msra.mxu0 0
    %1664 = vmatprep.subr.bf16.mxu0 0
    %1665 = vmatpush1.bf16.msra.mxu0 0
    %1666 = vmatprep.subr.bf16.mxu0 0
    %1667 = vmatpush1.bf16.msra.mxu0 0
    %1668 = vmatprep.subr.bf16.mxu0 0
    %1669 = vmatpush1.bf16.msra.mxu0 0
    %1670 = vmatprep.subr.bf16.mxu0 0
    %1671 = vmatpush1.bf16.msra.mxu0 0
    %1672 = vmatprep.subr.bf16.mxu0 0
    %1673 = vmatpush1.bf16.msra.mxu0 0
    %1674 = vmatprep.subr.bf16.mxu0 0
    %1675 = vmatpush1.bf16.msra.mxu0 0
    %1676 = vmatprep.subr.bf16.mxu0 0
    %1677 = vmatpush1.bf16.msra.mxu0 0
    %1678 = vmatprep.subr.bf16.mxu0 0
    %1679 = vmatpush1.bf16.msra.mxu0 0
    %1680 = vmatprep.subr.bf16.mxu0 0
    %1681 = vmatpush1.bf16.msra.mxu0 0
    %1682 = vmatprep.subr.bf16.mxu0 0
    %1683 = vmatpush1.bf16.msra.mxu0 0
    %1684 = vmatprep.subr.bf16.mxu0 0
    %1685 = vmatpush1.bf16.msra.mxu0 0
    %1686 = vmatprep.subr.bf16.mxu0 0
    %1687 = vmatpush1.bf16.msra.mxu0 0
    %1688 = vmatprep.mubr.bf16.mxu0 0
    %1689 = vmatmul.mubr.bf16.gmra.mrb[0].mxu0 %v1654
    %v1690 = vpop.f32.mrb[0].mxu0
    %v1691 = vadd.f32 0.0, %v1690
    %v1692 = vpop.f32.mrb[0].mxu0
    %v1693 = vpop.f32.mrb[0].mxu0
    %v1694 = vadd.f32 0.0, %v1693
    %v1695 = vpop.f32.mrb[0].mxu0
    %1696 = vdwg.mxu0
    %1697 = vrot.lane.b32.xlu0 %v242, 64
    %v1698 = vpop.permute.xlu0 %1697
    %v1701 = vsel %vm1046, %v1405, 0
    %1703 = vmatprep.subr.bf16.mxu0 0
    %1704 = vmatpush1.bf16.msra.mxu0 %v1698
    %1705 = vmatprep.subr.bf16.mxu0 0
    %1706 = vmatpush1.bf16.msra.mxu0 0
    %1707 = vmatprep.subr.bf16.mxu0 0
    %1708 = vmatpush1.bf16.msra.mxu0 0
    %1709 = vmatprep.subr.bf16.mxu0 0
    %1710 = vmatpush1.bf16.msra.mxu0 0
    %1711 = vmatprep.subr.bf16.mxu0 0
    %1712 = vmatpush1.bf16.msra.mxu0 0
    %1713 = vmatprep.subr.bf16.mxu0 0
    %1714 = vmatpush1.bf16.msra.mxu0 0
    %1715 = vmatprep.subr.bf16.mxu0 0
    %1716 = vmatpush1.bf16.msra.mxu0 0
    %1717 = vmatprep.subr.bf16.mxu0 0
    %1718 = vmatpush1.bf16.msra.mxu0 0
    %1719 = vmatprep.subr.bf16.mxu0 0
    %1720 = vmatpush1.bf16.msra.mxu0 0
    %1721 = vmatprep.subr.bf16.mxu0 0
    %1722 = vmatpush1.bf16.msra.mxu0 0
    %1723 = vmatprep.subr.bf16.mxu0 0
    %1724 = vmatpush1.bf16.msra.mxu0 0
    %1725 = vmatprep.subr.bf16.mxu0 0
    %1726 = vmatpush1.bf16.msra.mxu0 0
    %1727 = vmatprep.subr.bf16.mxu0 0
    %1728 = vmatpush1.bf16.msra.mxu0 0
    %1729 = vmatprep.subr.bf16.mxu0 0
    %1730 = vmatpush1.bf16.msra.mxu0 0
    %1731 = vmatprep.subr.bf16.mxu0 0
    %1732 = vmatpush1.bf16.msra.mxu0 0
    %1733 = vmatprep.subr.bf16.mxu0 0
    %1734 = vmatpush1.bf16.msra.mxu0 0
    %1735 = vmatprep.mubr.bf16.mxu0 0
    %1736 = vmatmul.mubr.bf16.gmra.mrb[0].mxu0 %v1701
    %v1737 = vpop.f32.mrb[0].mxu0
    %v1738 = vadd.f32 0.0, %v1737
    %v1739 = vpop.f32.mrb[0].mxu0
    %v1740 = vpop.f32.mrb[0].mxu0
    %v1741 = vadd.f32 0.0, %v1740
    %v1742 = vpop.f32.mrb[0].mxu0
    %1743 = vdwg.mxu0
    %1744 = vrot.lane.b32.xlu0 %v244, 64
    %v1745 = vpop.permute.xlu0 %1744
    %v1748 = vsel %vm1046, %v1406, 0
    %1750 = vmatprep.subr.bf16.mxu0 0
    %1751 = vmatpush1.bf16.msra.mxu0 %v1745
    %1752 = vmatprep.subr.bf16.mxu0 0
    %1753 = vmatpush1.bf16.msra.mxu0 0
    %1754 = vmatprep.subr.bf16.mxu0 0
    %1755 = vmatpush1.bf16.msra.mxu0 0
    %1756 = vmatprep.subr.bf16.mxu0 0
    %1757 = vmatpush1.bf16.msra.mxu0 0
    %1758 = vmatprep.subr.bf16.mxu0 0
    %1759 = vmatpush1.bf16.msra.mxu0 0
    %1760 = vmatprep.subr.bf16.mxu0 0
    %1761 = vmatpush1.bf16.msra.mxu0 0
    %1762 = vmatprep.subr.bf16.mxu0 0
    %1763 = vmatpush1.bf16.msra.mxu0 0
    %1764 = vmatprep.subr.bf16.mxu0 0
    %1765 = vmatpush1.bf16.msra.mxu0 0
    %1766 = vmatprep.subr.bf16.mxu0 0
    %1767 = vmatpush1.bf16.msra.mxu0 0
    %1768 = vmatprep.subr.bf16.mxu0 0
    %1769 = vmatpush1.bf16.msra.mxu0 0
    %1770 = vmatprep.subr.bf16.mxu0 0
    %1771 = vmatpush1.bf16.msra.mxu0 0
    %1772 = vmatprep.subr.bf16.mxu0 0
    %1773 = vmatpush1.bf16.msra.mxu0 0
    %1774 = vmatprep.subr.bf16.mxu0 0
    %1775 = vmatpush1.bf16.msra.mxu0 0
    %1776 = vmatprep.subr.bf16.mxu0 0
    %1777 = vmatpush1.bf16.msra.mxu0 0
    %1778 = vmatprep.subr.bf16.mxu0 0
    %1779 = vmatpush1.bf16.msra.mxu0 0
    %1780 = vmatprep.subr.bf16.mxu0 0
    %1781 = vmatpush1.bf16.msra.mxu0 0
    %1782 = vmatprep.mubr.bf16.mxu0 0
    %1783 = vmatmul.mubr.bf16.gmra.mrb[0].mxu0 %v1748
    %v1784 = vpop.f32.mrb[0].mxu0
    %v1785 = vadd.f32 0.0, %v1784
    %v1786 = vpop.f32.mrb[0].mxu0
    %v1787 = vpop.f32.mrb[0].mxu0
    %v1788 = vadd.f32 0.0, %v1787
    %v1789 = vpop.f32.mrb[0].mxu0
    %1790 = vdwg.mxu0
    %1791 = vrot.lane.b32.xlu0 %v246, 64
    %v1792 = vpop.permute.xlu0 %1791
    %v1795 = vsel %vm1046, %v1407, 0
    %1797 = vmatprep.subr.bf16.mxu0 0
    %1798 = vmatpush1.bf16.msra.mxu0 %v1792
    %1799 = vmatprep.subr.bf16.mxu0 0
    %1800 = vmatpush1.bf16.msra.mxu0 0
    %1801 = vmatprep.subr.bf16.mxu0 0
    %1802 = vmatpush1.bf16.msra.mxu0 0
    %1803 = vmatprep.subr.bf16.mxu0 0
    %1804 = vmatpush1.bf16.msra.mxu0 0
    %1805 = vmatprep.subr.bf16.mxu0 0
    %1806 = vmatpush1.bf16.msra.mxu0 0
    %1807 = vmatprep.subr.bf16.mxu0 0
    %1808 = vmatpush1.bf16.msra.mxu0 0
    %1809 = vmatprep.subr.bf16.mxu0 0
    %1810 = vmatpush1.bf16.msra.mxu0 0
    %1811 = vmatprep.subr.bf16.mxu0 0
    %1812 = vmatpush1.bf16.msra.mxu0 0
    %1813 = vmatprep.subr.bf16.mxu0 0
    %1814 = vmatpush1.bf16.msra.mxu0 0
    %1815 = vmatprep.subr.bf16.mxu0 0
    %1816 = vmatpush1.bf16.msra.mxu0 0
    %1817 = vmatprep.subr.bf16.mxu0 0
    %1818 = vmatpush1.bf16.msra.mxu0 0
    %1819 = vmatprep.subr.bf16.mxu0 0
    %1820 = vmatpush1.bf16.msra.mxu0 0
    %1821 = vmatprep.subr.bf16.mxu0 0
    %1822 = vmatpush1.bf16.msra.mxu0 0
    %1823 = vmatprep.subr.bf16.mxu0 0
    %1824 = vmatpush1.bf16.msra.mxu0 0
    %1825 = vmatprep.subr.bf16.mxu0 0
    %1826 = vmatpush1.bf16.msra.mxu0 0
    %1827 = vmatprep.subr.bf16.mxu0 0
    %1828 = vmatpush1.bf16.msra.mxu0 0
    %1829 = vmatprep.mubr.bf16.mxu0 0
    %1830 = vmatmul.mubr.bf16.gmra.mrb[0].mxu0 %v1795
    %v1831 = vpop.f32.mrb[0].mxu0
    %v1832 = vadd.f32 0.0, %v1831
    %v1833 = vpop.f32.mrb[0].mxu0
    %v1834 = vpop.f32.mrb[0].mxu0
    %v1835 = vadd.f32 0.0, %v1834
    %v1836 = vpop.f32.mrb[0].mxu0
    %1837 = vdwg.mxu0
    %1838 = vrot.lane.b32.xlu0 %v248, 64
    %v1839 = vpop.permute.xlu0 %1838
    %v1842 = vsel %vm1046, %v1408, 0
    %1844 = vmatprep.subr.bf16.mxu0 0
    %1845 = vmatpush1.bf16.msra.mxu0 %v1839
    %1846 = vmatprep.subr.bf16.mxu0 0
    %1847 = vmatpush1.bf16.msra.mxu0 0
    %1848 = vmatprep.subr.bf16.mxu0 0
    %1849 = vmatpush1.bf16.msra.mxu0 0
    %1850 = vmatprep.subr.bf16.mxu0 0
    %1851 = vmatpush1.bf16.msra.mxu0 0
    %1852 = vmatprep.subr.bf16.mxu0 0
    %1853 = vmatpush1.bf16.msra.mxu0 0
    %1854 = vmatprep.subr.bf16.mxu0 0
    %1855 = vmatpush1.bf16.msra.mxu0 0
    %1856 = vmatprep.subr.bf16.mxu0 0
    %1857 = vmatpush1.bf16.msra.mxu0 0
    %1858 = vmatprep.subr.bf16.mxu0 0
    %1859 = vmatpush1.bf16.msra.mxu0 0
    %1860 = vmatprep.subr.bf16.mxu0 0
    %1861 = vmatpush1.bf16.msra.mxu0 0
    %1862 = vmatprep.subr.bf16.mxu0 0
    %1863 = vmatpush1.bf16.msra.mxu0 0
    %1864 = vmatprep.subr.bf16.mxu0 0
    %1865 = vmatpush1.bf16.msra.mxu0 0
    %1866 = vmatprep.subr.bf16.mxu0 0
    %1867 = vmatpush1.bf16.msra.mxu0 0
    %1868 = vmatprep.subr.bf16.mxu0 0
    %1869 = vmatpush1.bf16.msra.mxu0 0
    %1870 = vmatprep.subr.bf16.mxu0 0
    %1871 = vmatpush1.bf16.msra.mxu0 0
    %1872 = vmatprep.subr.bf16.mxu0 0
    %1873 = vmatpush1.bf16.msra.mxu0 0
    %1874 = vmatprep.subr.bf16.mxu0 0
    %1875 = vmatpush1.bf16.msra.mxu0 0
    %1876 = vmatprep.mubr.bf16.mxu0 0
    %1877 = vmatmul.mubr.bf16.gmra.mrb[0].mxu0 %v1842
    %v1878 = vpop.f32.mrb[0].mxu0
    %v1879 = vadd.f32 0.0, %v1878
    %v1880 = vpop.f32.mrb[0].mxu0
    %v1881 = vpop.f32.mrb[0].mxu0
    %v1882 = vadd.f32 0.0, %v1881
    %v1883 = vpop.f32.mrb[0].mxu0
    %1884 = vdwg.mxu0
    %1885 = vrot.lane.b32.xlu0 %v250, 64
    %v1886 = vpop.permute.xlu0 %1885
    %v1889 = vsel %vm1046, %v1409, 0
    %1891 = vmatprep.subr.bf16.mxu0 0
    %1892 = vmatpush1.bf16.msra.mxu0 %v1886
    %1893 = vmatprep.subr.bf16.mxu0 0
    %1894 = vmatpush1.bf16.msra.mxu0 0
    %1895 = vmatprep.subr.bf16.mxu0 0
    %1896 = vmatpush1.bf16.msra.mxu0 0
    %1897 = vmatprep.subr.bf16.mxu0 0
    %1898 = vmatpush1.bf16.msra.mxu0 0
    %1899 = vmatprep.subr.bf16.mxu0 0
    %1900 = vmatpush1.bf16.msra.mxu0 0
    %1901 = vmatprep.subr.bf16.mxu0 0
    %1902 = vmatpush1.bf16.msra.mxu0 0
    %1903 = vmatprep.subr.bf16.mxu0 0
    %1904 = vmatpush1.bf16.msra.mxu0 0
    %1905 = vmatprep.subr.bf16.mxu0 0
    %1906 = vmatpush1.bf16.msra.mxu0 0
    %1907 = vmatprep.subr.bf16.mxu0 0
    %1908 = vmatpush1.bf16.msra.mxu0 0
    %1909 = vmatprep.subr.bf16.mxu0 0
    %1910 = vmatpush1.bf16.msra.mxu0 0
    %1911 = vmatprep.subr.bf16.mxu0 0
    %1912 = vmatpush1.bf16.msra.mxu0 0
    %1913 = vmatprep.subr.bf16.mxu0 0
    %1914 = vmatpush1.bf16.msra.mxu0 0
    %1915 = vmatprep.subr.bf16.mxu0 0
    %1916 = vmatpush1.bf16.msra.mxu0 0
    %1917 = vmatprep.subr.bf16.mxu0 0
    %1918 = vmatpush1.bf16.msra.mxu0 0
    %1919 = vmatprep.subr.bf16.mxu0 0
    %1920 = vmatpush1.bf16.msra.mxu0 0
    %1921 = vmatprep.subr.bf16.mxu0 0
    %1922 = vmatpush1.bf16.msra.mxu0 0
    %1923 = vmatprep.mubr.bf16.mxu0 0
    %1924 = vmatmul.mubr.bf16.gmra.mrb[0].mxu0 %v1889
    %v1925 = vpop.f32.mrb[0].mxu0
    %v1926 = vadd.f32 0.0, %v1925
    %v1927 = vpop.f32.mrb[0].mxu0
    %v1928 = vpop.f32.mrb[0].mxu0
    %v1929 = vadd.f32 0.0, %v1928
    %v1930 = vpop.f32.mrb[0].mxu0
    %1931 = vdwg.mxu0
    %1932 = vrot.lane.b32.xlu0 %v252, 64
    %v1933 = vpop.permute.xlu0 %1932
    %v1936 = vsel %vm1046, %v1410, 0
    %1938 = vmatprep.subr.bf16.mxu0 0
    %1939 = vmatpush1.bf16.msra.mxu0 %v1933
    %1940 = vmatprep.subr.bf16.mxu0 0
    %1941 = vmatpush1.bf16.msra.mxu0 0
    %1942 = vmatprep.subr.bf16.mxu0 0
    %1943 = vmatpush1.bf16.msra.mxu0 0
    %1944 = vmatprep.subr.bf16.mxu0 0
    %1945 = vmatpush1.bf16.msra.mxu0 0
    %1946 = vmatprep.subr.bf16.mxu0 0
    %1947 = vmatpush1.bf16.msra.mxu0 0
    %1948 = vmatprep.subr.bf16.mxu0 0
    %1949 = vmatpush1.bf16.msra.mxu0 0
    %1950 = vmatprep.subr.bf16.mxu0 0
    %1951 = vmatpush1.bf16.msra.mxu0 0
    %1952 = vmatprep.subr.bf16.mxu0 0
    %1953 = vmatpush1.bf16.msra.mxu0 0
    %1954 = vmatprep.subr.bf16.mxu0 0
    %1955 = vmatpush1.bf16.msra.mxu0 0
    %1956 = vmatprep.subr.bf16.mxu0 0
    %1957 = vmatpush1.bf16.msra.mxu0 0
    %1958 = vmatprep.subr.bf16.mxu0 0
    %1959 = vmatpush1.bf16.msra.mxu0 0
    %1960 = vmatprep.subr.bf16.mxu0 0
    %1961 = vmatpush1.bf16.msra.mxu0 0
    %1962 = vmatprep.subr.bf16.mxu0 0
    %1963 = vmatpush1.bf16.msra.mxu0 0
    %1964 = vmatprep.subr.bf16.mxu0 0
    %1965 = vmatpush1.bf16.msra.mxu0 0
    %1966 = vmatprep.subr.bf16.mxu0 0
    %1967 = vmatpush1.bf16.msra.mxu0 0
    %1968 = vmatprep.subr.bf16.mxu0 0
    %1969 = vmatpush1.bf16.msra.mxu0 0
    %1970 = vmatprep.mubr.bf16.mxu0 0
    %1971 = vmatmul.mubr.bf16.gmra.mrb[0].mxu0 %v1936
    %v1972 = vpop.f32.mrb[0].mxu0
    %v1973 = vadd.f32 0.0, %v1972
    %v1974 = vpop.f32.mrb[0].mxu0
    %v1975 = vpop.f32.mrb[0].mxu0
    %v1976 = vadd.f32 0.0, %v1975
    %v1977 = vpop.f32.mrb[0].mxu0
    %1978 = vdwg.mxu0
    %1979 = vrot.lane.b32.xlu0 %v254, 64
    %v1980 = vpop.permute.xlu0 %1979
    %v1983 = vsel %vm1046, %v1411, 0
    %1985 = vmatprep.subr.bf16.mxu0 0
    %1986 = vmatpush1.bf16.msra.mxu0 %v1980
    %1987 = vmatprep.subr.bf16.mxu0 0
    %1988 = vmatpush1.bf16.msra.mxu0 0
    %1989 = vmatprep.subr.bf16.mxu0 0
    %1990 = vmatpush1.bf16.msra.mxu0 0
    %1991 = vmatprep.subr.bf16.mxu0 0
    %1992 = vmatpush1.bf16.msra.mxu0 0
    %1993 = vmatprep.subr.bf16.mxu0 0
    %1994 = vmatpush1.bf16.msra.mxu0 0
    %1995 = vmatprep.subr.bf16.mxu0 0
    %1996 = vmatpush1.bf16.msra.mxu0 0
    %1997 = vmatprep.subr.bf16.mxu0 0
    %1998 = vmatpush1.bf16.msra.mxu0 0
    %1999 = vmatprep.subr.bf16.mxu0 0
    %2000 = vmatpush1.bf16.msra.mxu0 0
    %2001 = vmatprep.subr.bf16.mxu0 0
    %2002 = vmatpush1.bf16.msra.mxu0 0
    %2003 = vmatprep.subr.bf16.mxu0 0
    %2004 = vmatpush1.bf16.msra.mxu0 0
    %2005 = vmatprep.subr.bf16.mxu0 0
    %2006 = vmatpush1.bf16.msra.mxu0 0
    %2007 = vmatprep.subr.bf16.mxu0 0
    %2008 = vmatpush1.bf16.msra.mxu0 0
    %2009 = vmatprep.subr.bf16.mxu0 0
    %2010 = vmatpush1.bf16.msra.mxu0 0
    %2011 = vmatprep.subr.bf16.mxu0 0
    %2012 = vmatpush1.bf16.msra.mxu0 0
    %2013 = vmatprep.subr.bf16.mxu0 0
    %2014 = vmatpush1.bf16.msra.mxu0 0
    %2015 = vmatprep.subr.bf16.mxu0 0
    %2016 = vmatpush1.bf16.msra.mxu0 0
    %2017 = vmatprep.mubr.bf16.mxu0 0
    %2018 = vmatmul.mubr.bf16.gmra.mrb[0].mxu0 %v1983
    %v2019 = vpop.f32.mrb[0].mxu0
    %v2020 = vadd.f32 0.0, %v2019
    %v2021 = vpop.f32.mrb[0].mxu0
    %v2022 = vpop.f32.mrb[0].mxu0
    %v2023 = vadd.f32 0.0, %v2022
    %v2024 = vpop.f32.mrb[0].mxu0
    %2025 = vdwg.mxu0
    %2026 = vrot.lane.b32.xlu0 %v256, 64
    %v2027 = vpop.permute.xlu0 %2026
    %v2030 = vsel %vm1046, %v1412, 0
    %2032 = vmatprep.subr.bf16.mxu0 0
    %2033 = vmatpush1.bf16.msra.mxu0 %v2027
    %2034 = vmatprep.subr.bf16.mxu0 0
    %2035 = vmatpush1.bf16.msra.mxu0 0
    %2036 = vmatprep.subr.bf16.mxu0 0
    %2037 = vmatpush1.bf16.msra.mxu0 0
    %2038 = vmatprep.subr.bf16.mxu0 0
    %2039 = vmatpush1.bf16.msra.mxu0 0
    %2040 = vmatprep.subr.bf16.mxu0 0
    %2041 = vmatpush1.bf16.msra.mxu0 0
    %2042 = vmatprep.subr.bf16.mxu0 0
    %2043 = vmatpush1.bf16.msra.mxu0 0
    %2044 = vmatprep.subr.bf16.mxu0 0
    %2045 = vmatpush1.bf16.msra.mxu0 0
    %2046 = vmatprep.subr.bf16.mxu0 0
    %2047 = vmatpush1.bf16.msra.mxu0 0
    %2048 = vmatprep.subr.bf16.mxu0 0
    %2049 = vmatpush1.bf16.msra.mxu0 0
    %2050 = vmatprep.subr.bf16.mxu0 0
    %2051 = vmatpush1.bf16.msra.mxu0 0
    %2052 = vmatprep.subr.bf16.mxu0 0
    %2053 = vmatpush1.bf16.msra.mxu0 0
    %2054 = vmatprep.subr.bf16.mxu0 0
    %2055 = vmatpush1.bf16.msra.mxu0 0
    %2056 = vmatprep.subr.bf16.mxu0 0
    %2057 = vmatpush1.bf16.msra.mxu0 0
    %2058 = vmatprep.subr.bf16.mxu0 0
    %2059 = vmatpush1.bf16.msra.mxu0 0
    %2060 = vmatprep.subr.bf16.mxu0 0
    %2061 = vmatpush1.bf16.msra.mxu0 0
    %2062 = vmatprep.subr.bf16.mxu0 0
    %2063 = vmatpush1.bf16.msra.mxu0 0
    %2064 = vmatprep.mubr.bf16.mxu0 0
    %2065 = vmatmul.mubr.bf16.gmra.mrb[0].mxu0 %v2030
    %v2066 = vpop.f32.mrb[0].mxu0
    %v2067 = vadd.f32 0.0, %v2066
    %v2068 = vpop.f32.mrb[0].mxu0
    %v2069 = vpop.f32.mrb[0].mxu0
    %v2070 = vadd.f32 0.0, %v2069
    %v2071 = vpop.f32.mrb[0].mxu0
    %2072 = vdwg.mxu0
    %2073 = vrot.lane.b32.xlu0 %v258, 64
    %v2074 = vpop.permute.xlu0 %2073
    %v2077 = vsel %vm1046, %v1413, 0
    %2079 = vmatprep.subr.bf16.mxu0 0
    %2080 = vmatpush1.bf16.msra.mxu0 %v2074
    %2081 = vmatprep.subr.bf16.mxu0 0
    %2082 = vmatpush1.bf16.msra.mxu0 0
    %2083 = vmatprep.subr.bf16.mxu0 0
    %2084 = vmatpush1.bf16.msra.mxu0 0
    %2085 = vmatprep.subr.bf16.mxu0 0
    %2086 = vmatpush1.bf16.msra.mxu0 0
    %2087 = vmatprep.subr.bf16.mxu0 0
    %2088 = vmatpush1.bf16.msra.mxu0 0
    %2089 = vmatprep.subr.bf16.mxu0 0
    %2090 = vmatpush1.bf16.msra.mxu0 0
    %2091 = vmatprep.subr.bf16.mxu0 0
    %2092 = vmatpush1.bf16.msra.mxu0 0
    %2093 = vmatprep.subr.bf16.mxu0 0
    %2094 = vmatpush1.bf16.msra.mxu0 0
    %2095 = vmatprep.subr.bf16.mxu0 0
    %2096 = vmatpush1.bf16.msra.mxu0 0
    %2097 = vmatprep.subr.bf16.mxu0 0
    %2098 = vmatpush1.bf16.msra.mxu0 0
    %2099 = vmatprep.subr.bf16.mxu0 0
    %2100 = vmatpush1.bf16.msra.mxu0 0
    %2101 = vmatprep.subr.bf16.mxu0 0
    %2102 = vmatpush1.bf16.msra.mxu0 0
    %2103 = vmatprep.subr.bf16.mxu0 0
    %2104 = vmatpush1.bf16.msra.mxu0 0
    %2105 = vmatprep.subr.bf16.mxu0 0
    %2106 = vmatpush1.bf16.msra.mxu0 0
    %2107 = vmatprep.subr.bf16.mxu0 0
    %2108 = vmatpush1.bf16.msra.mxu0 0
    %2109 = vmatprep.subr.bf16.mxu0 0
    %2110 = vmatpush1.bf16.msra.mxu0 0
    %2111 = vmatprep.mubr.bf16.mxu0 0
    %2112 = vmatmul.mubr.bf16.gmra.mrb[0].mxu0 %v2077
    %v2113 = vpop.f32.mrb[0].mxu0
    %v2114 = vadd.f32 0.0, %v2113
    %v2115 = vpop.f32.mrb[0].mxu0
    %v2116 = vpop.f32.mrb[0].mxu0
    %v2117 = vadd.f32 0.0, %v2116
    %v2118 = vpop.f32.mrb[0].mxu0
    %2119 = vdwg.mxu0
    %2120 = vrot.lane.b32.xlu0 %v260, 64
    %v2121 = vpop.permute.xlu0 %2120
    %v2124 = vsel %vm1046, %v1414, 0
    %2126 = vmatprep.subr.bf16.mxu0 0
    %2127 = vmatpush1.bf16.msra.mxu0 %v2121
    %2128 = vmatprep.subr.bf16.mxu0 0
    %2129 = vmatpush1.bf16.msra.mxu0 0
    %2130 = vmatprep.subr.bf16.mxu0 0
    %2131 = vmatpush1.bf16.msra.mxu0 0
    %2132 = vmatprep.subr.bf16.mxu0 0
    %2133 = vmatpush1.bf16.msra.mxu0 0
    %2134 = vmatprep.subr.bf16.mxu0 0
    %2135 = vmatpush1.bf16.msra.mxu0 0
    %2136 = vmatprep.subr.bf16.mxu0 0
    %2137 = vmatpush1.bf16.msra.mxu0 0
    %2138 = vmatprep.subr.bf16.mxu0 0
    %2139 = vmatpush1.bf16.msra.mxu0 0
    %2140 = vmatprep.subr.bf16.mxu0 0
    %2141 = vmatpush1.bf16.msra.mxu0 0
    %2142 = vmatprep.subr.bf16.mxu0 0
    %2143 = vmatpush1.bf16.msra.mxu0 0
    %2144 = vmatprep.subr.bf16.mxu0 0
    %2145 = vmatpush1.bf16.msra.mxu0 0
    %2146 = vmatprep.subr.bf16.mxu0 0
    %2147 = vmatpush1.bf16.msra.mxu0 0
    %2148 = vmatprep.subr.bf16.mxu0 0
    %2149 = vmatpush1.bf16.msra.mxu0 0
    %2150 = vmatprep.subr.bf16.mxu0 0
    %2151 = vmatpush1.bf16.msra.mxu0 0
    %2152 = vmatprep.subr.bf16.mxu0 0
    %2153 = vmatpush1.bf16.msra.mxu0 0
    %2154 = vmatprep.subr.bf16.mxu0 0
    %2155 = vmatpush1.bf16.msra.mxu0 0
    %2156 = vmatprep.subr.bf16.mxu0 0
    %2157 = vmatpush1.bf16.msra.mxu0 0
    %2158 = vmatprep.mubr.bf16.mxu0 0
    %2159 = vmatmul.mubr.bf16.gmra.mrb[0].mxu0 %v2124
    %v2160 = vpop.f32.mrb[0].mxu0
    %v2161 = vadd.f32 0.0, %v2160
    %v2162 = vpop.f32.mrb[0].mxu0
    %v2163 = vpop.f32.mrb[0].mxu0
    %v2164 = vadd.f32 0.0, %v2163
    %v2165 = vpop.f32.mrb[0].mxu0
    %2166 = vdwg.mxu0
    %2171 = vrot.lane.b32.xlu0 %v1550, 4
    %v2172 = vpop.permute.xlu0 %2171
    %2173 = vrot.lane.b32.xlu0 %v1553, 4
    %v2174 = vpop.permute.xlu0 %2173
    %2175 = vrot.lane.b32.xlu0 %v1597, 4
    %v2176 = vpop.permute.xlu0 %2175
    %2177 = vrot.lane.b32.xlu0 %v1600, 4
    %v2178 = vpop.permute.xlu0 %2177
    %2187 = vrot.lane.b32.xlu0 %v1644, 8
    %v2188 = vpop.permute.xlu0 %2187
    %2189 = vrot.lane.b32.xlu0 %v1647, 8
    %v2190 = vpop.permute.xlu0 %2189
    %2191 = vrot.lane.b32.xlu0 %v1691, 8
    %v2192 = vpop.permute.xlu0 %2191
    %2193 = vrot.lane.b32.xlu0 %v1694, 8
    %v2194 = vpop.permute.xlu0 %2193
    %2203 = vrot.lane.b32.xlu0 %v1738, 12
    %v2204 = vpop.permute.xlu0 %2203
    %2205 = vrot.lane.b32.xlu0 %v1741, 12
    %v2206 = vpop.permute.xlu0 %2205
    %2207 = vrot.lane.b32.xlu0 %v1785, 12
    %v2208 = vpop.permute.xlu0 %2207
    %2209 = vrot.lane.b32.xlu0 %v1788, 12
    %v2210 = vpop.permute.xlu0 %2209
    %2219 = vrot.lane.b32.xlu0 %v1832, 16
    %v2220 = vpop.permute.xlu0 %2219
    %2221 = vrot.lane.b32.xlu0 %v1835, 16
    %v2222 = vpop.permute.xlu0 %2221
    %2223 = vrot.lane.b32.xlu0 %v1879, 16
    %v2224 = vpop.permute.xlu0 %2223
    %2225 = vrot.lane.b32.xlu0 %v1882, 16
    %v2226 = vpop.permute.xlu0 %2225
    %2235 = vrot.lane.b32.xlu0 %v1926, 20
    %v2236 = vpop.permute.xlu0 %2235
    %2237 = vrot.lane.b32.xlu0 %v1929, 20
    %v2238 = vpop.permute.xlu0 %2237
    %2239 = vrot.lane.b32.xlu0 %v1973, 20
    %v2240 = vpop.permute.xlu0 %2239
    %2241 = vrot.lane.b32.xlu0 %v1976, 20
    %v2242 = vpop.permute.xlu0 %2241
    %2251 = vrot.lane.b32.xlu0 %v2020, 24
    %v2252 = vpop.permute.xlu0 %2251
    %2253 = vrot.lane.b32.xlu0 %v2023, 24
    %v2254 = vpop.permute.xlu0 %2253
    %2255 = vrot.lane.b32.xlu0 %v2067, 24
    %v2256 = vpop.permute.xlu0 %2255
    %2257 = vrot.lane.b32.xlu0 %v2070, 24
    %v2258 = vpop.permute.xlu0 %2257
    %2267 = vrot.lane.b32.xlu0 %v2114, 28
    %v2268 = vpop.permute.xlu0 %2267
    %2269 = vrot.lane.b32.xlu0 %v2117, 28
    %v2270 = vpop.permute.xlu0 %2269
    %2271 = vrot.lane.b32.xlu0 %v2161, 28
    %v2272 = vpop.permute.xlu0 %2271
    %2273 = vrot.lane.b32.xlu0 %v2164, 28
    %v2274 = vpop.permute.xlu0 %2273
    %v2279 = vsel %vm263, %v1456, %v2172
    %v2280 = vsel %vm263, %v1459, %v2174
    %v2281 = vsel %vm263, %v1503, %v2176
    %v2282 = vsel %vm263, %v1506, %v2178
    %vm2283 = vcmask 64512
    %v2284 = vsel %vm2283, %v2279, %v2188
    %v2285 = vsel %vm2283, %v2280, %v2190
    %v2286 = vsel %vm2283, %v2281, %v2192
    %v2287 = vsel %vm2283, %v2282, %v2194
    %vm2288 = vcmask 97280
    %v2289 = vsel %vm2288, %v2284, %v2204
    %v2290 = vsel %vm2288, %v2285, %v2206
    %v2291 = vsel %vm2288, %v2286, %v2208
    %v2292 = vsel %vm2288, %v2287, %v2210
    %v2293 = vsel %vm1046, %v2289, %v2220
    %v2294 = vsel %vm1046, %v2290, %v2222
    %v2295 = vsel %vm1046, %v2291, %v2224
    %v2296 = vsel %vm1046, %v2292, %v2226
    %vm2297 = vcmask 162816
    %v2298 = vsel %vm2297, %v2293, %v2236
    %v2299 = vsel %vm2297, %v2294, %v2238
    %v2300 = vsel %vm2297, %v2295, %v2240
    %v2301 = vsel %vm2297, %v2296, %v2242
    %vm2302 = vcmask 195584
    %v2303 = vsel %vm2302, %v2298, %v2252
    %v2304 = vsel %vm2302, %v2299, %v2254
    %v2305 = vsel %vm2302, %v2300, %v2256
    %v2306 = vsel %vm2302, %v2301, %v2258
    %vm2307 = vcmask 228352
    %v2308 = vsel %vm2307, %v2303, %v2268
    %v2309 = vsel %vm2307, %v2304, %v2270
    %v2310 = vsel %vm2307, %v2305, %v2272
    %v2311 = vsel %vm2307, %v2306, %v2274
    %v2312 = vpack.c.bf16 %v2309, %v2308
    %v2313 = vpack.c.bf16 %v2311, %v2310
    %v2314 = vld [vmem:[%s5] sm:$0xf]
    %v2315 = vld [vmem:[%s5 + $0x4] sm:$0xf]
    %v2316 = vld [vmem:[%s5 + $0x8] sm:$0xf]
    %v2317 = vld [vmem:[%s5 + $0xc] sm:$0xf]
    %v2318 = vld [vmem:[%s6] sm:$0x1]
    %v2319 = vlaneseq
    %v2320 = vshrl.u32 %v2319, 7
    %v2321 = vsub.s32 0, %v2320
    %v2322 = vrot.slane %v2318, %v2321
    %v2327 = vunpack.c.l.b16 %v2314
    %v2328 = vunpack.c.l.b16 %v2315
    %v2329 = vunpack.c.l.b16 %v2316
    %v2330 = vunpack.c.l.b16 %v2317
    %v2331 = vpack.c.b16 %v2328, %v2327
    %v2332 = vpack.c.b16 %v2330, %v2329
    %v2336 = vsel %vm173, %v2312, 0
    %v2339 = vsel %vm173, %v2313, 0
    %2341 = vmatprep.subr.bf16.mxu0 0
    %2342 = vmatpush1.bf16.msra.mxu0 %v2331
    %2343 = vmatprep.subr.bf16.mxu0 0
    %2344 = vmatpush1.bf16.msra.mxu0 %v2332
    %2345 = vmatprep.subr.bf16.mxu0 0
    %2346 = vmatpush1.bf16.msra.mxu0 0
    %2347 = vmatprep.subr.bf16.mxu0 0
    %2348 = vmatpush1.bf16.msra.mxu0 0
    %2349 = vmatprep.subr.bf16.mxu0 0
    %2350 = vmatpush1.bf16.msra.mxu0 0
    %2351 = vmatprep.subr.bf16.mxu0 0
    %2352 = vmatpush1.bf16.msra.mxu0 0
    %2353 = vmatprep.subr.bf16.mxu0 0
    %2354 = vmatpush1.bf16.msra.mxu0 0
    %2355 = vmatprep.subr.bf16.mxu0 0
    %2356 = vmatpush1.bf16.msra.mxu0 0
    %2357 = vmatprep.subr.bf16.mxu0 0
    %2358 = vmatpush1.bf16.msra.mxu0 0
    %2359 = vmatprep.subr.bf16.mxu0 0
    %2360 = vmatpush1.bf16.msra.mxu0 0
    %2361 = vmatprep.subr.bf16.mxu0 0
    %2362 = vmatpush1.bf16.msra.mxu0 0
    %2363 = vmatprep.subr.bf16.mxu0 0
    %2364 = vmatpush1.bf16.msra.mxu0 0
    %2365 = vmatprep.subr.bf16.mxu0 0
    %2366 = vmatpush1.bf16.msra.mxu0 0
    %2367 = vmatprep.subr.bf16.mxu0 0
    %2368 = vmatpush1.bf16.msra.mxu0 0
    %2369 = vmatprep.subr.bf16.mxu0 0
    %2370 = vmatpush1.bf16.msra.mxu0 0
    %2371 = vmatprep.subr.bf16.mxu0 0
    %2372 = vmatpush1.bf16.msra.mxu0 0
    %2373 = vmatprep.mubr.bf16.mxu0 0
    %2374 = vmatmul.mubr.bf16.gmra.mrb[0].mxu0 %v2336
    %v2375 = vpop.f32.mrb[0].mxu0
    %v2376 = vadd.f32 %v2322, %v2375
    %v2377 = vpop.f32.mrb[0].mxu0
    %v2378 = vpop.f32.mrb[0].mxu0
    %v2379 = vadd.f32 %v2322, %v2378
    %v2380 = vpop.f32.mrb[0].mxu0
    %2381 = vmatprep.mubr.bf16.mxu0 0
    %2382 = vmatmul.mubr.bf16.gmra.mrb[0].mxu0 %v2339
    %v2383 = vpop.f32.mrb[0].mxu0
    %v2384 = vadd.f32 %v2322, %v2383
    %v2385 = vpop.f32.mrb[0].mxu0
    %v2386 = vpop.f32.mrb[0].mxu0
    %v2387 = vadd.f32 %v2322, %v2386
    %v2388 = vpop.f32.mrb[0].mxu0
    %2389 = vdwg.mxu0
    %v2390 = vadd.f32 %v136, %v2376
    %v2391 = vadd.f32 %v139, %v2379
    %v2392 = vadd.f32 %v144, %v2384
    %v2393 = vadd.f32 %v147, %v2387
    %v2394 = vld [vmem:[%s7] sm:$0x1]
    %v2395 = vld [vmem:[%s8] sm:$0x1]
    %v2396 = vsel %vm173, %v2390, 0.0
    %2397 = vadd.xlane.f32.xlu0 %v2396
    %v2398 = vpop.xlane.xlu0 %2397
    %v2399 = vsel %vm173, %v2391, 0.0
    %2400 = vadd.xlane.f32.xlu0 %v2399
    %v2401 = vpop.xlane.xlu0 %2400
    %v2402 = vsel %vm173, %v2392, 0.0
    %2403 = vadd.xlane.f32.xlu0 %v2402
    %v2404 = vpop.xlane.xlu0 %2403
    %v2405 = vsel %vm173, %v2393, 0.0
    %2406 = vadd.xlane.f32.xlu0 %v2405
    %v2407 = vpop.xlane.xlu0 %2406
    %v2408 = vrcp.pop 32.0
    %v2409 = vmul.f32 %v2398, %v2408
    %v2410 = vmul.f32 %v2401, %v2408
    %v2411 = vmul.f32 %v2404, %v2408
    %v2412 = vmul.f32 %v2407, %v2408
    %v2413 = vsub.f32 %v2390, %v2409
    %v2414 = vsub.f32 %v2391, %v2410
    %v2415 = vsub.f32 %v2392, %v2411
    %v2416 = vsub.f32 %v2393, %v2412
    %v2417 = vmul.f32 %v2413, %v2413
    %v2418 = vmul.f32 %v2414, %v2414
    %v2419 = vmul.f32 %v2415, %v2415
    %v2420 = vmul.f32 %v2416, %v2416
    %v2421 = vsel %vm173, %v2417, 0.0
    %2422 = vadd.xlane.f32.xlu0 %v2421
    %v2423 = vpop.xlane.xlu0 %2422
    %v2424 = vsel %vm173, %v2418, 0.0
    %2425 = vadd.xlane.f32.xlu0 %v2424
    %v2426 = vpop.xlane.xlu0 %2425
    %v2427 = vsel %vm173, %v2419, 0.0
    %2428 = vadd.xlane.f32.xlu0 %v2427
    %v2429 = vpop.xlane.xlu0 %2428
    %v2430 = vsel %vm173, %v2420, 0.0
    %2431 = vadd.xlane.f32.xlu0 %v2430
    %v2432 = vpop.xlane.xlu0 %2431
    %v2433 = vmul.f32 %v2423, %v2408
    %v2434 = vmul.f32 %v2426, %v2408
    %v2435 = vmul.f32 %v2429, %v2408
    %v2436 = vmul.f32 %v2432, %v2408
    %v2437 = vadd.f32 %v2433, 1e-05
    %v2438 = vadd.f32 %v2434, 1e-05
    %v2439 = vadd.f32 %v2435, 1e-05
    %v2440 = vadd.f32 %v2436, 1e-05
    %v2441 = vrsqrt.pop %v2437
    %v2442 = vrsqrt.pop %v2438
    %v2443 = vrsqrt.pop %v2439
    %v2444 = vrsqrt.pop %v2440
    %v2445 = vmul.f32 %v2413, %v2441
    %v2446 = vmul.f32 %v2414, %v2442
    %v2447 = vmul.f32 %v2415, %v2443
    %v2448 = vmul.f32 %v2416, %v2444
    %v2449 = vlaneseq
    %v2450 = vshrl.u32 %v2449, 7
    %v2451 = vsub.s32 0, %v2450
    %v2452 = vrot.slane %v2394, %v2451
    %v2453 = vmul.f32 %v2445, %v2452
    %v2454 = vmul.f32 %v2446, %v2452
    %v2455 = vmul.f32 %v2447, %v2452
    %v2456 = vmul.f32 %v2448, %v2452
    %v2457 = vlaneseq
    %v2458 = vshrl.u32 %v2457, 7
    %v2459 = vsub.s32 0, %v2458
    %v2460 = vrot.slane %v2395, %v2459
    %v2461 = vadd.f32 %v2453, %v2460
    %v2462 = vadd.f32 %v2454, %v2460
    %v2463 = vadd.f32 %v2455, %v2460
    %v2464 = vadd.f32 %v2456, %v2460
    %v2465 = vpack.c.bf16 %v2462, %v2461
    %v2466 = vpack.c.bf16 %v2464, %v2463
    %v2467 = vld [vmem:[%s9] sm:$0xff]
    %v2468 = vld [vmem:[%s9 + $0x8] sm:$0xff]
    %v2469 = vld [vmem:[%s9 + $0x10] sm:$0xff]
    %v2470 = vld [vmem:[%s9 + $0x18] sm:$0xff]
    %v2471 = vld [vmem:[%s10] ss:$2 sm:$0x3]
    %v2473 = vlaneseq
    %v2474 = vshrl.u32 %v2473, 7
    %v2475 = vsub.s32 0, %v2474
    %v2476 = vrot.slane %v2471, %v2475
    %v2477 = vlaneseq
    %v2478 = vshrl.u32 %v2477, 7
    %v2479 = vsub.s32 1, %v2478
    %v2480 = vrot.slane %v2471, %v2479
    %v2487 = vunpack.c.l.b16 %v2467
    %v2488 = vunpack.c.h.b16 %v2467
    %v2489 = vunpack.c.l.b16 %v2468
    %v2490 = vunpack.c.h.b16 %v2468
    %v2491 = vunpack.c.l.b16 %v2469
    %v2492 = vunpack.c.h.b16 %v2469
    %v2493 = vunpack.c.l.b16 %v2470
    %v2494 = vunpack.c.h.b16 %v2470
    %v2495 = vpack.c.b16 %v2489, %v2487
    %v2496 = vpack.c.b16 %v2490, %v2488
    %v2497 = vpack.c.b16 %v2493, %v2491
    %v2498 = vpack.c.b16 %v2494, %v2492
    %v2504 = vsel %vm173, %v2465, 0
    %v2507 = vsel %vm173, %v2466, 0
    %2509 = vmatprep.subr.bf16.mxu0 %v2496
    %2510 = vmatpush1.bf16.msra.mxu0 %v2495
    %2511 = vmatprep.subr.bf16.mxu0 %v2498
    %2512 = vmatpush1.bf16.msra.mxu0 %v2497
    %2513 = vmatprep.subr.bf16.mxu0 0
    %2514 = vmatpush1.bf16.msra.mxu0 0
    %2515 = vmatprep.subr.bf16.mxu0 0
    %2516 = vmatpush1.bf16.msra.mxu0 0
    %2517 = vmatprep.subr.bf16.mxu0 0
    %2518 = vmatpush1.bf16.msra.mxu0 0
    %2519 = vmatprep.subr.bf16.mxu0 0
    %2520 = vmatpush1.bf16.msra.mxu0 0
    %2521 = vmatprep.subr.bf16.mxu0 0
    %2522 = vmatpush1.bf16.msra.mxu0 0
    %2523 = vmatprep.subr.bf16.mxu0 0
    %2524 = vmatpush1.bf16.msra.mxu0 0
    %2525 = vmatprep.subr.bf16.mxu0 0
    %2526 = vmatpush1.bf16.msra.mxu0 0
    %2527 = vmatprep.subr.bf16.mxu0 0
    %2528 = vmatpush1.bf16.msra.mxu0 0
    %2529 = vmatprep.subr.bf16.mxu0 0
    %2530 = vmatpush1.bf16.msra.mxu0 0
    %2531 = vmatprep.subr.bf16.mxu0 0
    %2532 = vmatpush1.bf16.msra.mxu0 0
    %2533 = vmatprep.subr.bf16.mxu0 0
    %2534 = vmatpush1.bf16.msra.mxu0 0
    %2535 = vmatprep.subr.bf16.mxu0 0
    %2536 = vmatpush1.bf16.msra.mxu0 0
    %2537 = vmatprep.subr.bf16.mxu0 0
    %2538 = vmatpush1.bf16.msra.mxu0 0
    %2539 = vmatprep.subr.bf16.mxu0 0
    %2540 = vmatpush1.bf16.msra.mxu0 0
    %2541 = vmatprep.mubr.bf16.mxu0 0
    %2542 = vmatmul.mubr.bf16.gmra.mrb[0].mxu0 %v2504
    %v2543 = vpop.f32.mrb[0].mxu0
    %v2544 = vadd.f32 %v2476, %v2543
    %v2545 = vpop.f32.mrb[0].mxu0
    %v2546 = vadd.f32 %v2480, %v2545
    %v2547 = vpop.f32.mrb[0].mxu0
    %v2548 = vadd.f32 %v2476, %v2547
    %v2549 = vpop.f32.mrb[0].mxu0
    %v2550 = vadd.f32 %v2480, %v2549
    %2551 = vmatprep.mubr.bf16.mxu0 0
    %2552 = vmatmul.mubr.bf16.gmra.mrb[0].mxu0 %v2507
    %v2553 = vpop.f32.mrb[0].mxu0
    %v2554 = vadd.f32 %v2476, %v2553
    %v2555 = vpop.f32.mrb[0].mxu0
    %v2556 = vadd.f32 %v2480, %v2555
    %v2557 = vpop.f32.mrb[0].mxu0
    %v2558 = vadd.f32 %v2476, %v2557
    %v2559 = vpop.f32.mrb[0].mxu0
    %v2560 = vadd.f32 %v2480, %v2559
    %2561 = vdwg.mxu0
    %v2562 = vmax.f32 %v2544, 0.0
    %v2563 = vmax.f32 %v2546, 0.0
    %v2564 = vmax.f32 %v2548, 0.0
    %v2565 = vmax.f32 %v2550, 0.0
    %v2566 = vmax.f32 %v2554, 0.0
    %v2567 = vmax.f32 %v2556, 0.0
    %v2568 = vmax.f32 %v2558, 0.0
    %v2569 = vmax.f32 %v2560, 0.0
    %v2570 = vpack.c.bf16 %v2564, %v2562
    %v2571 = vpack.c.bf16 %v2565, %v2563
    %v2572 = vpack.c.bf16 %v2568, %v2566
    %v2573 = vpack.c.bf16 %v2569, %v2567
    %v2574 = vld [vmem:[%s11] sm:$0xf]
    %v2575 = vld [vmem:[%s11 + $0x4] sm:$0xf]
    %v2576 = vld [vmem:[%s11 + $0x8] sm:$0xf]
    %v2577 = vld [vmem:[%s11 + $0xc] sm:$0xf]
    %v2578 = vld [vmem:[%s11 + $0x10] sm:$0xf]
    %v2579 = vld [vmem:[%s11 + $0x14] sm:$0xf]
    %v2580 = vld [vmem:[%s11 + $0x18] sm:$0xf]
    %v2581 = vld [vmem:[%s11 + $0x1c] sm:$0xf]
    %v2582 = vld [vmem:[%s11 + $0x20] sm:$0xf]
    %v2583 = vld [vmem:[%s11 + $0x24] sm:$0xf]
    %v2584 = vld [vmem:[%s11 + $0x28] sm:$0xf]
    %v2585 = vld [vmem:[%s11 + $0x2c] sm:$0xf]
    %v2586 = vld [vmem:[%s11 + $0x30] sm:$0xf]
    %v2587 = vld [vmem:[%s11 + $0x34] sm:$0xf]
    %v2588 = vld [vmem:[%s11 + $0x38] sm:$0xf]
    %v2589 = vld [vmem:[%s11 + $0x3c] sm:$0xf]
    %v2590 = vld [vmem:[%s11 + $0x40] sm:$0xf]
    %v2591 = vld [vmem:[%s11 + $0x44] sm:$0xf]
    %v2592 = vld [vmem:[%s11 + $0x48] sm:$0xf]
    %v2593 = vld [vmem:[%s11 + $0x4c] sm:$0xf]
    %v2594 = vld [vmem:[%s11 + $0x50] sm:$0xf]
    %v2595 = vld [vmem:[%s11 + $0x54] sm:$0xf]
    %v2596 = vld [vmem:[%s11 + $0x58] sm:$0xf]
    %v2597 = vld [vmem:[%s11 + $0x5c] sm:$0xf]
    %v2598 = vld [vmem:[%s11 + $0x60] sm:$0xf]
    %v2599 = vld [vmem:[%s11 + $0x64] sm:$0xf]
    %v2600 = vld [vmem:[%s11 + $0x68] sm:$0xf]
    %v2601 = vld [vmem:[%s11 + $0x6c] sm:$0xf]
    %v2602 = vld [vmem:[%s11 + $0x70] sm:$0xf]
    %v2603 = vld [vmem:[%s11 + $0x74] sm:$0xf]
    %v2604 = vld [vmem:[%s11 + $0x78] sm:$0xf]
    %v2605 = vld [vmem:[%s11 + $0x7c] sm:$0xf]
    %v2606 = vld [vmem:[%s12] sm:$0x1]
    %v2607 = vlaneseq
    %v2608 = vshrl.u32 %v2607, 7
    %v2609 = vsub.s32 0, %v2608
    %v2610 = vrot.slane %v2606, %v2609
    %v2643 = vunpack.c.l.b16 %v2574
    %v2644 = vunpack.c.l.b16 %v2575
    %v2645 = vunpack.c.l.b16 %v2576
    %v2646 = vunpack.c.l.b16 %v2577
    %v2647 = vunpack.c.l.b16 %v2578
    %v2648 = vunpack.c.l.b16 %v2579
    %v2649 = vunpack.c.l.b16 %v2580
    %v2650 = vunpack.c.l.b16 %v2581
    %v2651 = vunpack.c.l.b16 %v2582
    %v2652 = vunpack.c.l.b16 %v2583
    %v2653 = vunpack.c.l.b16 %v2584
    %v2654 = vunpack.c.l.b16 %v2585
    %v2655 = vunpack.c.l.b16 %v2586
    %v2656 = vunpack.c.l.b16 %v2587
    %v2657 = vunpack.c.l.b16 %v2588
    %v2658 = vunpack.c.l.b16 %v2589
    %v2659 = vunpack.c.l.b16 %v2590
    %v2660 = vunpack.c.l.b16 %v2591
    %v2661 = vunpack.c.l.b16 %v2592
    %v2662 = vunpack.c.l.b16 %v2593
    %v2663 = vunpack.c.l.b16 %v2594
    %v2664 = vunpack.c.l.b16 %v2595
    %v2665 = vunpack.c.l.b16 %v2596
    %v2666 = vunpack.c.l.b16 %v2597
    %v2667 = vunpack.c.l.b16 %v2598
    %v2668 = vunpack.c.l.b16 %v2599
    %v2669 = vunpack.c.l.b16 %v2600
    %v2670 = vunpack.c.l.b16 %v2601
    %v2671 = vunpack.c.l.b16 %v2602
    %v2672 = vunpack.c.l.b16 %v2603
    %v2673 = vunpack.c.l.b16 %v2604
    %v2674 = vunpack.c.l.b16 %v2605
    %v2675 = vpack.c.b16 %v2644, %v2643
    %v2676 = vpack.c.b16 %v2646, %v2645
    %v2677 = vpack.c.b16 %v2648, %v2647
    %v2678 = vpack.c.b16 %v2650, %v2649
    %v2679 = vpack.c.b16 %v2652, %v2651
    %v2680 = vpack.c.b16 %v2654, %v2653
    %v2681 = vpack.c.b16 %v2656, %v2655
    %v2682 = vpack.c.b16 %v2658, %v2657
    %v2683 = vpack.c.b16 %v2660, %v2659
    %v2684 = vpack.c.b16 %v2662, %v2661
    %v2685 = vpack.c.b16 %v2664, %v2663
    %v2686 = vpack.c.b16 %v2666, %v2665
    %v2687 = vpack.c.b16 %v2668, %v2667
    %v2688 = vpack.c.b16 %v2670, %v2669
    %v2689 = vpack.c.b16 %v2672, %v2671
    %v2690 = vpack.c.b16 %v2674, %v2673
    %2707 = vmatprep.subr.bf16.mxu0 0
    %2708 = vmatpush1.bf16.msra.mxu0 %v2675
    %2709 = vmatprep.subr.bf16.mxu0 0
    %2710 = vmatpush1.bf16.msra.mxu0 %v2676
    %2711 = vmatprep.subr.bf16.mxu0 0
    %2712 = vmatpush1.bf16.msra.mxu0 %v2677
    %2713 = vmatprep.subr.bf16.mxu0 0
    %2714 = vmatpush1.bf16.msra.mxu0 %v2678
    %2715 = vmatprep.subr.bf16.mxu0 0
    %2716 = vmatpush1.bf16.msra.mxu0 %v2679
    %2717 = vmatprep.subr.bf16.mxu0 0
    %2718 = vmatpush1.bf16.msra.mxu0 %v2680
    %2719 = vmatprep.subr.bf16.mxu0 0
    %2720 = vmatpush1.bf16.msra.mxu0 %v2681
    %2721 = vmatprep.subr.bf16.mxu0 0
    %2722 = vmatpush1.bf16.msra.mxu0 %v2682
    %2723 = vmatprep.subr.bf16.mxu0 0
    %2724 = vmatpush1.bf16.msra.mxu0 %v2683
    %2725 = vmatprep.subr.bf16.mxu0 0
    %2726 = vmatpush1.bf16.msra.mxu0 %v2684
    %2727 = vmatprep.subr.bf16.mxu0 0
    %2728 = vmatpush1.bf16.msra.mxu0 %v2685
    %2729 = vmatprep.subr.bf16.mxu0 0
    %2730 = vmatpush1.bf16.msra.mxu0 %v2686
    %2731 = vmatprep.subr.bf16.mxu0 0
    %2732 = vmatpush1.bf16.msra.mxu0 %v2687
    %2733 = vmatprep.subr.bf16.mxu0 0
    %2734 = vmatpush1.bf16.msra.mxu0 %v2688
    %2735 = vmatprep.subr.bf16.mxu0 0
    %2736 = vmatpush1.bf16.msra.mxu0 %v2689
    %2737 = vmatprep.subr.bf16.mxu0 0
    %2738 = vmatpush1.bf16.msra.mxu0 %v2690
    %2739 = vmatprep.mubr.bf16.mxu0 %v2571
    %2740 = vmatmul.mubr.bf16.gmra.mrb[0].mxu0 %v2570
    %v2741 = vpop.f32.mrb[0].mxu0
    %v2742 = vadd.f32 %v2610, %v2741
    %v2743 = vpop.f32.mrb[0].mxu0
    %v2744 = vpop.f32.mrb[0].mxu0
    %v2745 = vadd.f32 %v2610, %v2744
    %v2746 = vpop.f32.mrb[0].mxu0
    %2747 = vmatprep.mubr.bf16.mxu0 %v2573
    %2748 = vmatmul.mubr.bf16.gmra.mrb[0].mxu0 %v2572
    %v2749 = vpop.f32.mrb[0].mxu0
    %v2750 = vadd.f32 %v2610, %v2749
    %v2751 = vpop.f32.mrb[0].mxu0
    %v2752 = vpop.f32.mrb[0].mxu0
    %v2753 = vadd.f32 %v2610, %v2752
    %v2754 = vpop.f32.mrb[0].mxu0
    %2755 = vdwg.mxu0
    %v2756 = vadd.f32 %v2461, %v2742
    %v2757 = vadd.f32 %v2462, %v2745
    %v2758 = vadd.f32 %v2463, %v2750
    %v2759 = vadd.f32 %v2464, %v2753
    %v2760 = vld [vmem:[%s13] sm:$0x1]
    %v2761 = vld [vmem:[%s14] sm:$0x1]
    %v2762 = vsel %vm173, %v2756, 0.0
    %2763 = vadd.xlane.f32.xlu0 %v2762
    %v2764 = vpop.xlane.xlu0 %2763
    %v2765 = vsel %vm173, %v2757, 0.0
    %2766 = vadd.xlane.f32.xlu0 %v2765
    %v2767 = vpop.xlane.xlu0 %2766
    %v2768 = vsel %vm173, %v2758, 0.0
    %2769 = vadd.xlane.f32.xlu0 %v2768
    %v2770 = vpop.xlane.xlu0 %2769
    %v2771 = vsel %vm173, %v2759, 0.0
    %2772 = vadd.xlane.f32.xlu0 %v2771
    %v2773 = vpop.xlane.xlu0 %2772
    %v2774 = vmul.f32 %v2764, %v2408
    %v2775 = vmul.f32 %v2767, %v2408
    %v2776 = vmul.f32 %v2770, %v2408
    %v2777 = vmul.f32 %v2773, %v2408
    %v2778 = vsub.f32 %v2756, %v2774
    %v2779 = vsub.f32 %v2757, %v2775
    %v2780 = vsub.f32 %v2758, %v2776
    %v2781 = vsub.f32 %v2759, %v2777
    %v2782 = vmul.f32 %v2778, %v2778
    %v2783 = vmul.f32 %v2779, %v2779
    %v2784 = vmul.f32 %v2780, %v2780
    %v2785 = vmul.f32 %v2781, %v2781
    %v2786 = vsel %vm173, %v2782, 0.0
    %2787 = vadd.xlane.f32.xlu0 %v2786
    %v2788 = vpop.xlane.xlu0 %2787
    %v2789 = vsel %vm173, %v2783, 0.0
    %2790 = vadd.xlane.f32.xlu0 %v2789
    %v2791 = vpop.xlane.xlu0 %2790
    %v2792 = vsel %vm173, %v2784, 0.0
    %2793 = vadd.xlane.f32.xlu0 %v2792
    %v2794 = vpop.xlane.xlu0 %2793
    %v2795 = vsel %vm173, %v2785, 0.0
    %2796 = vadd.xlane.f32.xlu0 %v2795
    %v2797 = vpop.xlane.xlu0 %2796
    %v2798 = vmul.f32 %v2788, %v2408
    %v2799 = vmul.f32 %v2791, %v2408
    %v2800 = vmul.f32 %v2794, %v2408
    %v2801 = vmul.f32 %v2797, %v2408
    %v2802 = vadd.f32 %v2798, 1e-05
    %v2803 = vadd.f32 %v2799, 1e-05
    %v2804 = vadd.f32 %v2800, 1e-05
    %v2805 = vadd.f32 %v2801, 1e-05
    %v2806 = vrsqrt.pop %v2802
    %v2807 = vrsqrt.pop %v2803
    %v2808 = vrsqrt.pop %v2804
    %v2809 = vrsqrt.pop %v2805
    %v2810 = vmul.f32 %v2778, %v2806
    %v2811 = vmul.f32 %v2779, %v2807
    %v2812 = vmul.f32 %v2780, %v2808
    %v2813 = vmul.f32 %v2781, %v2809
    %v2814 = vlaneseq
    %v2815 = vshrl.u32 %v2814, 7
    %v2816 = vsub.s32 0, %v2815
    %v2817 = vrot.slane %v2760, %v2816
    %v2818 = vmul.f32 %v2810, %v2817
    %v2819 = vmul.f32 %v2811, %v2817
    %v2820 = vmul.f32 %v2812, %v2817
    %v2821 = vmul.f32 %v2813, %v2817
    %v2822 = vlaneseq
    %v2823 = vshrl.u32 %v2822, 7
    %v2824 = vsub.s32 0, %v2823
    %v2825 = vrot.slane %v2761, %v2824
    %v2826 = vadd.f32 %v2818, %v2825
    %v2827 = vadd.f32 %v2819, %v2825
    %v2828 = vadd.f32 %v2820, %v2825
    %v2829 = vadd.f32 %v2821, %v2825
    %v2830 = vpack.c.bf16 %v2827, %v2826
    %v2831 = vpack.c.bf16 %v2829, %v2828
    %s2832 = scalar_lea.vmem %s3, 16
    %v2833 = vld [vmem:[%s2832] sm:$0xf]
    %v2834 = vld [vmem:[%s2832 + $0x4] sm:$0xf]
    %v2835 = vld [vmem:[%s2832 + $0x8] sm:$0xf]
    %v2836 = vld [vmem:[%s2832 + $0xc] sm:$0xf]
    %v2837 = vld [vmem:[%s4 + $0x1] sm:$0x1]
    %v2838 = vlaneseq
    %v2839 = vshrl.u32 %v2838, 7
    %v2840 = vsub.s32 0, %v2839
    %v2841 = vrot.slane %v2837, %v2840
    %v2846 = vunpack.c.l.b16 %v2833
    %v2847 = vunpack.c.l.b16 %v2834
    %v2848 = vunpack.c.l.b16 %v2835
    %v2849 = vunpack.c.l.b16 %v2836
    %v2850 = vpack.c.b16 %v2847, %v2846
    %v2851 = vpack.c.b16 %v2849, %v2848
    %v2855 = vsel %vm173, %v2830, 0
    %v2858 = vsel %vm173, %v2831, 0
    %2860 = vmatprep.subr.bf16.mxu0 0
    %2861 = vmatpush1.bf16.msra.mxu0 %v2850
    %2862 = vmatprep.subr.bf16.mxu0 0
    %2863 = vmatpush1.bf16.msra.mxu0 %v2851
    %2864 = vmatprep.subr.bf16.mxu0 0
    %2865 = vmatpush1.bf16.msra.mxu0 0
    %2866 = vmatprep.subr.bf16.mxu0 0
    %2867 = vmatpush1.bf16.msra.mxu0 0
    %2868 = vmatprep.subr.bf16.mxu0 0
    %2869 = vmatpush1.bf16.msra.mxu0 0
    %2870 = vmatprep.subr.bf16.mxu0 0
    %2871 = vmatpush1.bf16.msra.mxu0 0
    %2872 = vmatprep.subr.bf16.mxu0 0
    %2873 = vmatpush1.bf16.msra.mxu0 0
    %2874 = vmatprep.subr.bf16.mxu0 0
    %2875 = vmatpush1.bf16.msra.mxu0 0
    %2876 = vmatprep.subr.bf16.mxu0 0
    %2877 = vmatpush1.bf16.msra.mxu0 0
    %2878 = vmatprep.subr.bf16.mxu0 0
    %2879 = vmatpush1.bf16.msra.mxu0 0
    %2880 = vmatprep.subr.bf16.mxu0 0
    %2881 = vmatpush1.bf16.msra.mxu0 0
    %2882 = vmatprep.subr.bf16.mxu0 0
    %2883 = vmatpush1.bf16.msra.mxu0 0
    %2884 = vmatprep.subr.bf16.mxu0 0
    %2885 = vmatpush1.bf16.msra.mxu0 0
    %2886 = vmatprep.subr.bf16.mxu0 0
    %2887 = vmatpush1.bf16.msra.mxu0 0
    %2888 = vmatprep.subr.bf16.mxu0 0
    %2889 = vmatpush1.bf16.msra.mxu0 0
    %2890 = vmatprep.subr.bf16.mxu0 0
    %2891 = vmatpush1.bf16.msra.mxu0 0
    %2892 = vmatprep.mubr.bf16.mxu0 0
    %2893 = vmatmul.mubr.bf16.gmra.mrb[0].mxu0 %v2855
    %v2894 = vpop.f32.mrb[0].mxu0
    %v2895 = vadd.f32 %v2841, %v2894
    %v2896 = vpop.f32.mrb[0].mxu0
    %v2897 = vpop.f32.mrb[0].mxu0
    %v2898 = vadd.f32 %v2841, %v2897
    %v2899 = vpop.f32.mrb[0].mxu0
    %2900 = vmatprep.mubr.bf16.mxu0 0
    %2901 = vmatmul.mubr.bf16.gmra.mrb[0].mxu0 %v2858
    %v2902 = vpop.f32.mrb[0].mxu0
    %v2903 = vadd.f32 %v2841, %v2902
    %v2904 = vpop.f32.mrb[0].mxu0
    %v2905 = vpop.f32.mrb[0].mxu0
    %v2906 = vadd.f32 %v2841, %v2905
    %v2907 = vpop.f32.mrb[0].mxu0
    %2908 = vdwg.mxu0
    %v2909 = vpack.c.bf16 %v2898, %v2895
    %v2910 = vpack.c.bf16 %v2906, %v2903
    %2913 = vrot.lane.b32.xlu0 %v2909, 124
    %v2914 = vpop.permute.xlu0 %2913
    %2915 = vrot.lane.b32.xlu0 %v2910, 124
    %v2916 = vpop.permute.xlu0 %2915
    %2917 = vrot.lane.b32.xlu0 %v2909, 120
    %v2918 = vpop.permute.xlu0 %2917
    %2919 = vrot.lane.b32.xlu0 %v2910, 120
    %v2920 = vpop.permute.xlu0 %2919
    %2921 = vrot.lane.b32.xlu0 %v2909, 116
    %v2922 = vpop.permute.xlu0 %2921
    %2923 = vrot.lane.b32.xlu0 %v2910, 116
    %v2924 = vpop.permute.xlu0 %2923
    %2925 = vrot.lane.b32.xlu0 %v2909, 112
    %v2926 = vpop.permute.xlu0 %2925
    %2927 = vrot.lane.b32.xlu0 %v2910, 112
    %v2928 = vpop.permute.xlu0 %2927
    %2929 = vrot.lane.b32.xlu0 %v2909, 108
    %v2930 = vpop.permute.xlu0 %2929
    %2931 = vrot.lane.b32.xlu0 %v2910, 108
    %v2932 = vpop.permute.xlu0 %2931
    %2933 = vrot.lane.b32.xlu0 %v2909, 104
    %v2934 = vpop.permute.xlu0 %2933
    %2935 = vrot.lane.b32.xlu0 %v2910, 104
    %v2936 = vpop.permute.xlu0 %2935
    %2937 = vrot.lane.b32.xlu0 %v2909, 100
    %v2938 = vpop.permute.xlu0 %2937
    %2939 = vrot.lane.b32.xlu0 %v2910, 100
    %v2940 = vpop.permute.xlu0 %2939
    %2941 = vrot.lane.b32.xlu0 %v2909, 96
    %v2942 = vpop.permute.xlu0 %2941
    %v2944 = vsel %vm263, %v2909, 0
    %v2947 = vsel %vm263, %v2942, 0
    %2949 = vmatprep.subr.bf16.mxu0 0
    %2950 = vmatpush1.bf16.xpose.msra.mxu0 %v2947
    %2951 = vmatprep.subr.bf16.mxu0 0
    %2952 = vmatpush1.bf16.xpose.msra.mxu0 0
    %2953 = vmatprep.subr.bf16.mxu0 0
    %2954 = vmatpush1.bf16.xpose.msra.mxu0 0
    %2955 = vmatprep.subr.bf16.mxu0 0
    %2956 = vmatpush1.bf16.xpose.msra.mxu0 0
    %2957 = vmatprep.subr.bf16.mxu0 0
    %2958 = vmatpush1.bf16.xpose.msra.mxu0 0
    %2959 = vmatprep.subr.bf16.mxu0 0
    %2960 = vmatpush1.bf16.xpose.msra.mxu0 0
    %2961 = vmatprep.subr.bf16.mxu0 0
    %2962 = vmatpush1.bf16.xpose.msra.mxu0 0
    %2963 = vmatprep.subr.bf16.mxu0 0
    %2964 = vmatpush1.bf16.xpose.msra.mxu0 0
    %2965 = vmatprep.subr.bf16.mxu0 0
    %2966 = vmatpush1.bf16.xpose.msra.mxu0 0
    %2967 = vmatprep.subr.bf16.mxu0 0
    %2968 = vmatpush1.bf16.xpose.msra.mxu0 0
    %2969 = vmatprep.subr.bf16.mxu0 0
    %2970 = vmatpush1.bf16.xpose.msra.mxu0 0
    %2971 = vmatprep.subr.bf16.mxu0 0
    %2972 = vmatpush1.bf16.xpose.msra.mxu0 0
    %2973 = vmatprep.subr.bf16.mxu0 0
    %2974 = vmatpush1.bf16.xpose.msra.mxu0 0
    %2975 = vmatprep.subr.bf16.mxu0 0
    %2976 = vmatpush1.bf16.xpose.msra.mxu0 0
    %2977 = vmatprep.subr.bf16.mxu0 0
    %2978 = vmatpush1.bf16.xpose.msra.mxu0 0
    %2979 = vmatprep.subr.bf16.mxu0 0
    %2980 = vmatpush1.bf16.xpose.msra.mxu0 0
    %2981 = vmatprep.mubr.bf16.mxu0 0
    %2982 = vmatmul.mubr.bf16.gmra.mrb[0].mxu0 %v2944
    %v2983 = vpop.f32.mrb[0].mxu0
    %v2984 = vadd.f32 %v71, %v2983
    %v2985 = vpop.f32.mrb[0].mxu0
    %v2986 = vpop.f32.mrb[0].mxu0
    %v2987 = vadd.f32 %v72, %v2986
    %v2988 = vpop.f32.mrb[0].mxu0
    %2989 = vdwg.mxu0
    %2990 = vrot.lane.b32.xlu0 %v2910, 96
    %v2991 = vpop.permute.xlu0 %2990
    %v2993 = vsel %vm263, %v2910, 0
    %v2996 = vsel %vm263, %v2991, 0
    %2998 = vmatprep.subr.bf16.mxu0 0
    %2999 = vmatpush1.bf16.xpose.msra.mxu0 %v2996
    %3000 = vmatprep.subr.bf16.mxu0 0
    %3001 = vmatpush1.bf16.xpose.msra.mxu0 0
    %3002 = vmatprep.subr.bf16.mxu0 0
    %3003 = vmatpush1.bf16.xpose.msra.mxu0 0
    %3004 = vmatprep.subr.bf16.mxu0 0
    %3005 = vmatpush1.bf16.xpose.msra.mxu0 0
    %3006 = vmatprep.subr.bf16.mxu0 0
    %3007 = vmatpush1.bf16.xpose.msra.mxu0 0
    %3008 = vmatprep.subr.bf16.mxu0 0
    %3009 = vmatpush1.bf16.xpose.msra.mxu0 0
    %3010 = vmatprep.subr.bf16.mxu0 0
    %3011 = vmatpush1.bf16.xpose.msra.mxu0 0
    %3012 = vmatprep.subr.bf16.mxu0 0
    %3013 = vmatpush1.bf16.xpose.msra.mxu0 0
    %3014 = vmatprep.subr.bf16.mxu0 0
    %3015 = vmatpush1.bf16.xpose.msra.mxu0 0
    %3016 = vmatprep.subr.bf16.mxu0 0
    %3017 = vmatpush1.bf16.xpose.msra.mxu0 0
    %3018 = vmatprep.subr.bf16.mxu0 0
    %3019 = vmatpush1.bf16.xpose.msra.mxu0 0
    %3020 = vmatprep.subr.bf16.mxu0 0
    %3021 = vmatpush1.bf16.xpose.msra.mxu0 0
    %3022 = vmatprep.subr.bf16.mxu0 0
    %3023 = vmatpush1.bf16.xpose.msra.mxu0 0
    %3024 = vmatprep.subr.bf16.mxu0 0
    %3025 = vmatpush1.bf16.xpose.msra.mxu0 0
    %3026 = vmatprep.subr.bf16.mxu0 0
    %3027 = vmatpush1.bf16.xpose.msra.mxu0 0
    %3028 = vmatprep.subr.bf16.mxu0 0
    %3029 = vmatpush1.bf16.xpose.msra.mxu0 0
    %3030 = vmatprep.mubr.bf16.mxu0 0
    %3031 = vmatmul.mubr.bf16.gmra.mrb[0].mxu0 %v2993
    %v3032 = vpop.f32.mrb[0].mxu0
    %v3033 = vadd.f32 %v71, %v3032
    %v3034 = vpop.f32.mrb[0].mxu0
    %v3035 = vpop.f32.mrb[0].mxu0
    %v3036 = vadd.f32 %v72, %v3035
    %v3037 = vpop.f32.mrb[0].mxu0
    %3038 = vdwg.mxu0
    %3039 = vrot.lane.b32.xlu0 %v2914, 96
    %v3040 = vpop.permute.xlu0 %3039
    %v3042 = vsel %vm263, %v2914, 0
    %v3045 = vsel %vm263, %v3040, 0
    %3047 = vmatprep.subr.bf16.mxu0 0
    %3048 = vmatpush1.bf16.xpose.msra.mxu0 %v3045
    %3049 = vmatprep.subr.bf16.mxu0 0
    %3050 = vmatpush1.bf16.xpose.msra.mxu0 0
    %3051 = vmatprep.subr.bf16.mxu0 0
    %3052 = vmatpush1.bf16.xpose.msra.mxu0 0
    %3053 = vmatprep.subr.bf16.mxu0 0
    %3054 = vmatpush1.bf16.xpose.msra.mxu0 0
    %3055 = vmatprep.subr.bf16.mxu0 0
    %3056 = vmatpush1.bf16.xpose.msra.mxu0 0
    %3057 = vmatprep.subr.bf16.mxu0 0
    %3058 = vmatpush1.bf16.xpose.msra.mxu0 0
    %3059 = vmatprep.subr.bf16.mxu0 0
    %3060 = vmatpush1.bf16.xpose.msra.mxu0 0
    %3061 = vmatprep.subr.bf16.mxu0 0
    %3062 = vmatpush1.bf16.xpose.msra.mxu0 0
    %3063 = vmatprep.subr.bf16.mxu0 0
    %3064 = vmatpush1.bf16.xpose.msra.mxu0 0
    %3065 = vmatprep.subr.bf16.mxu0 0
    %3066 = vmatpush1.bf16.xpose.msra.mxu0 0
    %3067 = vmatprep.subr.bf16.mxu0 0
    %3068 = vmatpush1.bf16.xpose.msra.mxu0 0
    %3069 = vmatprep.subr.bf16.mxu0 0
    %3070 = vmatpush1.bf16.xpose.msra.mxu0 0
    %3071 = vmatprep.subr.bf16.mxu0 0
    %3072 = vmatpush1.bf16.xpose.msra.mxu0 0
    %3073 = vmatprep.subr.bf16.mxu0 0
    %3074 = vmatpush1.bf16.xpose.msra.mxu0 0
    %3075 = vmatprep.subr.bf16.mxu0 0
    %3076 = vmatpush1.bf16.xpose.msra.mxu0 0
    %3077 = vmatprep.subr.bf16.mxu0 0
    %3078 = vmatpush1.bf16.xpose.msra.mxu0 0
    %3079 = vmatprep.mubr.bf16.mxu0 0
    %3080 = vmatmul.mubr.bf16.gmra.mrb[0].mxu0 %v3042
    %v3081 = vpop.f32.mrb[0].mxu0
    %v3082 = vadd.f32 %v71, %v3081
    %v3083 = vpop.f32.mrb[0].mxu0
    %v3084 = vpop.f32.mrb[0].mxu0
    %v3085 = vadd.f32 %v72, %v3084
    %v3086 = vpop.f32.mrb[0].mxu0
    %3087 = vdwg.mxu0
    %3088 = vrot.lane.b32.xlu0 %v2916, 96
    %v3089 = vpop.permute.xlu0 %3088
    %v3091 = vsel %vm263, %v2916, 0
    %v3094 = vsel %vm263, %v3089, 0
    %3096 = vmatprep.subr.bf16.mxu0 0
    %3097 = vmatpush1.bf16.xpose.msra.mxu0 %v3094
    %3098 = vmatprep.subr.bf16.mxu0 0
    %3099 = vmatpush1.bf16.xpose.msra.mxu0 0
    %3100 = vmatprep.subr.bf16.mxu0 0
    %3101 = vmatpush1.bf16.xpose.msra.mxu0 0
    %3102 = vmatprep.subr.bf16.mxu0 0
    %3103 = vmatpush1.bf16.xpose.msra.mxu0 0
    %3104 = vmatprep.subr.bf16.mxu0 0
    %3105 = vmatpush1.bf16.xpose.msra.mxu0 0
    %3106 = vmatprep.subr.bf16.mxu0 0
    %3107 = vmatpush1.bf16.xpose.msra.mxu0 0
    %3108 = vmatprep.subr.bf16.mxu0 0
    %3109 = vmatpush1.bf16.xpose.msra.mxu0 0
    %3110 = vmatprep.subr.bf16.mxu0 0
    %3111 = vmatpush1.bf16.xpose.msra.mxu0 0
    %3112 = vmatprep.subr.bf16.mxu0 0
    %3113 = vmatpush1.bf16.xpose.msra.mxu0 0
    %3114 = vmatprep.subr.bf16.mxu0 0
    %3115 = vmatpush1.bf16.xpose.msra.mxu0 0
    %3116 = vmatprep.subr.bf16.mxu0 0
    %3117 = vmatpush1.bf16.xpose.msra.mxu0 0
    %3118 = vmatprep.subr.bf16.mxu0 0
    %3119 = vmatpush1.bf16.xpose.msra.mxu0 0
    %3120 = vmatprep.subr.bf16.mxu0 0
    %3121 = vmatpush1.bf16.xpose.msra.mxu0 0
    %3122 = vmatprep.subr.bf16.mxu0 0
    %3123 = vmatpush1.bf16.xpose.msra.mxu0 0
    %3124 = vmatprep.subr.bf16.mxu0 0
    %3125 = vmatpush1.bf16.xpose.msra.mxu0 0
    %3126 = vmatprep.subr.bf16.mxu0 0
    %3127 = vmatpush1.bf16.xpose.msra.mxu0 0
    %3128 = vmatprep.mubr.bf16.mxu0 0
    %3129 = vmatmul.mubr.bf16.gmra.mrb[0].mxu0 %v3091
    %v3130 = vpop.f32.mrb[0].mxu0
    %v3131 = vadd.f32 %v71, %v3130
    %v3132 = vpop.f32.mrb[0].mxu0
    %v3133 = vpop.f32.mrb[0].mxu0
    %v3134 = vadd.f32 %v72, %v3133
    %v3135 = vpop.f32.mrb[0].mxu0
    %3136 = vdwg.mxu0
    %3137 = vrot.lane.b32.xlu0 %v2918, 96
    %v3138 = vpop.permute.xlu0 %3137
    %v3140 = vsel %vm263, %v2918, 0
    %v3143 = vsel %vm263, %v3138, 0
    %3145 = vmatprep.subr.bf16.mxu0 0
    %3146 = vmatpush1.bf16.xpose.msra.mxu0 %v3143
    %3147 = vmatprep.subr.bf16.mxu0 0
    %3148 = vmatpush1.bf16.xpose.msra.mxu0 0
    %3149 = vmatprep.subr.bf16.mxu0 0
    %3150 = vmatpush1.bf16.xpose.msra.mxu0 0
    %3151 = vmatprep.subr.bf16.mxu0 0
    %3152 = vmatpush1.bf16.xpose.msra.mxu0 0
    %3153 = vmatprep.subr.bf16.mxu0 0
    %3154 = vmatpush1.bf16.xpose.msra.mxu0 0
    %3155 = vmatprep.subr.bf16.mxu0 0
    %3156 = vmatpush1.bf16.xpose.msra.mxu0 0
    %3157 = vmatprep.subr.bf16.mxu0 0
    %3158 = vmatpush1.bf16.xpose.msra.mxu0 0
    %3159 = vmatprep.subr.bf16.mxu0 0
    %3160 = vmatpush1.bf16.xpose.msra.mxu0 0
    %3161 = vmatprep.subr.bf16.mxu0 0
    %3162 = vmatpush1.bf16.xpose.msra.mxu0 0
    %3163 = vmatprep.subr.bf16.mxu0 0
    %3164 = vmatpush1.bf16.xpose.msra.mxu0 0
    %3165 = vmatprep.subr.bf16.mxu0 0
    %3166 = vmatpush1.bf16.xpose.msra.mxu0 0
    %3167 = vmatprep.subr.bf16.mxu0 0
    %3168 = vmatpush1.bf16.xpose.msra.mxu0 0
    %3169 = vmatprep.subr.bf16.mxu0 0
    %3170 = vmatpush1.bf16.xpose.msra.mxu0 0
    %3171 = vmatprep.subr.bf16.mxu0 0
    %3172 = vmatpush1.bf16.xpose.msra.mxu0 0
    %3173 = vmatprep.subr.bf16.mxu0 0
    %3174 = vmatpush1.bf16.xpose.msra.mxu0 0
    %3175 = vmatprep.subr.bf16.mxu0 0
    %3176 = vmatpush1.bf16.xpose.msra.mxu0 0
    %3177 = vmatprep.mubr.bf16.mxu0 0
    %3178 = vmatmul.mubr.bf16.gmra.mrb[0].mxu0 %v3140
    %v3179 = vpop.f32.mrb[0].mxu0
    %v3180 = vadd.f32 %v71, %v3179
    %v3181 = vpop.f32.mrb[0].mxu0
    %v3182 = vpop.f32.mrb[0].mxu0
    %v3183 = vadd.f32 %v72, %v3182
    %v3184 = vpop.f32.mrb[0].mxu0
    %3185 = vdwg.mxu0
    %3186 = vrot.lane.b32.xlu0 %v2920, 96
    %v3187 = vpop.permute.xlu0 %3186
    %v3189 = vsel %vm263, %v2920, 0
    %v3192 = vsel %vm263, %v3187, 0
    %3194 = vmatprep.subr.bf16.mxu0 0
    %3195 = vmatpush1.bf16.xpose.msra.mxu0 %v3192
    %3196 = vmatprep.subr.bf16.mxu0 0
    %3197 = vmatpush1.bf16.xpose.msra.mxu0 0
    %3198 = vmatprep.subr.bf16.mxu0 0
    %3199 = vmatpush1.bf16.xpose.msra.mxu0 0
    %3200 = vmatprep.subr.bf16.mxu0 0
    %3201 = vmatpush1.bf16.xpose.msra.mxu0 0
    %3202 = vmatprep.subr.bf16.mxu0 0
    %3203 = vmatpush1.bf16.xpose.msra.mxu0 0
    %3204 = vmatprep.subr.bf16.mxu0 0
    %3205 = vmatpush1.bf16.xpose.msra.mxu0 0
    %3206 = vmatprep.subr.bf16.mxu0 0
    %3207 = vmatpush1.bf16.xpose.msra.mxu0 0
    %3208 = vmatprep.subr.bf16.mxu0 0
    %3209 = vmatpush1.bf16.xpose.msra.mxu0 0
    %3210 = vmatprep.subr.bf16.mxu0 0
    %3211 = vmatpush1.bf16.xpose.msra.mxu0 0
    %3212 = vmatprep.subr.bf16.mxu0 0
    %3213 = vmatpush1.bf16.xpose.msra.mxu0 0
    %3214 = vmatprep.subr.bf16.mxu0 0
    %3215 = vmatpush1.bf16.xpose.msra.mxu0 0
    %3216 = vmatprep.subr.bf16.mxu0 0
    %3217 = vmatpush1.bf16.xpose.msra.mxu0 0
    %3218 = vmatprep.subr.bf16.mxu0 0
    %3219 = vmatpush1.bf16.xpose.msra.mxu0 0
    %3220 = vmatprep.subr.bf16.mxu0 0
    %3221 = vmatpush1.bf16.xpose.msra.mxu0 0
    %3222 = vmatprep.subr.bf16.mxu0 0
    %3223 = vmatpush1.bf16.xpose.msra.mxu0 0
    %3224 = vmatprep.subr.bf16.mxu0 0
    %3225 = vmatpush1.bf16.xpose.msra.mxu0 0
    %3226 = vmatprep.mubr.bf16.mxu0 0
    %3227 = vmatmul.mubr.bf16.gmra.mrb[0].mxu0 %v3189
    %v3228 = vpop.f32.mrb[0].mxu0
    %v3229 = vadd.f32 %v71, %v3228
    %v3230 = vpop.f32.mrb[0].mxu0
    %v3231 = vpop.f32.mrb[0].mxu0
    %v3232 = vadd.f32 %v72, %v3231
    %v3233 = vpop.f32.mrb[0].mxu0
    %3234 = vdwg.mxu0
    %3235 = vrot.lane.b32.xlu0 %v2922, 96
    %v3236 = vpop.permute.xlu0 %3235
    %v3238 = vsel %vm263, %v2922, 0
    %v3241 = vsel %vm263, %v3236, 0
    %3243 = vmatprep.subr.bf16.mxu0 0
    %3244 = vmatpush1.bf16.xpose.msra.mxu0 %v3241
    %3245 = vmatprep.subr.bf16.mxu0 0
    %3246 = vmatpush1.bf16.xpose.msra.mxu0 0
    %3247 = vmatprep.subr.bf16.mxu0 0
    %3248 = vmatpush1.bf16.xpose.msra.mxu0 0
    %3249 = vmatprep.subr.bf16.mxu0 0
    %3250 = vmatpush1.bf16.xpose.msra.mxu0 0
    %3251 = vmatprep.subr.bf16.mxu0 0
    %3252 = vmatpush1.bf16.xpose.msra.mxu0 0
    %3253 = vmatprep.subr.bf16.mxu0 0
    %3254 = vmatpush1.bf16.xpose.msra.mxu0 0
    %3255 = vmatprep.subr.bf16.mxu0 0
    %3256 = vmatpush1.bf16.xpose.msra.mxu0 0
    %3257 = vmatprep.subr.bf16.mxu0 0
    %3258 = vmatpush1.bf16.xpose.msra.mxu0 0
    %3259 = vmatprep.subr.bf16.mxu0 0
    %3260 = vmatpush1.bf16.xpose.msra.mxu0 0
    %3261 = vmatprep.subr.bf16.mxu0 0
    %3262 = vmatpush1.bf16.xpose.msra.mxu0 0
    %3263 = vmatprep.subr.bf16.mxu0 0
    %3264 = vmatpush1.bf16.xpose.msra.mxu0 0
    %3265 = vmatprep.subr.bf16.mxu0 0
    %3266 = vmatpush1.bf16.xpose.msra.mxu0 0
    %3267 = vmatprep.subr.bf16.mxu0 0
    %3268 = vmatpush1.bf16.xpose.msra.mxu0 0
    %3269 = vmatprep.subr.bf16.mxu0 0
    %3270 = vmatpush1.bf16.xpose.msra.mxu0 0
    %3271 = vmatprep.subr.bf16.mxu0 0
    %3272 = vmatpush1.bf16.xpose.msra.mxu0 0
    %3273 = vmatprep.subr.bf16.mxu0 0
    %3274 = vmatpush1.bf16.xpose.msra.mxu0 0
    %3275 = vmatprep.mubr.bf16.mxu0 0
    %3276 = vmatmul.mubr.bf16.gmra.mrb[0].mxu0 %v3238
    %v3277 = vpop.f32.mrb[0].mxu0
    %v3278 = vadd.f32 %v71, %v3277
    %v3279 = vpop.f32.mrb[0].mxu0
    %v3280 = vpop.f32.mrb[0].mxu0
    %v3281 = vadd.f32 %v72, %v3280
    %v3282 = vpop.f32.mrb[0].mxu0
    %3283 = vdwg.mxu0
    %3284 = vrot.lane.b32.xlu0 %v2924, 96
    %v3285 = vpop.permute.xlu0 %3284
    %v3287 = vsel %vm263, %v2924, 0
    %v3290 = vsel %vm263, %v3285, 0
    %3292 = vmatprep.subr.bf16.mxu0 0
    %3293 = vmatpush1.bf16.xpose.msra.mxu0 %v3290
    %3294 = vmatprep.subr.bf16.mxu0 0
    %3295 = vmatpush1.bf16.xpose.msra.mxu0 0
    %3296 = vmatprep.subr.bf16.mxu0 0
    %3297 = vmatpush1.bf16.xpose.msra.mxu0 0
    %3298 = vmatprep.subr.bf16.mxu0 0
    %3299 = vmatpush1.bf16.xpose.msra.mxu0 0
    %3300 = vmatprep.subr.bf16.mxu0 0
    %3301 = vmatpush1.bf16.xpose.msra.mxu0 0
    %3302 = vmatprep.subr.bf16.mxu0 0
    %3303 = vmatpush1.bf16.xpose.msra.mxu0 0
    %3304 = vmatprep.subr.bf16.mxu0 0
    %3305 = vmatpush1.bf16.xpose.msra.mxu0 0
    %3306 = vmatprep.subr.bf16.mxu0 0
    %3307 = vmatpush1.bf16.xpose.msra.mxu0 0
    %3308 = vmatprep.subr.bf16.mxu0 0
    %3309 = vmatpush1.bf16.xpose.msra.mxu0 0
    %3310 = vmatprep.subr.bf16.mxu0 0
    %3311 = vmatpush1.bf16.xpose.msra.mxu0 0
    %3312 = vmatprep.subr.bf16.mxu0 0
    %3313 = vmatpush1.bf16.xpose.msra.mxu0 0
    %3314 = vmatprep.subr.bf16.mxu0 0
    %3315 = vmatpush1.bf16.xpose.msra.mxu0 0
    %3316 = vmatprep.subr.bf16.mxu0 0
    %3317 = vmatpush1.bf16.xpose.msra.mxu0 0
    %3318 = vmatprep.subr.bf16.mxu0 0
    %3319 = vmatpush1.bf16.xpose.msra.mxu0 0
    %3320 = vmatprep.subr.bf16.mxu0 0
    %3321 = vmatpush1.bf16.xpose.msra.mxu0 0
    %3322 = vmatprep.subr.bf16.mxu0 0
    %3323 = vmatpush1.bf16.xpose.msra.mxu0 0
    %3324 = vmatprep.mubr.bf16.mxu0 0
    %3325 = vmatmul.mubr.bf16.gmra.mrb[0].mxu0 %v3287
    %v3326 = vpop.f32.mrb[0].mxu0
    %v3327 = vadd.f32 %v71, %v3326
    %v3328 = vpop.f32.mrb[0].mxu0
    %v3329 = vpop.f32.mrb[0].mxu0
    %v3330 = vadd.f32 %v72, %v3329
    %v3331 = vpop.f32.mrb[0].mxu0
    %3332 = vdwg.mxu0
    %3333 = vrot.lane.b32.xlu0 %v2926, 96
    %v3334 = vpop.permute.xlu0 %3333
    %v3336 = vsel %vm263, %v2926, 0
    %v3339 = vsel %vm263, %v3334, 0
    %3341 = vmatprep.subr.bf16.mxu0 0
    %3342 = vmatpush1.bf16.xpose.msra.mxu0 %v3339
    %3343 = vmatprep.subr.bf16.mxu0 0
    %3344 = vmatpush1.bf16.xpose.msra.mxu0 0
    %3345 = vmatprep.subr.bf16.mxu0 0
    %3346 = vmatpush1.bf16.xpose.msra.mxu0 0
    %3347 = vmatprep.subr.bf16.mxu0 0
    %3348 = vmatpush1.bf16.xpose.msra.mxu0 0
    %3349 = vmatprep.subr.bf16.mxu0 0
    %3350 = vmatpush1.bf16.xpose.msra.mxu0 0
    %3351 = vmatprep.subr.bf16.mxu0 0
    %3352 = vmatpush1.bf16.xpose.msra.mxu0 0
    %3353 = vmatprep.subr.bf16.mxu0 0
    %3354 = vmatpush1.bf16.xpose.msra.mxu0 0
    %3355 = vmatprep.subr.bf16.mxu0 0
    %3356 = vmatpush1.bf16.xpose.msra.mxu0 0
    %3357 = vmatprep.subr.bf16.mxu0 0
    %3358 = vmatpush1.bf16.xpose.msra.mxu0 0
    %3359 = vmatprep.subr.bf16.mxu0 0
    %3360 = vmatpush1.bf16.xpose.msra.mxu0 0
    %3361 = vmatprep.subr.bf16.mxu0 0
    %3362 = vmatpush1.bf16.xpose.msra.mxu0 0
    %3363 = vmatprep.subr.bf16.mxu0 0
    %3364 = vmatpush1.bf16.xpose.msra.mxu0 0
    %3365 = vmatprep.subr.bf16.mxu0 0
    %3366 = vmatpush1.bf16.xpose.msra.mxu0 0
    %3367 = vmatprep.subr.bf16.mxu0 0
    %3368 = vmatpush1.bf16.xpose.msra.mxu0 0
    %3369 = vmatprep.subr.bf16.mxu0 0
    %3370 = vmatpush1.bf16.xpose.msra.mxu0 0
    %3371 = vmatprep.subr.bf16.mxu0 0
    %3372 = vmatpush1.bf16.xpose.msra.mxu0 0
    %3373 = vmatprep.mubr.bf16.mxu0 0
    %3374 = vmatmul.mubr.bf16.gmra.mrb[0].mxu0 %v3336
    %v3375 = vpop.f32.mrb[0].mxu0
    %v3376 = vadd.f32 %v71, %v3375
    %v3377 = vpop.f32.mrb[0].mxu0
    %v3378 = vpop.f32.mrb[0].mxu0
    %v3379 = vadd.f32 %v72, %v3378
    %v3380 = vpop.f32.mrb[0].mxu0
    %3381 = vdwg.mxu0
    %3382 = vrot.lane.b32.xlu0 %v2928, 96
    %v3383 = vpop.permute.xlu0 %3382
    %v3385 = vsel %vm263, %v2928, 0
    %v3388 = vsel %vm263, %v3383, 0
    %3390 = vmatprep.subr.bf16.mxu0 0
    %3391 = vmatpush1.bf16.xpose.msra.mxu0 %v3388
    %3392 = vmatprep.subr.bf16.mxu0 0
    %3393 = vmatpush1.bf16.xpose.msra.mxu0 0
    %3394 = vmatprep.subr.bf16.mxu0 0
    %3395 = vmatpush1.bf16.xpose.msra.mxu0 0
    %3396 = vmatprep.subr.bf16.mxu0 0
    %3397 = vmatpush1.bf16.xpose.msra.mxu0 0
    %3398 = vmatprep.subr.bf16.mxu0 0
    %3399 = vmatpush1.bf16.xpose.msra.mxu0 0
    %3400 = vmatprep.subr.bf16.mxu0 0
    %3401 = vmatpush1.bf16.xpose.msra.mxu0 0
    %3402 = vmatprep.subr.bf16.mxu0 0
    %3403 = vmatpush1.bf16.xpose.msra.mxu0 0
    %3404 = vmatprep.subr.bf16.mxu0 0
    %3405 = vmatpush1.bf16.xpose.msra.mxu0 0
    %3406 = vmatprep.subr.bf16.mxu0 0
    %3407 = vmatpush1.bf16.xpose.msra.mxu0 0
    %3408 = vmatprep.subr.bf16.mxu0 0
    %3409 = vmatpush1.bf16.xpose.msra.mxu0 0
    %3410 = vmatprep.subr.bf16.mxu0 0
    %3411 = vmatpush1.bf16.xpose.msra.mxu0 0
    %3412 = vmatprep.subr.bf16.mxu0 0
    %3413 = vmatpush1.bf16.xpose.msra.mxu0 0
    %3414 = vmatprep.subr.bf16.mxu0 0
    %3415 = vmatpush1.bf16.xpose.msra.mxu0 0
    %3416 = vmatprep.subr.bf16.mxu0 0
    %3417 = vmatpush1.bf16.xpose.msra.mxu0 0
    %3418 = vmatprep.subr.bf16.mxu0 0
    %3419 = vmatpush1.bf16.xpose.msra.mxu0 0
    %3420 = vmatprep.subr.bf16.mxu0 0
    %3421 = vmatpush1.bf16.xpose.msra.mxu0 0
    %3422 = vmatprep.mubr.bf16.mxu0 0
    %3423 = vmatmul.mubr.bf16.gmra.mrb[0].mxu0 %v3385
    %v3424 = vpop.f32.mrb[0].mxu0
    %v3425 = vadd.f32 %v71, %v3424
    %v3426 = vpop.f32.mrb[0].mxu0
    %v3427 = vpop.f32.mrb[0].mxu0
    %v3428 = vadd.f32 %v72, %v3427
    %v3429 = vpop.f32.mrb[0].mxu0
    %3430 = vdwg.mxu0
    %3431 = vrot.lane.b32.xlu0 %v2930, 96
    %v3432 = vpop.permute.xlu0 %3431
    %v3434 = vsel %vm263, %v2930, 0
    %v3437 = vsel %vm263, %v3432, 0
    %3439 = vmatprep.subr.bf16.mxu0 0
    %3440 = vmatpush1.bf16.xpose.msra.mxu0 %v3437
    %3441 = vmatprep.subr.bf16.mxu0 0
    %3442 = vmatpush1.bf16.xpose.msra.mxu0 0
    %3443 = vmatprep.subr.bf16.mxu0 0
    %3444 = vmatpush1.bf16.xpose.msra.mxu0 0
    %3445 = vmatprep.subr.bf16.mxu0 0
    %3446 = vmatpush1.bf16.xpose.msra.mxu0 0
    %3447 = vmatprep.subr.bf16.mxu0 0
    %3448 = vmatpush1.bf16.xpose.msra.mxu0 0
    %3449 = vmatprep.subr.bf16.mxu0 0
    %3450 = vmatpush1.bf16.xpose.msra.mxu0 0
    %3451 = vmatprep.subr.bf16.mxu0 0
    %3452 = vmatpush1.bf16.xpose.msra.mxu0 0
    %3453 = vmatprep.subr.bf16.mxu0 0
    %3454 = vmatpush1.bf16.xpose.msra.mxu0 0
    %3455 = vmatprep.subr.bf16.mxu0 0
    %3456 = vmatpush1.bf16.xpose.msra.mxu0 0
    %3457 = vmatprep.subr.bf16.mxu0 0
    %3458 = vmatpush1.bf16.xpose.msra.mxu0 0
    %3459 = vmatprep.subr.bf16.mxu0 0
    %3460 = vmatpush1.bf16.xpose.msra.mxu0 0
    %3461 = vmatprep.subr.bf16.mxu0 0
    %3462 = vmatpush1.bf16.xpose.msra.mxu0 0
    %3463 = vmatprep.subr.bf16.mxu0 0
    %3464 = vmatpush1.bf16.xpose.msra.mxu0 0
    %3465 = vmatprep.subr.bf16.mxu0 0
    %3466 = vmatpush1.bf16.xpose.msra.mxu0 0
    %3467 = vmatprep.subr.bf16.mxu0 0
    %3468 = vmatpush1.bf16.xpose.msra.mxu0 0
    %3469 = vmatprep.subr.bf16.mxu0 0
    %3470 = vmatpush1.bf16.xpose.msra.mxu0 0
    %3471 = vmatprep.mubr.bf16.mxu0 0
    %3472 = vmatmul.mubr.bf16.gmra.mrb[0].mxu0 %v3434
    %v3473 = vpop.f32.mrb[0].mxu0
    %v3474 = vadd.f32 %v71, %v3473
    %v3475 = vpop.f32.mrb[0].mxu0
    %v3476 = vpop.f32.mrb[0].mxu0
    %v3477 = vadd.f32 %v72, %v3476
    %v3478 = vpop.f32.mrb[0].mxu0
    %3479 = vdwg.mxu0
    %3480 = vrot.lane.b32.xlu0 %v2932, 96
    %v3481 = vpop.permute.xlu0 %3480
    %v3483 = vsel %vm263, %v2932, 0
    %v3486 = vsel %vm263, %v3481, 0
    %3488 = vmatprep.subr.bf16.mxu0 0
    %3489 = vmatpush1.bf16.xpose.msra.mxu0 %v3486
    %3490 = vmatprep.subr.bf16.mxu0 0
    %3491 = vmatpush1.bf16.xpose.msra.mxu0 0
    %3492 = vmatprep.subr.bf16.mxu0 0
    %3493 = vmatpush1.bf16.xpose.msra.mxu0 0
    %3494 = vmatprep.subr.bf16.mxu0 0
    %3495 = vmatpush1.bf16.xpose.msra.mxu0 0
    %3496 = vmatprep.subr.bf16.mxu0 0
    %3497 = vmatpush1.bf16.xpose.msra.mxu0 0
    %3498 = vmatprep.subr.bf16.mxu0 0
    %3499 = vmatpush1.bf16.xpose.msra.mxu0 0
    %3500 = vmatprep.subr.bf16.mxu0 0
    %3501 = vmatpush1.bf16.xpose.msra.mxu0 0
    %3502 = vmatprep.subr.bf16.mxu0 0
    %3503 = vmatpush1.bf16.xpose.msra.mxu0 0
    %3504 = vmatprep.subr.bf16.mxu0 0
    %3505 = vmatpush1.bf16.xpose.msra.mxu0 0
    %3506 = vmatprep.subr.bf16.mxu0 0
    %3507 = vmatpush1.bf16.xpose.msra.mxu0 0
    %3508 = vmatprep.subr.bf16.mxu0 0
    %3509 = vmatpush1.bf16.xpose.msra.mxu0 0
    %3510 = vmatprep.subr.bf16.mxu0 0
    %3511 = vmatpush1.bf16.xpose.msra.mxu0 0
    %3512 = vmatprep.subr.bf16.mxu0 0
    %3513 = vmatpush1.bf16.xpose.msra.mxu0 0
    %3514 = vmatprep.subr.bf16.mxu0 0
    %3515 = vmatpush1.bf16.xpose.msra.mxu0 0
    %3516 = vmatprep.subr.bf16.mxu0 0
    %3517 = vmatpush1.bf16.xpose.msra.mxu0 0
    %3518 = vmatprep.subr.bf16.mxu0 0
    %3519 = vmatpush1.bf16.xpose.msra.mxu0 0
    %3520 = vmatprep.mubr.bf16.mxu0 0
    %3521 = vmatmul.mubr.bf16.gmra.mrb[0].mxu0 %v3483
    %v3522 = vpop.f32.mrb[0].mxu0
    %v3523 = vadd.f32 %v71, %v3522
    %v3524 = vpop.f32.mrb[0].mxu0
    %v3525 = vpop.f32.mrb[0].mxu0
    %v3526 = vadd.f32 %v72, %v3525
    %v3527 = vpop.f32.mrb[0].mxu0
    %3528 = vdwg.mxu0
    %3529 = vrot.lane.b32.xlu0 %v2934, 96
    %v3530 = vpop.permute.xlu0 %3529
    %v3532 = vsel %vm263, %v2934, 0
    %v3535 = vsel %vm263, %v3530, 0
    %3537 = vmatprep.subr.bf16.mxu0 0
    %3538 = vmatpush1.bf16.xpose.msra.mxu0 %v3535
    %3539 = vmatprep.subr.bf16.mxu0 0
    %3540 = vmatpush1.bf16.xpose.msra.mxu0 0
    %3541 = vmatprep.subr.bf16.mxu0 0
    %3542 = vmatpush1.bf16.xpose.msra.mxu0 0
    %3543 = vmatprep.subr.bf16.mxu0 0
    %3544 = vmatpush1.bf16.xpose.msra.mxu0 0
    %3545 = vmatprep.subr.bf16.mxu0 0
    %3546 = vmatpush1.bf16.xpose.msra.mxu0 0
    %3547 = vmatprep.subr.bf16.mxu0 0
    %3548 = vmatpush1.bf16.xpose.msra.mxu0 0
    %3549 = vmatprep.subr.bf16.mxu0 0
    %3550 = vmatpush1.bf16.xpose.msra.mxu0 0
    %3551 = vmatprep.subr.bf16.mxu0 0
    %3552 = vmatpush1.bf16.xpose.msra.mxu0 0
    %3553 = vmatprep.subr.bf16.mxu0 0
    %3554 = vmatpush1.bf16.xpose.msra.mxu0 0
    %3555 = vmatprep.subr.bf16.mxu0 0
    %3556 = vmatpush1.bf16.xpose.msra.mxu0 0
    %3557 = vmatprep.subr.bf16.mxu0 0
    %3558 = vmatpush1.bf16.xpose.msra.mxu0 0
    %3559 = vmatprep.subr.bf16.mxu0 0
    %3560 = vmatpush1.bf16.xpose.msra.mxu0 0
    %3561 = vmatprep.subr.bf16.mxu0 0
    %3562 = vmatpush1.bf16.xpose.msra.mxu0 0
    %3563 = vmatprep.subr.bf16.mxu0 0
    %3564 = vmatpush1.bf16.xpose.msra.mxu0 0
    %3565 = vmatprep.subr.bf16.mxu0 0
    %3566 = vmatpush1.bf16.xpose.msra.mxu0 0
    %3567 = vmatprep.subr.bf16.mxu0 0
    %3568 = vmatpush1.bf16.xpose.msra.mxu0 0
    %3569 = vmatprep.mubr.bf16.mxu0 0
    %3570 = vmatmul.mubr.bf16.gmra.mrb[0].mxu0 %v3532
    %v3571 = vpop.f32.mrb[0].mxu0
    %v3572 = vadd.f32 %v71, %v3571
    %v3573 = vpop.f32.mrb[0].mxu0
    %v3574 = vpop.f32.mrb[0].mxu0
    %v3575 = vadd.f32 %v72, %v3574
    %v3576 = vpop.f32.mrb[0].mxu0
    %3577 = vdwg.mxu0
    %3578 = vrot.lane.b32.xlu0 %v2936, 96
    %v3579 = vpop.permute.xlu0 %3578
    %v3581 = vsel %vm263, %v2936, 0
    %v3584 = vsel %vm263, %v3579, 0
    %3586 = vmatprep.subr.bf16.mxu0 0
    %3587 = vmatpush1.bf16.xpose.msra.mxu0 %v3584
    %3588 = vmatprep.subr.bf16.mxu0 0
    %3589 = vmatpush1.bf16.xpose.msra.mxu0 0
    %3590 = vmatprep.subr.bf16.mxu0 0
    %3591 = vmatpush1.bf16.xpose.msra.mxu0 0
    %3592 = vmatprep.subr.bf16.mxu0 0
    %3593 = vmatpush1.bf16.xpose.msra.mxu0 0
    %3594 = vmatprep.subr.bf16.mxu0 0
    %3595 = vmatpush1.bf16.xpose.msra.mxu0 0
    %3596 = vmatprep.subr.bf16.mxu0 0
    %3597 = vmatpush1.bf16.xpose.msra.mxu0 0
    %3598 = vmatprep.subr.bf16.mxu0 0
    %3599 = vmatpush1.bf16.xpose.msra.mxu0 0
    %3600 = vmatprep.subr.bf16.mxu0 0
    %3601 = vmatpush1.bf16.xpose.msra.mxu0 0
    %3602 = vmatprep.subr.bf16.mxu0 0
    %3603 = vmatpush1.bf16.xpose.msra.mxu0 0
    %3604 = vmatprep.subr.bf16.mxu0 0
    %3605 = vmatpush1.bf16.xpose.msra.mxu0 0
    %3606 = vmatprep.subr.bf16.mxu0 0
    %3607 = vmatpush1.bf16.xpose.msra.mxu0 0
    %3608 = vmatprep.subr.bf16.mxu0 0
    %3609 = vmatpush1.bf16.xpose.msra.mxu0 0
    %3610 = vmatprep.subr.bf16.mxu0 0
    %3611 = vmatpush1.bf16.xpose.msra.mxu0 0
    %3612 = vmatprep.subr.bf16.mxu0 0
    %3613 = vmatpush1.bf16.xpose.msra.mxu0 0
    %3614 = vmatprep.subr.bf16.mxu0 0
    %3615 = vmatpush1.bf16.xpose.msra.mxu0 0
    %3616 = vmatprep.subr.bf16.mxu0 0
    %3617 = vmatpush1.bf16.xpose.msra.mxu0 0
    %3618 = vmatprep.mubr.bf16.mxu0 0
    %3619 = vmatmul.mubr.bf16.gmra.mrb[0].mxu0 %v3581
    %v3620 = vpop.f32.mrb[0].mxu0
    %v3621 = vadd.f32 %v71, %v3620
    %v3622 = vpop.f32.mrb[0].mxu0
    %v3623 = vpop.f32.mrb[0].mxu0
    %v3624 = vadd.f32 %v72, %v3623
    %v3625 = vpop.f32.mrb[0].mxu0
    %3626 = vdwg.mxu0
    %3627 = vrot.lane.b32.xlu0 %v2938, 96
    %v3628 = vpop.permute.xlu0 %3627
    %v3630 = vsel %vm263, %v2938, 0
    %v3633 = vsel %vm263, %v3628, 0
    %3635 = vmatprep.subr.bf16.mxu0 0
    %3636 = vmatpush1.bf16.xpose.msra.mxu0 %v3633
    %3637 = vmatprep.subr.bf16.mxu0 0
    %3638 = vmatpush1.bf16.xpose.msra.mxu0 0
    %3639 = vmatprep.subr.bf16.mxu0 0
    %3640 = vmatpush1.bf16.xpose.msra.mxu0 0
    %3641 = vmatprep.subr.bf16.mxu0 0
    %3642 = vmatpush1.bf16.xpose.msra.mxu0 0
    %3643 = vmatprep.subr.bf16.mxu0 0
    %3644 = vmatpush1.bf16.xpose.msra.mxu0 0
    %3645 = vmatprep.subr.bf16.mxu0 0
    %3646 = vmatpush1.bf16.xpose.msra.mxu0 0
    %3647 = vmatprep.subr.bf16.mxu0 0
    %3648 = vmatpush1.bf16.xpose.msra.mxu0 0
    %3649 = vmatprep.subr.bf16.mxu0 0
    %3650 = vmatpush1.bf16.xpose.msra.mxu0 0
    %3651 = vmatprep.subr.bf16.mxu0 0
    %3652 = vmatpush1.bf16.xpose.msra.mxu0 0
    %3653 = vmatprep.subr.bf16.mxu0 0
    %3654 = vmatpush1.bf16.xpose.msra.mxu0 0
    %3655 = vmatprep.subr.bf16.mxu0 0
    %3656 = vmatpush1.bf16.xpose.msra.mxu0 0
    %3657 = vmatprep.subr.bf16.mxu0 0
    %3658 = vmatpush1.bf16.xpose.msra.mxu0 0
    %3659 = vmatprep.subr.bf16.mxu0 0
    %3660 = vmatpush1.bf16.xpose.msra.mxu0 0
    %3661 = vmatprep.subr.bf16.mxu0 0
    %3662 = vmatpush1.bf16.xpose.msra.mxu0 0
    %3663 = vmatprep.subr.bf16.mxu0 0
    %3664 = vmatpush1.bf16.xpose.msra.mxu0 0
    %3665 = vmatprep.subr.bf16.mxu0 0
    %3666 = vmatpush1.bf16.xpose.msra.mxu0 0
    %3667 = vmatprep.mubr.bf16.mxu0 0
    %3668 = vmatmul.mubr.bf16.gmra.mrb[0].mxu0 %v3630
    %v3669 = vpop.f32.mrb[0].mxu0
    %v3670 = vadd.f32 %v71, %v3669
    %v3671 = vpop.f32.mrb[0].mxu0
    %v3672 = vpop.f32.mrb[0].mxu0
    %v3673 = vadd.f32 %v72, %v3672
    %v3674 = vpop.f32.mrb[0].mxu0
    %3675 = vdwg.mxu0
    %3676 = vrot.lane.b32.xlu0 %v2940, 96
    %v3677 = vpop.permute.xlu0 %3676
    %v3679 = vsel %vm263, %v2940, 0
    %v3682 = vsel %vm263, %v3677, 0
    %3684 = vmatprep.subr.bf16.mxu0 0
    %3685 = vmatpush1.bf16.xpose.msra.mxu0 %v3682
    %3686 = vmatprep.subr.bf16.mxu0 0
    %3687 = vmatpush1.bf16.xpose.msra.mxu0 0
    %3688 = vmatprep.subr.bf16.mxu0 0
    %3689 = vmatpush1.bf16.xpose.msra.mxu0 0
    %3690 = vmatprep.subr.bf16.mxu0 0
    %3691 = vmatpush1.bf16.xpose.msra.mxu0 0
    %3692 = vmatprep.subr.bf16.mxu0 0
    %3693 = vmatpush1.bf16.xpose.msra.mxu0 0
    %3694 = vmatprep.subr.bf16.mxu0 0
    %3695 = vmatpush1.bf16.xpose.msra.mxu0 0
    %3696 = vmatprep.subr.bf16.mxu0 0
    %3697 = vmatpush1.bf16.xpose.msra.mxu0 0
    %3698 = vmatprep.subr.bf16.mxu0 0
    %3699 = vmatpush1.bf16.xpose.msra.mxu0 0
    %3700 = vmatprep.subr.bf16.mxu0 0
    %3701 = vmatpush1.bf16.xpose.msra.mxu0 0
    %3702 = vmatprep.subr.bf16.mxu0 0
    %3703 = vmatpush1.bf16.xpose.msra.mxu0 0
    %3704 = vmatprep.subr.bf16.mxu0 0
    %3705 = vmatpush1.bf16.xpose.msra.mxu0 0
    %3706 = vmatprep.subr.bf16.mxu0 0
    %3707 = vmatpush1.bf16.xpose.msra.mxu0 0
    %3708 = vmatprep.subr.bf16.mxu0 0
    %3709 = vmatpush1.bf16.xpose.msra.mxu0 0
    %3710 = vmatprep.subr.bf16.mxu0 0
    %3711 = vmatpush1.bf16.xpose.msra.mxu0 0
    %3712 = vmatprep.subr.bf16.mxu0 0
    %3713 = vmatpush1.bf16.xpose.msra.mxu0 0
    %3714 = vmatprep.subr.bf16.mxu0 0
    %3715 = vmatpush1.bf16.xpose.msra.mxu0 0
    %3716 = vmatprep.mubr.bf16.mxu0 0
    %3717 = vmatmul.mubr.bf16.gmra.mrb[0].mxu0 %v3679
    %v3718 = vpop.f32.mrb[0].mxu0
    %v3719 = vadd.f32 %v71, %v3718
    %v3720 = vpop.f32.mrb[0].mxu0
    %v3721 = vpop.f32.mrb[0].mxu0
    %v3722 = vadd.f32 %v72, %v3721
    %v3723 = vpop.f32.mrb[0].mxu0
    %3724 = vdwg.mxu0
    %v3725 = vsel %vm1046, %v2984, -inf
    %3726 = vmax.xlane.f32.xlu0 %v3725
    %v3727 = vpop.xlane.xlu0 %3726
    %v3728 = vsel %vm1046, %v2987, -inf
    %3729 = vmax.xlane.f32.xlu0 %v3728
    %v3730 = vpop.xlane.xlu0 %3729
    %v3731 = vsel %vm1046, %v3033, -inf
    %3732 = vmax.xlane.f32.xlu0 %v3731
    %v3733 = vpop.xlane.xlu0 %3732
    %v3734 = vsel %vm1046, %v3036, -inf
    %3735 = vmax.xlane.f32.xlu0 %v3734
    %v3736 = vpop.xlane.xlu0 %3735
    %v3737 = vsel %vm1046, %v3082, -inf
    %3738 = vmax.xlane.f32.xlu0 %v3737
    %v3739 = vpop.xlane.xlu0 %3738
    %v3740 = vsel %vm1046, %v3085, -inf
    %3741 = vmax.xlane.f32.xlu0 %v3740
    %v3742 = vpop.xlane.xlu0 %3741
    %v3743 = vsel %vm1046, %v3131, -inf
    %3744 = vmax.xlane.f32.xlu0 %v3743
    %v3745 = vpop.xlane.xlu0 %3744
    %v3746 = vsel %vm1046, %v3134, -inf
    %3747 = vmax.xlane.f32.xlu0 %v3746
    %v3748 = vpop.xlane.xlu0 %3747
    %v3749 = vsel %vm1046, %v3180, -inf
    %3750 = vmax.xlane.f32.xlu0 %v3749
    %v3751 = vpop.xlane.xlu0 %3750
    %v3752 = vsel %vm1046, %v3183, -inf
    %3753 = vmax.xlane.f32.xlu0 %v3752
    %v3754 = vpop.xlane.xlu0 %3753
    %v3755 = vsel %vm1046, %v3229, -inf
    %3756 = vmax.xlane.f32.xlu0 %v3755
    %v3757 = vpop.xlane.xlu0 %3756
    %v3758 = vsel %vm1046, %v3232, -inf
    %3759 = vmax.xlane.f32.xlu0 %v3758
    %v3760 = vpop.xlane.xlu0 %3759
    %v3761 = vsel %vm1046, %v3278, -inf
    %3762 = vmax.xlane.f32.xlu0 %v3761
    %v3763 = vpop.xlane.xlu0 %3762
    %v3764 = vsel %vm1046, %v3281, -inf
    %3765 = vmax.xlane.f32.xlu0 %v3764
    %v3766 = vpop.xlane.xlu0 %3765
    %v3767 = vsel %vm1046, %v3327, -inf
    %3768 = vmax.xlane.f32.xlu0 %v3767
    %v3769 = vpop.xlane.xlu0 %3768
    %v3770 = vsel %vm1046, %v3330, -inf
    %3771 = vmax.xlane.f32.xlu0 %v3770
    %v3772 = vpop.xlane.xlu0 %3771
    %v3773 = vsel %vm1046, %v3376, -inf
    %3774 = vmax.xlane.f32.xlu0 %v3773
    %v3775 = vpop.xlane.xlu0 %3774
    %v3776 = vsel %vm1046, %v3379, -inf
    %3777 = vmax.xlane.f32.xlu0 %v3776
    %v3778 = vpop.xlane.xlu0 %3777
    %v3779 = vsel %vm1046, %v3425, -inf
    %3780 = vmax.xlane.f32.xlu0 %v3779
    %v3781 = vpop.xlane.xlu0 %3780
    %v3782 = vsel %vm1046, %v3428, -inf
    %3783 = vmax.xlane.f32.xlu0 %v3782
    %v3784 = vpop.xlane.xlu0 %3783
    %v3785 = vsel %vm1046, %v3474, -inf
    %3786 = vmax.xlane.f32.xlu0 %v3785
    %v3787 = vpop.xlane.xlu0 %3786
    %v3788 = vsel %vm1046, %v3477, -inf
    %3789 = vmax.xlane.f32.xlu0 %v3788
    %v3790 = vpop.xlane.xlu0 %3789
    %v3791 = vsel %vm1046, %v3523, -inf
    %3792 = vmax.xlane.f32.xlu0 %v3791
    %v3793 = vpop.xlane.xlu0 %3792
    %v3794 = vsel %vm1046, %v3526, -inf
    %3795 = vmax.xlane.f32.xlu0 %v3794
    %v3796 = vpop.xlane.xlu0 %3795
    %v3797 = vsel %vm1046, %v3572, -inf
    %3798 = vmax.xlane.f32.xlu0 %v3797
    %v3799 = vpop.xlane.xlu0 %3798
    %v3800 = vsel %vm1046, %v3575, -inf
    %3801 = vmax.xlane.f32.xlu0 %v3800
    %v3802 = vpop.xlane.xlu0 %3801
    %v3803 = vsel %vm1046, %v3621, -inf
    %3804 = vmax.xlane.f32.xlu0 %v3803
    %v3805 = vpop.xlane.xlu0 %3804
    %v3806 = vsel %vm1046, %v3624, -inf
    %3807 = vmax.xlane.f32.xlu0 %v3806
    %v3808 = vpop.xlane.xlu0 %3807
    %v3809 = vsel %vm1046, %v3670, -inf
    %3810 = vmax.xlane.f32.xlu0 %v3809
    %v3811 = vpop.xlane.xlu0 %3810
    %v3812 = vsel %vm1046, %v3673, -inf
    %3813 = vmax.xlane.f32.xlu0 %v3812
    %v3814 = vpop.xlane.xlu0 %3813
    %v3815 = vsel %vm1046, %v3719, -inf
    %3816 = vmax.xlane.f32.xlu0 %v3815
    %v3817 = vpop.xlane.xlu0 %3816
    %v3818 = vsel %vm1046, %v3722, -inf
    %3819 = vmax.xlane.f32.xlu0 %v3818
    %v3820 = vpop.xlane.xlu0 %3819
    %v3821 = vsub.f32 %v2984, %v3727
    %v3822 = vsub.f32 %v2987, %v3730
    %v3823 = vsub.f32 %v3033, %v3733
    %v3824 = vsub.f32 %v3036, %v3736
    %v3825 = vsub.f32 %v3082, %v3739
    %v3826 = vsub.f32 %v3085, %v3742
    %v3827 = vsub.f32 %v3131, %v3745
    %v3828 = vsub.f32 %v3134, %v3748
    %v3829 = vsub.f32 %v3180, %v3751
    %v3830 = vsub.f32 %v3183, %v3754
    %v3831 = vsub.f32 %v3229, %v3757
    %v3832 = vsub.f32 %v3232, %v3760
    %v3833 = vsub.f32 %v3278, %v3763
    %v3834 = vsub.f32 %v3281, %v3766
    %v3835 = vsub.f32 %v3327, %v3769
    %v3836 = vsub.f32 %v3330, %v3772
    %v3837 = vsub.f32 %v3376, %v3775
    %v3838 = vsub.f32 %v3379, %v3778
    %v3839 = vsub.f32 %v3425, %v3781
    %v3840 = vsub.f32 %v3428, %v3784
    %v3841 = vsub.f32 %v3474, %v3787
    %v3842 = vsub.f32 %v3477, %v3790
    %v3843 = vsub.f32 %v3523, %v3793
    %v3844 = vsub.f32 %v3526, %v3796
    %v3845 = vsub.f32 %v3572, %v3799
    %v3846 = vsub.f32 %v3575, %v3802
    %v3847 = vsub.f32 %v3621, %v3805
    %v3848 = vsub.f32 %v3624, %v3808
    %v3849 = vsub.f32 %v3670, %v3811
    %v3850 = vsub.f32 %v3673, %v3814
    %v3851 = vsub.f32 %v3719, %v3817
    %v3852 = vsub.f32 %v3722, %v3820
    %v3853 = vmul.f32 %v3821, 1.442695
    %v3854 = vpow.pop %v3853
    %v3855 = vmul.f32 %v3822, 1.442695
    %v3856 = vpow.pop %v3855
    %v3857 = vmul.f32 %v3823, 1.442695
    %v3858 = vpow.pop %v3857
    %v3859 = vmul.f32 %v3824, 1.442695
    %v3860 = vpow.pop %v3859
    %v3861 = vmul.f32 %v3825, 1.442695
    %v3862 = vpow.pop %v3861
    %v3863 = vmul.f32 %v3826, 1.442695
    %v3864 = vpow.pop %v3863
    %v3865 = vmul.f32 %v3827, 1.442695
    %v3866 = vpow.pop %v3865
    %v3867 = vmul.f32 %v3828, 1.442695
    %v3868 = vpow.pop %v3867
    %v3869 = vmul.f32 %v3829, 1.442695
    %v3870 = vpow.pop %v3869
    %v3871 = vmul.f32 %v3830, 1.442695
    %v3872 = vpow.pop %v3871
    %v3873 = vmul.f32 %v3831, 1.442695
    %v3874 = vpow.pop %v3873
    %v3875 = vmul.f32 %v3832, 1.442695
    %v3876 = vpow.pop %v3875
    %v3877 = vmul.f32 %v3833, 1.442695
    %v3878 = vpow.pop %v3877
    %v3879 = vmul.f32 %v3834, 1.442695
    %v3880 = vpow.pop %v3879
    %v3881 = vmul.f32 %v3835, 1.442695
    %v3882 = vpow.pop %v3881
    %v3883 = vmul.f32 %v3836, 1.442695
    %v3884 = vpow.pop %v3883
    %v3885 = vmul.f32 %v3837, 1.442695
    %v3886 = vpow.pop %v3885
    %v3887 = vmul.f32 %v3838, 1.442695
    %v3888 = vpow.pop %v3887
    %v3889 = vmul.f32 %v3839, 1.442695
    %v3890 = vpow.pop %v3889
    %v3891 = vmul.f32 %v3840, 1.442695
    %v3892 = vpow.pop %v3891
    %v3893 = vmul.f32 %v3841, 1.442695
    %v3894 = vpow.pop %v3893
    %v3895 = vmul.f32 %v3842, 1.442695
    %v3896 = vpow.pop %v3895
    %v3897 = vmul.f32 %v3843, 1.442695
    %v3898 = vpow.pop %v3897
    %v3899 = vmul.f32 %v3844, 1.442695
    %v3900 = vpow.pop %v3899
    %v3901 = vmul.f32 %v3845, 1.442695
    %v3902 = vpow.pop %v3901
    %v3903 = vmul.f32 %v3846, 1.442695
    %v3904 = vpow.pop %v3903
    %v3905 = vmul.f32 %v3847, 1.442695
    %v3906 = vpow.pop %v3905
    %v3907 = vmul.f32 %v3848, 1.442695
    %v3908 = vpow.pop %v3907
    %v3909 = vmul.f32 %v3849, 1.442695
    %v3910 = vpow.pop %v3909
    %v3911 = vmul.f32 %v3850, 1.442695
    %v3912 = vpow.pop %v3911
    %v3913 = vmul.f32 %v3851, 1.442695
    %v3914 = vpow.pop %v3913
    %v3915 = vmul.f32 %v3852, 1.442695
    %v3916 = vpow.pop %v3915
    %v3917 = vsel %vm1046, %v3854, 0.0
    %3918 = vadd.xlane.f32.xlu0 %v3917
    %v3919 = vpop.xlane.xlu0 %3918
    %v3920 = vsel %vm1046, %v3856, 0.0
    %3921 = vadd.xlane.f32.xlu0 %v3920
    %v3922 = vpop.xlane.xlu0 %3921
    %v3923 = vsel %vm1046, %v3858, 0.0
    %3924 = vadd.xlane.f32.xlu0 %v3923
    %v3925 = vpop.xlane.xlu0 %3924
    %v3926 = vsel %vm1046, %v3860, 0.0
    %3927 = vadd.xlane.f32.xlu0 %v3926
    %v3928 = vpop.xlane.xlu0 %3927
    %v3929 = vsel %vm1046, %v3862, 0.0
    %3930 = vadd.xlane.f32.xlu0 %v3929
    %v3931 = vpop.xlane.xlu0 %3930
    %v3932 = vsel %vm1046, %v3864, 0.0
    %3933 = vadd.xlane.f32.xlu0 %v3932
    %v3934 = vpop.xlane.xlu0 %3933
    %v3935 = vsel %vm1046, %v3866, 0.0
    %3936 = vadd.xlane.f32.xlu0 %v3935
    %v3937 = vpop.xlane.xlu0 %3936
    %v3938 = vsel %vm1046, %v3868, 0.0
    %3939 = vadd.xlane.f32.xlu0 %v3938
    %v3940 = vpop.xlane.xlu0 %3939
    %v3941 = vsel %vm1046, %v3870, 0.0
    %3942 = vadd.xlane.f32.xlu0 %v3941
    %v3943 = vpop.xlane.xlu0 %3942
    %v3944 = vsel %vm1046, %v3872, 0.0
    %3945 = vadd.xlane.f32.xlu0 %v3944
    %v3946 = vpop.xlane.xlu0 %3945
    %v3947 = vsel %vm1046, %v3874, 0.0
    %3948 = vadd.xlane.f32.xlu0 %v3947
    %v3949 = vpop.xlane.xlu0 %3948
    %v3950 = vsel %vm1046, %v3876, 0.0
    %3951 = vadd.xlane.f32.xlu0 %v3950
    %v3952 = vpop.xlane.xlu0 %3951
    %v3953 = vsel %vm1046, %v3878, 0.0
    %3954 = vadd.xlane.f32.xlu0 %v3953
    %v3955 = vpop.xlane.xlu0 %3954
    %v3956 = vsel %vm1046, %v3880, 0.0
    %3957 = vadd.xlane.f32.xlu0 %v3956
    %v3958 = vpop.xlane.xlu0 %3957
    %v3959 = vsel %vm1046, %v3882, 0.0
    %3960 = vadd.xlane.f32.xlu0 %v3959
    %v3961 = vpop.xlane.xlu0 %3960
    %v3962 = vsel %vm1046, %v3884, 0.0
    %3963 = vadd.xlane.f32.xlu0 %v3962
    %v3964 = vpop.xlane.xlu0 %3963
    %v3965 = vsel %vm1046, %v3886, 0.0
    %3966 = vadd.xlane.f32.xlu0 %v3965
    %v3967 = vpop.xlane.xlu0 %3966
    %v3968 = vsel %vm1046, %v3888, 0.0
    %3969 = vadd.xlane.f32.xlu0 %v3968
    %v3970 = vpop.xlane.xlu0 %3969
    %v3971 = vsel %vm1046, %v3890, 0.0
    %3972 = vadd.xlane.f32.xlu0 %v3971
    %v3973 = vpop.xlane.xlu0 %3972
    %v3974 = vsel %vm1046, %v3892, 0.0
    %3975 = vadd.xlane.f32.xlu0 %v3974
    %v3976 = vpop.xlane.xlu0 %3975
    %v3977 = vsel %vm1046, %v3894, 0.0
    %3978 = vadd.xlane.f32.xlu0 %v3977
    %v3979 = vpop.xlane.xlu0 %3978
    %v3980 = vsel %vm1046, %v3896, 0.0
    %3981 = vadd.xlane.f32.xlu0 %v3980
    %v3982 = vpop.xlane.xlu0 %3981
    %v3983 = vsel %vm1046, %v3898, 0.0
    %3984 = vadd.xlane.f32.xlu0 %v3983
    %v3985 = vpop.xlane.xlu0 %3984
    %v3986 = vsel %vm1046, %v3900, 0.0
    %3987 = vadd.xlane.f32.xlu0 %v3986
    %v3988 = vpop.xlane.xlu0 %3987
    %v3989 = vsel %vm1046, %v3902, 0.0
    %3990 = vadd.xlane.f32.xlu0 %v3989
    %v3991 = vpop.xlane.xlu0 %3990
    %v3992 = vsel %vm1046, %v3904, 0.0
    %3993 = vadd.xlane.f32.xlu0 %v3992
    %v3994 = vpop.xlane.xlu0 %3993
    %v3995 = vsel %vm1046, %v3906, 0.0
    %3996 = vadd.xlane.f32.xlu0 %v3995
    %v3997 = vpop.xlane.xlu0 %3996
    %v3998 = vsel %vm1046, %v3908, 0.0
    %3999 = vadd.xlane.f32.xlu0 %v3998
    %v4000 = vpop.xlane.xlu0 %3999
    %v4001 = vsel %vm1046, %v3910, 0.0
    %4002 = vadd.xlane.f32.xlu0 %v4001
    %v4003 = vpop.xlane.xlu0 %4002
    %v4004 = vsel %vm1046, %v3912, 0.0
    %4005 = vadd.xlane.f32.xlu0 %v4004
    %v4006 = vpop.xlane.xlu0 %4005
    %v4007 = vsel %vm1046, %v3914, 0.0
    %4008 = vadd.xlane.f32.xlu0 %v4007
    %v4009 = vpop.xlane.xlu0 %4008
    %v4010 = vsel %vm1046, %v3916, 0.0
    %4011 = vadd.xlane.f32.xlu0 %v4010
    %v4012 = vpop.xlane.xlu0 %4011
    %v4013 = vrcp.pop %v3919
    %v4014 = vrcp.pop %v3922
    %v4015 = vrcp.pop %v3925
    %v4016 = vrcp.pop %v3928
    %v4017 = vrcp.pop %v3931
    %v4018 = vrcp.pop %v3934
    %v4019 = vrcp.pop %v3937
    %v4020 = vrcp.pop %v3940
    %v4021 = vrcp.pop %v3943
    %v4022 = vrcp.pop %v3946
    %v4023 = vrcp.pop %v3949
    %v4024 = vrcp.pop %v3952
    %v4025 = vrcp.pop %v3955
    %v4026 = vrcp.pop %v3958
    %v4027 = vrcp.pop %v3961
    %v4028 = vrcp.pop %v3964
    %v4029 = vrcp.pop %v3967
    %v4030 = vrcp.pop %v3970
    %v4031 = vrcp.pop %v3973
    %v4032 = vrcp.pop %v3976
    %v4033 = vrcp.pop %v3979
    %v4034 = vrcp.pop %v3982
    %v4035 = vrcp.pop %v3985
    %v4036 = vrcp.pop %v3988
    %v4037 = vrcp.pop %v3991
    %v4038 = vrcp.pop %v3994
    %v4039 = vrcp.pop %v3997
    %v4040 = vrcp.pop %v4000
    %v4041 = vrcp.pop %v4003
    %v4042 = vrcp.pop %v4006
    %v4043 = vrcp.pop %v4009
    %v4044 = vrcp.pop %v4012
    %v4045 = vmul.f32 %v3854, %v4013
    %v4046 = vmul.f32 %v3856, %v4014
    %v4047 = vmul.f32 %v3858, %v4015
    %v4048 = vmul.f32 %v3860, %v4016
    %v4049 = vmul.f32 %v3862, %v4017
    %v4050 = vmul.f32 %v3864, %v4018
    %v4051 = vmul.f32 %v3866, %v4019
    %v4052 = vmul.f32 %v3868, %v4020
    %v4053 = vmul.f32 %v3870, %v4021
    %v4054 = vmul.f32 %v3872, %v4022
    %v4055 = vmul.f32 %v3874, %v4023
    %v4056 = vmul.f32 %v3876, %v4024
    %v4057 = vmul.f32 %v3878, %v4025
    %v4058 = vmul.f32 %v3880, %v4026
    %v4059 = vmul.f32 %v3882, %v4027
    %v4060 = vmul.f32 %v3884, %v4028
    %v4061 = vmul.f32 %v3886, %v4029
    %v4062 = vmul.f32 %v3888, %v4030
    %v4063 = vmul.f32 %v3890, %v4031
    %v4064 = vmul.f32 %v3892, %v4032
    %v4065 = vmul.f32 %v3894, %v4033
    %v4066 = vmul.f32 %v3896, %v4034
    %v4067 = vmul.f32 %v3898, %v4035
    %v4068 = vmul.f32 %v3900, %v4036
    %v4069 = vmul.f32 %v3902, %v4037
    %v4070 = vmul.f32 %v3904, %v4038
    %v4071 = vmul.f32 %v3906, %v4039
    %v4072 = vmul.f32 %v3908, %v4040
    %v4073 = vmul.f32 %v3910, %v4041
    %v4074 = vmul.f32 %v3912, %v4042
    %v4075 = vmul.f32 %v3914, %v4043
    %v4076 = vmul.f32 %v3916, %v4044
    %v4077 = vpack.c.bf16 %v4046, %v4045
    %v4078 = vpack.c.bf16 %v4048, %v4047
    %v4079 = vpack.c.bf16 %v4050, %v4049
    %v4080 = vpack.c.bf16 %v4052, %v4051
    %v4081 = vpack.c.bf16 %v4054, %v4053
    %v4082 = vpack.c.bf16 %v4056, %v4055
    %v4083 = vpack.c.bf16 %v4058, %v4057
    %v4084 = vpack.c.bf16 %v4060, %v4059
    %v4085 = vpack.c.bf16 %v4062, %v4061
    %v4086 = vpack.c.bf16 %v4064, %v4063
    %v4087 = vpack.c.bf16 %v4066, %v4065
    %v4088 = vpack.c.bf16 %v4068, %v4067
    %v4089 = vpack.c.bf16 %v4070, %v4069
    %v4090 = vpack.c.bf16 %v4072, %v4071
    %v4091 = vpack.c.bf16 %v4074, %v4073
    %v4092 = vpack.c.bf16 %v4076, %v4075
    %4093 = vrot.lane.b32.xlu0 %v2909, 64
    %v4094 = vpop.permute.xlu0 %4093
    %v4097 = vsel %vm1046, %v4077, 0
    %4099 = vmatprep.subr.bf16.mxu0 0
    %4100 = vmatpush1.bf16.msra.mxu0 %v4094
    %4101 = vmatprep.subr.bf16.mxu0 0
    %4102 = vmatpush1.bf16.msra.mxu0 0
    %4103 = vmatprep.subr.bf16.mxu0 0
    %4104 = vmatpush1.bf16.msra.mxu0 0
    %4105 = vmatprep.subr.bf16.mxu0 0
    %4106 = vmatpush1.bf16.msra.mxu0 0
    %4107 = vmatprep.subr.bf16.mxu0 0
    %4108 = vmatpush1.bf16.msra.mxu0 0
    %4109 = vmatprep.subr.bf16.mxu0 0
    %4110 = vmatpush1.bf16.msra.mxu0 0
    %4111 = vmatprep.subr.bf16.mxu0 0
    %4112 = vmatpush1.bf16.msra.mxu0 0
    %4113 = vmatprep.subr.bf16.mxu0 0
    %4114 = vmatpush1.bf16.msra.mxu0 0
    %4115 = vmatprep.subr.bf16.mxu0 0
    %4116 = vmatpush1.bf16.msra.mxu0 0
    %4117 = vmatprep.subr.bf16.mxu0 0
    %4118 = vmatpush1.bf16.msra.mxu0 0
    %4119 = vmatprep.subr.bf16.mxu0 0
    %4120 = vmatpush1.bf16.msra.mxu0 0
    %4121 = vmatprep.subr.bf16.mxu0 0
    %4122 = vmatpush1.bf16.msra.mxu0 0
    %4123 = vmatprep.subr.bf16.mxu0 0
    %4124 = vmatpush1.bf16.msra.mxu0 0
    %4125 = vmatprep.subr.bf16.mxu0 0
    %4126 = vmatpush1.bf16.msra.mxu0 0
    %4127 = vmatprep.subr.bf16.mxu0 0
    %4128 = vmatpush1.bf16.msra.mxu0 0
    %4129 = vmatprep.subr.bf16.mxu0 0
    %4130 = vmatpush1.bf16.msra.mxu0 0
    %4131 = vmatprep.mubr.bf16.mxu0 0
    %4132 = vmatmul.mubr.bf16.gmra.mrb[0].mxu0 %v4097
    %v4133 = vpop.f32.mrb[0].mxu0
    %v4134 = vadd.f32 0.0, %v4133
    %v4135 = vpop.f32.mrb[0].mxu0
    %v4136 = vpop.f32.mrb[0].mxu0
    %v4137 = vadd.f32 0.0, %v4136
    %v4138 = vpop.f32.mrb[0].mxu0
    %4139 = vdwg.mxu0
    %4140 = vrot.lane.b32.xlu0 %v2910, 64
    %v4141 = vpop.permute.xlu0 %4140
    %v4144 = vsel %vm1046, %v4078, 0
    %4146 = vmatprep.subr.bf16.mxu0 0
    %4147 = vmatpush1.bf16.msra.mxu0 %v4141
    %4148 = vmatprep.subr.bf16.mxu0 0
    %4149 = vmatpush1.bf16.msra.mxu0 0
    %4150 = vmatprep.subr.bf16.mxu0 0
    %4151 = vmatpush1.bf16.msra.mxu0 0
    %4152 = vmatprep.subr.bf16.mxu0 0
    %4153 = vmatpush1.bf16.msra.mxu0 0
    %4154 = vmatprep.subr.bf16.mxu0 0
    %4155 = vmatpush1.bf16.msra.mxu0 0
    %4156 = vmatprep.subr.bf16.mxu0 0
    %4157 = vmatpush1.bf16.msra.mxu0 0
    %4158 = vmatprep.subr.bf16.mxu0 0
    %4159 = vmatpush1.bf16.msra.mxu0 0
    %4160 = vmatprep.subr.bf16.mxu0 0
    %4161 = vmatpush1.bf16.msra.mxu0 0
    %4162 = vmatprep.subr.bf16.mxu0 0
    %4163 = vmatpush1.bf16.msra.mxu0 0
    %4164 = vmatprep.subr.bf16.mxu0 0
    %4165 = vmatpush1.bf16.msra.mxu0 0
    %4166 = vmatprep.subr.bf16.mxu0 0
    %4167 = vmatpush1.bf16.msra.mxu0 0
    %4168 = vmatprep.subr.bf16.mxu0 0
    %4169 = vmatpush1.bf16.msra.mxu0 0
    %4170 = vmatprep.subr.bf16.mxu0 0
    %4171 = vmatpush1.bf16.msra.mxu0 0
    %4172 = vmatprep.subr.bf16.mxu0 0
    %4173 = vmatpush1.bf16.msra.mxu0 0
    %4174 = vmatprep.subr.bf16.mxu0 0
    %4175 = vmatpush1.bf16.msra.mxu0 0
    %4176 = vmatprep.subr.bf16.mxu0 0
    %4177 = vmatpush1.bf16.msra.mxu0 0
    %4178 = vmatprep.mubr.bf16.mxu0 0
    %4179 = vmatmul.mubr.bf16.gmra.mrb[0].mxu0 %v4144
    %v4180 = vpop.f32.mrb[0].mxu0
    %v4181 = vadd.f32 0.0, %v4180
    %v4182 = vpop.f32.mrb[0].mxu0
    %v4183 = vpop.f32.mrb[0].mxu0
    %v4184 = vadd.f32 0.0, %v4183
    %v4185 = vpop.f32.mrb[0].mxu0
    %4186 = vdwg.mxu0
    %4187 = vrot.lane.b32.xlu0 %v2914, 64
    %v4188 = vpop.permute.xlu0 %4187
    %v4191 = vsel %vm1046, %v4079, 0
    %4193 = vmatprep.subr.bf16.mxu0 0
    %4194 = vmatpush1.bf16.msra.mxu0 %v4188
    %4195 = vmatprep.subr.bf16.mxu0 0
    %4196 = vmatpush1.bf16.msra.mxu0 0
    %4197 = vmatprep.subr.bf16.mxu0 0
    %4198 = vmatpush1.bf16.msra.mxu0 0
    %4199 = vmatprep.subr.bf16.mxu0 0
    %4200 = vmatpush1.bf16.msra.mxu0 0
    %4201 = vmatprep.subr.bf16.mxu0 0
    %4202 = vmatpush1.bf16.msra.mxu0 0
    %4203 = vmatprep.subr.bf16.mxu0 0
    %4204 = vmatpush1.bf16.msra.mxu0 0
    %4205 = vmatprep.subr.bf16.mxu0 0
    %4206 = vmatpush1.bf16.msra.mxu0 0
    %4207 = vmatprep.subr.bf16.mxu0 0
    %4208 = vmatpush1.bf16.msra.mxu0 0
    %4209 = vmatprep.subr.bf16.mxu0 0
    %4210 = vmatpush1.bf16.msra.mxu0 0
    %4211 = vmatprep.subr.bf16.mxu0 0
    %4212 = vmatpush1.bf16.msra.mxu0 0
    %4213 = vmatprep.subr.bf16.mxu0 0
    %4214 = vmatpush1.bf16.msra.mxu0 0
    %4215 = vmatprep.subr.bf16.mxu0 0
    %4216 = vmatpush1.bf16.msra.mxu0 0
    %4217 = vmatprep.subr.bf16.mxu0 0
    %4218 = vmatpush1.bf16.msra.mxu0 0
    %4219 = vmatprep.subr.bf16.mxu0 0
    %4220 = vmatpush1.bf16.msra.mxu0 0
    %4221 = vmatprep.subr.bf16.mxu0 0
    %4222 = vmatpush1.bf16.msra.mxu0 0
    %4223 = vmatprep.subr.bf16.mxu0 0
    %4224 = vmatpush1.bf16.msra.mxu0 0
    %4225 = vmatprep.mubr.bf16.mxu0 0
    %4226 = vmatmul.mubr.bf16.gmra.mrb[0].mxu0 %v4191
    %v4227 = vpop.f32.mrb[0].mxu0
    %v4228 = vadd.f32 0.0, %v4227
    %v4229 = vpop.f32.mrb[0].mxu0
    %v4230 = vpop.f32.mrb[0].mxu0
    %v4231 = vadd.f32 0.0, %v4230
    %v4232 = vpop.f32.mrb[0].mxu0
    %4233 = vdwg.mxu0
    %4234 = vrot.lane.b32.xlu0 %v2916, 64
    %v4235 = vpop.permute.xlu0 %4234
    %v4238 = vsel %vm1046, %v4080, 0
    %4240 = vmatprep.subr.bf16.mxu0 0
    %4241 = vmatpush1.bf16.msra.mxu0 %v4235
    %4242 = vmatprep.subr.bf16.mxu0 0
    %4243 = vmatpush1.bf16.msra.mxu0 0
    %4244 = vmatprep.subr.bf16.mxu0 0
    %4245 = vmatpush1.bf16.msra.mxu0 0
    %4246 = vmatprep.subr.bf16.mxu0 0
    %4247 = vmatpush1.bf16.msra.mxu0 0
    %4248 = vmatprep.subr.bf16.mxu0 0
    %4249 = vmatpush1.bf16.msra.mxu0 0
    %4250 = vmatprep.subr.bf16.mxu0 0
    %4251 = vmatpush1.bf16.msra.mxu0 0
    %4252 = vmatprep.subr.bf16.mxu0 0
    %4253 = vmatpush1.bf16.msra.mxu0 0
    %4254 = vmatprep.subr.bf16.mxu0 0
    %4255 = vmatpush1.bf16.msra.mxu0 0
    %4256 = vmatprep.subr.bf16.mxu0 0
    %4257 = vmatpush1.bf16.msra.mxu0 0
    %4258 = vmatprep.subr.bf16.mxu0 0
    %4259 = vmatpush1.bf16.msra.mxu0 0
    %4260 = vmatprep.subr.bf16.mxu0 0
    %4261 = vmatpush1.bf16.msra.mxu0 0
    %4262 = vmatprep.subr.bf16.mxu0 0
    %4263 = vmatpush1.bf16.msra.mxu0 0
    %4264 = vmatprep.subr.bf16.mxu0 0
    %4265 = vmatpush1.bf16.msra.mxu0 0
    %4266 = vmatprep.subr.bf16.mxu0 0
    %4267 = vmatpush1.bf16.msra.mxu0 0
    %4268 = vmatprep.subr.bf16.mxu0 0
    %4269 = vmatpush1.bf16.msra.mxu0 0
    %4270 = vmatprep.subr.bf16.mxu0 0
    %4271 = vmatpush1.bf16.msra.mxu0 0
    %4272 = vmatprep.mubr.bf16.mxu0 0
    %4273 = vmatmul.mubr.bf16.gmra.mrb[0].mxu0 %v4238
    %v4274 = vpop.f32.mrb[0].mxu0
    %v4275 = vadd.f32 0.0, %v4274
    %v4276 = vpop.f32.mrb[0].mxu0
    %v4277 = vpop.f32.mrb[0].mxu0
    %v4278 = vadd.f32 0.0, %v4277
    %v4279 = vpop.f32.mrb[0].mxu0
    %4280 = vdwg.mxu0
    %4281 = vrot.lane.b32.xlu0 %v2918, 64
    %v4282 = vpop.permute.xlu0 %4281
    %v4285 = vsel %vm1046, %v4081, 0
    %4287 = vmatprep.subr.bf16.mxu0 0
    %4288 = vmatpush1.bf16.msra.mxu0 %v4282
    %4289 = vmatprep.subr.bf16.mxu0 0
    %4290 = vmatpush1.bf16.msra.mxu0 0
    %4291 = vmatprep.subr.bf16.mxu0 0
    %4292 = vmatpush1.bf16.msra.mxu0 0
    %4293 = vmatprep.subr.bf16.mxu0 0
    %4294 = vmatpush1.bf16.msra.mxu0 0
    %4295 = vmatprep.subr.bf16.mxu0 0
    %4296 = vmatpush1.bf16.msra.mxu0 0
    %4297 = vmatprep.subr.bf16.mxu0 0
    %4298 = vmatpush1.bf16.msra.mxu0 0
    %4299 = vmatprep.subr.bf16.mxu0 0
    %4300 = vmatpush1.bf16.msra.mxu0 0
    %4301 = vmatprep.subr.bf16.mxu0 0
    %4302 = vmatpush1.bf16.msra.mxu0 0
    %4303 = vmatprep.subr.bf16.mxu0 0
    %4304 = vmatpush1.bf16.msra.mxu0 0
    %4305 = vmatprep.subr.bf16.mxu0 0
    %4306 = vmatpush1.bf16.msra.mxu0 0
    %4307 = vmatprep.subr.bf16.mxu0 0
    %4308 = vmatpush1.bf16.msra.mxu0 0
    %4309 = vmatprep.subr.bf16.mxu0 0
    %4310 = vmatpush1.bf16.msra.mxu0 0
    %4311 = vmatprep.subr.bf16.mxu0 0
    %4312 = vmatpush1.bf16.msra.mxu0 0
    %4313 = vmatprep.subr.bf16.mxu0 0
    %4314 = vmatpush1.bf16.msra.mxu0 0
    %4315 = vmatprep.subr.bf16.mxu0 0
    %4316 = vmatpush1.bf16.msra.mxu0 0
    %4317 = vmatprep.subr.bf16.mxu0 0
    %4318 = vmatpush1.bf16.msra.mxu0 0
    %4319 = vmatprep.mubr.bf16.mxu0 0
    %4320 = vmatmul.mubr.bf16.gmra.mrb[0].mxu0 %v4285
    %v4321 = vpop.f32.mrb[0].mxu0
    %v4322 = vadd.f32 0.0, %v4321
    %v4323 = vpop.f32.mrb[0].mxu0
    %v4324 = vpop.f32.mrb[0].mxu0
    %v4325 = vadd.f32 0.0, %v4324
    %v4326 = vpop.f32.mrb[0].mxu0
    %4327 = vdwg.mxu0
    %4328 = vrot.lane.b32.xlu0 %v2920, 64
    %v4329 = vpop.permute.xlu0 %4328
    %v4332 = vsel %vm1046, %v4082, 0
    %4334 = vmatprep.subr.bf16.mxu0 0
    %4335 = vmatpush1.bf16.msra.mxu0 %v4329
    %4336 = vmatprep.subr.bf16.mxu0 0
    %4337 = vmatpush1.bf16.msra.mxu0 0
    %4338 = vmatprep.subr.bf16.mxu0 0
    %4339 = vmatpush1.bf16.msra.mxu0 0
    %4340 = vmatprep.subr.bf16.mxu0 0
    %4341 = vmatpush1.bf16.msra.mxu0 0
    %4342 = vmatprep.subr.bf16.mxu0 0
    %4343 = vmatpush1.bf16.msra.mxu0 0
    %4344 = vmatprep.subr.bf16.mxu0 0
    %4345 = vmatpush1.bf16.msra.mxu0 0
    %4346 = vmatprep.subr.bf16.mxu0 0
    %4347 = vmatpush1.bf16.msra.mxu0 0
    %4348 = vmatprep.subr.bf16.mxu0 0
    %4349 = vmatpush1.bf16.msra.mxu0 0
    %4350 = vmatprep.subr.bf16.mxu0 0
    %4351 = vmatpush1.bf16.msra.mxu0 0
    %4352 = vmatprep.subr.bf16.mxu0 0
    %4353 = vmatpush1.bf16.msra.mxu0 0
    %4354 = vmatprep.subr.bf16.mxu0 0
    %4355 = vmatpush1.bf16.msra.mxu0 0
    %4356 = vmatprep.subr.bf16.mxu0 0
    %4357 = vmatpush1.bf16.msra.mxu0 0
    %4358 = vmatprep.subr.bf16.mxu0 0
    %4359 = vmatpush1.bf16.msra.mxu0 0
    %4360 = vmatprep.subr.bf16.mxu0 0
    %4361 = vmatpush1.bf16.msra.mxu0 0
    %4362 = vmatprep.subr.bf16.mxu0 0
    %4363 = vmatpush1.bf16.msra.mxu0 0
    %4364 = vmatprep.subr.bf16.mxu0 0
    %4365 = vmatpush1.bf16.msra.mxu0 0
    %4366 = vmatprep.mubr.bf16.mxu0 0
    %4367 = vmatmul.mubr.bf16.gmra.mrb[0].mxu0 %v4332
    %v4368 = vpop.f32.mrb[0].mxu0
    %v4369 = vadd.f32 0.0, %v4368
    %v4370 = vpop.f32.mrb[0].mxu0
    %v4371 = vpop.f32.mrb[0].mxu0
    %v4372 = vadd.f32 0.0, %v4371
    %v4373 = vpop.f32.mrb[0].mxu0
    %4374 = vdwg.mxu0
    %4375 = vrot.lane.b32.xlu0 %v2922, 64
    %v4376 = vpop.permute.xlu0 %4375
    %v4379 = vsel %vm1046, %v4083, 0
    %4381 = vmatprep.subr.bf16.mxu0 0
    %4382 = vmatpush1.bf16.msra.mxu0 %v4376
    %4383 = vmatprep.subr.bf16.mxu0 0
    %4384 = vmatpush1.bf16.msra.mxu0 0
    %4385 = vmatprep.subr.bf16.mxu0 0
    %4386 = vmatpush1.bf16.msra.mxu0 0
    %4387 = vmatprep.subr.bf16.mxu0 0
    %4388 = vmatpush1.bf16.msra.mxu0 0
    %4389 = vmatprep.subr.bf16.mxu0 0
    %4390 = vmatpush1.bf16.msra.mxu0 0
    %4391 = vmatprep.subr.bf16.mxu0 0
    %4392 = vmatpush1.bf16.msra.mxu0 0
    %4393 = vmatprep.subr.bf16.mxu0 0
    %4394 = vmatpush1.bf16.msra.mxu0 0
    %4395 = vmatprep.subr.bf16.mxu0 0
    %4396 = vmatpush1.bf16.msra.mxu0 0
    %4397 = vmatprep.subr.bf16.mxu0 0
    %4398 = vmatpush1.bf16.msra.mxu0 0
    %4399 = vmatprep.subr.bf16.mxu0 0
    %4400 = vmatpush1.bf16.msra.mxu0 0
    %4401 = vmatprep.subr.bf16.mxu0 0
    %4402 = vmatpush1.bf16.msra.mxu0 0
    %4403 = vmatprep.subr.bf16.mxu0 0
    %4404 = vmatpush1.bf16.msra.mxu0 0
    %4405 = vmatprep.subr.bf16.mxu0 0
    %4406 = vmatpush1.bf16.msra.mxu0 0
    %4407 = vmatprep.subr.bf16.mxu0 0
    %4408 = vmatpush1.bf16.msra.mxu0 0
    %4409 = vmatprep.subr.bf16.mxu0 0
    %4410 = vmatpush1.bf16.msra.mxu0 0
    %4411 = vmatprep.subr.bf16.mxu0 0
    %4412 = vmatpush1.bf16.msra.mxu0 0
    %4413 = vmatprep.mubr.bf16.mxu0 0
    %4414 = vmatmul.mubr.bf16.gmra.mrb[0].mxu0 %v4379
    %v4415 = vpop.f32.mrb[0].mxu0
    %v4416 = vadd.f32 0.0, %v4415
    %v4417 = vpop.f32.mrb[0].mxu0
    %v4418 = vpop.f32.mrb[0].mxu0
    %v4419 = vadd.f32 0.0, %v4418
    %v4420 = vpop.f32.mrb[0].mxu0
    %4421 = vdwg.mxu0
    %4422 = vrot.lane.b32.xlu0 %v2924, 64
    %v4423 = vpop.permute.xlu0 %4422
    %v4426 = vsel %vm1046, %v4084, 0
    %4428 = vmatprep.subr.bf16.mxu0 0
    %4429 = vmatpush1.bf16.msra.mxu0 %v4423
    %4430 = vmatprep.subr.bf16.mxu0 0
    %4431 = vmatpush1.bf16.msra.mxu0 0
    %4432 = vmatprep.subr.bf16.mxu0 0
    %4433 = vmatpush1.bf16.msra.mxu0 0
    %4434 = vmatprep.subr.bf16.mxu0 0
    %4435 = vmatpush1.bf16.msra.mxu0 0
    %4436 = vmatprep.subr.bf16.mxu0 0
    %4437 = vmatpush1.bf16.msra.mxu0 0
    %4438 = vmatprep.subr.bf16.mxu0 0
    %4439 = vmatpush1.bf16.msra.mxu0 0
    %4440 = vmatprep.subr.bf16.mxu0 0
    %4441 = vmatpush1.bf16.msra.mxu0 0
    %4442 = vmatprep.subr.bf16.mxu0 0
    %4443 = vmatpush1.bf16.msra.mxu0 0
    %4444 = vmatprep.subr.bf16.mxu0 0
    %4445 = vmatpush1.bf16.msra.mxu0 0
    %4446 = vmatprep.subr.bf16.mxu0 0
    %4447 = vmatpush1.bf16.msra.mxu0 0
    %4448 = vmatprep.subr.bf16.mxu0 0
    %4449 = vmatpush1.bf16.msra.mxu0 0
    %4450 = vmatprep.subr.bf16.mxu0 0
    %4451 = vmatpush1.bf16.msra.mxu0 0
    %4452 = vmatprep.subr.bf16.mxu0 0
    %4453 = vmatpush1.bf16.msra.mxu0 0
    %4454 = vmatprep.subr.bf16.mxu0 0
    %4455 = vmatpush1.bf16.msra.mxu0 0
    %4456 = vmatprep.subr.bf16.mxu0 0
    %4457 = vmatpush1.bf16.msra.mxu0 0
    %4458 = vmatprep.subr.bf16.mxu0 0
    %4459 = vmatpush1.bf16.msra.mxu0 0
    %4460 = vmatprep.mubr.bf16.mxu0 0
    %4461 = vmatmul.mubr.bf16.gmra.mrb[0].mxu0 %v4426
    %v4462 = vpop.f32.mrb[0].mxu0
    %v4463 = vadd.f32 0.0, %v4462
    %v4464 = vpop.f32.mrb[0].mxu0
    %v4465 = vpop.f32.mrb[0].mxu0
    %v4466 = vadd.f32 0.0, %v4465
    %v4467 = vpop.f32.mrb[0].mxu0
    %4468 = vdwg.mxu0
    %4469 = vrot.lane.b32.xlu0 %v2926, 64
    %v4470 = vpop.permute.xlu0 %4469
    %v4473 = vsel %vm1046, %v4085, 0
    %4475 = vmatprep.subr.bf16.mxu0 0
    %4476 = vmatpush1.bf16.msra.mxu0 %v4470
    %4477 = vmatprep.subr.bf16.mxu0 0
    %4478 = vmatpush1.bf16.msra.mxu0 0
    %4479 = vmatprep.subr.bf16.mxu0 0
    %4480 = vmatpush1.bf16.msra.mxu0 0
    %4481 = vmatprep.subr.bf16.mxu0 0
    %4482 = vmatpush1.bf16.msra.mxu0 0
    %4483 = vmatprep.subr.bf16.mxu0 0
    %4484 = vmatpush1.bf16.msra.mxu0 0
    %4485 = vmatprep.subr.bf16.mxu0 0
    %4486 = vmatpush1.bf16.msra.mxu0 0
    %4487 = vmatprep.subr.bf16.mxu0 0
    %4488 = vmatpush1.bf16.msra.mxu0 0
    %4489 = vmatprep.subr.bf16.mxu0 0
    %4490 = vmatpush1.bf16.msra.mxu0 0
    %4491 = vmatprep.subr.bf16.mxu0 0
    %4492 = vmatpush1.bf16.msra.mxu0 0
    %4493 = vmatprep.subr.bf16.mxu0 0
    %4494 = vmatpush1.bf16.msra.mxu0 0
    %4495 = vmatprep.subr.bf16.mxu0 0
    %4496 = vmatpush1.bf16.msra.mxu0 0
    %4497 = vmatprep.subr.bf16.mxu0 0
    %4498 = vmatpush1.bf16.msra.mxu0 0
    %4499 = vmatprep.subr.bf16.mxu0 0
    %4500 = vmatpush1.bf16.msra.mxu0 0
    %4501 = vmatprep.subr.bf16.mxu0 0
    %4502 = vmatpush1.bf16.msra.mxu0 0
    %4503 = vmatprep.subr.bf16.mxu0 0
    %4504 = vmatpush1.bf16.msra.mxu0 0
    %4505 = vmatprep.subr.bf16.mxu0 0
    %4506 = vmatpush1.bf16.msra.mxu0 0
    %4507 = vmatprep.mubr.bf16.mxu0 0
    %4508 = vmatmul.mubr.bf16.gmra.mrb[0].mxu0 %v4473
    %v4509 = vpop.f32.mrb[0].mxu0
    %v4510 = vadd.f32 0.0, %v4509
    %v4511 = vpop.f32.mrb[0].mxu0
    %v4512 = vpop.f32.mrb[0].mxu0
    %v4513 = vadd.f32 0.0, %v4512
    %v4514 = vpop.f32.mrb[0].mxu0
    %4515 = vdwg.mxu0
    %4516 = vrot.lane.b32.xlu0 %v2928, 64
    %v4517 = vpop.permute.xlu0 %4516
    %v4520 = vsel %vm1046, %v4086, 0
    %4522 = vmatprep.subr.bf16.mxu0 0
    %4523 = vmatpush1.bf16.msra.mxu0 %v4517
    %4524 = vmatprep.subr.bf16.mxu0 0
    %4525 = vmatpush1.bf16.msra.mxu0 0
    %4526 = vmatprep.subr.bf16.mxu0 0
    %4527 = vmatpush1.bf16.msra.mxu0 0
    %4528 = vmatprep.subr.bf16.mxu0 0
    %4529 = vmatpush1.bf16.msra.mxu0 0
    %4530 = vmatprep.subr.bf16.mxu0 0
    %4531 = vmatpush1.bf16.msra.mxu0 0
    %4532 = vmatprep.subr.bf16.mxu0 0
    %4533 = vmatpush1.bf16.msra.mxu0 0
    %4534 = vmatprep.subr.bf16.mxu0 0
    %4535 = vmatpush1.bf16.msra.mxu0 0
    %4536 = vmatprep.subr.bf16.mxu0 0
    %4537 = vmatpush1.bf16.msra.mxu0 0
    %4538 = vmatprep.subr.bf16.mxu0 0
    %4539 = vmatpush1.bf16.msra.mxu0 0
    %4540 = vmatprep.subr.bf16.mxu0 0
    %4541 = vmatpush1.bf16.msra.mxu0 0
    %4542 = vmatprep.subr.bf16.mxu0 0
    %4543 = vmatpush1.bf16.msra.mxu0 0
    %4544 = vmatprep.subr.bf16.mxu0 0
    %4545 = vmatpush1.bf16.msra.mxu0 0
    %4546 = vmatprep.subr.bf16.mxu0 0
    %4547 = vmatpush1.bf16.msra.mxu0 0
    %4548 = vmatprep.subr.bf16.mxu0 0
    %4549 = vmatpush1.bf16.msra.mxu0 0
    %4550 = vmatprep.subr.bf16.mxu0 0
    %4551 = vmatpush1.bf16.msra.mxu0 0
    %4552 = vmatprep.subr.bf16.mxu0 0
    %4553 = vmatpush1.bf16.msra.mxu0 0
    %4554 = vmatprep.mubr.bf16.mxu0 0
    %4555 = vmatmul.mubr.bf16.gmra.mrb[0].mxu0 %v4520
    %v4556 = vpop.f32.mrb[0].mxu0
    %v4557 = vadd.f32 0.0, %v4556
    %v4558 = vpop.f32.mrb[0].mxu0
    %v4559 = vpop.f32.mrb[0].mxu0
    %v4560 = vadd.f32 0.0, %v4559
    %v4561 = vpop.f32.mrb[0].mxu0
    %4562 = vdwg.mxu0
    %4563 = vrot.lane.b32.xlu0 %v2930, 64
    %v4564 = vpop.permute.xlu0 %4563
    %v4567 = vsel %vm1046, %v4087, 0
    %4569 = vmatprep.subr.bf16.mxu0 0
    %4570 = vmatpush1.bf16.msra.mxu0 %v4564
    %4571 = vmatprep.subr.bf16.mxu0 0
    %4572 = vmatpush1.bf16.msra.mxu0 0
    %4573 = vmatprep.subr.bf16.mxu0 0
    %4574 = vmatpush1.bf16.msra.mxu0 0
    %4575 = vmatprep.subr.bf16.mxu0 0
    %4576 = vmatpush1.bf16.msra.mxu0 0
    %4577 = vmatprep.subr.bf16.mxu0 0
    %4578 = vmatpush1.bf16.msra.mxu0 0
    %4579 = vmatprep.subr.bf16.mxu0 0
    %4580 = vmatpush1.bf16.msra.mxu0 0
    %4581 = vmatprep.subr.bf16.mxu0 0
    %4582 = vmatpush1.bf16.msra.mxu0 0
    %4583 = vmatprep.subr.bf16.mxu0 0
    %4584 = vmatpush1.bf16.msra.mxu0 0
    %4585 = vmatprep.subr.bf16.mxu0 0
    %4586 = vmatpush1.bf16.msra.mxu0 0
    %4587 = vmatprep.subr.bf16.mxu0 0
    %4588 = vmatpush1.bf16.msra.mxu0 0
    %4589 = vmatprep.subr.bf16.mxu0 0
    %4590 = vmatpush1.bf16.msra.mxu0 0
    %4591 = vmatprep.subr.bf16.mxu0 0
    %4592 = vmatpush1.bf16.msra.mxu0 0
    %4593 = vmatprep.subr.bf16.mxu0 0
    %4594 = vmatpush1.bf16.msra.mxu0 0
    %4595 = vmatprep.subr.bf16.mxu0 0
    %4596 = vmatpush1.bf16.msra.mxu0 0
    %4597 = vmatprep.subr.bf16.mxu0 0
    %4598 = vmatpush1.bf16.msra.mxu0 0
    %4599 = vmatprep.subr.bf16.mxu0 0
    %4600 = vmatpush1.bf16.msra.mxu0 0
    %4601 = vmatprep.mubr.bf16.mxu0 0
    %4602 = vmatmul.mubr.bf16.gmra.mrb[0].mxu0 %v4567
    %v4603 = vpop.f32.mrb[0].mxu0
    %v4604 = vadd.f32 0.0, %v4603
    %v4605 = vpop.f32.mrb[0].mxu0
    %v4606 = vpop.f32.mrb[0].mxu0
    %v4607 = vadd.f32 0.0, %v4606
    %v4608 = vpop.f32.mrb[0].mxu0
    %4609 = vdwg.mxu0
    %4610 = vrot.lane.b32.xlu0 %v2932, 64
    %v4611 = vpop.permute.xlu0 %4610
    %v4614 = vsel %vm1046, %v4088, 0
    %4616 = vmatprep.subr.bf16.mxu0 0
    %4617 = vmatpush1.bf16.msra.mxu0 %v4611
    %4618 = vmatprep.subr.bf16.mxu0 0
    %4619 = vmatpush1.bf16.msra.mxu0 0
    %4620 = vmatprep.subr.bf16.mxu0 0
    %4621 = vmatpush1.bf16.msra.mxu0 0
    %4622 = vmatprep.subr.bf16.mxu0 0
    %4623 = vmatpush1.bf16.msra.mxu0 0
    %4624 = vmatprep.subr.bf16.mxu0 0
    %4625 = vmatpush1.bf16.msra.mxu0 0
    %4626 = vmatprep.subr.bf16.mxu0 0
    %4627 = vmatpush1.bf16.msra.mxu0 0
    %4628 = vmatprep.subr.bf16.mxu0 0
    %4629 = vmatpush1.bf16.msra.mxu0 0
    %4630 = vmatprep.subr.bf16.mxu0 0
    %4631 = vmatpush1.bf16.msra.mxu0 0
    %4632 = vmatprep.subr.bf16.mxu0 0
    %4633 = vmatpush1.bf16.msra.mxu0 0
    %4634 = vmatprep.subr.bf16.mxu0 0
    %4635 = vmatpush1.bf16.msra.mxu0 0
    %4636 = vmatprep.subr.bf16.mxu0 0
    %4637 = vmatpush1.bf16.msra.mxu0 0
    %4638 = vmatprep.subr.bf16.mxu0 0
    %4639 = vmatpush1.bf16.msra.mxu0 0
    %4640 = vmatprep.subr.bf16.mxu0 0
    %4641 = vmatpush1.bf16.msra.mxu0 0
    %4642 = vmatprep.subr.bf16.mxu0 0
    %4643 = vmatpush1.bf16.msra.mxu0 0
    %4644 = vmatprep.subr.bf16.mxu0 0
    %4645 = vmatpush1.bf16.msra.mxu0 0
    %4646 = vmatprep.subr.bf16.mxu0 0
    %4647 = vmatpush1.bf16.msra.mxu0 0
    %4648 = vmatprep.mubr.bf16.mxu0 0
    %4649 = vmatmul.mubr.bf16.gmra.mrb[0].mxu0 %v4614
    %v4650 = vpop.f32.mrb[0].mxu0
    %v4651 = vadd.f32 0.0, %v4650
    %v4652 = vpop.f32.mrb[0].mxu0
    %v4653 = vpop.f32.mrb[0].mxu0
    %v4654 = vadd.f32 0.0, %v4653
    %v4655 = vpop.f32.mrb[0].mxu0
    %4656 = vdwg.mxu0
    %4657 = vrot.lane.b32.xlu0 %v2934, 64
    %v4658 = vpop.permute.xlu0 %4657
    %v4661 = vsel %vm1046, %v4089, 0
    %4663 = vmatprep.subr.bf16.mxu0 0
    %4664 = vmatpush1.bf16.msra.mxu0 %v4658
    %4665 = vmatprep.subr.bf16.mxu0 0
    %4666 = vmatpush1.bf16.msra.mxu0 0
    %4667 = vmatprep.subr.bf16.mxu0 0
    %4668 = vmatpush1.bf16.msra.mxu0 0
    %4669 = vmatprep.subr.bf16.mxu0 0
    %4670 = vmatpush1.bf16.msra.mxu0 0
    %4671 = vmatprep.subr.bf16.mxu0 0
    %4672 = vmatpush1.bf16.msra.mxu0 0
    %4673 = vmatprep.subr.bf16.mxu0 0
    %4674 = vmatpush1.bf16.msra.mxu0 0
    %4675 = vmatprep.subr.bf16.mxu0 0
    %4676 = vmatpush1.bf16.msra.mxu0 0
    %4677 = vmatprep.subr.bf16.mxu0 0
    %4678 = vmatpush1.bf16.msra.mxu0 0
    %4679 = vmatprep.subr.bf16.mxu0 0
    %4680 = vmatpush1.bf16.msra.mxu0 0
    %4681 = vmatprep.subr.bf16.mxu0 0
    %4682 = vmatpush1.bf16.msra.mxu0 0
    %4683 = vmatprep.subr.bf16.mxu0 0
    %4684 = vmatpush1.bf16.msra.mxu0 0
    %4685 = vmatprep.subr.bf16.mxu0 0
    %4686 = vmatpush1.bf16.msra.mxu0 0
    %4687 = vmatprep.subr.bf16.mxu0 0
    %4688 = vmatpush1.bf16.msra.mxu0 0
    %4689 = vmatprep.subr.bf16.mxu0 0
    %4690 = vmatpush1.bf16.msra.mxu0 0
    %4691 = vmatprep.subr.bf16.mxu0 0
    %4692 = vmatpush1.bf16.msra.mxu0 0
    %4693 = vmatprep.subr.bf16.mxu0 0
    %4694 = vmatpush1.bf16.msra.mxu0 0
    %4695 = vmatprep.mubr.bf16.mxu0 0
    %4696 = vmatmul.mubr.bf16.gmra.mrb[0].mxu0 %v4661
    %v4697 = vpop.f32.mrb[0].mxu0
    %v4698 = vadd.f32 0.0, %v4697
    %v4699 = vpop.f32.mrb[0].mxu0
    %v4700 = vpop.f32.mrb[0].mxu0
    %v4701 = vadd.f32 0.0, %v4700
    %v4702 = vpop.f32.mrb[0].mxu0
    %4703 = vdwg.mxu0
    %4704 = vrot.lane.b32.xlu0 %v2936, 64
    %v4705 = vpop.permute.xlu0 %4704
    %v4708 = vsel %vm1046, %v4090, 0
    %4710 = vmatprep.subr.bf16.mxu0 0
    %4711 = vmatpush1.bf16.msra.mxu0 %v4705
    %4712 = vmatprep.subr.bf16.mxu0 0
    %4713 = vmatpush1.bf16.msra.mxu0 0
    %4714 = vmatprep.subr.bf16.mxu0 0
    %4715 = vmatpush1.bf16.msra.mxu0 0
    %4716 = vmatprep.subr.bf16.mxu0 0
    %4717 = vmatpush1.bf16.msra.mxu0 0
    %4718 = vmatprep.subr.bf16.mxu0 0
    %4719 = vmatpush1.bf16.msra.mxu0 0
    %4720 = vmatprep.subr.bf16.mxu0 0
    %4721 = vmatpush1.bf16.msra.mxu0 0
    %4722 = vmatprep.subr.bf16.mxu0 0
    %4723 = vmatpush1.bf16.msra.mxu0 0
    %4724 = vmatprep.subr.bf16.mxu0 0
    %4725 = vmatpush1.bf16.msra.mxu0 0
    %4726 = vmatprep.subr.bf16.mxu0 0
    %4727 = vmatpush1.bf16.msra.mxu0 0
    %4728 = vmatprep.subr.bf16.mxu0 0
    %4729 = vmatpush1.bf16.msra.mxu0 0
    %4730 = vmatprep.subr.bf16.mxu0 0
    %4731 = vmatpush1.bf16.msra.mxu0 0
    %4732 = vmatprep.subr.bf16.mxu0 0
    %4733 = vmatpush1.bf16.msra.mxu0 0
    %4734 = vmatprep.subr.bf16.mxu0 0
    %4735 = vmatpush1.bf16.msra.mxu0 0
    %4736 = vmatprep.subr.bf16.mxu0 0
    %4737 = vmatpush1.bf16.msra.mxu0 0
    %4738 = vmatprep.subr.bf16.mxu0 0
    %4739 = vmatpush1.bf16.msra.mxu0 0
    %4740 = vmatprep.subr.bf16.mxu0 0
    %4741 = vmatpush1.bf16.msra.mxu0 0
    %4742 = vmatprep.mubr.bf16.mxu0 0
    %4743 = vmatmul.mubr.bf16.gmra.mrb[0].mxu0 %v4708
    %v4744 = vpop.f32.mrb[0].mxu0
    %v4745 = vadd.f32 0.0, %v4744
    %v4746 = vpop.f32.mrb[0].mxu0
    %v4747 = vpop.f32.mrb[0].mxu0
    %v4748 = vadd.f32 0.0, %v4747
    %v4749 = vpop.f32.mrb[0].mxu0
    %4750 = vdwg.mxu0
    %4751 = vrot.lane.b32.xlu0 %v2938, 64
    %v4752 = vpop.permute.xlu0 %4751
    %v4755 = vsel %vm1046, %v4091, 0
    %4757 = vmatprep.subr.bf16.mxu0 0
    %4758 = vmatpush1.bf16.msra.mxu0 %v4752
    %4759 = vmatprep.subr.bf16.mxu0 0
    %4760 = vmatpush1.bf16.msra.mxu0 0
    %4761 = vmatprep.subr.bf16.mxu0 0
    %4762 = vmatpush1.bf16.msra.mxu0 0
    %4763 = vmatprep.subr.bf16.mxu0 0
    %4764 = vmatpush1.bf16.msra.mxu0 0
    %4765 = vmatprep.subr.bf16.mxu0 0
    %4766 = vmatpush1.bf16.msra.mxu0 0
    %4767 = vmatprep.subr.bf16.mxu0 0
    %4768 = vmatpush1.bf16.msra.mxu0 0
    %4769 = vmatprep.subr.bf16.mxu0 0
    %4770 = vmatpush1.bf16.msra.mxu0 0
    %4771 = vmatprep.subr.bf16.mxu0 0
    %4772 = vmatpush1.bf16.msra.mxu0 0
    %4773 = vmatprep.subr.bf16.mxu0 0
    %4774 = vmatpush1.bf16.msra.mxu0 0
    %4775 = vmatprep.subr.bf16.mxu0 0
    %4776 = vmatpush1.bf16.msra.mxu0 0
    %4777 = vmatprep.subr.bf16.mxu0 0
    %4778 = vmatpush1.bf16.msra.mxu0 0
    %4779 = vmatprep.subr.bf16.mxu0 0
    %4780 = vmatpush1.bf16.msra.mxu0 0
    %4781 = vmatprep.subr.bf16.mxu0 0
    %4782 = vmatpush1.bf16.msra.mxu0 0
    %4783 = vmatprep.subr.bf16.mxu0 0
    %4784 = vmatpush1.bf16.msra.mxu0 0
    %4785 = vmatprep.subr.bf16.mxu0 0
    %4786 = vmatpush1.bf16.msra.mxu0 0
    %4787 = vmatprep.subr.bf16.mxu0 0
    %4788 = vmatpush1.bf16.msra.mxu0 0
    %4789 = vmatprep.mubr.bf16.mxu0 0
    %4790 = vmatmul.mubr.bf16.gmra.mrb[0].mxu0 %v4755
    %v4791 = vpop.f32.mrb[0].mxu0
    %v4792 = vadd.f32 0.0, %v4791
    %v4793 = vpop.f32.mrb[0].mxu0
    %v4794 = vpop.f32.mrb[0].mxu0
    %v4795 = vadd.f32 0.0, %v4794
    %v4796 = vpop.f32.mrb[0].mxu0
    %4797 = vdwg.mxu0
    %4798 = vrot.lane.b32.xlu0 %v2940, 64
    %v4799 = vpop.permute.xlu0 %4798
    %v4802 = vsel %vm1046, %v4092, 0
    %4804 = vmatprep.subr.bf16.mxu0 0
    %4805 = vmatpush1.bf16.msra.mxu0 %v4799
    %4806 = vmatprep.subr.bf16.mxu0 0
    %4807 = vmatpush1.bf16.msra.mxu0 0
    %4808 = vmatprep.subr.bf16.mxu0 0
    %4809 = vmatpush1.bf16.msra.mxu0 0
    %4810 = vmatprep.subr.bf16.mxu0 0
    %4811 = vmatpush1.bf16.msra.mxu0 0
    %4812 = vmatprep.subr.bf16.mxu0 0
    %4813 = vmatpush1.bf16.msra.mxu0 0
    %4814 = vmatprep.subr.bf16.mxu0 0
    %4815 = vmatpush1.bf16.msra.mxu0 0
    %4816 = vmatprep.subr.bf16.mxu0 0
    %4817 = vmatpush1.bf16.msra.mxu0 0
    %4818 = vmatprep.subr.bf16.mxu0 0
    %4819 = vmatpush1.bf16.msra.mxu0 0
    %4820 = vmatprep.subr.bf16.mxu0 0
    %4821 = vmatpush1.bf16.msra.mxu0 0
    %4822 = vmatprep.subr.bf16.mxu0 0
    %4823 = vmatpush1.bf16.msra.mxu0 0
    %4824 = vmatprep.subr.bf16.mxu0 0
    %4825 = vmatpush1.bf16.msra.mxu0 0
    %4826 = vmatprep.subr.bf16.mxu0 0
    %4827 = vmatpush1.bf16.msra.mxu0 0
    %4828 = vmatprep.subr.bf16.mxu0 0
    %4829 = vmatpush1.bf16.msra.mxu0 0
    %4830 = vmatprep.subr.bf16.mxu0 0
    %4831 = vmatpush1.bf16.msra.mxu0 0
    %4832 = vmatprep.subr.bf16.mxu0 0
    %4833 = vmatpush1.bf16.msra.mxu0 0
    %4834 = vmatprep.subr.bf16.mxu0 0
    %4835 = vmatpush1.bf16.msra.mxu0 0
    %4836 = vmatprep.mubr.bf16.mxu0 0
    %4837 = vmatmul.mubr.bf16.gmra.mrb[0].mxu0 %v4802
    %v4838 = vpop.f32.mrb[0].mxu0
    %v4839 = vadd.f32 0.0, %v4838
    %v4840 = vpop.f32.mrb[0].mxu0
    %v4841 = vpop.f32.mrb[0].mxu0
    %v4842 = vadd.f32 0.0, %v4841
    %v4843 = vpop.f32.mrb[0].mxu0
    %4844 = vdwg.mxu0
    %4849 = vrot.lane.b32.xlu0 %v4228, 4
    %v4850 = vpop.permute.xlu0 %4849
    %4851 = vrot.lane.b32.xlu0 %v4231, 4
    %v4852 = vpop.permute.xlu0 %4851
    %4853 = vrot.lane.b32.xlu0 %v4275, 4
    %v4854 = vpop.permute.xlu0 %4853
    %4855 = vrot.lane.b32.xlu0 %v4278, 4
    %v4856 = vpop.permute.xlu0 %4855
    %4865 = vrot.lane.b32.xlu0 %v4322, 8
    %v4866 = vpop.permute.xlu0 %4865
    %4867 = vrot.lane.b32.xlu0 %v4325, 8
    %v4868 = vpop.permute.xlu0 %4867
    %4869 = vrot.lane.b32.xlu0 %v4369, 8
    %v4870 = vpop.permute.xlu0 %4869
    %4871 = vrot.lane.b32.xlu0 %v4372, 8
    %v4872 = vpop.permute.xlu0 %4871
    %4881 = vrot.lane.b32.xlu0 %v4416, 12
    %v4882 = vpop.permute.xlu0 %4881
    %4883 = vrot.lane.b32.xlu0 %v4419, 12
    %v4884 = vpop.permute.xlu0 %4883
    %4885 = vrot.lane.b32.xlu0 %v4463, 12
    %v4886 = vpop.permute.xlu0 %4885
    %4887 = vrot.lane.b32.xlu0 %v4466, 12
    %v4888 = vpop.permute.xlu0 %4887
    %4897 = vrot.lane.b32.xlu0 %v4510, 16
    %v4898 = vpop.permute.xlu0 %4897
    %4899 = vrot.lane.b32.xlu0 %v4513, 16
    %v4900 = vpop.permute.xlu0 %4899
    %4901 = vrot.lane.b32.xlu0 %v4557, 16
    %v4902 = vpop.permute.xlu0 %4901
    %4903 = vrot.lane.b32.xlu0 %v4560, 16
    %v4904 = vpop.permute.xlu0 %4903
    %4913 = vrot.lane.b32.xlu0 %v4604, 20
    %v4914 = vpop.permute.xlu0 %4913
    %4915 = vrot.lane.b32.xlu0 %v4607, 20
    %v4916 = vpop.permute.xlu0 %4915
    %4917 = vrot.lane.b32.xlu0 %v4651, 20
    %v4918 = vpop.permute.xlu0 %4917
    %4919 = vrot.lane.b32.xlu0 %v4654, 20
    %v4920 = vpop.permute.xlu0 %4919
    %4929 = vrot.lane.b32.xlu0 %v4698, 24
    %v4930 = vpop.permute.xlu0 %4929
    %4931 = vrot.lane.b32.xlu0 %v4701, 24
    %v4932 = vpop.permute.xlu0 %4931
    %4933 = vrot.lane.b32.xlu0 %v4745, 24
    %v4934 = vpop.permute.xlu0 %4933
    %4935 = vrot.lane.b32.xlu0 %v4748, 24
    %v4936 = vpop.permute.xlu0 %4935
    %4945 = vrot.lane.b32.xlu0 %v4792, 28
    %v4946 = vpop.permute.xlu0 %4945
    %4947 = vrot.lane.b32.xlu0 %v4795, 28
    %v4948 = vpop.permute.xlu0 %4947
    %4949 = vrot.lane.b32.xlu0 %v4839, 28
    %v4950 = vpop.permute.xlu0 %4949
    %4951 = vrot.lane.b32.xlu0 %v4842, 28
    %v4952 = vpop.permute.xlu0 %4951
    %v4957 = vsel %vm263, %v4134, %v4850
    %v4958 = vsel %vm263, %v4137, %v4852
    %v4959 = vsel %vm263, %v4181, %v4854
    %v4960 = vsel %vm263, %v4184, %v4856
    %v4961 = vsel %vm2283, %v4957, %v4866
    %v4962 = vsel %vm2283, %v4958, %v4868
    %v4963 = vsel %vm2283, %v4959, %v4870
    %v4964 = vsel %vm2283, %v4960, %v4872
    %v4965 = vsel %vm2288, %v4961, %v4882
    %v4966 = vsel %vm2288, %v4962, %v4884
    %v4967 = vsel %vm2288, %v4963, %v4886
    %v4968 = vsel %vm2288, %v4964, %v4888
    %v4969 = vsel %vm1046, %v4965, %v4898
    %v4970 = vsel %vm1046, %v4966, %v4900
    %v4971 = vsel %vm1046, %v4967, %v4902
    %v4972 = vsel %vm1046, %v4968, %v4904
    %v4973 = vsel %vm2297, %v4969, %v4914
    %v4974 = vsel %vm2297, %v4970, %v4916
    %v4975 = vsel %vm2297, %v4971, %v4918
    %v4976 = vsel %vm2297, %v4972, %v4920
    %v4977 = vsel %vm2302, %v4973, %v4930
    %v4978 = vsel %vm2302, %v4974, %v4932
    %v4979 = vsel %vm2302, %v4975, %v4934
    %v4980 = vsel %vm2302, %v4976, %v4936
    %v4981 = vsel %vm2307, %v4977, %v4946
    %v4982 = vsel %vm2307, %v4978, %v4948
    %v4983 = vsel %vm2307, %v4979, %v4950
    %v4984 = vsel %vm2307, %v4980, %v4952
    %v4985 = vpack.c.bf16 %v4982, %v4981
    %v4986 = vpack.c.bf16 %v4984, %v4983
    %s4987 = scalar_lea.vmem %s5, 16
    %v4988 = vld [vmem:[%s4987] sm:$0xf]
    %v4989 = vld [vmem:[%s4987 + $0x4] sm:$0xf]
    %v4990 = vld [vmem:[%s4987 + $0x8] sm:$0xf]
    %v4991 = vld [vmem:[%s4987 + $0xc] sm:$0xf]
    %v4992 = vld [vmem:[%s6 + $0x1] sm:$0x1]
    %v4993 = vlaneseq
    %v4994 = vshrl.u32 %v4993, 7
    %v4995 = vsub.s32 0, %v4994
    %v4996 = vrot.slane %v4992, %v4995
    %v5001 = vunpack.c.l.b16 %v4988
    %v5002 = vunpack.c.l.b16 %v4989
    %v5003 = vunpack.c.l.b16 %v4990
    %v5004 = vunpack.c.l.b16 %v4991
    %v5005 = vpack.c.b16 %v5002, %v5001
    %v5006 = vpack.c.b16 %v5004, %v5003
    %v5010 = vsel %vm173, %v4985, 0
    %v5013 = vsel %vm173, %v4986, 0
    %5015 = vmatprep.subr.bf16.mxu0 0
    %5016 = vmatpush1.bf16.msra.mxu0 %v5005
    %5017 = vmatprep.subr.bf16.mxu0 0
    %5018 = vmatpush1.bf16.msra.mxu0 %v5006
    %5019 = vmatprep.subr.bf16.mxu0 0
    %5020 = vmatpush1.bf16.msra.mxu0 0
    %5021 = vmatprep.subr.bf16.mxu0 0
    %5022 = vmatpush1.bf16.msra.mxu0 0
    %5023 = vmatprep.subr.bf16.mxu0 0
    %5024 = vmatpush1.bf16.msra.mxu0 0
    %5025 = vmatprep.subr.bf16.mxu0 0
    %5026 = vmatpush1.bf16.msra.mxu0 0
    %5027 = vmatprep.subr.bf16.mxu0 0
    %5028 = vmatpush1.bf16.msra.mxu0 0
    %5029 = vmatprep.subr.bf16.mxu0 0
    %5030 = vmatpush1.bf16.msra.mxu0 0
    %5031 = vmatprep.subr.bf16.mxu0 0
    %5032 = vmatpush1.bf16.msra.mxu0 0
    %5033 = vmatprep.subr.bf16.mxu0 0
    %5034 = vmatpush1.bf16.msra.mxu0 0
    %5035 = vmatprep.subr.bf16.mxu0 0
    %5036 = vmatpush1.bf16.msra.mxu0 0
    %5037 = vmatprep.subr.bf16.mxu0 0
    %5038 = vmatpush1.bf16.msra.mxu0 0
    %5039 = vmatprep.subr.bf16.mxu0 0
    %5040 = vmatpush1.bf16.msra.mxu0 0
    %5041 = vmatprep.subr.bf16.mxu0 0
    %5042 = vmatpush1.bf16.msra.mxu0 0
    %5043 = vmatprep.subr.bf16.mxu0 0
    %5044 = vmatpush1.bf16.msra.mxu0 0
    %5045 = vmatprep.subr.bf16.mxu0 0
    %5046 = vmatpush1.bf16.msra.mxu0 0
    %5047 = vmatprep.mubr.bf16.mxu0 0
    %5048 = vmatmul.mubr.bf16.gmra.mrb[0].mxu0 %v5010
    %v5049 = vpop.f32.mrb[0].mxu0
    %v5050 = vadd.f32 %v4996, %v5049
    %v5051 = vpop.f32.mrb[0].mxu0
    %v5052 = vpop.f32.mrb[0].mxu0
    %v5053 = vadd.f32 %v4996, %v5052
    %v5054 = vpop.f32.mrb[0].mxu0
    %5055 = vmatprep.mubr.bf16.mxu0 0
    %5056 = vmatmul.mubr.bf16.gmra.mrb[0].mxu0 %v5013
    %v5057 = vpop.f32.mrb[0].mxu0
    %v5058 = vadd.f32 %v4996, %v5057
    %v5059 = vpop.f32.mrb[0].mxu0
    %v5060 = vpop.f32.mrb[0].mxu0
    %v5061 = vadd.f32 %v4996, %v5060
    %v5062 = vpop.f32.mrb[0].mxu0
    %5063 = vdwg.mxu0
    %v5064 = vadd.f32 %v2826, %v5050
    %v5065 = vadd.f32 %v2827, %v5053
    %v5066 = vadd.f32 %v2828, %v5058
    %v5067 = vadd.f32 %v2829, %v5061
    %v5068 = vld [vmem:[%s7 + $0x1] sm:$0x1]
    %v5069 = vld [vmem:[%s8 + $0x1] sm:$0x1]
    %v5070 = vsel %vm173, %v5064, 0.0
    %5071 = vadd.xlane.f32.xlu0 %v5070
    %v5072 = vpop.xlane.xlu0 %5071
    %v5073 = vsel %vm173, %v5065, 0.0
    %5074 = vadd.xlane.f32.xlu0 %v5073
    %v5075 = vpop.xlane.xlu0 %5074
    %v5076 = vsel %vm173, %v5066, 0.0
    %5077 = vadd.xlane.f32.xlu0 %v5076
    %v5078 = vpop.xlane.xlu0 %5077
    %v5079 = vsel %vm173, %v5067, 0.0
    %5080 = vadd.xlane.f32.xlu0 %v5079
    %v5081 = vpop.xlane.xlu0 %5080
    %v5082 = vmul.f32 %v5072, %v2408
    %v5083 = vmul.f32 %v5075, %v2408
    %v5084 = vmul.f32 %v5078, %v2408
    %v5085 = vmul.f32 %v5081, %v2408
    %v5086 = vsub.f32 %v5064, %v5082
    %v5087 = vsub.f32 %v5065, %v5083
    %v5088 = vsub.f32 %v5066, %v5084
    %v5089 = vsub.f32 %v5067, %v5085
    %v5090 = vmul.f32 %v5086, %v5086
    %v5091 = vmul.f32 %v5087, %v5087
    %v5092 = vmul.f32 %v5088, %v5088
    %v5093 = vmul.f32 %v5089, %v5089
    %v5094 = vsel %vm173, %v5090, 0.0
    %5095 = vadd.xlane.f32.xlu0 %v5094
    %v5096 = vpop.xlane.xlu0 %5095
    %v5097 = vsel %vm173, %v5091, 0.0
    %5098 = vadd.xlane.f32.xlu0 %v5097
    %v5099 = vpop.xlane.xlu0 %5098
    %v5100 = vsel %vm173, %v5092, 0.0
    %5101 = vadd.xlane.f32.xlu0 %v5100
    %v5102 = vpop.xlane.xlu0 %5101
    %v5103 = vsel %vm173, %v5093, 0.0
    %5104 = vadd.xlane.f32.xlu0 %v5103
    %v5105 = vpop.xlane.xlu0 %5104
    %v5106 = vmul.f32 %v5096, %v2408
    %v5107 = vmul.f32 %v5099, %v2408
    %v5108 = vmul.f32 %v5102, %v2408
    %v5109 = vmul.f32 %v5105, %v2408
    %v5110 = vadd.f32 %v5106, 1e-05
    %v5111 = vadd.f32 %v5107, 1e-05
    %v5112 = vadd.f32 %v5108, 1e-05
    %v5113 = vadd.f32 %v5109, 1e-05
    %v5114 = vrsqrt.pop %v5110
    %v5115 = vrsqrt.pop %v5111
    %v5116 = vrsqrt.pop %v5112
    %v5117 = vrsqrt.pop %v5113
    %v5118 = vmul.f32 %v5086, %v5114
    %v5119 = vmul.f32 %v5087, %v5115
    %v5120 = vmul.f32 %v5088, %v5116
    %v5121 = vmul.f32 %v5089, %v5117
    %v5122 = vlaneseq
    %v5123 = vshrl.u32 %v5122, 7
    %v5124 = vsub.s32 0, %v5123
    %v5125 = vrot.slane %v5068, %v5124
    %v5126 = vmul.f32 %v5118, %v5125
    %v5127 = vmul.f32 %v5119, %v5125
    %v5128 = vmul.f32 %v5120, %v5125
    %v5129 = vmul.f32 %v5121, %v5125
    %v5130 = vlaneseq
    %v5131 = vshrl.u32 %v5130, 7
    %v5132 = vsub.s32 0, %v5131
    %v5133 = vrot.slane %v5069, %v5132
    %v5134 = vadd.f32 %v5126, %v5133
    %v5135 = vadd.f32 %v5127, %v5133
    %v5136 = vadd.f32 %v5128, %v5133
    %v5137 = vadd.f32 %v5129, %v5133
    %v5138 = vpack.c.bf16 %v5135, %v5134
    %v5139 = vpack.c.bf16 %v5137, %v5136
    %s5140 = scalar_lea.vmem %s9, 32
    %v5141 = vld [vmem:[%s5140] sm:$0xff]
    %v5142 = vld [vmem:[%s5140 + $0x8] sm:$0xff]
    %v5143 = vld [vmem:[%s5140 + $0x10] sm:$0xff]
    %v5144 = vld [vmem:[%s5140 + $0x18] sm:$0xff]
    %s5145 = scalar_lea.vmem %s10, 1
    %v5146 = vld [vmem:[%s5145] ss:$2 sm:$0x3]
    %v5148 = vlaneseq
    %v5149 = vshrl.u32 %v5148, 7
    %v5150 = vsub.s32 0, %v5149
    %v5151 = vrot.slane %v5146, %v5150
    %v5152 = vlaneseq
    %v5153 = vshrl.u32 %v5152, 7
    %v5154 = vsub.s32 1, %v5153
    %v5155 = vrot.slane %v5146, %v5154
    %v5162 = vunpack.c.l.b16 %v5141
    %v5163 = vunpack.c.h.b16 %v5141
    %v5164 = vunpack.c.l.b16 %v5142
    %v5165 = vunpack.c.h.b16 %v5142
    %v5166 = vunpack.c.l.b16 %v5143
    %v5167 = vunpack.c.h.b16 %v5143
    %v5168 = vunpack.c.l.b16 %v5144
    %v5169 = vunpack.c.h.b16 %v5144
    %v5170 = vpack.c.b16 %v5164, %v5162
    %v5171 = vpack.c.b16 %v5165, %v5163
    %v5172 = vpack.c.b16 %v5168, %v5166
    %v5173 = vpack.c.b16 %v5169, %v5167
    %v5179 = vsel %vm173, %v5138, 0
    %v5182 = vsel %vm173, %v5139, 0
    %5184 = vmatprep.subr.bf16.mxu0 %v5171
    %5185 = vmatpush1.bf16.msra.mxu0 %v5170
    %5186 = vmatprep.subr.bf16.mxu0 %v5173
    %5187 = vmatpush1.bf16.msra.mxu0 %v5172
    %5188 = vmatprep.subr.bf16.mxu0 0
    %5189 = vmatpush1.bf16.msra.mxu0 0
    %5190 = vmatprep.subr.bf16.mxu0 0
    %5191 = vmatpush1.bf16.msra.mxu0 0
    %5192 = vmatprep.subr.bf16.mxu0 0
    %5193 = vmatpush1.bf16.msra.mxu0 0
    %5194 = vmatprep.subr.bf16.mxu0 0
    %5195 = vmatpush1.bf16.msra.mxu0 0
    %5196 = vmatprep.subr.bf16.mxu0 0
    %5197 = vmatpush1.bf16.msra.mxu0 0
    %5198 = vmatprep.subr.bf16.mxu0 0
    %5199 = vmatpush1.bf16.msra.mxu0 0
    %5200 = vmatprep.subr.bf16.mxu0 0
    %5201 = vmatpush1.bf16.msra.mxu0 0
    %5202 = vmatprep.subr.bf16.mxu0 0
    %5203 = vmatpush1.bf16.msra.mxu0 0
    %5204 = vmatprep.subr.bf16.mxu0 0
    %5205 = vmatpush1.bf16.msra.mxu0 0
    %5206 = vmatprep.subr.bf16.mxu0 0
    %5207 = vmatpush1.bf16.msra.mxu0 0
    %5208 = vmatprep.subr.bf16.mxu0 0
    %5209 = vmatpush1.bf16.msra.mxu0 0
    %5210 = vmatprep.subr.bf16.mxu0 0
    %5211 = vmatpush1.bf16.msra.mxu0 0
    %5212 = vmatprep.subr.bf16.mxu0 0
    %5213 = vmatpush1.bf16.msra.mxu0 0
    %5214 = vmatprep.subr.bf16.mxu0 0
    %5215 = vmatpush1.bf16.msra.mxu0 0
    %5216 = vmatprep.mubr.bf16.mxu0 0
    %5217 = vmatmul.mubr.bf16.gmra.mrb[0].mxu0 %v5179
    %v5218 = vpop.f32.mrb[0].mxu0
    %v5219 = vadd.f32 %v5151, %v5218
    %v5220 = vpop.f32.mrb[0].mxu0
    %v5221 = vadd.f32 %v5155, %v5220
    %v5222 = vpop.f32.mrb[0].mxu0
    %v5223 = vadd.f32 %v5151, %v5222
    %v5224 = vpop.f32.mrb[0].mxu0
    %v5225 = vadd.f32 %v5155, %v5224
    %5226 = vmatprep.mubr.bf16.mxu0 0
    %5227 = vmatmul.mubr.bf16.gmra.mrb[0].mxu0 %v5182
    %v5228 = vpop.f32.mrb[0].mxu0
    %v5229 = vadd.f32 %v5151, %v5228
    %v5230 = vpop.f32.mrb[0].mxu0
    %v5231 = vadd.f32 %v5155, %v5230
    %v5232 = vpop.f32.mrb[0].mxu0
    %v5233 = vadd.f32 %v5151, %v5232
    %v5234 = vpop.f32.mrb[0].mxu0
    %v5235 = vadd.f32 %v5155, %v5234
    %5236 = vdwg.mxu0
    %v5237 = vmax.f32 %v5219, 0.0
    %v5238 = vmax.f32 %v5221, 0.0
    %v5239 = vmax.f32 %v5223, 0.0
    %v5240 = vmax.f32 %v5225, 0.0
    %v5241 = vmax.f32 %v5229, 0.0
    %v5242 = vmax.f32 %v5231, 0.0
    %v5243 = vmax.f32 %v5233, 0.0
    %v5244 = vmax.f32 %v5235, 0.0
    %v5245 = vpack.c.bf16 %v5239, %v5237
    %v5246 = vpack.c.bf16 %v5240, %v5238
    %v5247 = vpack.c.bf16 %v5243, %v5241
    %v5248 = vpack.c.bf16 %v5244, %v5242
    %s5249 = scalar_lea.vmem %s11, 128
    %v5250 = vld [vmem:[%s5249] sm:$0xf]
    %v5251 = vld [vmem:[%s5249 + $0x4] sm:$0xf]
    %v5252 = vld [vmem:[%s5249 + $0x8] sm:$0xf]
    %v5253 = vld [vmem:[%s5249 + $0xc] sm:$0xf]
    %v5254 = vld [vmem:[%s5249 + $0x10] sm:$0xf]
    %v5255 = vld [vmem:[%s5249 + $0x14] sm:$0xf]
    %v5256 = vld [vmem:[%s5249 + $0x18] sm:$0xf]
    %v5257 = vld [vmem:[%s5249 + $0x1c] sm:$0xf]
    %v5258 = vld [vmem:[%s5249 + $0x20] sm:$0xf]
    %v5259 = vld [vmem:[%s5249 + $0x24] sm:$0xf]
    %v5260 = vld [vmem:[%s5249 + $0x28] sm:$0xf]
    %v5261 = vld [vmem:[%s5249 + $0x2c] sm:$0xf]
    %v5262 = vld [vmem:[%s5249 + $0x30] sm:$0xf]
    %v5263 = vld [vmem:[%s5249 + $0x34] sm:$0xf]
    %v5264 = vld [vmem:[%s5249 + $0x38] sm:$0xf]
    %v5265 = vld [vmem:[%s5249 + $0x3c] sm:$0xf]
    %v5266 = vld [vmem:[%s5249 + $0x40] sm:$0xf]
    %v5267 = vld [vmem:[%s5249 + $0x44] sm:$0xf]
    %v5268 = vld [vmem:[%s5249 + $0x48] sm:$0xf]
    %v5269 = vld [vmem:[%s5249 + $0x4c] sm:$0xf]
    %v5270 = vld [vmem:[%s5249 + $0x50] sm:$0xf]
    %v5271 = vld [vmem:[%s5249 + $0x54] sm:$0xf]
    %v5272 = vld [vmem:[%s5249 + $0x58] sm:$0xf]
    %v5273 = vld [vmem:[%s5249 + $0x5c] sm:$0xf]
    %v5274 = vld [vmem:[%s5249 + $0x60] sm:$0xf]
    %v5275 = vld [vmem:[%s5249 + $0x64] sm:$0xf]
    %v5276 = vld [vmem:[%s5249 + $0x68] sm:$0xf]
    %v5277 = vld [vmem:[%s5249 + $0x6c] sm:$0xf]
    %v5278 = vld [vmem:[%s5249 + $0x70] sm:$0xf]
    %v5279 = vld [vmem:[%s5249 + $0x74] sm:$0xf]
    %v5280 = vld [vmem:[%s5249 + $0x78] sm:$0xf]
    %v5281 = vld [vmem:[%s5249 + $0x7c] sm:$0xf]
    %v5282 = vld [vmem:[%s12 + $0x1] sm:$0x1]
    %v5283 = vlaneseq
    %v5284 = vshrl.u32 %v5283, 7
    %v5285 = vsub.s32 0, %v5284
    %v5286 = vrot.slane %v5282, %v5285
    %v5319 = vunpack.c.l.b16 %v5250
    %v5320 = vunpack.c.l.b16 %v5251
    %v5321 = vunpack.c.l.b16 %v5252
    %v5322 = vunpack.c.l.b16 %v5253
    %v5323 = vunpack.c.l.b16 %v5254
    %v5324 = vunpack.c.l.b16 %v5255
    %v5325 = vunpack.c.l.b16 %v5256
    %v5326 = vunpack.c.l.b16 %v5257
    %v5327 = vunpack.c.l.b16 %v5258
    %v5328 = vunpack.c.l.b16 %v5259
    %v5329 = vunpack.c.l.b16 %v5260
    %v5330 = vunpack.c.l.b16 %v5261
    %v5331 = vunpack.c.l.b16 %v5262
    %v5332 = vunpack.c.l.b16 %v5263
    %v5333 = vunpack.c.l.b16 %v5264
    %v5334 = vunpack.c.l.b16 %v5265
    %v5335 = vunpack.c.l.b16 %v5266
    %v5336 = vunpack.c.l.b16 %v5267
    %v5337 = vunpack.c.l.b16 %v5268
    %v5338 = vunpack.c.l.b16 %v5269
    %v5339 = vunpack.c.l.b16 %v5270
    %v5340 = vunpack.c.l.b16 %v5271
    %v5341 = vunpack.c.l.b16 %v5272
    %v5342 = vunpack.c.l.b16 %v5273
    %v5343 = vunpack.c.l.b16 %v5274
    %v5344 = vunpack.c.l.b16 %v5275
    %v5345 = vunpack.c.l.b16 %v5276
    %v5346 = vunpack.c.l.b16 %v5277
    %v5347 = vunpack.c.l.b16 %v5278
    %v5348 = vunpack.c.l.b16 %v5279
    %v5349 = vunpack.c.l.b16 %v5280
    %v5350 = vunpack.c.l.b16 %v5281
    %v5351 = vpack.c.b16 %v5320, %v5319
    %v5352 = vpack.c.b16 %v5322, %v5321
    %v5353 = vpack.c.b16 %v5324, %v5323
    %v5354 = vpack.c.b16 %v5326, %v5325
    %v5355 = vpack.c.b16 %v5328, %v5327
    %v5356 = vpack.c.b16 %v5330, %v5329
    %v5357 = vpack.c.b16 %v5332, %v5331
    %v5358 = vpack.c.b16 %v5334, %v5333
    %v5359 = vpack.c.b16 %v5336, %v5335
    %v5360 = vpack.c.b16 %v5338, %v5337
    %v5361 = vpack.c.b16 %v5340, %v5339
    %v5362 = vpack.c.b16 %v5342, %v5341
    %v5363 = vpack.c.b16 %v5344, %v5343
    %v5364 = vpack.c.b16 %v5346, %v5345
    %v5365 = vpack.c.b16 %v5348, %v5347
    %v5366 = vpack.c.b16 %v5350, %v5349
    %5383 = vmatprep.subr.bf16.mxu0 0
    %5384 = vmatpush1.bf16.msra.mxu0 %v5351
    %5385 = vmatprep.subr.bf16.mxu0 0
    %5386 = vmatpush1.bf16.msra.mxu0 %v5352
    %5387 = vmatprep.subr.bf16.mxu0 0
    %5388 = vmatpush1.bf16.msra.mxu0 %v5353
    %5389 = vmatprep.subr.bf16.mxu0 0
    %5390 = vmatpush1.bf16.msra.mxu0 %v5354
    %5391 = vmatprep.subr.bf16.mxu0 0
    %5392 = vmatpush1.bf16.msra.mxu0 %v5355
    %5393 = vmatprep.subr.bf16.mxu0 0
    %5394 = vmatpush1.bf16.msra.mxu0 %v5356
    %5395 = vmatprep.subr.bf16.mxu0 0
    %5396 = vmatpush1.bf16.msra.mxu0 %v5357
    %5397 = vmatprep.subr.bf16.mxu0 0
    %5398 = vmatpush1.bf16.msra.mxu0 %v5358
    %5399 = vmatprep.subr.bf16.mxu0 0
    %5400 = vmatpush1.bf16.msra.mxu0 %v5359
    %5401 = vmatprep.subr.bf16.mxu0 0
    %5402 = vmatpush1.bf16.msra.mxu0 %v5360
    %5403 = vmatprep.subr.bf16.mxu0 0
    %5404 = vmatpush1.bf16.msra.mxu0 %v5361
    %5405 = vmatprep.subr.bf16.mxu0 0
    %5406 = vmatpush1.bf16.msra.mxu0 %v5362
    %5407 = vmatprep.subr.bf16.mxu0 0
    %5408 = vmatpush1.bf16.msra.mxu0 %v5363
    %5409 = vmatprep.subr.bf16.mxu0 0
    %5410 = vmatpush1.bf16.msra.mxu0 %v5364
    %5411 = vmatprep.subr.bf16.mxu0 0
    %5412 = vmatpush1.bf16.msra.mxu0 %v5365
    %5413 = vmatprep.subr.bf16.mxu0 0
    %5414 = vmatpush1.bf16.msra.mxu0 %v5366
    %5415 = vmatprep.mubr.bf16.mxu0 %v5246
    %5416 = vmatmul.mubr.bf16.gmra.mrb[0].mxu0 %v5245
    %v5417 = vpop.f32.mrb[0].mxu0
    %v5418 = vadd.f32 %v5286, %v5417
    %v5419 = vpop.f32.mrb[0].mxu0
    %v5420 = vpop.f32.mrb[0].mxu0
    %v5421 = vadd.f32 %v5286, %v5420
    %v5422 = vpop.f32.mrb[0].mxu0
    %5423 = vmatprep.mubr.bf16.mxu0 %v5248
    %5424 = vmatmul.mubr.bf16.gmra.mrb[0].mxu0 %v5247
    %v5425 = vpop.f32.mrb[0].mxu0
    %v5426 = vadd.f32 %v5286, %v5425
    %v5427 = vpop.f32.mrb[0].mxu0
    %v5428 = vpop.f32.mrb[0].mxu0
    %v5429 = vadd.f32 %v5286, %v5428
    %v5430 = vpop.f32.mrb[0].mxu0
    %5431 = vdwg.mxu0
    %v5432 = vadd.f32 %v5134, %v5418
    %v5433 = vadd.f32 %v5135, %v5421
    %v5434 = vadd.f32 %v5136, %v5426
    %v5435 = vadd.f32 %v5137, %v5429
    %v5436 = vld [vmem:[%s13 + $0x1] sm:$0x1]
    %v5437 = vld [vmem:[%s14 + $0x1] sm:$0x1]
    %v5438 = vsel %vm173, %v5432, 0.0
    %5439 = vadd.xlane.f32.xlu0 %v5438
    %v5440 = vpop.xlane.xlu0 %5439
    %v5441 = vsel %vm173, %v5433, 0.0
    %5442 = vadd.xlane.f32.xlu0 %v5441
    %v5443 = vpop.xlane.xlu0 %5442
    %v5444 = vsel %vm173, %v5434, 0.0
    %5445 = vadd.xlane.f32.xlu0 %v5444
    %v5446 = vpop.xlane.xlu0 %5445
    %v5447 = vsel %vm173, %v5435, 0.0
    %5448 = vadd.xlane.f32.xlu0 %v5447
    %v5449 = vpop.xlane.xlu0 %5448
    %v5450 = vmul.f32 %v5440, %v2408
    %v5451 = vmul.f32 %v5443, %v2408
    %v5452 = vmul.f32 %v5446, %v2408
    %v5453 = vmul.f32 %v5449, %v2408
    %v5454 = vsub.f32 %v5432, %v5450
    %v5455 = vsub.f32 %v5433, %v5451
    %v5456 = vsub.f32 %v5434, %v5452
    %v5457 = vsub.f32 %v5435, %v5453
    %v5458 = vmul.f32 %v5454, %v5454
    %v5459 = vmul.f32 %v5455, %v5455
    %v5460 = vmul.f32 %v5456, %v5456
    %v5461 = vmul.f32 %v5457, %v5457
    %v5462 = vsel %vm173, %v5458, 0.0
    %5463 = vadd.xlane.f32.xlu0 %v5462
    %v5464 = vpop.xlane.xlu0 %5463
    %v5465 = vsel %vm173, %v5459, 0.0
    %5466 = vadd.xlane.f32.xlu0 %v5465
    %v5467 = vpop.xlane.xlu0 %5466
    %v5468 = vsel %vm173, %v5460, 0.0
    %5469 = vadd.xlane.f32.xlu0 %v5468
    %v5470 = vpop.xlane.xlu0 %5469
    %v5471 = vsel %vm173, %v5461, 0.0
    %5472 = vadd.xlane.f32.xlu0 %v5471
    %v5473 = vpop.xlane.xlu0 %5472
    %v5474 = vmul.f32 %v5464, %v2408
    %v5475 = vmul.f32 %v5467, %v2408
    %v5476 = vmul.f32 %v5470, %v2408
    %v5477 = vmul.f32 %v5473, %v2408
    %v5478 = vadd.f32 %v5474, 1e-05
    %v5479 = vadd.f32 %v5475, 1e-05
    %v5480 = vadd.f32 %v5476, 1e-05
    %v5481 = vadd.f32 %v5477, 1e-05
    %v5482 = vrsqrt.pop %v5478
    %v5483 = vrsqrt.pop %v5479
    %v5484 = vrsqrt.pop %v5480
    %v5485 = vrsqrt.pop %v5481
    %v5486 = vmul.f32 %v5454, %v5482
    %v5487 = vmul.f32 %v5455, %v5483
    %v5488 = vmul.f32 %v5456, %v5484
    %v5489 = vmul.f32 %v5457, %v5485
    %v5490 = vlaneseq
    %v5491 = vshrl.u32 %v5490, 7
    %v5492 = vsub.s32 0, %v5491
    %v5493 = vrot.slane %v5436, %v5492
    %v5494 = vmul.f32 %v5486, %v5493
    %v5495 = vmul.f32 %v5487, %v5493
    %v5496 = vmul.f32 %v5488, %v5493
    %v5497 = vmul.f32 %v5489, %v5493
    %v5498 = vlaneseq
    %v5499 = vshrl.u32 %v5498, 7
    %v5500 = vsub.s32 0, %v5499
    %v5501 = vrot.slane %v5437, %v5500
    %v5502 = vadd.f32 %v5494, %v5501
    %v5503 = vadd.f32 %v5495, %v5501
    %v5504 = vadd.f32 %v5496, %v5501
    %v5505 = vadd.f32 %v5497, %v5501
    %v5506 = vld [vmem:[%s15] sm:$0x1]
    %v5507 = vld [vmem:[%s16] sm:$0x1]
    %v5508 = vsel %vm173, %v5502, 0.0
    %5509 = vadd.xlane.f32.xlu0 %v5508
    %v5510 = vpop.xlane.xlu0 %5509
    %v5511 = vsel %vm173, %v5503, 0.0
    %5512 = vadd.xlane.f32.xlu0 %v5511
    %v5513 = vpop.xlane.xlu0 %5512
    %v5514 = vsel %vm173, %v5504, 0.0
    %5515 = vadd.xlane.f32.xlu0 %v5514
    %v5516 = vpop.xlane.xlu0 %5515
    %v5517 = vsel %vm173, %v5505, 0.0
    %5518 = vadd.xlane.f32.xlu0 %v5517
    %v5519 = vpop.xlane.xlu0 %5518
    %v5520 = vmul.f32 %v5510, %v2408
    %v5521 = vmul.f32 %v5513, %v2408
    %v5522 = vmul.f32 %v5516, %v2408
    %v5523 = vmul.f32 %v5519, %v2408
    %v5524 = vsub.f32 %v5502, %v5520
    %v5525 = vsub.f32 %v5503, %v5521
    %v5526 = vsub.f32 %v5504, %v5522
    %v5527 = vsub.f32 %v5505, %v5523
    %v5528 = vmul.f32 %v5524, %v5524
    %v5529 = vmul.f32 %v5525, %v5525
    %v5530 = vmul.f32 %v5526, %v5526
    %v5531 = vmul.f32 %v5527, %v5527
    %v5532 = vsel %vm173, %v5528, 0.0
    %5533 = vadd.xlane.f32.xlu0 %v5532
    %v5534 = vpop.xlane.xlu0 %5533
    %v5535 = vsel %vm173, %v5529, 0.0
    %5536 = vadd.xlane.f32.xlu0 %v5535
    %v5537 = vpop.xlane.xlu0 %5536
    %v5538 = vsel %vm173, %v5530, 0.0
    %5539 = vadd.xlane.f32.xlu0 %v5538
    %v5540 = vpop.xlane.xlu0 %5539
    %v5541 = vsel %vm173, %v5531, 0.0
    %5542 = vadd.xlane.f32.xlu0 %v5541
    %v5543 = vpop.xlane.xlu0 %5542
    %v5544 = vmul.f32 %v5534, %v2408
    %v5545 = vmul.f32 %v5537, %v2408
    %v5546 = vmul.f32 %v5540, %v2408
    %v5547 = vmul.f32 %v5543, %v2408
    %v5548 = vadd.f32 %v5544, 1e-05
    %v5549 = vadd.f32 %v5545, 1e-05
    %v5550 = vadd.f32 %v5546, 1e-05
    %v5551 = vadd.f32 %v5547, 1e-05
    %v5552 = vrsqrt.pop %v5548
    %v5553 = vrsqrt.pop %v5549
    %v5554 = vrsqrt.pop %v5550
    %v5555 = vrsqrt.pop %v5551
    %v5556 = vmul.f32 %v5524, %v5552
    %v5557 = vmul.f32 %v5525, %v5553
    %v5558 = vmul.f32 %v5526, %v5554
    %v5559 = vmul.f32 %v5527, %v5555
    %v5561 = vlaneseq
    %v5562 = vshrl.u32 %v5561, 7
    %v5563 = vsub.s32 0, %v5562
    %v5564 = vrot.slane %v5506, %v5563
    %v5566 = vmul.f32 %v5556, %v5564
    %v5567 = vmul.f32 %v5557, %v5564
    %v5568 = vmul.f32 %v5558, %v5564
    %v5569 = vmul.f32 %v5559, %v5564
    %v5571 = vlaneseq
    %v5572 = vshrl.u32 %v5571, 7
    %v5573 = vsub.s32 0, %v5572
    %v5574 = vrot.slane %v5507, %v5573
    %v5576 = vadd.f32 %v5566, %v5574
    %v5577 = vadd.f32 %v5567, %v5574
    %v5578 = vadd.f32 %v5568, %v5574
    %v5579 = vadd.f32 %v5569, %v5574
    %v5580 = vpack.c.bf16 %v5577, %v5576
    %v5581 = vpack.c.bf16 %v5579, %v5578
    %v5582 = vld [vmem:[%s17] sm:$0xf]
    %v5583 = vld [vmem:[%s17 + $0x4] sm:$0xf]
    %v5584 = vld [vmem:[%s17 + $0x8] sm:$0xf]
    %v5585 = vld [vmem:[%s17 + $0xc] sm:$0xf]
    %v5586 = vld [vmem:[%s18] sm:$0x1]
    %v5588 = vlaneseq
    %v5589 = vshrl.u32 %v5588, 7
    %v5590 = vsub.s32 0, %v5589
    %v5591 = vrot.slane %v5586, %v5590
    %v5597 = vunpack.c.l.b16 %v5582
    %v5598 = vunpack.c.l.b16 %v5583
    %v5599 = vunpack.c.l.b16 %v5584
    %v5600 = vunpack.c.l.b16 %v5585
    %v5601 = vpack.c.b16 %v5598, %v5597
    %v5602 = vpack.c.b16 %v5600, %v5599
    %v5606 = vsel %vm173, %v5580, 0
    %v5609 = vsel %vm173, %v5581, 0
    %5611 = vmatprep.subr.bf16.mxu0 0
    %5612 = vmatpush1.bf16.msra.mxu0 %v5601
    %5613 = vmatprep.subr.bf16.mxu0 0
    %5614 = vmatpush1.bf16.msra.mxu0 %v5602
    %5615 = vmatprep.subr.bf16.mxu0 0
    %5616 = vmatpush1.bf16.msra.mxu0 0
    %5617 = vmatprep.subr.bf16.mxu0 0
    %5618 = vmatpush1.bf16.msra.mxu0 0
    %5619 = vmatprep.subr.bf16.mxu0 0
    %5620 = vmatpush1.bf16.msra.mxu0 0
    %5621 = vmatprep.subr.bf16.mxu0 0
    %5622 = vmatpush1.bf16.msra.mxu0 0
    %5623 = vmatprep.subr.bf16.mxu0 0
    %5624 = vmatpush1.bf16.msra.mxu0 0
    %5625 = vmatprep.subr.bf16.mxu0 0
    %5626 = vmatpush1.bf16.msra.mxu0 0
    %5627 = vmatprep.subr.bf16.mxu0 0
    %5628 = vmatpush1.bf16.msra.mxu0 0
    %5629 = vmatprep.subr.bf16.mxu0 0
    %5630 = vmatpush1.bf16.msra.mxu0 0
    %5631 = vmatprep.subr.bf16.mxu0 0
    %5632 = vmatpush1.bf16.msra.mxu0 0
    %5633 = vmatprep.subr.bf16.mxu0 0
    %5634 = vmatpush1.bf16.msra.mxu0 0
    %5635 = vmatprep.subr.bf16.mxu0 0
    %5636 = vmatpush1.bf16.msra.mxu0 0
    %5637 = vmatprep.subr.bf16.mxu0 0
    %5638 = vmatpush1.bf16.msra.mxu0 0
    %5639 = vmatprep.subr.bf16.mxu0 0
    %5640 = vmatpush1.bf16.msra.mxu0 0
    %5641 = vmatprep.subr.bf16.mxu0 0
    %5642 = vmatpush1.bf16.msra.mxu0 0
    %5643 = vmatprep.mubr.bf16.mxu0 0
    %5644 = vmatmul.mubr.bf16.gmra.mrb[0].mxu0 %v5606
    %v5645 = vpop.f32.mrb[0].mxu0
    %v5646 = vadd.f32 %v5591, %v5645
    %v5647 = vpop.f32.mrb[0].mxu0
    %v5648 = vpop.f32.mrb[0].mxu0
    %v5649 = vadd.f32 %v5591, %v5648
    %v5650 = vpop.f32.mrb[0].mxu0
    %5651 = vmatprep.mubr.bf16.mxu0 0
    %5652 = vmatmul.mubr.bf16.gmra.mrb[0].mxu0 %v5609
    %v5653 = vpop.f32.mrb[0].mxu0
    %v5654 = vadd.f32 %v5591, %v5653
    %v5655 = vpop.f32.mrb[0].mxu0
    %v5656 = vpop.f32.mrb[0].mxu0
    %v5657 = vadd.f32 %v5591, %v5656
    %v5658 = vpop.f32.mrb[0].mxu0
    %5659 = vdwg.mxu0
    %5660 = vst [vmem:[#allocation2] sm:$0xff] %v5646
    %5661 = vst [vmem:[#allocation2 + $0x8] sm:$0xff] %v5649
    %5662 = vst [vmem:[#allocation2 + $0x10] sm:$0xff] %v5654
    %5663 = vst [vmem:[#allocation2 + $0x18] sm:$0xff] %v5657
    // Predicated region
    $region78: #{tpu_custom_call.1} parent=1 // pred_check
      _
    $region79: #{tpu_custom_call.1} parent=1 // pred_check_branch
      %5665 = sbr.rel (0) target = $region81
    $region80: #{tpu_custom_call.1} parent=1 // pred_region
      %s5667 = ssub.s32 512, 512
      %5668 = vsyncadd [#allocation3], %s5667
      %s5669 = sshll.u32 [#allocation2], 4
      %s5670 = int_to_ptr.vmem [resolvable:$true] %s5669
      %5675 = dma.vmem_to_hbm [thread:$0]  %s5670, 512, %s19, [#allocation3], 128, 128, 8
    $region81: #{tpu_custom_call.1} parent=1 // pred_fallthru
      _
    // Predicated region
    $region82: #{tpu_custom_call.1} parent=1 // pred_check
      _
    $region83: #{tpu_custom_call.1} parent=1 // pred_check_branch
      %5677 = sbr.rel (0) target = $region85
    $region84: #{tpu_custom_call.1} parent=1 // pred_region
      %5678 = dma.done [#allocation3], 512
    $region85: #{tpu_custom_call.1} parent=1 // pred_fallthru
      _
    %5679 = vsyncpa [#allocation3], 1

</llo_original>
